<compile_context>
chip_gen: v7x
topology: tpu7x:2x2x1
jax: 0.10.0
libtpu: 0.0.40
codegen_flags: <defaults>
</compile_context>

<pallas_src>
import functools

import jax
import jax.numpy as jnp
from jax import lax
from jax.experimental import pallas as pl
from jax.experimental.pallas import tpu as pltpu

EPS = 1e-5  # PyTorch default eps for LayerNorm and BatchNorm1d


# ----------------------------- shared math (kernel + reference) -----------------------------------

def _layernorm(x, w, b):
    mu = jnp.mean(x, axis=-1, keepdims=True)
    var = jnp.mean((x - mu) ** 2, axis=-1, keepdims=True)
    return (x - mu) * lax.rsqrt(var + EPS) * w + b


def _silu(x):
    return x * jax.nn.sigmoid(x)


def ffm_math(x, lnw, lnb, w1t, b1, w2t, b2):
    """FeedForwardModule body (no residual): LN -> Linear -> SiLU -> Linear."""
    xn = _layernorm(x, lnw, lnb)
    h = _silu(jnp.dot(xn, w1t, preferred_element_type=jnp.float32) + b1)
    return jnp.dot(h, w2t, preferred_element_type=jnp.float32) + b2


# ----------------------------- fused Pallas kernel -------------------------------------------------

def conformer_kernel(
    x_ref,
    # ffm1
    f1_lnw, f1_lnb, f1_w1t, f1_b1, f1_w2t, f1_b2,
    # attention
    a_lnw, a_lnb, a_wqt, a_bq, a_wkt, a_bk, a_wvt, a_bv, a_wot, a_bo,
    # conformer conv module
    c_lnw, c_lnb, c_w1t, c_b1, c_wdw, c_bdw, c_bng, c_bnb, c_w2t, c_b2,
    # ffm2
    f2_lnw, f2_lnb, f2_w1t, f2_b1, f2_w2t, f2_b2,
    # post norm
    pn_w, pn_b,
    o_ref,
    *, n_head, ksize):
    T, B, C = x_ref.shape
    M = T * B
    x = x_ref[...].reshape(M, C)                       # flattened rows: m = t*B + b

    # ---------------- FFM1: x = x + 0.5 * FFN(LN(x)) ----------------
    x = x + 0.5 * ffm_math(x, f1_lnw[...], f1_lnb[...], f1_w1t[...], f1_b1[...],
                           f1_w2t[...], f1_b2[...])

    # ---------------- Attention (sequence = T, batch = B), transpose-free ----------------
    xn = _layernorm(x, a_lnw[...], a_lnb[...])
    q = jnp.dot(xn, a_wqt[...], preferred_element_type=jnp.float32) + a_bq[...]
    k = jnp.dot(xn, a_wkt[...], preferred_element_type=jnp.float32) + a_bk[...]
    v = jnp.dot(xn, a_wvt[...], preferred_element_type=jnp.float32) + a_bv[...]
    dh = C // n_head
    scale = 1.0 / (dh ** 0.5)
    # Rows only attend within their own batch element: m = t*B + b -> batch index = m % B.
    row_b = lax.broadcasted_iota(jnp.int32, (M, M), 0) % B
    col_b = lax.broadcasted_iota(jnp.int32, (M, M), 1) % B
    same_batch = row_b == col_b
    heads = []
    for h in range(n_head):
        sl = slice(h * dh, (h + 1) * dh)
        qh = q[:, sl] * scale
        kh = k[:, sl]
        vh = v[:, sl]
        s = jnp.einsum('md,nd->mn', qh, kh, preferred_element_type=jnp.float32)
        s = jnp.where(same_batch, s, -1e30)
        s = s - jnp.max(s, axis=-1, keepdims=True)
        p = jnp.exp(s)
        p = p * pl.reciprocal(jnp.sum(p, axis=-1, keepdims=True), approx=True)
        heads.append(jnp.dot(p, vh, preferred_element_type=jnp.float32))
    attn_o = jnp.concatenate(heads, axis=-1)                       # (M, C): concat heads first
    x = x + jnp.dot(attn_o, a_wot[...], preferred_element_type=jnp.float32) + a_bo[...]

    # ---------------- Conformer conv module (conv batch = T, conv length = B) ----------------
    inner = c_wdw.shape[1]
    pad = (ksize - 1) // 2
    xn = _layernorm(x, c_lnw[...], c_lnb[...])
    y = jnp.dot(xn, c_w1t[...], preferred_element_type=jnp.float32) + c_b1[...]   # (M, 2*inner)
    z = y[:, :inner] * jax.nn.sigmoid(y[:, inner:])                                # GLU (channels)
    z3 = z.reshape(T, B, inner)
    # Only taps whose window overlaps [0, B) can contribute: 2*min(pad, B-1)+1 of ksize taps.
    p_lo = min(pad, B - 1)
    p_hi = min(ksize - 1 - pad, B - 1)
    zq = jnp.concatenate(
        [jnp.zeros((T, p_lo, inner), jnp.float32), z3,
         jnp.zeros((T, p_hi, inner), jnp.float32)], axis=1)
    wdw = c_wdw[...]
    acc = jnp.zeros((T, B, inner), jnp.float32)
    for o in range(-p_lo, p_hi + 1):                               # 15 taps for B=8, k=31
        acc = acc + zq[:, o + p_lo:o + p_lo + B, :] * wdw[o + pad]
    acc = acc.reshape(M, inner) + c_bdw[...]
    # BatchNorm1d, training-mode batch statistics (biased var) over (batch, length) == all rows.
    mean = jnp.mean(acc, axis=0, keepdims=True)
    var = jnp.mean((acc - mean) ** 2, axis=0, keepdims=True)
    hbn = (acc - mean) * lax.rsqrt(var + EPS) * c_bng[...] + c_bnb[...]
    hbn = _silu(hbn)
    x = x + jnp.dot(hbn, c_w2t[...], preferred_element_type=jnp.float32) + c_b2[...]

    # ---------------- FFM2 + post LayerNorm ----------------
    x = x + 0.5 * ffm_math(x, f2_lnw[...], f2_lnb[...], f2_w1t[...], f2_b1[...],
                           f2_w2t[...], f2_b2[...])
    x = _layernorm(x, pn_w[...], pn_b[...])

    o_ref[...] = x.reshape(T, B, C).astype(o_ref.dtype)


# ----------------------------- pallas_call wrapper --------------------------------------------------

def conformer_block_pallas(x, params, *, n_head=8, ksize=31):
    T, B, C = x.shape
    f1, a, c, f2, pn = (params['ffm1'], params['attn'], params['ccm'],
                        params['ffm2'], params['post_norm'])
    r = lambda v: v.reshape(1, -1)   # present 1-D params as (1, N) rows for 2-D broadcasting

    args = [
        x,
        r(f1['lnw']), r(f1['lnb']), f1['w1t'], r(f1['b1']), f1['w2t'], r(f1['b2']),
        r(a['lnw']), r(a['lnb']), a['wqt'], r(a['bq']), a['wkt'], r(a['bk']),
        a['wvt'], r(a['bv']), a['wot'], r(a['bo']),
        r(c['lnw']), r(c['lnb']), c['w1t'], r(c['b1']), c['wdw'], r(c['bdw']),
        r(c['bng']), r(c['bnb']), c['w2t'], r(c['b2']),
        r(f2['lnw']), r(f2['lnb']), f2['w1t'], r(f2['b1']), f2['w2t'], r(f2['b2']),
        r(pn['w']), r(pn['b']),
    ]

    def full_spec(arr):
        nd = arr.ndim
        return pl.BlockSpec(arr.shape, lambda i, _nd=nd: (0,) * _nd)

    kernel = functools.partial(conformer_kernel, n_head=n_head, ksize=ksize)
    return pl.pallas_call(
        kernel,
        out_shape=jax.ShapeDtypeStruct((T, B, C), x.dtype),
        grid=(1,),                              # everything fits in VMEM: one fused invocation
        in_specs=[full_spec(arr) for arr in args],
        out_specs=pl.BlockSpec((T, B, C), lambda i: (0, 0, 0)),
        compiler_params=pltpu.CompilerParams(dimension_semantics=("arbitrary",)),
    )(*args)


# ----------------------------- pure-JAX reference (same math, no Pallas) ---------------------------

def attn_math_ref(xb, lnw, lnb, wqt, bq, wkt, bk, wvt, bv, wot, bo, *, n_head):
    xn = _layernorm(xb, lnw, lnb)
    q = jnp.dot(xn, wqt, preferred_element_type=jnp.float32) + bq
    k = jnp.dot(xn, wkt, preferred_element_type=jnp.float32) + bk
    v = jnp.dot(xn, wvt, preferred_element_type=jnp.float32) + bv
    e = xb.shape[-1]
    dh = e // n_head
    scale = 1.0 / (dh ** 0.5)
    acc = jnp.zeros(xb.shape, jnp.float32)
    for h in range(n_head):
        sl = slice(h * dh, (h + 1) * dh)
        qh = q[..., sl] * scale
        kh = k[..., sl]
        vh = v[..., sl]
        s = jnp.einsum('nld,nmd->nlm', qh, kh, preferred_element_type=jnp.float32)
        s = s - jnp.max(s, axis=-1, keepdims=True)
        p = jnp.exp(s)
        p = p / jnp.sum(p, axis=-1, keepdims=True)
        oh = jnp.einsum('nlm,nmd->nld', p, vh, preferred_element_type=jnp.float32)
        acc = acc + jnp.dot(oh, wot[sl, :], preferred_element_type=jnp.float32)
    return xb + acc + bo


def ccm_math_ref(x, lnw, lnb, w1t, b1, wdw, bdw, bng, bnb, w2t, b2, *, ksize, inner):
    xn = _layernorm(x, lnw, lnb)
    y = jnp.dot(xn, w1t, preferred_element_type=jnp.float32) + b1
    z = y[..., :inner] * jax.nn.sigmoid(y[..., inner:])
    bsz, n, _ = x.shape
    pad = (ksize - 1) // 2
    zp = jnp.concatenate(
        [jnp.zeros((bsz, pad, inner), z.dtype), z, jnp.zeros((bsz, pad, inner), z.dtype)],
        axis=1)
    acc = jnp.zeros((bsz, n, inner), jnp.float32)
    for kk in range(ksize):
        acc = acc + zp[:, kk:kk + n, :] * wdw[kk, :]
    acc = acc + bdw
    mean = jnp.mean(acc, axis=(0, 1), keepdims=True)
    var = jnp.mean((acc - mean) ** 2, axis=(0, 1), keepdims=True)
    h = (acc - mean) * lax.rsqrt(var + EPS) * bng + bnb
    h = _silu(h)
    out = jnp.dot(h, w2t, preferred_element_type=jnp.float32) + b2
    return x + out


def conformer_block_ref(x, params, *, n_head=8, ksize=31):
    f1 = params['ffm1']
    x = x + 0.5 * ffm_math(x, f1['lnw'], f1['lnb'], f1['w1t'], f1['b1'], f1['w2t'], f1['b2'])
    a = params['attn']
    xb = jnp.transpose(x, (1, 0, 2))
    xb = attn_math_ref(xb, a['lnw'], a['lnb'], a['wqt'], a['bq'], a['wkt'], a['bk'],
                       a['wvt'], a['bv'], a['wot'], a['bo'], n_head=n_head)
    x = jnp.transpose(xb, (1, 0, 2))
    c = params['ccm']
    x = ccm_math_ref(x, c['lnw'], c['lnb'], c['w1t'], c['b1'], c['wdw'], c['bdw'],
                     c['bng'], c['bnb'], c['w2t'], c['b2'], ksize=ksize,
                     inner=c['wdw'].shape[1])
    f2 = params['ffm2']
    x = x + 0.5 * ffm_math(x, f2['lnw'], f2['lnb'], f2['w1t'], f2['b1'], f2['w2t'], f2['b2'])
    pn = params['post_norm']
    return _layernorm(x, pn['w'], pn['b'])


# ----------------------------- deterministic parameter init ----------------------------------------

def init_params(key, dim, n_head=8, ffm_mult=4, expansion=2, ksize=31):
    hidden = dim * ffm_mult
    inner = dim * expansion
    keys = iter(jax.random.split(key, 32))

    def w(shape, scale=0.05):
        return (scale * jax.random.normal(next(keys), shape)).astype(jnp.float32)

    def ffm():
        return dict(lnw=jnp.ones((dim,), jnp.float32), lnb=jnp.zeros((dim,), jnp.float32),
                    w1t=w((dim, hidden)), b1=w((hidden,), 0.01),
                    w2t=w((hidden, dim)), b2=w((dim,), 0.01))

    attn = dict(lnw=jnp.ones((dim,), jnp.float32), lnb=jnp.zeros((dim,), jnp.float32),
                wqt=w((dim, dim)), bq=w((dim,), 0.01),
                wkt=w((dim, dim)), bk=w((dim,), 0.01),
                wvt=w((dim, dim)), bv=w((dim,), 0.01),
                wot=w((dim, dim)), bo=w((dim,), 0.01))

    ccm = dict(lnw=jnp.ones((dim,), jnp.float32), lnb=jnp.zeros((dim,), jnp.float32),
               w1t=w((dim, 2 * inner)), b1=w((2 * inner,), 0.01),
               wdw=w((ksize, inner), 0.1), bdw=w((inner,), 0.01),
               bng=jnp.ones((inner,), jnp.float32), bnb=jnp.zeros((inner,), jnp.float32),
               w2t=w((inner, dim)), b2=w((dim,), 0.01))

    return dict(ffm1=ffm(), attn=attn, ccm=ccm, ffm2=ffm(),
                post_norm=dict(w=jnp.ones((dim,), jnp.float32), b=jnp.zeros((dim,), jnp.float32)))


# ----------------------------- main ----------------------------------------------------------------

if __name__ == "__main__":
    key = jax.random.PRNGKey(0)
    kx, kp = jax.random.split(key)

    dim = 32          # embedding dim (divisible by n_head=8)
    T, B = 16, 8      # attention: seq=16, batch=8 ; conv module: conv-batch=16, length=8

    x = jax.random.normal(kx, (T, B, dim), dtype=jnp.float32)
    params = init_params(kp, dim)

    y = conformer_block_pallas(x, params, n_head=8, ksize=31)
    y = jax.block_until_ready(y)

    y_ref = conformer_block_ref(x, params, n_head=8, ksize=31)
    assert y.shape == x.shape
    assert bool(jnp.all(jnp.isfinite(y)))
    assert bool(jnp.allclose(y, y_ref, atol=2e-2, rtol=2e-2))

    print("KERNEL_OK")
</pallas_src>

<mosaic_0001>
module attributes {stable_mosaic.version = 11 : i64} {
  func.func @conformer_kernel(%arg0: i32, %arg1: memref<16x8x32xf32, #tpu.memory_space<vmem>>, %arg2: memref<1x32xf32, #tpu.memory_space<vmem>>, %arg3: memref<1x32xf32, #tpu.memory_space<vmem>>, %arg4: memref<32x128xf32, #tpu.memory_space<vmem>>, %arg5: memref<1x128xf32, #tpu.memory_space<vmem>>, %arg6: memref<128x32xf32, #tpu.memory_space<vmem>>, %arg7: memref<1x32xf32, #tpu.memory_space<vmem>>, %arg8: memref<1x32xf32, #tpu.memory_space<vmem>>, %arg9: memref<1x32xf32, #tpu.memory_space<vmem>>, %arg10: memref<32x32xf32, #tpu.memory_space<vmem>>, %arg11: memref<1x32xf32, #tpu.memory_space<vmem>>, %arg12: memref<32x32xf32, #tpu.memory_space<vmem>>, %arg13: memref<1x32xf32, #tpu.memory_space<vmem>>, %arg14: memref<32x32xf32, #tpu.memory_space<vmem>>, %arg15: memref<1x32xf32, #tpu.memory_space<vmem>>, %arg16: memref<32x32xf32, #tpu.memory_space<vmem>>, %arg17: memref<1x32xf32, #tpu.memory_space<vmem>>, %arg18: memref<1x32xf32, #tpu.memory_space<vmem>>, %arg19: memref<1x32xf32, #tpu.memory_space<vmem>>, %arg20: memref<32x128xf32, #tpu.memory_space<vmem>>, %arg21: memref<1x128xf32, #tpu.memory_space<vmem>>, %arg22: memref<31x64xf32, #tpu.memory_space<vmem>>, %arg23: memref<1x64xf32, #tpu.memory_space<vmem>>, %arg24: memref<1x64xf32, #tpu.memory_space<vmem>>, %arg25: memref<1x64xf32, #tpu.memory_space<vmem>>, %arg26: memref<64x32xf32, #tpu.memory_space<vmem>>, %arg27: memref<1x32xf32, #tpu.memory_space<vmem>>, %arg28: memref<1x32xf32, #tpu.memory_space<vmem>>, %arg29: memref<1x32xf32, #tpu.memory_space<vmem>>, %arg30: memref<32x128xf32, #tpu.memory_space<vmem>>, %arg31: memref<1x128xf32, #tpu.memory_space<vmem>>, %arg32: memref<128x32xf32, #tpu.memory_space<vmem>>, %arg33: memref<1x32xf32, #tpu.memory_space<vmem>>, %arg34: memref<1x32xf32, #tpu.memory_space<vmem>>, %arg35: memref<1x32xf32, #tpu.memory_space<vmem>>, %arg36: memref<16x8x32xf32, #tpu.memory_space<vmem>>) attributes {dimension_semantics = [#tpu.dimension_semantics<arbitrary>], iteration_bounds = array<i64: 1>, scalar_prefetch = 0 : i64, scratch_operands = 0 : i64, tpu.core_type = #tpu.core_type<tc>, window_params = [{pipeline_mode = #tpu.pipeline_mode<synchronous>, transform_indices = @transform_0, window_bounds = array<i64: 16, 8, 32>}, {pipeline_mode = #tpu.pipeline_mode<synchronous>, transform_indices = @transform_1, window_bounds = array<i64: 1, 32>}, {pipeline_mode = #tpu.pipeline_mode<synchronous>, transform_indices = @transform_2, window_bounds = array<i64: 1, 32>}, {pipeline_mode = #tpu.pipeline_mode<synchronous>, transform_indices = @transform_3, window_bounds = array<i64: 32, 128>}, {pipeline_mode = #tpu.pipeline_mode<synchronous>, transform_indices = @transform_4, window_bounds = array<i64: 1, 128>}, {pipeline_mode = #tpu.pipeline_mode<synchronous>, transform_indices = @transform_5, window_bounds = array<i64: 128, 32>}, {pipeline_mode = #tpu.pipeline_mode<synchronous>, transform_indices = @transform_6, window_bounds = array<i64: 1, 32>}, {pipeline_mode = #tpu.pipeline_mode<synchronous>, transform_indices = @transform_7, window_bounds = array<i64: 1, 32>}, {pipeline_mode = #tpu.pipeline_mode<synchronous>, transform_indices = @transform_8, window_bounds = array<i64: 1, 32>}, {pipeline_mode = #tpu.pipeline_mode<synchronous>, transform_indices = @transform_9, window_bounds = array<i64: 32, 32>}, {pipeline_mode = #tpu.pipeline_mode<synchronous>, transform_indices = @transform_10, window_bounds = array<i64: 1, 32>}, {pipeline_mode = #tpu.pipeline_mode<synchronous>, transform_indices = @transform_11, window_bounds = array<i64: 32, 32>}, {pipeline_mode = #tpu.pipeline_mode<synchronous>, transform_indices = @transform_12, window_bounds = array<i64: 1, 32>}, {pipeline_mode = #tpu.pipeline_mode<synchronous>, transform_indices = @transform_13, window_bounds = array<i64: 32, 32>}, {pipeline_mode = #tpu.pipeline_mode<synchronous>, transform_indices = @transform_14, window_bounds = array<i64: 1, 32>}, {pipeline_mode = #tpu.pipeline_mode<synchronous>, transform_indices = @transform_15, window_bounds = array<i64: 32, 32>}, {pipeline_mode = #tpu.pipeline_mode<synchronous>, transform_indices = @transform_16, window_bounds = array<i64: 1, 32>}, {pipeline_mode = #tpu.pipeline_mode<synchronous>, transform_indices = @transform_17, window_bounds = array<i64: 1, 32>}, {pipeline_mode = #tpu.pipeline_mode<synchronous>, transform_indices = @transform_18, window_bounds = array<i64: 1, 32>}, {pipeline_mode = #tpu.pipeline_mode<synchronous>, transform_indices = @transform_19, window_bounds = array<i64: 32, 128>}, {pipeline_mode = #tpu.pipeline_mode<synchronous>, transform_indices = @transform_20, window_bounds = array<i64: 1, 128>}, {pipeline_mode = #tpu.pipeline_mode<synchronous>, transform_indices = @transform_21, window_bounds = array<i64: 31, 64>}, {pipeline_mode = #tpu.pipeline_mode<synchronous>, transform_indices = @transform_22, window_bounds = array<i64: 1, 64>}, {pipeline_mode = #tpu.pipeline_mode<synchronous>, transform_indices = @transform_23, window_bounds = array<i64: 1, 64>}, {pipeline_mode = #tpu.pipeline_mode<synchronous>, transform_indices = @transform_24, window_bounds = array<i64: 1, 64>}, {pipeline_mode = #tpu.pipeline_mode<synchronous>, transform_indices = @transform_25, window_bounds = array<i64: 64, 32>}, {pipeline_mode = #tpu.pipeline_mode<synchronous>, transform_indices = @transform_26, window_bounds = array<i64: 1, 32>}, {pipeline_mode = #tpu.pipeline_mode<synchronous>, transform_indices = @transform_27, window_bounds = array<i64: 1, 32>}, {pipeline_mode = #tpu.pipeline_mode<synchronous>, transform_indices = @transform_28, window_bounds = array<i64: 1, 32>}, {pipeline_mode = #tpu.pipeline_mode<synchronous>, transform_indices = @transform_29, window_bounds = array<i64: 32, 128>}, {pipeline_mode = #tpu.pipeline_mode<synchronous>, transform_indices = @transform_30, window_bounds = array<i64: 1, 128>}, {pipeline_mode = #tpu.pipeline_mode<synchronous>, transform_indices = @transform_31, window_bounds = array<i64: 128, 32>}, {pipeline_mode = #tpu.pipeline_mode<synchronous>, transform_indices = @transform_32, window_bounds = array<i64: 1, 32>}, {pipeline_mode = #tpu.pipeline_mode<synchronous>, transform_indices = @transform_33, window_bounds = array<i64: 1, 32>}, {pipeline_mode = #tpu.pipeline_mode<synchronous>, transform_indices = @transform_34, window_bounds = array<i64: 1, 32>}, {pipeline_mode = #tpu.pipeline_mode<synchronous>, transform_indices = @transform_35, window_bounds = array<i64: 16, 8, 32>}]} {
    %c0 = arith.constant 0 : index
    %c0_0 = arith.constant 0 : index
    %c0_1 = arith.constant 0 : index
    %0 = vector.load %arg1[%c0, %c0_0, %c0_1] : memref<16x8x32xf32, #tpu.memory_space<vmem>>, vector<16x8x32xf32>
    %1 = vector.shape_cast %0 : vector<16x8x32xf32> to vector<128x32xf32>
    %c0_2 = arith.constant 0 : index
    %c0_3 = arith.constant 0 : index
    %2 = vector.load %arg2[%c0_2, %c0_3] : memref<1x32xf32, #tpu.memory_space<vmem>>, vector<1x32xf32>
    %c0_4 = arith.constant 0 : index
    %c0_5 = arith.constant 0 : index
    %3 = vector.load %arg3[%c0_4, %c0_5] : memref<1x32xf32, #tpu.memory_space<vmem>>, vector<1x32xf32>
    %c0_6 = arith.constant 0 : index
    %c0_7 = arith.constant 0 : index
    %4 = vector.load %arg4[%c0_6, %c0_7] : memref<32x128xf32, #tpu.memory_space<vmem>>, vector<32x128xf32>
    %c0_8 = arith.constant 0 : index
    %c0_9 = arith.constant 0 : index
    %5 = vector.load %arg5[%c0_8, %c0_9] : memref<1x128xf32, #tpu.memory_space<vmem>>, vector<1x128xf32>
    %c0_10 = arith.constant 0 : index
    %c0_11 = arith.constant 0 : index
    %6 = vector.load %arg6[%c0_10, %c0_11] : memref<128x32xf32, #tpu.memory_space<vmem>>, vector<128x32xf32>
    %c0_12 = arith.constant 0 : index
    %c0_13 = arith.constant 0 : index
    %7 = vector.load %arg7[%c0_12, %c0_13] : memref<1x32xf32, #tpu.memory_space<vmem>>, vector<1x32xf32>
    %cst = arith.constant dense<0.000000e+00> : vector<128xf32>
    %8 = vector.multi_reduction <add>, %1, %cst [1] : vector<128x32xf32> to vector<128xf32>
    %9 = vector.shape_cast %8 : vector<128xf32> to vector<128x1xf32>
    %cst_14 = arith.constant 3.200000e+01 : f32
    %10 = vector.broadcast %cst_14 : f32 to vector<128x1xf32>
    %11 = arith.divf %9, %10 : vector<128x1xf32>
    %12 = vector.broadcast %11 : vector<128x1xf32> to vector<128x32xf32>
    %13 = arith.subf %1, %12 : vector<128x32xf32>
    %14 = arith.mulf %13, %13 : vector<128x32xf32>
    %cst_15 = arith.constant dense<0.000000e+00> : vector<128xf32>
    %15 = vector.multi_reduction <add>, %14, %cst_15 [1] : vector<128x32xf32> to vector<128xf32>
    %16 = vector.shape_cast %15 : vector<128xf32> to vector<128x1xf32>
    %cst_16 = arith.constant 3.200000e+01 : f32
    %17 = vector.broadcast %cst_16 : f32 to vector<128x1xf32>
    %18 = arith.divf %16, %17 : vector<128x1xf32>
    %19 = vector.broadcast %11 : vector<128x1xf32> to vector<128x32xf32>
    %20 = arith.subf %1, %19 : vector<128x32xf32>
    %cst_17 = arith.constant 9.99999974E-6 : f32
    %21 = vector.broadcast %cst_17 : f32 to vector<128x1xf32>
    %22 = arith.addf %18, %21 : vector<128x1xf32>
    %23 = math.rsqrt %22 : vector<128x1xf32>
    %24 = vector.broadcast %23 : vector<128x1xf32> to vector<128x32xf32>
    %25 = arith.mulf %20, %24 : vector<128x32xf32>
    %26 = vector.broadcast %2 : vector<1x32xf32> to vector<128x32xf32>
    %27 = arith.mulf %25, %26 : vector<128x32xf32>
    %28 = vector.broadcast %3 : vector<1x32xf32> to vector<128x32xf32>
    %29 = arith.addf %27, %28 : vector<128x32xf32>
    %cst_18 = arith.constant dense<0.000000e+00> : vector<128x128xf32>
    %30 = tpu.matmul %29, %4, %cst_18 {dimension_numbers = #tpu.dot_dimension_numbers<[1], [0], [0], [1], [0, 0, 1, 1], [], []>} : vector<128x32xf32>, vector<32x128xf32>, vector<128x128xf32> -> vector<128x128xf32>
    %31 = vector.broadcast %5 : vector<1x128xf32> to vector<128x128xf32>
    %32 = arith.addf %30, %31 : vector<128x128xf32>
    %33 = arith.negf %32 : vector<128x128xf32>
    %34 = math.exp %33 : vector<128x128xf32>
    %cst_19 = arith.constant 1.000000e+00 : f32
    %35 = vector.broadcast %cst_19 : f32 to vector<128x128xf32>
    %36 = arith.addf %35, %34 : vector<128x128xf32>
    %37 = arith.divf %35, %36 : vector<128x128xf32>
    %38 = arith.mulf %32, %37 : vector<128x128xf32>
    %cst_20 = arith.constant dense<0.000000e+00> : vector<128x32xf32>
    %39 = tpu.matmul %38, %6, %cst_20 {dimension_numbers = #tpu.dot_dimension_numbers<[1], [0], [0], [1], [0, 0, 1, 1], [], []>} : vector<128x128xf32>, vector<128x32xf32>, vector<128x32xf32> -> vector<128x32xf32>
    %40 = vector.broadcast %7 : vector<1x32xf32> to vector<128x32xf32>
    %41 = arith.addf %39, %40 : vector<128x32xf32>
    %cst_21 = arith.constant 5.000000e-01 : f32
    %42 = vector.broadcast %cst_21 : f32 to vector<128x32xf32>
    %43 = arith.mulf %42, %41 : vector<128x32xf32>
    %44 = arith.addf %1, %43 : vector<128x32xf32>
    %c0_22 = arith.constant 0 : index
    %c0_23 = arith.constant 0 : index
    %45 = vector.load %arg8[%c0_22, %c0_23] : memref<1x32xf32, #tpu.memory_space<vmem>>, vector<1x32xf32>
    %c0_24 = arith.constant 0 : index
    %c0_25 = arith.constant 0 : index
    %46 = vector.load %arg9[%c0_24, %c0_25] : memref<1x32xf32, #tpu.memory_space<vmem>>, vector<1x32xf32>
    %cst_26 = arith.constant dense<0.000000e+00> : vector<128xf32>
    %47 = vector.multi_reduction <add>, %44, %cst_26 [1] : vector<128x32xf32> to vector<128xf32>
    %48 = vector.shape_cast %47 : vector<128xf32> to vector<128x1xf32>
    %cst_27 = arith.constant 3.200000e+01 : f32
    %49 = vector.broadcast %cst_27 : f32 to vector<128x1xf32>
    %50 = arith.divf %48, %49 : vector<128x1xf32>
    %51 = vector.broadcast %50 : vector<128x1xf32> to vector<128x32xf32>
    %52 = arith.subf %44, %51 : vector<128x32xf32>
    %53 = arith.mulf %52, %52 : vector<128x32xf32>
    %cst_28 = arith.constant dense<0.000000e+00> : vector<128xf32>
    %54 = vector.multi_reduction <add>, %53, %cst_28 [1] : vector<128x32xf32> to vector<128xf32>
    %55 = vector.shape_cast %54 : vector<128xf32> to vector<128x1xf32>
    %cst_29 = arith.constant 3.200000e+01 : f32
    %56 = vector.broadcast %cst_29 : f32 to vector<128x1xf32>
    %57 = arith.divf %55, %56 : vector<128x1xf32>
    %58 = vector.broadcast %50 : vector<128x1xf32> to vector<128x32xf32>
    %59 = arith.subf %44, %58 : vector<128x32xf32>
    %cst_30 = arith.constant 9.99999974E-6 : f32
    %60 = vector.broadcast %cst_30 : f32 to vector<128x1xf32>
    %61 = arith.addf %57, %60 : vector<128x1xf32>
    %62 = math.rsqrt %61 : vector<128x1xf32>
    %63 = vector.broadcast %62 : vector<128x1xf32> to vector<128x32xf32>
    %64 = arith.mulf %59, %63 : vector<128x32xf32>
    %65 = vector.broadcast %45 : vector<1x32xf32> to vector<128x32xf32>
    %66 = arith.mulf %64, %65 : vector<128x32xf32>
    %67 = vector.broadcast %46 : vector<1x32xf32> to vector<128x32xf32>
    %68 = arith.addf %66, %67 : vector<128x32xf32>
    %c0_31 = arith.constant 0 : index
    %c0_32 = arith.constant 0 : index
    %69 = vector.load %arg10[%c0_31, %c0_32] : memref<32x32xf32, #tpu.memory_space<vmem>>, vector<32x32xf32>
    %cst_33 = arith.constant dense<0.000000e+00> : vector<128x32xf32>
    %70 = tpu.matmul %68, %69, %cst_33 {dimension_numbers = #tpu.dot_dimension_numbers<[1], [0], [0], [1], [0, 0, 1, 1], [], []>} : vector<128x32xf32>, vector<32x32xf32>, vector<128x32xf32> -> vector<128x32xf32>
    %c0_34 = arith.constant 0 : index
    %c0_35 = arith.constant 0 : index
    %71 = vector.load %arg11[%c0_34, %c0_35] : memref<1x32xf32, #tpu.memory_space<vmem>>, vector<1x32xf32>
    %72 = vector.broadcast %71 : vector<1x32xf32> to vector<128x32xf32>
    %73 = arith.addf %70, %72 : vector<128x32xf32>
    %c0_36 = arith.constant 0 : index
    %c0_37 = arith.constant 0 : index
    %74 = vector.load %arg12[%c0_36, %c0_37] : memref<32x32xf32, #tpu.memory_space<vmem>>, vector<32x32xf32>
    %cst_38 = arith.constant dense<0.000000e+00> : vector<128x32xf32>
    %75 = tpu.matmul %68, %74, %cst_38 {dimension_numbers = #tpu.dot_dimension_numbers<[1], [0], [0], [1], [0, 0, 1, 1], [], []>} : vector<128x32xf32>, vector<32x32xf32>, vector<128x32xf32> -> vector<128x32xf32>
    %c0_39 = arith.constant 0 : index
    %c0_40 = arith.constant 0 : index
    %76 = vector.load %arg13[%c0_39, %c0_40] : memref<1x32xf32, #tpu.memory_space<vmem>>, vector<1x32xf32>
    %77 = vector.broadcast %76 : vector<1x32xf32> to vector<128x32xf32>
    %78 = arith.addf %75, %77 : vector<128x32xf32>
    %c0_41 = arith.constant 0 : index
    %c0_42 = arith.constant 0 : index
    %79 = vector.load %arg14[%c0_41, %c0_42] : memref<32x32xf32, #tpu.memory_space<vmem>>, vector<32x32xf32>
    %cst_43 = arith.constant dense<0.000000e+00> : vector<128x32xf32>
    %80 = tpu.matmul %68, %79, %cst_43 {dimension_numbers = #tpu.dot_dimension_numbers<[1], [0], [0], [1], [0, 0, 1, 1], [], []>} : vector<128x32xf32>, vector<32x32xf32>, vector<128x32xf32> -> vector<128x32xf32>
    %c0_44 = arith.constant 0 : index
    %c0_45 = arith.constant 0 : index
    %81 = vector.load %arg15[%c0_44, %c0_45] : memref<1x32xf32, #tpu.memory_space<vmem>>, vector<1x32xf32>
    %82 = vector.broadcast %81 : vector<1x32xf32> to vector<128x32xf32>
    %83 = arith.addf %80, %82 : vector<128x32xf32>
    %84 = tpu.iota {dimensions = array<i32: 0>} : vector<128x128xi32>
    %c8_i32 = arith.constant 8 : i32
    %c0_i32 = arith.constant 0 : i32
    %85 = arith.cmpi eq, %c8_i32, %c0_i32 : i32
    %c1_i32 = arith.constant 1 : i32
    %86 = arith.select %85, %c1_i32, %c8_i32 : i32
    %87 = vector.broadcast %86 : i32 to vector<128x128xi32>
    %88 = arith.remsi %84, %87 : vector<128x128xi32>
    %c0_i32_46 = arith.constant 0 : i32
    %89 = vector.broadcast %c0_i32_46 : i32 to vector<128x128xi32>
    %90 = arith.cmpi ne, %88, %89 : vector<128x128xi32>
    %c0_i32_47 = arith.constant 0 : i32
    %91 = vector.broadcast %c0_i32_47 : i32 to vector<128x128xi32>
    %92 = arith.cmpi slt, %88, %91 : vector<128x128xi32>
    %c0_i32_48 = arith.constant 0 : i32
    %93 = arith.cmpi slt, %86, %c0_i32_48 : i32
    %94 = vector.broadcast %93 : i1 to vector<128x128xi1>
    %95 = vector.broadcast %94 : vector<128x128xi1> to vector<128x128xi1>
    %96 = arith.xori %92, %95 : vector<128x128xi1>
    %97 = arith.andi %96, %90 : vector<128x128xi1>
    %98 = vector.broadcast %86 : i32 to vector<128x128xi32>
    %99 = arith.addi %88, %98 : vector<128x128xi32>
    %100 = arith.select %97, %99, %88 : vector<128x128xi1>, vector<128x128xi32>
    %101 = tpu.iota {dimensions = array<i32: 1>} : vector<128x128xi32>
    %c8_i32_49 = arith.constant 8 : i32
    %c0_i32_50 = arith.constant 0 : i32
    %102 = arith.cmpi eq, %c8_i32_49, %c0_i32_50 : i32
    %c1_i32_51 = arith.constant 1 : i32
    %103 = arith.select %102, %c1_i32_51, %c8_i32_49 : i32
    %104 = vector.broadcast %103 : i32 to vector<128x128xi32>
    %105 = arith.remsi %101, %104 : vector<128x128xi32>
    %c0_i32_52 = arith.constant 0 : i32
    %106 = vector.broadcast %c0_i32_52 : i32 to vector<128x128xi32>
    %107 = arith.cmpi ne, %105, %106 : vector<128x128xi32>
    %c0_i32_53 = arith.constant 0 : i32
    %108 = vector.broadcast %c0_i32_53 : i32 to vector<128x128xi32>
    %109 = arith.cmpi slt, %105, %108 : vector<128x128xi32>
    %c0_i32_54 = arith.constant 0 : i32
    %110 = arith.cmpi slt, %103, %c0_i32_54 : i32
    %111 = vector.broadcast %110 : i1 to vector<128x128xi1>
    %112 = vector.broadcast %111 : vector<128x128xi1> to vector<128x128xi1>
    %113 = arith.xori %109, %112 : vector<128x128xi1>
    %114 = arith.andi %113, %107 : vector<128x128xi1>
    %115 = vector.broadcast %103 : i32 to vector<128x128xi32>
    %116 = arith.addi %105, %115 : vector<128x128xi32>
    %117 = arith.select %114, %116, %105 : vector<128x128xi1>, vector<128x128xi32>
    %118 = arith.cmpi eq, %100, %117 : vector<128x128xi32>
    %119 = vector.extract_strided_slice %73 {offsets = [0, 0], sizes = [128, 4], strides = [1, 1]} : vector<128x32xf32> to vector<128x4xf32>
    %cst_55 = arith.constant 5.000000e-01 : f32
    %120 = vector.broadcast %cst_55 : f32 to vector<128x4xf32>
    %121 = arith.mulf %119, %120 : vector<128x4xf32>
    %122 = vector.extract_strided_slice %78 {offsets = [0, 0], sizes = [128, 4], strides = [1, 1]} : vector<128x32xf32> to vector<128x4xf32>
    %123 = vector.extract_strided_slice %83 {offsets = [0, 0], sizes = [128, 4], strides = [1, 1]} : vector<128x32xf32> to vector<128x4xf32>
    "tpu.trace_start"() <{level = 10 : i32, message = "md,nd->mn"}> : () -> ()
    %cst_56 = arith.constant dense<0.000000e+00> : vector<128x128xf32>
    %124 = tpu.matmul %121, %122, %cst_56 {dimension_numbers = #tpu.dot_dimension_numbers<[1], [1], [0], [0], [0, 0, 1, 0], [], []>} : vector<128x4xf32>, vector<128x4xf32>, vector<128x128xf32> -> vector<128x128xf32>
    %cst_57 = arith.constant -1.000000e+30 : f32
    "tpu.trace_stop"() : () -> ()
    %125 = vector.broadcast %cst_57 : f32 to vector<128x128xf32>
    %126 = arith.select %118, %124, %125 : vector<128x128xi1>, vector<128x128xf32>
    %cst_58 = arith.constant dense<0xFF800000> : vector<128xf32>
    %127 = vector.multi_reduction <maximumf>, %126, %cst_58 [1] : vector<128x128xf32> to vector<128xf32>
    %128 = vector.shape_cast %127 : vector<128xf32> to vector<128x1xf32>
    %129 = vector.broadcast %128 : vector<128x1xf32> to vector<128x128xf32>
    %130 = arith.subf %126, %129 : vector<128x128xf32>
    %131 = math.exp %130 : vector<128x128xf32>
    %cst_59 = arith.constant dense<0.000000e+00> : vector<128xf32>
    %132 = vector.multi_reduction <add>, %131, %cst_59 [1] : vector<128x128xf32> to vector<128xf32>
    %133 = vector.shape_cast %132 : vector<128xf32> to vector<128x1xf32>
    %134 = tpu.reciprocal %133 {approx = true} : vector<128x1xf32> -> vector<128x1xf32>
    %135 = vector.broadcast %134 : vector<128x1xf32> to vector<128x128xf32>
    %136 = arith.mulf %131, %135 : vector<128x128xf32>
    %cst_60 = arith.constant dense<0.000000e+00> : vector<128x4xf32>
    %137 = tpu.matmul %136, %123, %cst_60 {dimension_numbers = #tpu.dot_dimension_numbers<[1], [0], [0], [1], [0, 0, 1, 1], [], []>} : vector<128x128xf32>, vector<128x4xf32>, vector<128x4xf32> -> vector<128x4xf32>
    %138 = vector.extract_strided_slice %73 {offsets = [0, 4], sizes = [128, 4], strides = [1, 1]} : vector<128x32xf32> to vector<128x4xf32>
    %cst_61 = arith.constant 5.000000e-01 : f32
    %139 = vector.broadcast %cst_61 : f32 to vector<128x4xf32>
    %140 = arith.mulf %138, %139 : vector<128x4xf32>
    %141 = vector.extract_strided_slice %78 {offsets = [0, 4], sizes = [128, 4], strides = [1, 1]} : vector<128x32xf32> to vector<128x4xf32>
    %142 = vector.extract_strided_slice %83 {offsets = [0, 4], sizes = [128, 4], strides = [1, 1]} : vector<128x32xf32> to vector<128x4xf32>
    "tpu.trace_start"() <{level = 10 : i32, message = "md,nd->mn"}> : () -> ()
    %cst_62 = arith.constant dense<0.000000e+00> : vector<128x128xf32>
    %143 = tpu.matmul %140, %141, %cst_62 {dimension_numbers = #tpu.dot_dimension_numbers<[1], [1], [0], [0], [0, 0, 1, 0], [], []>} : vector<128x4xf32>, vector<128x4xf32>, vector<128x128xf32> -> vector<128x128xf32>
    %cst_63 = arith.constant -1.000000e+30 : f32
    "tpu.trace_stop"() : () -> ()
    %144 = vector.broadcast %cst_63 : f32 to vector<128x128xf32>
    %145 = arith.select %118, %143, %144 : vector<128x128xi1>, vector<128x128xf32>
    %cst_64 = arith.constant dense<0xFF800000> : vector<128xf32>
    %146 = vector.multi_reduction <maximumf>, %145, %cst_64 [1] : vector<128x128xf32> to vector<128xf32>
    %147 = vector.shape_cast %146 : vector<128xf32> to vector<128x1xf32>
    %148 = vector.broadcast %147 : vector<128x1xf32> to vector<128x128xf32>
    %149 = arith.subf %145, %148 : vector<128x128xf32>
    %150 = math.exp %149 : vector<128x128xf32>
    %cst_65 = arith.constant dense<0.000000e+00> : vector<128xf32>
    %151 = vector.multi_reduction <add>, %150, %cst_65 [1] : vector<128x128xf32> to vector<128xf32>
    %152 = vector.shape_cast %151 : vector<128xf32> to vector<128x1xf32>
    %153 = tpu.reciprocal %152 {approx = true} : vector<128x1xf32> -> vector<128x1xf32>
    %154 = vector.broadcast %153 : vector<128x1xf32> to vector<128x128xf32>
    %155 = arith.mulf %150, %154 : vector<128x128xf32>
    %cst_66 = arith.constant dense<0.000000e+00> : vector<128x4xf32>
    %156 = tpu.matmul %155, %142, %cst_66 {dimension_numbers = #tpu.dot_dimension_numbers<[1], [0], [0], [1], [0, 0, 1, 1], [], []>} : vector<128x128xf32>, vector<128x4xf32>, vector<128x4xf32> -> vector<128x4xf32>
    %157 = vector.extract_strided_slice %73 {offsets = [0, 8], sizes = [128, 4], strides = [1, 1]} : vector<128x32xf32> to vector<128x4xf32>
    %cst_67 = arith.constant 5.000000e-01 : f32
    %158 = vector.broadcast %cst_67 : f32 to vector<128x4xf32>
    %159 = arith.mulf %157, %158 : vector<128x4xf32>
    %160 = vector.extract_strided_slice %78 {offsets = [0, 8], sizes = [128, 4], strides = [1, 1]} : vector<128x32xf32> to vector<128x4xf32>
    %161 = vector.extract_strided_slice %83 {offsets = [0, 8], sizes = [128, 4], strides = [1, 1]} : vector<128x32xf32> to vector<128x4xf32>
    "tpu.trace_start"() <{level = 10 : i32, message = "md,nd->mn"}> : () -> ()
    %cst_68 = arith.constant dense<0.000000e+00> : vector<128x128xf32>
    %162 = tpu.matmul %159, %160, %cst_68 {dimension_numbers = #tpu.dot_dimension_numbers<[1], [1], [0], [0], [0, 0, 1, 0], [], []>} : vector<128x4xf32>, vector<128x4xf32>, vector<128x128xf32> -> vector<128x128xf32>
    %cst_69 = arith.constant -1.000000e+30 : f32
    "tpu.trace_stop"() : () -> ()
    %163 = vector.broadcast %cst_69 : f32 to vector<128x128xf32>
    %164 = arith.select %118, %162, %163 : vector<128x128xi1>, vector<128x128xf32>
    %cst_70 = arith.constant dense<0xFF800000> : vector<128xf32>
    %165 = vector.multi_reduction <maximumf>, %164, %cst_70 [1] : vector<128x128xf32> to vector<128xf32>
    %166 = vector.shape_cast %165 : vector<128xf32> to vector<128x1xf32>
    %167 = vector.broadcast %166 : vector<128x1xf32> to vector<128x128xf32>
    %168 = arith.subf %164, %167 : vector<128x128xf32>
    %169 = math.exp %168 : vector<128x128xf32>
    %cst_71 = arith.constant dense<0.000000e+00> : vector<128xf32>
    %170 = vector.multi_reduction <add>, %169, %cst_71 [1] : vector<128x128xf32> to vector<128xf32>
    %171 = vector.shape_cast %170 : vector<128xf32> to vector<128x1xf32>
    %172 = tpu.reciprocal %171 {approx = true} : vector<128x1xf32> -> vector<128x1xf32>
    %173 = vector.broadcast %172 : vector<128x1xf32> to vector<128x128xf32>
    %174 = arith.mulf %169, %173 : vector<128x128xf32>
    %cst_72 = arith.constant dense<0.000000e+00> : vector<128x4xf32>
    %175 = tpu.matmul %174, %161, %cst_72 {dimension_numbers = #tpu.dot_dimension_numbers<[1], [0], [0], [1], [0, 0, 1, 1], [], []>} : vector<128x128xf32>, vector<128x4xf32>, vector<128x4xf32> -> vector<128x4xf32>
    %176 = vector.extract_strided_slice %73 {offsets = [0, 12], sizes = [128, 4], strides = [1, 1]} : vector<128x32xf32> to vector<128x4xf32>
    %cst_73 = arith.constant 5.000000e-01 : f32
    %177 = vector.broadcast %cst_73 : f32 to vector<128x4xf32>
    %178 = arith.mulf %176, %177 : vector<128x4xf32>
    %179 = vector.extract_strided_slice %78 {offsets = [0, 12], sizes = [128, 4], strides = [1, 1]} : vector<128x32xf32> to vector<128x4xf32>
    %180 = vector.extract_strided_slice %83 {offsets = [0, 12], sizes = [128, 4], strides = [1, 1]} : vector<128x32xf32> to vector<128x4xf32>
    "tpu.trace_start"() <{level = 10 : i32, message = "md,nd->mn"}> : () -> ()
    %cst_74 = arith.constant dense<0.000000e+00> : vector<128x128xf32>
    %181 = tpu.matmul %178, %179, %cst_74 {dimension_numbers = #tpu.dot_dimension_numbers<[1], [1], [0], [0], [0, 0, 1, 0], [], []>} : vector<128x4xf32>, vector<128x4xf32>, vector<128x128xf32> -> vector<128x128xf32>
    %cst_75 = arith.constant -1.000000e+30 : f32
    "tpu.trace_stop"() : () -> ()
    %182 = vector.broadcast %cst_75 : f32 to vector<128x128xf32>
    %183 = arith.select %118, %181, %182 : vector<128x128xi1>, vector<128x128xf32>
    %cst_76 = arith.constant dense<0xFF800000> : vector<128xf32>
    %184 = vector.multi_reduction <maximumf>, %183, %cst_76 [1] : vector<128x128xf32> to vector<128xf32>
    %185 = vector.shape_cast %184 : vector<128xf32> to vector<128x1xf32>
    %186 = vector.broadcast %185 : vector<128x1xf32> to vector<128x128xf32>
    %187 = arith.subf %183, %186 : vector<128x128xf32>
    %188 = math.exp %187 : vector<128x128xf32>
    %cst_77 = arith.constant dense<0.000000e+00> : vector<128xf32>
    %189 = vector.multi_reduction <add>, %188, %cst_77 [1] : vector<128x128xf32> to vector<128xf32>
    %190 = vector.shape_cast %189 : vector<128xf32> to vector<128x1xf32>
    %191 = tpu.reciprocal %190 {approx = true} : vector<128x1xf32> -> vector<128x1xf32>
    %192 = vector.broadcast %191 : vector<128x1xf32> to vector<128x128xf32>
    %193 = arith.mulf %188, %192 : vector<128x128xf32>
    %cst_78 = arith.constant dense<0.000000e+00> : vector<128x4xf32>
    %194 = tpu.matmul %193, %180, %cst_78 {dimension_numbers = #tpu.dot_dimension_numbers<[1], [0], [0], [1], [0, 0, 1, 1], [], []>} : vector<128x128xf32>, vector<128x4xf32>, vector<128x4xf32> -> vector<128x4xf32>
    %195 = vector.extract_strided_slice %73 {offsets = [0, 16], sizes = [128, 4], strides = [1, 1]} : vector<128x32xf32> to vector<128x4xf32>
    %cst_79 = arith.constant 5.000000e-01 : f32
    %196 = vector.broadcast %cst_79 : f32 to vector<128x4xf32>
    %197 = arith.mulf %195, %196 : vector<128x4xf32>
    %198 = vector.extract_strided_slice %78 {offsets = [0, 16], sizes = [128, 4], strides = [1, 1]} : vector<128x32xf32> to vector<128x4xf32>
    %199 = vector.extract_strided_slice %83 {offsets = [0, 16], sizes = [128, 4], strides = [1, 1]} : vector<128x32xf32> to vector<128x4xf32>
    "tpu.trace_start"() <{level = 10 : i32, message = "md,nd->mn"}> : () -> ()
    %cst_80 = arith.constant dense<0.000000e+00> : vector<128x128xf32>
    %200 = tpu.matmul %197, %198, %cst_80 {dimension_numbers = #tpu.dot_dimension_numbers<[1], [1], [0], [0], [0, 0, 1, 0], [], []>} : vector<128x4xf32>, vector<128x4xf32>, vector<128x128xf32> -> vector<128x128xf32>
    %cst_81 = arith.constant -1.000000e+30 : f32
    "tpu.trace_stop"() : () -> ()
    %201 = vector.broadcast %cst_81 : f32 to vector<128x128xf32>
    %202 = arith.select %118, %200, %201 : vector<128x128xi1>, vector<128x128xf32>
    %cst_82 = arith.constant dense<0xFF800000> : vector<128xf32>
    %203 = vector.multi_reduction <maximumf>, %202, %cst_82 [1] : vector<128x128xf32> to vector<128xf32>
    %204 = vector.shape_cast %203 : vector<128xf32> to vector<128x1xf32>
    %205 = vector.broadcast %204 : vector<128x1xf32> to vector<128x128xf32>
    %206 = arith.subf %202, %205 : vector<128x128xf32>
    %207 = math.exp %206 : vector<128x128xf32>
    %cst_83 = arith.constant dense<0.000000e+00> : vector<128xf32>
    %208 = vector.multi_reduction <add>, %207, %cst_83 [1] : vector<128x128xf32> to vector<128xf32>
    %209 = vector.shape_cast %208 : vector<128xf32> to vector<128x1xf32>
    %210 = tpu.reciprocal %209 {approx = true} : vector<128x1xf32> -> vector<128x1xf32>
    %211 = vector.broadcast %210 : vector<128x1xf32> to vector<128x128xf32>
    %212 = arith.mulf %207, %211 : vector<128x128xf32>
    %cst_84 = arith.constant dense<0.000000e+00> : vector<128x4xf32>
    %213 = tpu.matmul %212, %199, %cst_84 {dimension_numbers = #tpu.dot_dimension_numbers<[1], [0], [0], [1], [0, 0, 1, 1], [], []>} : vector<128x128xf32>, vector<128x4xf32>, vector<128x4xf32> -> vector<128x4xf32>
    %214 = vector.extract_strided_slice %73 {offsets = [0, 20], sizes = [128, 4], strides = [1, 1]} : vector<128x32xf32> to vector<128x4xf32>
    %cst_85 = arith.constant 5.000000e-01 : f32
    %215 = vector.broadcast %cst_85 : f32 to vector<128x4xf32>
    %216 = arith.mulf %214, %215 : vector<128x4xf32>
    %217 = vector.extract_strided_slice %78 {offsets = [0, 20], sizes = [128, 4], strides = [1, 1]} : vector<128x32xf32> to vector<128x4xf32>
    %218 = vector.extract_strided_slice %83 {offsets = [0, 20], sizes = [128, 4], strides = [1, 1]} : vector<128x32xf32> to vector<128x4xf32>
    "tpu.trace_start"() <{level = 10 : i32, message = "md,nd->mn"}> : () -> ()
    %cst_86 = arith.constant dense<0.000000e+00> : vector<128x128xf32>
    %219 = tpu.matmul %216, %217, %cst_86 {dimension_numbers = #tpu.dot_dimension_numbers<[1], [1], [0], [0], [0, 0, 1, 0], [], []>} : vector<128x4xf32>, vector<128x4xf32>, vector<128x128xf32> -> vector<128x128xf32>
    %cst_87 = arith.constant -1.000000e+30 : f32
    "tpu.trace_stop"() : () -> ()
    %220 = vector.broadcast %cst_87 : f32 to vector<128x128xf32>
    %221 = arith.select %118, %219, %220 : vector<128x128xi1>, vector<128x128xf32>
    %cst_88 = arith.constant dense<0xFF800000> : vector<128xf32>
    %222 = vector.multi_reduction <maximumf>, %221, %cst_88 [1] : vector<128x128xf32> to vector<128xf32>
    %223 = vector.shape_cast %222 : vector<128xf32> to vector<128x1xf32>
    %224 = vector.broadcast %223 : vector<128x1xf32> to vector<128x128xf32>
    %225 = arith.subf %221, %224 : vector<128x128xf32>
    %226 = math.exp %225 : vector<128x128xf32>
    %cst_89 = arith.constant dense<0.000000e+00> : vector<128xf32>
    %227 = vector.multi_reduction <add>, %226, %cst_89 [1] : vector<128x128xf32> to vector<128xf32>
    %228 = vector.shape_cast %227 : vector<128xf32> to vector<128x1xf32>
    %229 = tpu.reciprocal %228 {approx = true} : vector<128x1xf32> -> vector<128x1xf32>
    %230 = vector.broadcast %229 : vector<128x1xf32> to vector<128x128xf32>
    %231 = arith.mulf %226, %230 : vector<128x128xf32>
    %cst_90 = arith.constant dense<0.000000e+00> : vector<128x4xf32>
    %232 = tpu.matmul %231, %218, %cst_90 {dimension_numbers = #tpu.dot_dimension_numbers<[1], [0], [0], [1], [0, 0, 1, 1], [], []>} : vector<128x128xf32>, vector<128x4xf32>, vector<128x4xf32> -> vector<128x4xf32>
    %233 = vector.extract_strided_slice %73 {offsets = [0, 24], sizes = [128, 4], strides = [1, 1]} : vector<128x32xf32> to vector<128x4xf32>
    %cst_91 = arith.constant 5.000000e-01 : f32
    %234 = vector.broadcast %cst_91 : f32 to vector<128x4xf32>
    %235 = arith.mulf %233, %234 : vector<128x4xf32>
    %236 = vector.extract_strided_slice %78 {offsets = [0, 24], sizes = [128, 4], strides = [1, 1]} : vector<128x32xf32> to vector<128x4xf32>
    %237 = vector.extract_strided_slice %83 {offsets = [0, 24], sizes = [128, 4], strides = [1, 1]} : vector<128x32xf32> to vector<128x4xf32>
    "tpu.trace_start"() <{level = 10 : i32, message = "md,nd->mn"}> : () -> ()
    %cst_92 = arith.constant dense<0.000000e+00> : vector<128x128xf32>
    %238 = tpu.matmul %235, %236, %cst_92 {dimension_numbers = #tpu.dot_dimension_numbers<[1], [1], [0], [0], [0, 0, 1, 0], [], []>} : vector<128x4xf32>, vector<128x4xf32>, vector<128x128xf32> -> vector<128x128xf32>
    %cst_93 = arith.constant -1.000000e+30 : f32
    "tpu.trace_stop"() : () -> ()
    %239 = vector.broadcast %cst_93 : f32 to vector<128x128xf32>
    %240 = arith.select %118, %238, %239 : vector<128x128xi1>, vector<128x128xf32>
    %cst_94 = arith.constant dense<0xFF800000> : vector<128xf32>
    %241 = vector.multi_reduction <maximumf>, %240, %cst_94 [1] : vector<128x128xf32> to vector<128xf32>
    %242 = vector.shape_cast %241 : vector<128xf32> to vector<128x1xf32>
    %243 = vector.broadcast %242 : vector<128x1xf32> to vector<128x128xf32>
    %244 = arith.subf %240, %243 : vector<128x128xf32>
    %245 = math.exp %244 : vector<128x128xf32>
    %cst_95 = arith.constant dense<0.000000e+00> : vector<128xf32>
    %246 = vector.multi_reduction <add>, %245, %cst_95 [1] : vector<128x128xf32> to vector<128xf32>
    %247 = vector.shape_cast %246 : vector<128xf32> to vector<128x1xf32>
    %248 = tpu.reciprocal %247 {approx = true} : vector<128x1xf32> -> vector<128x1xf32>
    %249 = vector.broadcast %248 : vector<128x1xf32> to vector<128x128xf32>
    %250 = arith.mulf %245, %249 : vector<128x128xf32>
    %cst_96 = arith.constant dense<0.000000e+00> : vector<128x4xf32>
    %251 = tpu.matmul %250, %237, %cst_96 {dimension_numbers = #tpu.dot_dimension_numbers<[1], [0], [0], [1], [0, 0, 1, 1], [], []>} : vector<128x128xf32>, vector<128x4xf32>, vector<128x4xf32> -> vector<128x4xf32>
    %252 = vector.extract_strided_slice %73 {offsets = [0, 28], sizes = [128, 4], strides = [1, 1]} : vector<128x32xf32> to vector<128x4xf32>
    %cst_97 = arith.constant 5.000000e-01 : f32
    %253 = vector.broadcast %cst_97 : f32 to vector<128x4xf32>
    %254 = arith.mulf %252, %253 : vector<128x4xf32>
    %255 = vector.extract_strided_slice %78 {offsets = [0, 28], sizes = [128, 4], strides = [1, 1]} : vector<128x32xf32> to vector<128x4xf32>
    %256 = vector.extract_strided_slice %83 {offsets = [0, 28], sizes = [128, 4], strides = [1, 1]} : vector<128x32xf32> to vector<128x4xf32>
    "tpu.trace_start"() <{level = 10 : i32, message = "md,nd->mn"}> : () -> ()
    %cst_98 = arith.constant dense<0.000000e+00> : vector<128x128xf32>
    %257 = tpu.matmul %254, %255, %cst_98 {dimension_numbers = #tpu.dot_dimension_numbers<[1], [1], [0], [0], [0, 0, 1, 0], [], []>} : vector<128x4xf32>, vector<128x4xf32>, vector<128x128xf32> -> vector<128x128xf32>
    %cst_99 = arith.constant -1.000000e+30 : f32
    "tpu.trace_stop"() : () -> ()
    %258 = vector.broadcast %cst_99 : f32 to vector<128x128xf32>
    %259 = arith.select %118, %257, %258 : vector<128x128xi1>, vector<128x128xf32>
    %cst_100 = arith.constant dense<0xFF800000> : vector<128xf32>
    %260 = vector.multi_reduction <maximumf>, %259, %cst_100 [1] : vector<128x128xf32> to vector<128xf32>
    %261 = vector.shape_cast %260 : vector<128xf32> to vector<128x1xf32>
    %262 = vector.broadcast %261 : vector<128x1xf32> to vector<128x128xf32>
    %263 = arith.subf %259, %262 : vector<128x128xf32>
    %264 = math.exp %263 : vector<128x128xf32>
    %cst_101 = arith.constant dense<0.000000e+00> : vector<128xf32>
    %265 = vector.multi_reduction <add>, %264, %cst_101 [1] : vector<128x128xf32> to vector<128xf32>
    %266 = vector.shape_cast %265 : vector<128xf32> to vector<128x1xf32>
    %267 = tpu.reciprocal %266 {approx = true} : vector<128x1xf32> -> vector<128x1xf32>
    %268 = vector.broadcast %267 : vector<128x1xf32> to vector<128x128xf32>
    %269 = arith.mulf %264, %268 : vector<128x128xf32>
    %cst_102 = arith.constant dense<0.000000e+00> : vector<128x4xf32>
    %270 = tpu.matmul %269, %256, %cst_102 {dimension_numbers = #tpu.dot_dimension_numbers<[1], [0], [0], [1], [0, 0, 1, 1], [], []>} : vector<128x128xf32>, vector<128x4xf32>, vector<128x4xf32> -> vector<128x4xf32>
    %271 = tpu.concatenate %137, %156, %175, %194, %213, %232, %251, %270 in 1 : vector<128x4xf32>, vector<128x4xf32>, vector<128x4xf32>, vector<128x4xf32>, vector<128x4xf32>, vector<128x4xf32>, vector<128x4xf32>, vector<128x4xf32> -> vector<128x32xf32>
    %c0_103 = arith.constant 0 : index
    %c0_104 = arith.constant 0 : index
    %272 = vector.load %arg16[%c0_103, %c0_104] : memref<32x32xf32, #tpu.memory_space<vmem>>, vector<32x32xf32>
    %cst_105 = arith.constant dense<0.000000e+00> : vector<128x32xf32>
    %273 = tpu.matmul %271, %272, %cst_105 {dimension_numbers = #tpu.dot_dimension_numbers<[1], [0], [0], [1], [0, 0, 1, 1], [], []>} : vector<128x32xf32>, vector<32x32xf32>, vector<128x32xf32> -> vector<128x32xf32>
    %274 = arith.addf %44, %273 : vector<128x32xf32>
    %c0_106 = arith.constant 0 : index
    %c0_107 = arith.constant 0 : index
    %275 = vector.load %arg17[%c0_106, %c0_107] : memref<1x32xf32, #tpu.memory_space<vmem>>, vector<1x32xf32>
    %276 = vector.broadcast %275 : vector<1x32xf32> to vector<128x32xf32>
    %277 = arith.addf %274, %276 : vector<128x32xf32>
    %c0_108 = arith.constant 0 : index
    %c0_109 = arith.constant 0 : index
    %278 = vector.load %arg18[%c0_108, %c0_109] : memref<1x32xf32, #tpu.memory_space<vmem>>, vector<1x32xf32>
    %c0_110 = arith.constant 0 : index
    %c0_111 = arith.constant 0 : index
    %279 = vector.load %arg19[%c0_110, %c0_111] : memref<1x32xf32, #tpu.memory_space<vmem>>, vector<1x32xf32>
    %cst_112 = arith.constant dense<0.000000e+00> : vector<128xf32>
    %280 = vector.multi_reduction <add>, %277, %cst_112 [1] : vector<128x32xf32> to vector<128xf32>
    %281 = vector.shape_cast %280 : vector<128xf32> to vector<128x1xf32>
    %cst_113 = arith.constant 3.200000e+01 : f32
    %282 = vector.broadcast %cst_113 : f32 to vector<128x1xf32>
    %283 = arith.divf %281, %282 : vector<128x1xf32>
    %284 = vector.broadcast %283 : vector<128x1xf32> to vector<128x32xf32>
    %285 = arith.subf %277, %284 : vector<128x32xf32>
    %286 = arith.mulf %285, %285 : vector<128x32xf32>
    %cst_114 = arith.constant dense<0.000000e+00> : vector<128xf32>
    %287 = vector.multi_reduction <add>, %286, %cst_114 [1] : vector<128x32xf32> to vector<128xf32>
    %288 = vector.shape_cast %287 : vector<128xf32> to vector<128x1xf32>
    %cst_115 = arith.constant 3.200000e+01 : f32
    %289 = vector.broadcast %cst_115 : f32 to vector<128x1xf32>
    %290 = arith.divf %288, %289 : vector<128x1xf32>
    %291 = vector.broadcast %283 : vector<128x1xf32> to vector<128x32xf32>
    %292 = arith.subf %277, %291 : vector<128x32xf32>
    %cst_116 = arith.constant 9.99999974E-6 : f32
    %293 = vector.broadcast %cst_116 : f32 to vector<128x1xf32>
    %294 = arith.addf %290, %293 : vector<128x1xf32>
    %295 = math.rsqrt %294 : vector<128x1xf32>
    %296 = vector.broadcast %295 : vector<128x1xf32> to vector<128x32xf32>
    %297 = arith.mulf %292, %296 : vector<128x32xf32>
    %298 = vector.broadcast %278 : vector<1x32xf32> to vector<128x32xf32>
    %299 = arith.mulf %297, %298 : vector<128x32xf32>
    %300 = vector.broadcast %279 : vector<1x32xf32> to vector<128x32xf32>
    %301 = arith.addf %299, %300 : vector<128x32xf32>
    %c0_117 = arith.constant 0 : index
    %c0_118 = arith.constant 0 : index
    %302 = vector.load %arg20[%c0_117, %c0_118] : memref<32x128xf32, #tpu.memory_space<vmem>>, vector<32x128xf32>
    %cst_119 = arith.constant dense<0.000000e+00> : vector<128x128xf32>
    %303 = tpu.matmul %301, %302, %cst_119 {dimension_numbers = #tpu.dot_dimension_numbers<[1], [0], [0], [1], [0, 0, 1, 1], [], []>} : vector<128x32xf32>, vector<32x128xf32>, vector<128x128xf32> -> vector<128x128xf32>
    %c0_120 = arith.constant 0 : index
    %c0_121 = arith.constant 0 : index
    %304 = vector.load %arg21[%c0_120, %c0_121] : memref<1x128xf32, #tpu.memory_space<vmem>>, vector<1x128xf32>
    %305 = vector.broadcast %304 : vector<1x128xf32> to vector<128x128xf32>
    %306 = arith.addf %303, %305 : vector<128x128xf32>
    %307 = vector.extract_strided_slice %306 {offsets = [0, 0], sizes = [128, 64], strides = [1, 1]} : vector<128x128xf32> to vector<128x64xf32>
    %308 = vector.extract_strided_slice %306 {offsets = [0, 64], sizes = [128, 64], strides = [1, 1]} : vector<128x128xf32> to vector<128x64xf32>
    %309 = arith.negf %308 : vector<128x64xf32>
    %310 = math.exp %309 : vector<128x64xf32>
    %cst_122 = arith.constant 1.000000e+00 : f32
    %311 = vector.broadcast %cst_122 : f32 to vector<128x64xf32>
    %312 = arith.addf %311, %310 : vector<128x64xf32>
    %313 = arith.divf %311, %312 : vector<128x64xf32>
    %314 = arith.mulf %307, %313 : vector<128x64xf32>
    %315 = vector.shape_cast %314 : vector<128x64xf32> to vector<16x8x64xf32>
    %cst_123 = arith.constant 0.000000e+00 : f32
    %316 = vector.broadcast %cst_123 : f32 to vector<16x7x64xf32>
    %cst_124 = arith.constant 0.000000e+00 : f32
    %317 = vector.broadcast %cst_124 : f32 to vector<16x7x64xf32>
    %318 = tpu.concatenate %316, %315, %317 in 1 : vector<16x7x64xf32>, vector<16x8x64xf32>, vector<16x7x64xf32> -> vector<16x22x64xf32>
    %c0_125 = arith.constant 0 : index
    %c0_126 = arith.constant 0 : index
    %319 = vector.load %arg22[%c0_125, %c0_126] : memref<31x64xf32, #tpu.memory_space<vmem>>, vector<31x64xf32>
    %cst_127 = arith.constant 0.000000e+00 : f32
    %320 = vector.broadcast %cst_127 : f32 to vector<16x8x64xf32>
    %321 = vector.extract_strided_slice %318 {offsets = [0, 0, 0], sizes = [16, 8, 64], strides = [1, 1, 1]} : vector<16x22x64xf32> to vector<16x8x64xf32>
    %322 = vector.extract_strided_slice %319 {offsets = [8, 0], sizes = [1, 64], strides = [1, 1]} : vector<31x64xf32> to vector<1x64xf32>
    %323 = vector.shape_cast %322 : vector<1x64xf32> to vector<64xf32>
    %324 = vector.shape_cast %323 : vector<64xf32> to vector<1x1x64xf32>
    %325 = vector.broadcast %324 : vector<1x1x64xf32> to vector<16x8x64xf32>
    %326 = arith.mulf %321, %325 : vector<16x8x64xf32>
    %327 = arith.addf %320, %326 : vector<16x8x64xf32>
    %328 = vector.extract_strided_slice %318 {offsets = [0, 1, 0], sizes = [16, 8, 64], strides = [1, 1, 1]} : vector<16x22x64xf32> to vector<16x8x64xf32>
    %329 = vector.extract_strided_slice %319 {offsets = [9, 0], sizes = [1, 64], strides = [1, 1]} : vector<31x64xf32> to vector<1x64xf32>
    %330 = vector.shape_cast %329 : vector<1x64xf32> to vector<64xf32>
    %331 = vector.shape_cast %330 : vector<64xf32> to vector<1x1x64xf32>
    %332 = vector.broadcast %331 : vector<1x1x64xf32> to vector<16x8x64xf32>
    %333 = arith.mulf %328, %332 : vector<16x8x64xf32>
    %334 = arith.addf %327, %333 : vector<16x8x64xf32>
    %335 = vector.extract_strided_slice %318 {offsets = [0, 2, 0], sizes = [16, 8, 64], strides = [1, 1, 1]} : vector<16x22x64xf32> to vector<16x8x64xf32>
    %336 = vector.extract_strided_slice %319 {offsets = [10, 0], sizes = [1, 64], strides = [1, 1]} : vector<31x64xf32> to vector<1x64xf32>
    %337 = vector.shape_cast %336 : vector<1x64xf32> to vector<64xf32>
    %338 = vector.shape_cast %337 : vector<64xf32> to vector<1x1x64xf32>
    %339 = vector.broadcast %338 : vector<1x1x64xf32> to vector<16x8x64xf32>
    %340 = arith.mulf %335, %339 : vector<16x8x64xf32>
    %341 = arith.addf %334, %340 : vector<16x8x64xf32>
    %342 = vector.extract_strided_slice %318 {offsets = [0, 3, 0], sizes = [16, 8, 64], strides = [1, 1, 1]} : vector<16x22x64xf32> to vector<16x8x64xf32>
    %343 = vector.extract_strided_slice %319 {offsets = [11, 0], sizes = [1, 64], strides = [1, 1]} : vector<31x64xf32> to vector<1x64xf32>
    %344 = vector.shape_cast %343 : vector<1x64xf32> to vector<64xf32>
    %345 = vector.shape_cast %344 : vector<64xf32> to vector<1x1x64xf32>
    %346 = vector.broadcast %345 : vector<1x1x64xf32> to vector<16x8x64xf32>
    %347 = arith.mulf %342, %346 : vector<16x8x64xf32>
    %348 = arith.addf %341, %347 : vector<16x8x64xf32>
    %349 = vector.extract_strided_slice %318 {offsets = [0, 4, 0], sizes = [16, 8, 64], strides = [1, 1, 1]} : vector<16x22x64xf32> to vector<16x8x64xf32>
    %350 = vector.extract_strided_slice %319 {offsets = [12, 0], sizes = [1, 64], strides = [1, 1]} : vector<31x64xf32> to vector<1x64xf32>
    %351 = vector.shape_cast %350 : vector<1x64xf32> to vector<64xf32>
    %352 = vector.shape_cast %351 : vector<64xf32> to vector<1x1x64xf32>
    %353 = vector.broadcast %352 : vector<1x1x64xf32> to vector<16x8x64xf32>
    %354 = arith.mulf %349, %353 : vector<16x8x64xf32>
    %355 = arith.addf %348, %354 : vector<16x8x64xf32>
    %356 = vector.extract_strided_slice %318 {offsets = [0, 5, 0], sizes = [16, 8, 64], strides = [1, 1, 1]} : vector<16x22x64xf32> to vector<16x8x64xf32>
    %357 = vector.extract_strided_slice %319 {offsets = [13, 0], sizes = [1, 64], strides = [1, 1]} : vector<31x64xf32> to vector<1x64xf32>
    %358 = vector.shape_cast %357 : vector<1x64xf32> to vector<64xf32>
    %359 = vector.shape_cast %358 : vector<64xf32> to vector<1x1x64xf32>
    %360 = vector.broadcast %359 : vector<1x1x64xf32> to vector<16x8x64xf32>
    %361 = arith.mulf %356, %360 : vector<16x8x64xf32>
    %362 = arith.addf %355, %361 : vector<16x8x64xf32>
    %363 = vector.extract_strided_slice %318 {offsets = [0, 6, 0], sizes = [16, 8, 64], strides = [1, 1, 1]} : vector<16x22x64xf32> to vector<16x8x64xf32>
    %364 = vector.extract_strided_slice %319 {offsets = [14, 0], sizes = [1, 64], strides = [1, 1]} : vector<31x64xf32> to vector<1x64xf32>
    %365 = vector.shape_cast %364 : vector<1x64xf32> to vector<64xf32>
    %366 = vector.shape_cast %365 : vector<64xf32> to vector<1x1x64xf32>
    %367 = vector.broadcast %366 : vector<1x1x64xf32> to vector<16x8x64xf32>
    %368 = arith.mulf %363, %367 : vector<16x8x64xf32>
    %369 = arith.addf %362, %368 : vector<16x8x64xf32>
    %370 = vector.extract_strided_slice %318 {offsets = [0, 7, 0], sizes = [16, 8, 64], strides = [1, 1, 1]} : vector<16x22x64xf32> to vector<16x8x64xf32>
    %371 = vector.extract_strided_slice %319 {offsets = [15, 0], sizes = [1, 64], strides = [1, 1]} : vector<31x64xf32> to vector<1x64xf32>
    %372 = vector.shape_cast %371 : vector<1x64xf32> to vector<64xf32>
    %373 = vector.shape_cast %372 : vector<64xf32> to vector<1x1x64xf32>
    %374 = vector.broadcast %373 : vector<1x1x64xf32> to vector<16x8x64xf32>
    %375 = arith.mulf %370, %374 : vector<16x8x64xf32>
    %376 = arith.addf %369, %375 : vector<16x8x64xf32>
    %377 = vector.extract_strided_slice %318 {offsets = [0, 8, 0], sizes = [16, 8, 64], strides = [1, 1, 1]} : vector<16x22x64xf32> to vector<16x8x64xf32>
    %378 = vector.extract_strided_slice %319 {offsets = [16, 0], sizes = [1, 64], strides = [1, 1]} : vector<31x64xf32> to vector<1x64xf32>
    %379 = vector.shape_cast %378 : vector<1x64xf32> to vector<64xf32>
    %380 = vector.shape_cast %379 : vector<64xf32> to vector<1x1x64xf32>
    %381 = vector.broadcast %380 : vector<1x1x64xf32> to vector<16x8x64xf32>
    %382 = arith.mulf %377, %381 : vector<16x8x64xf32>
    %383 = arith.addf %376, %382 : vector<16x8x64xf32>
    %384 = vector.extract_strided_slice %318 {offsets = [0, 9, 0], sizes = [16, 8, 64], strides = [1, 1, 1]} : vector<16x22x64xf32> to vector<16x8x64xf32>
    %385 = vector.extract_strided_slice %319 {offsets = [17, 0], sizes = [1, 64], strides = [1, 1]} : vector<31x64xf32> to vector<1x64xf32>
    %386 = vector.shape_cast %385 : vector<1x64xf32> to vector<64xf32>
    %387 = vector.shape_cast %386 : vector<64xf32> to vector<1x1x64xf32>
    %388 = vector.broadcast %387 : vector<1x1x64xf32> to vector<16x8x64xf32>
    %389 = arith.mulf %384, %388 : vector<16x8x64xf32>
    %390 = arith.addf %383, %389 : vector<16x8x64xf32>
    %391 = vector.extract_strided_slice %318 {offsets = [0, 10, 0], sizes = [16, 8, 64], strides = [1, 1, 1]} : vector<16x22x64xf32> to vector<16x8x64xf32>
    %392 = vector.extract_strided_slice %319 {offsets = [18, 0], sizes = [1, 64], strides = [1, 1]} : vector<31x64xf32> to vector<1x64xf32>
    %393 = vector.shape_cast %392 : vector<1x64xf32> to vector<64xf32>
    %394 = vector.shape_cast %393 : vector<64xf32> to vector<1x1x64xf32>
    %395 = vector.broadcast %394 : vector<1x1x64xf32> to vector<16x8x64xf32>
    %396 = arith.mulf %391, %395 : vector<16x8x64xf32>
    %397 = arith.addf %390, %396 : vector<16x8x64xf32>
    %398 = vector.extract_strided_slice %318 {offsets = [0, 11, 0], sizes = [16, 8, 64], strides = [1, 1, 1]} : vector<16x22x64xf32> to vector<16x8x64xf32>
    %399 = vector.extract_strided_slice %319 {offsets = [19, 0], sizes = [1, 64], strides = [1, 1]} : vector<31x64xf32> to vector<1x64xf32>
    %400 = vector.shape_cast %399 : vector<1x64xf32> to vector<64xf32>
    %401 = vector.shape_cast %400 : vector<64xf32> to vector<1x1x64xf32>
    %402 = vector.broadcast %401 : vector<1x1x64xf32> to vector<16x8x64xf32>
    %403 = arith.mulf %398, %402 : vector<16x8x64xf32>
    %404 = arith.addf %397, %403 : vector<16x8x64xf32>
    %405 = vector.extract_strided_slice %318 {offsets = [0, 12, 0], sizes = [16, 8, 64], strides = [1, 1, 1]} : vector<16x22x64xf32> to vector<16x8x64xf32>
    %406 = vector.extract_strided_slice %319 {offsets = [20, 0], sizes = [1, 64], strides = [1, 1]} : vector<31x64xf32> to vector<1x64xf32>
    %407 = vector.shape_cast %406 : vector<1x64xf32> to vector<64xf32>
    %408 = vector.shape_cast %407 : vector<64xf32> to vector<1x1x64xf32>
    %409 = vector.broadcast %408 : vector<1x1x64xf32> to vector<16x8x64xf32>
    %410 = arith.mulf %405, %409 : vector<16x8x64xf32>
    %411 = arith.addf %404, %410 : vector<16x8x64xf32>
    %412 = vector.extract_strided_slice %318 {offsets = [0, 13, 0], sizes = [16, 8, 64], strides = [1, 1, 1]} : vector<16x22x64xf32> to vector<16x8x64xf32>
    %413 = vector.extract_strided_slice %319 {offsets = [21, 0], sizes = [1, 64], strides = [1, 1]} : vector<31x64xf32> to vector<1x64xf32>
    %414 = vector.shape_cast %413 : vector<1x64xf32> to vector<64xf32>
    %415 = vector.shape_cast %414 : vector<64xf32> to vector<1x1x64xf32>
    %416 = vector.broadcast %415 : vector<1x1x64xf32> to vector<16x8x64xf32>
    %417 = arith.mulf %412, %416 : vector<16x8x64xf32>
    %418 = arith.addf %411, %417 : vector<16x8x64xf32>
    %419 = vector.extract_strided_slice %318 {offsets = [0, 14, 0], sizes = [16, 8, 64], strides = [1, 1, 1]} : vector<16x22x64xf32> to vector<16x8x64xf32>
    %420 = vector.extract_strided_slice %319 {offsets = [22, 0], sizes = [1, 64], strides = [1, 1]} : vector<31x64xf32> to vector<1x64xf32>
    %421 = vector.shape_cast %420 : vector<1x64xf32> to vector<64xf32>
    %422 = vector.shape_cast %421 : vector<64xf32> to vector<1x1x64xf32>
    %423 = vector.broadcast %422 : vector<1x1x64xf32> to vector<16x8x64xf32>
    %424 = arith.mulf %419, %423 : vector<16x8x64xf32>
    %425 = arith.addf %418, %424 : vector<16x8x64xf32>
    %426 = vector.shape_cast %425 : vector<16x8x64xf32> to vector<128x64xf32>
    %c0_128 = arith.constant 0 : index
    %c0_129 = arith.constant 0 : index
    %427 = vector.load %arg23[%c0_128, %c0_129] : memref<1x64xf32, #tpu.memory_space<vmem>>, vector<1x64xf32>
    %428 = vector.broadcast %427 : vector<1x64xf32> to vector<128x64xf32>
    %429 = arith.addf %426, %428 : vector<128x64xf32>
    %cst_130 = arith.constant dense<0.000000e+00> : vector<64xf32>
    %430 = vector.multi_reduction <add>, %429, %cst_130 [0] : vector<128x64xf32> to vector<64xf32>
    %431 = vector.shape_cast %430 : vector<64xf32> to vector<1x64xf32>
    %cst_131 = arith.constant 1.280000e+02 : f32
    %432 = vector.broadcast %cst_131 : f32 to vector<1x64xf32>
    %433 = arith.divf %431, %432 : vector<1x64xf32>
    %434 = vector.broadcast %433 : vector<1x64xf32> to vector<128x64xf32>
    %435 = arith.subf %429, %434 : vector<128x64xf32>
    %436 = arith.mulf %435, %435 : vector<128x64xf32>
    %cst_132 = arith.constant dense<0.000000e+00> : vector<64xf32>
    %437 = vector.multi_reduction <add>, %436, %cst_132 [0] : vector<128x64xf32> to vector<64xf32>
    %438 = vector.shape_cast %437 : vector<64xf32> to vector<1x64xf32>
    %cst_133 = arith.constant 1.280000e+02 : f32
    %439 = vector.broadcast %cst_133 : f32 to vector<1x64xf32>
    %440 = arith.divf %438, %439 : vector<1x64xf32>
    %441 = vector.broadcast %433 : vector<1x64xf32> to vector<128x64xf32>
    %442 = arith.subf %429, %441 : vector<128x64xf32>
    %cst_134 = arith.constant 9.99999974E-6 : f32
    %443 = vector.broadcast %cst_134 : f32 to vector<1x64xf32>
    %444 = arith.addf %440, %443 : vector<1x64xf32>
    %445 = math.rsqrt %444 : vector<1x64xf32>
    %446 = vector.broadcast %445 : vector<1x64xf32> to vector<128x64xf32>
    %447 = arith.mulf %442, %446 : vector<128x64xf32>
    %c0_135 = arith.constant 0 : index
    %c0_136 = arith.constant 0 : index
    %448 = vector.load %arg24[%c0_135, %c0_136] : memref<1x64xf32, #tpu.memory_space<vmem>>, vector<1x64xf32>
    %449 = vector.broadcast %448 : vector<1x64xf32> to vector<128x64xf32>
    %450 = arith.mulf %447, %449 : vector<128x64xf32>
    %c0_137 = arith.constant 0 : index
    %c0_138 = arith.constant 0 : index
    %451 = vector.load %arg25[%c0_137, %c0_138] : memref<1x64xf32, #tpu.memory_space<vmem>>, vector<1x64xf32>
    %452 = vector.broadcast %451 : vector<1x64xf32> to vector<128x64xf32>
    %453 = arith.addf %450, %452 : vector<128x64xf32>
    %454 = arith.negf %453 : vector<128x64xf32>
    %455 = math.exp %454 : vector<128x64xf32>
    %cst_139 = arith.constant 1.000000e+00 : f32
    %456 = vector.broadcast %cst_139 : f32 to vector<128x64xf32>
    %457 = arith.addf %456, %455 : vector<128x64xf32>
    %458 = arith.divf %456, %457 : vector<128x64xf32>
    %459 = arith.mulf %453, %458 : vector<128x64xf32>
    %c0_140 = arith.constant 0 : index
    %c0_141 = arith.constant 0 : index
    %460 = vector.load %arg26[%c0_140, %c0_141] : memref<64x32xf32, #tpu.memory_space<vmem>>, vector<64x32xf32>
    %cst_142 = arith.constant dense<0.000000e+00> : vector<128x32xf32>
    %461 = tpu.matmul %459, %460, %cst_142 {dimension_numbers = #tpu.dot_dimension_numbers<[1], [0], [0], [1], [0, 0, 1, 1], [], []>} : vector<128x64xf32>, vector<64x32xf32>, vector<128x32xf32> -> vector<128x32xf32>
    %462 = arith.addf %277, %461 : vector<128x32xf32>
    %c0_143 = arith.constant 0 : index
    %c0_144 = arith.constant 0 : index
    %463 = vector.load %arg27[%c0_143, %c0_144] : memref<1x32xf32, #tpu.memory_space<vmem>>, vector<1x32xf32>
    %464 = vector.broadcast %463 : vector<1x32xf32> to vector<128x32xf32>
    %465 = arith.addf %462, %464 : vector<128x32xf32>
    %c0_145 = arith.constant 0 : index
    %c0_146 = arith.constant 0 : index
    %466 = vector.load %arg28[%c0_145, %c0_146] : memref<1x32xf32, #tpu.memory_space<vmem>>, vector<1x32xf32>
    %c0_147 = arith.constant 0 : index
    %c0_148 = arith.constant 0 : index
    %467 = vector.load %arg29[%c0_147, %c0_148] : memref<1x32xf32, #tpu.memory_space<vmem>>, vector<1x32xf32>
    %c0_149 = arith.constant 0 : index
    %c0_150 = arith.constant 0 : index
    %468 = vector.load %arg30[%c0_149, %c0_150] : memref<32x128xf32, #tpu.memory_space<vmem>>, vector<32x128xf32>
    %c0_151 = arith.constant 0 : index
    %c0_152 = arith.constant 0 : index
    %469 = vector.load %arg31[%c0_151, %c0_152] : memref<1x128xf32, #tpu.memory_space<vmem>>, vector<1x128xf32>
    %c0_153 = arith.constant 0 : index
    %c0_154 = arith.constant 0 : index
    %470 = vector.load %arg32[%c0_153, %c0_154] : memref<128x32xf32, #tpu.memory_space<vmem>>, vector<128x32xf32>
    %c0_155 = arith.constant 0 : index
    %c0_156 = arith.constant 0 : index
    %471 = vector.load %arg33[%c0_155, %c0_156] : memref<1x32xf32, #tpu.memory_space<vmem>>, vector<1x32xf32>
    %cst_157 = arith.constant dense<0.000000e+00> : vector<128xf32>
    %472 = vector.multi_reduction <add>, %465, %cst_157 [1] : vector<128x32xf32> to vector<128xf32>
    %473 = vector.shape_cast %472 : vector<128xf32> to vector<128x1xf32>
    %cst_158 = arith.constant 3.200000e+01 : f32
    %474 = vector.broadcast %cst_158 : f32 to vector<128x1xf32>
    %475 = arith.divf %473, %474 : vector<128x1xf32>
    %476 = vector.broadcast %475 : vector<128x1xf32> to vector<128x32xf32>
    %477 = arith.subf %465, %476 : vector<128x32xf32>
    %478 = arith.mulf %477, %477 : vector<128x32xf32>
    %cst_159 = arith.constant dense<0.000000e+00> : vector<128xf32>
    %479 = vector.multi_reduction <add>, %478, %cst_159 [1] : vector<128x32xf32> to vector<128xf32>
    %480 = vector.shape_cast %479 : vector<128xf32> to vector<128x1xf32>
    %cst_160 = arith.constant 3.200000e+01 : f32
    %481 = vector.broadcast %cst_160 : f32 to vector<128x1xf32>
    %482 = arith.divf %480, %481 : vector<128x1xf32>
    %483 = vector.broadcast %475 : vector<128x1xf32> to vector<128x32xf32>
    %484 = arith.subf %465, %483 : vector<128x32xf32>
    %cst_161 = arith.constant 9.99999974E-6 : f32
    %485 = vector.broadcast %cst_161 : f32 to vector<128x1xf32>
    %486 = arith.addf %482, %485 : vector<128x1xf32>
    %487 = math.rsqrt %486 : vector<128x1xf32>
    %488 = vector.broadcast %487 : vector<128x1xf32> to vector<128x32xf32>
    %489 = arith.mulf %484, %488 : vector<128x32xf32>
    %490 = vector.broadcast %466 : vector<1x32xf32> to vector<128x32xf32>
    %491 = arith.mulf %489, %490 : vector<128x32xf32>
    %492 = vector.broadcast %467 : vector<1x32xf32> to vector<128x32xf32>
    %493 = arith.addf %491, %492 : vector<128x32xf32>
    %cst_162 = arith.constant dense<0.000000e+00> : vector<128x128xf32>
    %494 = tpu.matmul %493, %468, %cst_162 {dimension_numbers = #tpu.dot_dimension_numbers<[1], [0], [0], [1], [0, 0, 1, 1], [], []>} : vector<128x32xf32>, vector<32x128xf32>, vector<128x128xf32> -> vector<128x128xf32>
    %495 = vector.broadcast %469 : vector<1x128xf32> to vector<128x128xf32>
    %496 = arith.addf %494, %495 : vector<128x128xf32>
    %497 = arith.negf %496 : vector<128x128xf32>
    %498 = math.exp %497 : vector<128x128xf32>
    %cst_163 = arith.constant 1.000000e+00 : f32
    %499 = vector.broadcast %cst_163 : f32 to vector<128x128xf32>
    %500 = arith.addf %499, %498 : vector<128x128xf32>
    %501 = arith.divf %499, %500 : vector<128x128xf32>
    %502 = arith.mulf %496, %501 : vector<128x128xf32>
    %cst_164 = arith.constant dense<0.000000e+00> : vector<128x32xf32>
    %503 = tpu.matmul %502, %470, %cst_164 {dimension_numbers = #tpu.dot_dimension_numbers<[1], [0], [0], [1], [0, 0, 1, 1], [], []>} : vector<128x128xf32>, vector<128x32xf32>, vector<128x32xf32> -> vector<128x32xf32>
    %504 = vector.broadcast %471 : vector<1x32xf32> to vector<128x32xf32>
    %505 = arith.addf %503, %504 : vector<128x32xf32>
    %cst_165 = arith.constant 5.000000e-01 : f32
    %506 = vector.broadcast %cst_165 : f32 to vector<128x32xf32>
    %507 = arith.mulf %506, %505 : vector<128x32xf32>
    %508 = arith.addf %465, %507 : vector<128x32xf32>
    %c0_166 = arith.constant 0 : index
    %c0_167 = arith.constant 0 : index
    %509 = vector.load %arg34[%c0_166, %c0_167] : memref<1x32xf32, #tpu.memory_space<vmem>>, vector<1x32xf32>
    %c0_168 = arith.constant 0 : index
    %c0_169 = arith.constant 0 : index
    %510 = vector.load %arg35[%c0_168, %c0_169] : memref<1x32xf32, #tpu.memory_space<vmem>>, vector<1x32xf32>
    %cst_170 = arith.constant dense<0.000000e+00> : vector<128xf32>
    %511 = vector.multi_reduction <add>, %508, %cst_170 [1] : vector<128x32xf32> to vector<128xf32>
    %512 = vector.shape_cast %511 : vector<128xf32> to vector<128x1xf32>
    %cst_171 = arith.constant 3.200000e+01 : f32
    %513 = vector.broadcast %cst_171 : f32 to vector<128x1xf32>
    %514 = arith.divf %512, %513 : vector<128x1xf32>
    %515 = vector.broadcast %514 : vector<128x1xf32> to vector<128x32xf32>
    %516 = arith.subf %508, %515 : vector<128x32xf32>
    %517 = arith.mulf %516, %516 : vector<128x32xf32>
    %cst_172 = arith.constant dense<0.000000e+00> : vector<128xf32>
    %518 = vector.multi_reduction <add>, %517, %cst_172 [1] : vector<128x32xf32> to vector<128xf32>
    %519 = vector.shape_cast %518 : vector<128xf32> to vector<128x1xf32>
    %cst_173 = arith.constant 3.200000e+01 : f32
    %520 = vector.broadcast %cst_173 : f32 to vector<128x1xf32>
    %521 = arith.divf %519, %520 : vector<128x1xf32>
    %522 = vector.broadcast %514 : vector<128x1xf32> to vector<128x32xf32>
    %523 = arith.subf %508, %522 : vector<128x32xf32>
    %cst_174 = arith.constant 9.99999974E-6 : f32
    %524 = vector.broadcast %cst_174 : f32 to vector<128x1xf32>
    %525 = arith.addf %521, %524 : vector<128x1xf32>
    %526 = math.rsqrt %525 : vector<128x1xf32>
    %527 = vector.broadcast %526 : vector<128x1xf32> to vector<128x32xf32>
    %528 = arith.mulf %523, %527 : vector<128x32xf32>
    %529 = vector.broadcast %509 : vector<1x32xf32> to vector<128x32xf32>
    %530 = arith.mulf %528, %529 : vector<128x32xf32>
    %531 = vector.broadcast %510 : vector<1x32xf32> to vector<128x32xf32>
    %532 = arith.addf %530, %531 : vector<128x32xf32>
    %533 = vector.shape_cast %532 : vector<128x32xf32> to vector<16x8x32xf32>
    %c0_175 = arith.constant 0 : index
    %c0_176 = arith.constant 0 : index
    %c0_177 = arith.constant 0 : index
    %534 = vector.load %arg36[%c0_175, %c0_176, %c0_177] : memref<16x8x32xf32, #tpu.memory_space<vmem>>, vector<16x8x32xf32>
    tpu.vector_store %arg36[%c0_175, %c0_176, %c0_177], %533 {strides = array<i32>} : memref<16x8x32xf32, #tpu.memory_space<vmem>>, vector<16x8x32xf32>,
    return
  }
  func.func @transform_0(%arg0: i32) -> (i32, i32, i32) {
    %c0_i32 = arith.constant 0 : i32
    %c0_i32_0 = arith.constant 0 : i32
    %c0_i32_1 = arith.constant 0 : i32
    %c0_i32_2 = arith.constant 0 : i32
    return %c0_i32, %c0_i32_0, %c0_i32_1 : i32, i32, i32
  }
  func.func @transform_1(%arg0: i32) -> (i32, i32) {
    %c0_i32 = arith.constant 0 : i32
    %c0_i32_0 = arith.constant 0 : i32
    %c0_i32_1 = arith.constant 0 : i32
    return %c0_i32, %c0_i32_0 : i32, i32
  }
  func.func @transform_2(%arg0: i32) -> (i32, i32) {
    %c0_i32 = arith.constant 0 : i32
    %c0_i32_0 = arith.constant 0 : i32
    %c0_i32_1 = arith.constant 0 : i32
    return %c0_i32, %c0_i32_0 : i32, i32
  }
  func.func @transform_3(%arg0: i32) -> (i32, i32) {
    %c0_i32 = arith.constant 0 : i32
    %c0_i32_0 = arith.constant 0 : i32
    %c0_i32_1 = arith.constant 0 : i32
    return %c0_i32, %c0_i32_0 : i32, i32
  }
  func.func @transform_4(%arg0: i32) -> (i32, i32) {
    %c0_i32 = arith.constant 0 : i32
    %c0_i32_0 = arith.constant 0 : i32
    %c0_i32_1 = arith.constant 0 : i32
    return %c0_i32, %c0_i32_0 : i32, i32
  }
  func.func @transform_5(%arg0: i32) -> (i32, i32) {
    %c0_i32 = arith.constant 0 : i32
    %c0_i32_0 = arith.constant 0 : i32
    %c0_i32_1 = arith.constant 0 : i32
    return %c0_i32, %c0_i32_0 : i32, i32
  }
  func.func @transform_6(%arg0: i32) -> (i32, i32) {
    %c0_i32 = arith.constant 0 : i32
    %c0_i32_0 = arith.constant 0 : i32
    %c0_i32_1 = arith.constant 0 : i32
    return %c0_i32, %c0_i32_0 : i32, i32
  }
  func.func @transform_7(%arg0: i32) -> (i32, i32) {
    %c0_i32 = arith.constant 0 : i32
    %c0_i32_0 = arith.constant 0 : i32
    %c0_i32_1 = arith.constant 0 : i32
    return %c0_i32, %c0_i32_0 : i32, i32
  }
  func.func @transform_8(%arg0: i32) -> (i32, i32) {
    %c0_i32 = arith.constant 0 : i32
    %c0_i32_0 = arith.constant 0 : i32
    %c0_i32_1 = arith.constant 0 : i32
    return %c0_i32, %c0_i32_0 : i32, i32
  }
  func.func @transform_9(%arg0: i32) -> (i32, i32) {
    %c0_i32 = arith.constant 0 : i32
    %c0_i32_0 = arith.constant 0 : i32
    %c0_i32_1 = arith.constant 0 : i32
    return %c0_i32, %c0_i32_0 : i32, i32
  }
  func.func @transform_10(%arg0: i32) -> (i32, i32) {
    %c0_i32 = arith.constant 0 : i32
    %c0_i32_0 = arith.constant 0 : i32
    %c0_i32_1 = arith.constant 0 : i32
    return %c0_i32, %c0_i32_0 : i32, i32
  }
  func.func @transform_11(%arg0: i32) -> (i32, i32) {
    %c0_i32 = arith.constant 0 : i32
    %c0_i32_0 = arith.constant 0 : i32
    %c0_i32_1 = arith.constant 0 : i32
    return %c0_i32, %c0_i32_0 : i32, i32
  }
  func.func @transform_12(%arg0: i32) -> (i32, i32) {
    %c0_i32 = arith.constant 0 : i32
    %c0_i32_0 = arith.constant 0 : i32
    %c0_i32_1 = arith.constant 0 : i32
    return %c0_i32, %c0_i32_0 : i32, i32
  }
  func.func @transform_13(%arg0: i32) -> (i32, i32) {
    %c0_i32 = arith.constant 0 : i32
    %c0_i32_0 = arith.constant 0 : i32
    %c0_i32_1 = arith.constant 0 : i32
    return %c0_i32, %c0_i32_0 : i32, i32
  }
  func.func @transform_14(%arg0: i32) -> (i32, i32) {
    %c0_i32 = arith.constant 0 : i32
    %c0_i32_0 = arith.constant 0 : i32
    %c0_i32_1 = arith.constant 0 : i32
    return %c0_i32, %c0_i32_0 : i32, i32
  }
  func.func @transform_15(%arg0: i32) -> (i32, i32) {
    %c0_i32 = arith.constant 0 : i32
    %c0_i32_0 = arith.constant 0 : i32
    %c0_i32_1 = arith.constant 0 : i32
    return %c0_i32, %c0_i32_0 : i32, i32
  }
  func.func @transform_16(%arg0: i32) -> (i32, i32) {
    %c0_i32 = arith.constant 0 : i32
    %c0_i32_0 = arith.constant 0 : i32
    %c0_i32_1 = arith.constant 0 : i32
    return %c0_i32, %c0_i32_0 : i32, i32
  }
  func.func @transform_17(%arg0: i32) -> (i32, i32) {
    %c0_i32 = arith.constant 0 : i32
    %c0_i32_0 = arith.constant 0 : i32
    %c0_i32_1 = arith.constant 0 : i32
    return %c0_i32, %c0_i32_0 : i32, i32
  }
  func.func @transform_18(%arg0: i32) -> (i32, i32) {
    %c0_i32 = arith.constant 0 : i32
    %c0_i32_0 = arith.constant 0 : i32
    %c0_i32_1 = arith.constant 0 : i32
    return %c0_i32, %c0_i32_0 : i32, i32
  }
  func.func @transform_19(%arg0: i32) -> (i32, i32) {
    %c0_i32 = arith.constant 0 : i32
    %c0_i32_0 = arith.constant 0 : i32
    %c0_i32_1 = arith.constant 0 : i32
    return %c0_i32, %c0_i32_0 : i32, i32
  }
  func.func @transform_20(%arg0: i32) -> (i32, i32) {
    %c0_i32 = arith.constant 0 : i32
    %c0_i32_0 = arith.constant 0 : i32
    %c0_i32_1 = arith.constant 0 : i32
    return %c0_i32, %c0_i32_0 : i32, i32
  }
  func.func @transform_21(%arg0: i32) -> (i32, i32) {
    %c0_i32 = arith.constant 0 : i32
    %c0_i32_0 = arith.constant 0 : i32
    %c0_i32_1 = arith.constant 0 : i32
    return %c0_i32, %c0_i32_0 : i32, i32
  }
  func.func @transform_22(%arg0: i32) -> (i32, i32) {
    %c0_i32 = arith.constant 0 : i32
    %c0_i32_0 = arith.constant 0 : i32
    %c0_i32_1 = arith.constant 0 : i32
    return %c0_i32, %c0_i32_0 : i32, i32
  }
  func.func @transform_23(%arg0: i32) -> (i32, i32) {
    %c0_i32 = arith.constant 0 : i32
    %c0_i32_0 = arith.constant 0 : i32
    %c0_i32_1 = arith.constant 0 : i32
    return %c0_i32, %c0_i32_0 : i32, i32
  }
  func.func @transform_24(%arg0: i32) -> (i32, i32) {
    %c0_i32 = arith.constant 0 : i32
    %c0_i32_0 = arith.constant 0 : i32
    %c0_i32_1 = arith.constant 0 : i32
    return %c0_i32, %c0_i32_0 : i32, i32
  }
  func.func @transform_25(%arg0: i32) -> (i32, i32) {
    %c0_i32 = arith.constant 0 : i32
    %c0_i32_0 = arith.constant 0 : i32
    %c0_i32_1 = arith.constant 0 : i32
    return %c0_i32, %c0_i32_0 : i32, i32
  }
  func.func @transform_26(%arg0: i32) -> (i32, i32) {
    %c0_i32 = arith.constant 0 : i32
    %c0_i32_0 = arith.constant 0 : i32
    %c0_i32_1 = arith.constant 0 : i32
    return %c0_i32, %c0_i32_0 : i32, i32
  }
  func.func @transform_27(%arg0: i32) -> (i32, i32) {
    %c0_i32 = arith.constant 0 : i32
    %c0_i32_0 = arith.constant 0 : i32
    %c0_i32_1 = arith.constant 0 : i32
    return %c0_i32, %c0_i32_0 : i32, i32
  }
  func.func @transform_28(%arg0: i32) -> (i32, i32) {
    %c0_i32 = arith.constant 0 : i32
    %c0_i32_0 = arith.constant 0 : i32
    %c0_i32_1 = arith.constant 0 : i32
    return %c0_i32, %c0_i32_0 : i32, i32
  }
  func.func @transform_29(%arg0: i32) -> (i32, i32) {
    %c0_i32 = arith.constant 0 : i32
    %c0_i32_0 = arith.constant 0 : i32
    %c0_i32_1 = arith.constant 0 : i32
    return %c0_i32, %c0_i32_0 : i32, i32
  }
  func.func @transform_30(%arg0: i32) -> (i32, i32) {
    %c0_i32 = arith.constant 0 : i32
    %c0_i32_0 = arith.constant 0 : i32
    %c0_i32_1 = arith.constant 0 : i32
    return %c0_i32, %c0_i32_0 : i32, i32
  }
  func.func @transform_31(%arg0: i32) -> (i32, i32) {
    %c0_i32 = arith.constant 0 : i32
    %c0_i32_0 = arith.constant 0 : i32
    %c0_i32_1 = arith.constant 0 : i32
    return %c0_i32, %c0_i32_0 : i32, i32
  }
  func.func @transform_32(%arg0: i32) -> (i32, i32) {
    %c0_i32 = arith.constant 0 : i32
    %c0_i32_0 = arith.constant 0 : i32
    %c0_i32_1 = arith.constant 0 : i32
    return %c0_i32, %c0_i32_0 : i32, i32
  }
  func.func @transform_33(%arg0: i32) -> (i32, i32) {
    %c0_i32 = arith.constant 0 : i32
    %c0_i32_0 = arith.constant 0 : i32
    %c0_i32_1 = arith.constant 0 : i32
    return %c0_i32, %c0_i32_0 : i32, i32
  }
  func.func @transform_34(%arg0: i32) -> (i32, i32) {
    %c0_i32 = arith.constant 0 : i32
    %c0_i32_0 = arith.constant 0 : i32
    %c0_i32_1 = arith.constant 0 : i32
    return %c0_i32, %c0_i32_0 : i32, i32
  }
  func.func @transform_35(%arg0: i32) -> (i32, i32, i32) {
    %c0_i32 = arith.constant 0 : i32
    %c0_i32_0 = arith.constant 0 : i32
    %c0_i32_1 = arith.constant 0 : i32
    %c0_i32_2 = arith.constant 0 : i32
    return %c0_i32, %c0_i32_0, %c0_i32_1 : i32, i32, i32
  }
}

</mosaic_0001>

<llo_original>
// kernel: tpu_custom_call.1
$region0: #{tpu_custom_call.1}
  #allocation0 [shape = 'u32[]', space=smem, size = 0x4, offset = 0x4, fixed_abs, tag = 'smem constant byte address 0x4 - core index']
  #allocation1 [shape = 'u32[144,128]{1,0:T(1,128)}', space=vmem, size = 0x12000, scoped, tag = 'internal scratch']
  %s0 = inlined_call_operand.smem [shape: u32[36], index: -1, kind: input, shape index: {}]
  %s1 = sld [smem:[%s0]]
  %s2 = scalar_lea.smem %s0, 1
  %s3 = sld [smem:[%s2]]
  %s4 = scalar_lea.smem %s0, 2
  %s5 = sld [smem:[%s4]]
  %s6 = scalar_lea.smem %s0, 3
  %s7 = sld [smem:[%s6]]
  %s8 = scalar_lea.smem %s0, 4
  %s9 = sld [smem:[%s8]]
  %s10 = scalar_lea.smem %s0, 5
  %s11 = sld [smem:[%s10]]
  %s12 = scalar_lea.smem %s0, 6
  %s13 = sld [smem:[%s12]]
  %s14 = scalar_lea.smem %s0, 7
  %s15 = sld [smem:[%s14]]
  %s16 = scalar_lea.smem %s0, 8
  %s17 = sld [smem:[%s16]]
  %s18 = scalar_lea.smem %s0, 9
  %s19 = sld [smem:[%s18]]
  %s20 = scalar_lea.smem %s0, 10
  %s21 = sld [smem:[%s20]]
  %s22 = scalar_lea.smem %s0, 11
  %s23 = sld [smem:[%s22]]
  %s24 = scalar_lea.smem %s0, 12
  %s25 = sld [smem:[%s24]]
  %s26 = scalar_lea.smem %s0, 13
  %s27 = sld [smem:[%s26]]
  %s28 = scalar_lea.smem %s0, 14
  %s29 = sld [smem:[%s28]]
  %s30 = scalar_lea.smem %s0, 15
  %s31 = sld [smem:[%s30]]
  %s32 = scalar_lea.smem %s0, 16
  %s33 = sld [smem:[%s32]]
  %s34 = scalar_lea.smem %s0, 17
  %s35 = sld [smem:[%s34]]
  %s36 = scalar_lea.smem %s0, 18
  %s37 = sld [smem:[%s36]]
  %s38 = scalar_lea.smem %s0, 19
  %s39 = sld [smem:[%s38]]
  %s40 = scalar_lea.smem %s0, 20
  %s41 = sld [smem:[%s40]]
  %s42 = scalar_lea.smem %s0, 21
  %s43 = sld [smem:[%s42]]
  %s44 = scalar_lea.smem %s0, 22
  %s45 = sld [smem:[%s44]]
  %s46 = scalar_lea.smem %s0, 23
  %s47 = sld [smem:[%s46]]
  %s48 = scalar_lea.smem %s0, 24
  %s49 = sld [smem:[%s48]]
  %s50 = scalar_lea.smem %s0, 25
  %s51 = sld [smem:[%s50]]
  %s52 = scalar_lea.smem %s0, 26
  %s53 = sld [smem:[%s52]]
  %s54 = scalar_lea.smem %s0, 27
  %s55 = sld [smem:[%s54]]
  %s56 = scalar_lea.smem %s0, 28
  %s57 = sld [smem:[%s56]]
  %s58 = scalar_lea.smem %s0, 29
  %s59 = sld [smem:[%s58]]
  %s60 = scalar_lea.smem %s0, 30
  %s61 = sld [smem:[%s60]]
  %s62 = scalar_lea.smem %s0, 31
  %s63 = sld [smem:[%s62]]
  %s64 = scalar_lea.smem %s0, 32
  %s65 = sld [smem:[%s64]]
  %s66 = scalar_lea.smem %s0, 33
  %s67 = sld [smem:[%s66]]
  %s68 = scalar_lea.smem %s0, 34
  %s69 = sld [smem:[%s68]]
  %s70 = scalar_lea.smem %s0, 35
  %s71 = sld [smem:[%s70]]
  %s72 = sld [smem:[#allocation0]]
  $region194: #{tpu_custom_call.1} parent=0
    _
  %s74 = ssub.s32 1, %s72
  %s75 = scalar_select 0, %s74, %s72
  $region1: #{tpu_custom_call.1} parent=0
    #allocation2 [shape = 'u8[512]{0}', space=vmem, size = 0x400, scoped, tag = 'input window, operand 1, single buffered']
    #allocation3 [shape = 's32[1]{0}', space=sflag, size = 0x4, scoped, tag = 'scoped memory for tpu_custom_call.1']
    #allocation4 [shape = 's32[1]{0}', space=sflag, size = 0x4, scoped, tag = 'scoped memory for tpu_custom_call.1']
    #allocation5 [shape = 'u8[512]{0}', space=vmem, size = 0x400, scoped, tag = 'input window, operand 2, single buffered']
    #allocation6 [shape = 's32[1]{0}', space=sflag, size = 0x4, scoped, tag = 'scoped memory for tpu_custom_call.1']
    #allocation7 [shape = 'u8[512]{0}', space=vmem, size = 0x400, scoped, tag = 'input window, operand 4, single buffered']
    #allocation8 [shape = 'u8[512]{0}', space=vmem, size = 0x400, scoped, tag = 'input window, operand 6, single buffered']
    #allocation9 [shape = 's32[1]{0}', space=sflag, size = 0x4, scoped, tag = 'scoped memory for tpu_custom_call.1']
    #allocation10 [shape = 'u8[512]{0}', space=vmem, size = 0x400, scoped, tag = 'input window, operand 7, single buffered']
    #allocation11 [shape = 'u8[512]{0}', space=vmem, size = 0x400, scoped, tag = 'input window, operand 8, single buffered']
    #allocation12 [shape = 's32[1]{0}', space=sflag, size = 0x4, scoped, tag = 'scoped memory for tpu_custom_call.1']
    #allocation13 [shape = 'u8[512]{0}', space=vmem, size = 0x400, scoped, tag = 'input window, operand 10, single buffered']
    #allocation14 [shape = 'u8[512]{0}', space=vmem, size = 0x400, scoped, tag = 'input window, operand 12, single buffered']
    #allocation15 [shape = 's32[1]{0}', space=sflag, size = 0x4, scoped, tag = 'scoped memory for tpu_custom_call.1']
    #allocation16 [shape = 'u8[512]{0}', space=vmem, size = 0x400, scoped, tag = 'input window, operand 14, single buffered']
    #allocation17 [shape = 'u8[512]{0}', space=vmem, size = 0x400, scoped, tag = 'input window, operand 16, single buffered']
    #allocation18 [shape = 's32[1]{0}', space=sflag, size = 0x4, scoped, tag = 'scoped memory for tpu_custom_call.1']
    #allocation19 [shape = 'u8[512]{0}', space=vmem, size = 0x400, scoped, tag = 'input window, operand 17, single buffered']
    #allocation20 [shape = 'u8[65536]{0}', space=vmem, size = 0x10000, scoped, tag = 'output window, operand 0, single buffered']
    %76 = vsyncpa [#allocation3], 0
    %77 = vsyncpa [#allocation6], 0
    %78 = vsyncpa [#allocation9], 0
    %79 = vsyncpa [#allocation12], 0
    %80 = vsyncpa [#allocation15], 0
    %81 = vsyncpa [#allocation18], 0
    %82 = vsyncpa [#allocation4], 0
    // Predicated region
    $region2: #{tpu_custom_call.1} parent=1 // pred_check
      _
    $region3: #{tpu_custom_call.1} parent=1 // pred_check_branch
      %84 = sbr.rel (0) target = $region5
    $region4: #{tpu_custom_call.1} parent=1 // pred_region
      _
    $region5: #{tpu_custom_call.1} parent=1 // pred_fallthru
      _
    // Predicated region
    $region6: #{tpu_custom_call.1} parent=1 // pred_check
      _
    $region7: #{tpu_custom_call.1} parent=1 // pred_check_branch
      %86 = sbr.rel (0) target = $region9
    $region8: #{tpu_custom_call.1} parent=1 // pred_region
      %s88 = ssub.s32 16, 16
      %89 = vsyncadd [#allocation3], %s88
      %s91 = sshll.u32 [#allocation2], 4
      %s92 = int_to_ptr.vmem [resolvable:$true] %s91
      %94 = dma.hbm_to_vmem [thread:$0]  %s3, 16, %s92, [#allocation3]
    $region9: #{tpu_custom_call.1} parent=1 // pred_fallthru
      _
    // Predicated region
    $region10: #{tpu_custom_call.1} parent=1 // pred_check
      _
    $region11: #{tpu_custom_call.1} parent=1 // pred_check_branch
      %96 = sbr.rel (0) target = $region13
    $region12: #{tpu_custom_call.1} parent=1 // pred_region
      %s98 = ssub.s32 16, 16
      %99 = vsyncadd [#allocation6], %s98
      %s101 = sshll.u32 [#allocation5], 4
      %s102 = int_to_ptr.vmem [resolvable:$true] %s101
      %104 = dma.hbm_to_vmem [thread:$0]  %s5, 16, %s102, [#allocation6]
    $region13: #{tpu_custom_call.1} parent=1 // pred_fallthru
      _
    // Predicated region
    $region14: #{tpu_custom_call.1} parent=1 // pred_check
      _
    $region15: #{tpu_custom_call.1} parent=1 // pred_check_branch
      %106 = sbr.rel (0) target = $region17
    $region16: #{tpu_custom_call.1} parent=1 // pred_region
      _
    $region17: #{tpu_custom_call.1} parent=1 // pred_fallthru
      _
    // Predicated region
    $region18: #{tpu_custom_call.1} parent=1 // pred_check
      _
    $region19: #{tpu_custom_call.1} parent=1 // pred_check_branch
      %108 = sbr.rel (0) target = $region21
    $region20: #{tpu_custom_call.1} parent=1 // pred_region
      %s110 = ssub.s32 16, 16
      %111 = vsyncadd [#allocation6], %s110
      %s113 = sshll.u32 [#allocation7], 4
      %s114 = int_to_ptr.vmem [resolvable:$true] %s113
      %116 = dma.hbm_to_vmem [thread:$0]  %s9, 16, %s114, [#allocation6]
    $region21: #{tpu_custom_call.1} parent=1 // pred_fallthru
      _
    // Predicated region
    $region22: #{tpu_custom_call.1} parent=1 // pred_check
      _
    $region23: #{tpu_custom_call.1} parent=1 // pred_check_branch
      %118 = sbr.rel (0) target = $region25
    $region24: #{tpu_custom_call.1} parent=1 // pred_region
      _
    $region25: #{tpu_custom_call.1} parent=1 // pred_fallthru
      _
    // Predicated region
    $region26: #{tpu_custom_call.1} parent=1 // pred_check
      _
    $region27: #{tpu_custom_call.1} parent=1 // pred_check_branch
      %120 = sbr.rel (0) target = $region29
    $region28: #{tpu_custom_call.1} parent=1 // pred_region
      %s122 = ssub.s32 16, 16
      %123 = vsyncadd [#allocation9], %s122
      %s125 = sshll.u32 [#allocation8], 4
      %s126 = int_to_ptr.vmem [resolvable:$true] %s125
      %128 = dma.hbm_to_vmem [thread:$0]  %s13, 16, %s126, [#allocation9]
    $region29: #{tpu_custom_call.1} parent=1 // pred_fallthru
      _
    // Predicated region
    $region30: #{tpu_custom_call.1} parent=1 // pred_check
      _
    $region31: #{tpu_custom_call.1} parent=1 // pred_check_branch
      %130 = sbr.rel (0) target = $region33
    $region32: #{tpu_custom_call.1} parent=1 // pred_region
      %s132 = ssub.s32 16, 16
      %133 = vsyncadd [#allocation9], %s132
      %s135 = sshll.u32 [#allocation10], 4
      %s136 = int_to_ptr.vmem [resolvable:$true] %s135
      %138 = dma.hbm_to_vmem [thread:$0]  %s15, 16, %s136, [#allocation9]
    $region33: #{tpu_custom_call.1} parent=1 // pred_fallthru
      _
    // Predicated region
    $region34: #{tpu_custom_call.1} parent=1 // pred_check
      _
    $region35: #{tpu_custom_call.1} parent=1 // pred_check_branch
      %140 = sbr.rel (0) target = $region37
    $region36: #{tpu_custom_call.1} parent=1 // pred_region
      %s142 = ssub.s32 16, 16
      %143 = vsyncadd [#allocation12], %s142
      %s145 = sshll.u32 [#allocation11], 4
      %s146 = int_to_ptr.vmem [resolvable:$true] %s145
      %148 = dma.hbm_to_vmem [thread:$0]  %s17, 16, %s146, [#allocation12]
    $region37: #{tpu_custom_call.1} parent=1 // pred_fallthru
      _
    // Predicated region
    $region38: #{tpu_custom_call.1} parent=1 // pred_check
      _
    $region39: #{tpu_custom_call.1} parent=1 // pred_check_branch
      %150 = sbr.rel (0) target = $region41
    $region40: #{tpu_custom_call.1} parent=1 // pred_region
      _
    $region41: #{tpu_custom_call.1} parent=1 // pred_fallthru
      _
    // Predicated region
    $region42: #{tpu_custom_call.1} parent=1 // pred_check
      _
    $region43: #{tpu_custom_call.1} parent=1 // pred_check_branch
      %152 = sbr.rel (0) target = $region45
    $region44: #{tpu_custom_call.1} parent=1 // pred_region
      %s154 = ssub.s32 16, 16
      %155 = vsyncadd [#allocation12], %s154
      %s157 = sshll.u32 [#allocation13], 4
      %s158 = int_to_ptr.vmem [resolvable:$true] %s157
      %160 = dma.hbm_to_vmem [thread:$0]  %s21, 16, %s158, [#allocation12]
    $region45: #{tpu_custom_call.1} parent=1 // pred_fallthru
      _
    // Predicated region
    $region46: #{tpu_custom_call.1} parent=1 // pred_check
      _
    $region47: #{tpu_custom_call.1} parent=1 // pred_check_branch
      %162 = sbr.rel (0) target = $region49
    $region48: #{tpu_custom_call.1} parent=1 // pred_region
      _
    $region49: #{tpu_custom_call.1} parent=1 // pred_fallthru
      _
    // Predicated region
    $region50: #{tpu_custom_call.1} parent=1 // pred_check
      _
    $region51: #{tpu_custom_call.1} parent=1 // pred_check_branch
      %164 = sbr.rel (0) target = $region53
    $region52: #{tpu_custom_call.1} parent=1 // pred_region
      %s166 = ssub.s32 16, 16
      %167 = vsyncadd [#allocation15], %s166
      %s169 = sshll.u32 [#allocation14], 4
      %s170 = int_to_ptr.vmem [resolvable:$true] %s169
      %172 = dma.hbm_to_vmem [thread:$0]  %s25, 16, %s170, [#allocation15]
    $region53: #{tpu_custom_call.1} parent=1 // pred_fallthru
      _
    // Predicated region
    $region54: #{tpu_custom_call.1} parent=1 // pred_check
      _
    $region55: #{tpu_custom_call.1} parent=1 // pred_check_branch
      %174 = sbr.rel (0) target = $region57
    $region56: #{tpu_custom_call.1} parent=1 // pred_region
      _
    $region57: #{tpu_custom_call.1} parent=1 // pred_fallthru
      _
    // Predicated region
    $region58: #{tpu_custom_call.1} parent=1 // pred_check
      _
    $region59: #{tpu_custom_call.1} parent=1 // pred_check_branch
      %176 = sbr.rel (0) target = $region61
    $region60: #{tpu_custom_call.1} parent=1 // pred_region
      %s178 = ssub.s32 16, 16
      %179 = vsyncadd [#allocation15], %s178
      %s181 = sshll.u32 [#allocation16], 4
      %s182 = int_to_ptr.vmem [resolvable:$true] %s181
      %184 = dma.hbm_to_vmem [thread:$0]  %s29, 16, %s182, [#allocation15]
    $region61: #{tpu_custom_call.1} parent=1 // pred_fallthru
      _
    // Predicated region
    $region62: #{tpu_custom_call.1} parent=1 // pred_check
      _
    $region63: #{tpu_custom_call.1} parent=1 // pred_check_branch
      %186 = sbr.rel (0) target = $region65
    $region64: #{tpu_custom_call.1} parent=1 // pred_region
      _
    $region65: #{tpu_custom_call.1} parent=1 // pred_fallthru
      _
    // Predicated region
    $region66: #{tpu_custom_call.1} parent=1 // pred_check
      _
    $region67: #{tpu_custom_call.1} parent=1 // pred_check_branch
      %188 = sbr.rel (0) target = $region69
    $region68: #{tpu_custom_call.1} parent=1 // pred_region
      %s190 = ssub.s32 16, 16
      %191 = vsyncadd [#allocation18], %s190
      %s193 = sshll.u32 [#allocation17], 4
      %s194 = int_to_ptr.vmem [resolvable:$true] %s193
      %196 = dma.hbm_to_vmem [thread:$0]  %s33, 16, %s194, [#allocation18]
    $region69: #{tpu_custom_call.1} parent=1 // pred_fallthru
      _
    // Predicated region
    $region70: #{tpu_custom_call.1} parent=1 // pred_check
      _
    $region71: #{tpu_custom_call.1} parent=1 // pred_check_branch
      %198 = sbr.rel (0) target = $region73
    $region72: #{tpu_custom_call.1} parent=1 // pred_region
      %s200 = ssub.s32 16, 16
      %201 = vsyncadd [#allocation18], %s200
      %s203 = sshll.u32 [#allocation19], 4
      %s204 = int_to_ptr.vmem [resolvable:$true] %s203
      %206 = dma.hbm_to_vmem [thread:$0]  %s35, 16, %s204, [#allocation18]
    $region73: #{tpu_custom_call.1} parent=1 // pred_fallthru
      _
    // Predicated region
    $region74: #{tpu_custom_call.1} parent=1 // pred_check
      _
    $region75: #{tpu_custom_call.1} parent=1 // pred_check_branch
      %208 = sbr.rel (0) target = $region77
    $region76: #{tpu_custom_call.1} parent=1 // pred_region
      _
    $region77: #{tpu_custom_call.1} parent=1 // pred_fallthru
      _
    // Predicated region
    $region78: #{tpu_custom_call.1} parent=1 // pred_check
      _
    $region79: #{tpu_custom_call.1} parent=1 // pred_check_branch
      %210 = sbr.rel (0) target = $region81
    $region80: #{tpu_custom_call.1} parent=1 // pred_region
      _
    $region81: #{tpu_custom_call.1} parent=1 // pred_fallthru
      _
    // Predicated region
    $region82: #{tpu_custom_call.1} parent=1 // pred_check
      _
    $region83: #{tpu_custom_call.1} parent=1 // pred_check_branch
      %212 = sbr.rel (0) target = $region85
    $region84: #{tpu_custom_call.1} parent=1 // pred_region
      _
    $region85: #{tpu_custom_call.1} parent=1 // pred_fallthru
      _
    // Predicated region
    $region86: #{tpu_custom_call.1} parent=1 // pred_check
      _
    $region87: #{tpu_custom_call.1} parent=1 // pred_check_branch
      %214 = sbr.rel (0) target = $region89
    $region88: #{tpu_custom_call.1} parent=1 // pred_region
      _
    $region89: #{tpu_custom_call.1} parent=1 // pred_fallthru
      _
    // Predicated region
    $region90: #{tpu_custom_call.1} parent=1 // pred_check
      _
    $region91: #{tpu_custom_call.1} parent=1 // pred_check_branch
      %216 = sbr.rel (0) target = $region93
    $region92: #{tpu_custom_call.1} parent=1 // pred_region
      _
    $region93: #{tpu_custom_call.1} parent=1 // pred_fallthru
      _
    // Predicated region
    $region94: #{tpu_custom_call.1} parent=1 // pred_check
      _
    $region95: #{tpu_custom_call.1} parent=1 // pred_check_branch
      %218 = sbr.rel (0) target = $region97
    $region96: #{tpu_custom_call.1} parent=1 // pred_region
      _
    $region97: #{tpu_custom_call.1} parent=1 // pred_fallthru
      _
    // Predicated region
    $region98: #{tpu_custom_call.1} parent=1 // pred_check
      _
    $region99: #{tpu_custom_call.1} parent=1 // pred_check_branch
      %220 = sbr.rel (0) target = $region101
    $region100: #{tpu_custom_call.1} parent=1 // pred_region
      _
    $region101: #{tpu_custom_call.1} parent=1 // pred_fallthru
      _
    // Predicated region
    $region102: #{tpu_custom_call.1} parent=1 // pred_check
      _
    $region103: #{tpu_custom_call.1} parent=1 // pred_check_branch
      %222 = sbr.rel (0) target = $region105
    $region104: #{tpu_custom_call.1} parent=1 // pred_region
      _
    $region105: #{tpu_custom_call.1} parent=1 // pred_fallthru
      _
    // Predicated region
    $region106: #{tpu_custom_call.1} parent=1 // pred_check
      _
    $region107: #{tpu_custom_call.1} parent=1 // pred_check_branch
      %224 = sbr.rel (0) target = $region109
    $region108: #{tpu_custom_call.1} parent=1 // pred_region
      _
    $region109: #{tpu_custom_call.1} parent=1 // pred_fallthru
      _
    // Predicated region
    $region110: #{tpu_custom_call.1} parent=1 // pred_check
      _
    $region111: #{tpu_custom_call.1} parent=1 // pred_check_branch
      %226 = sbr.rel (0) target = $region113
    $region112: #{tpu_custom_call.1} parent=1 // pred_region
      _
    $region113: #{tpu_custom_call.1} parent=1 // pred_fallthru
      _
    // Predicated region
    $region114: #{tpu_custom_call.1} parent=1 // pred_check
      _
    $region115: #{tpu_custom_call.1} parent=1 // pred_check_branch
      %228 = sbr.rel (0) target = $region117
    $region116: #{tpu_custom_call.1} parent=1 // pred_region
      _
    $region117: #{tpu_custom_call.1} parent=1 // pred_fallthru
      _
    // Predicated region
    $region118: #{tpu_custom_call.1} parent=1 // pred_check
      _
    $region119: #{tpu_custom_call.1} parent=1 // pred_check_branch
      %230 = sbr.rel (0) target = $region121
    $region120: #{tpu_custom_call.1} parent=1 // pred_region
      _
    $region121: #{tpu_custom_call.1} parent=1 // pred_fallthru
      _
    // Predicated region
    $region122: #{tpu_custom_call.1} parent=1 // pred_check
      _
    $region123: #{tpu_custom_call.1} parent=1 // pred_check_branch
      %232 = sbr.rel (0) target = $region125
    $region124: #{tpu_custom_call.1} parent=1 // pred_region
      _
    $region125: #{tpu_custom_call.1} parent=1 // pred_fallthru
      _
    // Predicated region
    $region126: #{tpu_custom_call.1} parent=1 // pred_check
      _
    $region127: #{tpu_custom_call.1} parent=1 // pred_check_branch
      %234 = sbr.rel (0) target = $region129
    $region128: #{tpu_custom_call.1} parent=1 // pred_region
      _
    $region129: #{tpu_custom_call.1} parent=1 // pred_fallthru
      _
    // Predicated region
    $region130: #{tpu_custom_call.1} parent=1 // pred_check
      _
    $region131: #{tpu_custom_call.1} parent=1 // pred_check_branch
      %236 = sbr.rel (0) target = $region133
    $region132: #{tpu_custom_call.1} parent=1 // pred_region
      _
    $region133: #{tpu_custom_call.1} parent=1 // pred_fallthru
      _
    // Predicated region
    $region134: #{tpu_custom_call.1} parent=1 // pred_check
      _
    $region135: #{tpu_custom_call.1} parent=1 // pred_check_branch
      %238 = sbr.rel (0) target = $region137
    $region136: #{tpu_custom_call.1} parent=1 // pred_region
      _
    $region137: #{tpu_custom_call.1} parent=1 // pred_fallthru
      _
    // Predicated region
    $region138: #{tpu_custom_call.1} parent=1 // pred_check
      _
    $region139: #{tpu_custom_call.1} parent=1 // pred_check_branch
      %240 = sbr.rel (0) target = $region141
    $region140: #{tpu_custom_call.1} parent=1 // pred_region
      _
    $region141: #{tpu_custom_call.1} parent=1 // pred_fallthru
      _
    // Predicated region
    $region142: #{tpu_custom_call.1} parent=1 // pred_check
      _
    $region143: #{tpu_custom_call.1} parent=1 // pred_check_branch
      %242 = sbr.rel (0) target = $region145
    $region144: #{tpu_custom_call.1} parent=1 // pred_region
      %243 = dma.done [#allocation3], 16
    $region145: #{tpu_custom_call.1} parent=1 // pred_fallthru
      _
    // Predicated region
    $region146: #{tpu_custom_call.1} parent=1 // pred_check
      _
    $region147: #{tpu_custom_call.1} parent=1 // pred_check_branch
      %245 = sbr.rel (0) target = $region149
    $region148: #{tpu_custom_call.1} parent=1 // pred_region
      %246 = dma.done [#allocation6], 16
    $region149: #{tpu_custom_call.1} parent=1 // pred_fallthru
      _
    // Predicated region
    $region150: #{tpu_custom_call.1} parent=1 // pred_check
      _
    $region151: #{tpu_custom_call.1} parent=1 // pred_check_branch
      %248 = sbr.rel (0) target = $region153
    $region152: #{tpu_custom_call.1} parent=1 // pred_region
      %249 = dma.done [#allocation6], 16
    $region153: #{tpu_custom_call.1} parent=1 // pred_fallthru
      _
    // Predicated region
    $region154: #{tpu_custom_call.1} parent=1 // pred_check
      _
    $region155: #{tpu_custom_call.1} parent=1 // pred_check_branch
      %251 = sbr.rel (0) target = $region157
    $region156: #{tpu_custom_call.1} parent=1 // pred_region
      %252 = dma.done [#allocation9], 16
    $region157: #{tpu_custom_call.1} parent=1 // pred_fallthru
      _
    // Predicated region
    $region158: #{tpu_custom_call.1} parent=1 // pred_check
      _
    $region159: #{tpu_custom_call.1} parent=1 // pred_check_branch
      %254 = sbr.rel (0) target = $region161
    $region160: #{tpu_custom_call.1} parent=1 // pred_region
      %255 = dma.done [#allocation9], 16
    $region161: #{tpu_custom_call.1} parent=1 // pred_fallthru
      _
    // Predicated region
    $region162: #{tpu_custom_call.1} parent=1 // pred_check
      _
    $region163: #{tpu_custom_call.1} parent=1 // pred_check_branch
      %257 = sbr.rel (0) target = $region165
    $region164: #{tpu_custom_call.1} parent=1 // pred_region
      %258 = dma.done [#allocation12], 16
    $region165: #{tpu_custom_call.1} parent=1 // pred_fallthru
      _
    // Predicated region
    $region166: #{tpu_custom_call.1} parent=1 // pred_check
      _
    $region167: #{tpu_custom_call.1} parent=1 // pred_check_branch
      %260 = sbr.rel (0) target = $region169
    $region168: #{tpu_custom_call.1} parent=1 // pred_region
      %261 = dma.done [#allocation12], 16
    $region169: #{tpu_custom_call.1} parent=1 // pred_fallthru
      _
    // Predicated region
    $region170: #{tpu_custom_call.1} parent=1 // pred_check
      _
    $region171: #{tpu_custom_call.1} parent=1 // pred_check_branch
      %263 = sbr.rel (0) target = $region173
    $region172: #{tpu_custom_call.1} parent=1 // pred_region
      %264 = dma.done [#allocation15], 16
    $region173: #{tpu_custom_call.1} parent=1 // pred_fallthru
      _
    // Predicated region
    $region174: #{tpu_custom_call.1} parent=1 // pred_check
      _
    $region175: #{tpu_custom_call.1} parent=1 // pred_check_branch
      %266 = sbr.rel (0) target = $region177
    $region176: #{tpu_custom_call.1} parent=1 // pred_region
      %267 = dma.done [#allocation15], 16
    $region177: #{tpu_custom_call.1} parent=1 // pred_fallthru
      _
    // Predicated region
    $region178: #{tpu_custom_call.1} parent=1 // pred_check
      _
    $region179: #{tpu_custom_call.1} parent=1 // pred_check_branch
      %269 = sbr.rel (0) target = $region181
    $region180: #{tpu_custom_call.1} parent=1 // pred_region
      %270 = dma.done [#allocation18], 16
    $region181: #{tpu_custom_call.1} parent=1 // pred_fallthru
      _
    // Predicated region
    $region182: #{tpu_custom_call.1} parent=1 // pred_check
      _
    $region183: #{tpu_custom_call.1} parent=1 // pred_check_branch
      %272 = sbr.rel (0) target = $region185
    $region184: #{tpu_custom_call.1} parent=1 // pred_region
      %273 = dma.done [#allocation18], 16
    $region185: #{tpu_custom_call.1} parent=1 // pred_fallthru
      _
    %v274 = vld [vmem:[%s1] sm:$0xff]
    %v275 = vld [vmem:[%s1 + $0x8] sm:$0xff]
    %v276 = vld [vmem:[%s1 + $0x10] sm:$0xff]
    %v277 = vld [vmem:[%s1 + $0x18] sm:$0xff]
    %v278 = vld [vmem:[%s1 + $0x20] sm:$0xff]
    %v279 = vld [vmem:[%s1 + $0x28] sm:$0xff]
    %v280 = vld [vmem:[%s1 + $0x30] sm:$0xff]
    %v281 = vld [vmem:[%s1 + $0x38] sm:$0xff]
    %v282 = vld [vmem:[%s1 + $0x40] sm:$0xff]
    %v283 = vld [vmem:[%s1 + $0x48] sm:$0xff]
    %v284 = vld [vmem:[%s1 + $0x50] sm:$0xff]
    %v285 = vld [vmem:[%s1 + $0x58] sm:$0xff]
    %v286 = vld [vmem:[%s1 + $0x60] sm:$0xff]
    %v287 = vld [vmem:[%s1 + $0x68] sm:$0xff]
    %v288 = vld [vmem:[%s1 + $0x70] sm:$0xff]
    %v289 = vld [vmem:[%s1 + $0x78] sm:$0xff]
    %v290 = vld [vmem:[#allocation2] sm:$0x1]
    %v291 = vld [vmem:[#allocation5] sm:$0x1]
    %v292 = vld [vmem:[%s7] sm:$0xff]
    %v293 = vld [vmem:[%s7 + $0x8] sm:$0xff]
    %v294 = vld [vmem:[%s7 + $0x10] sm:$0xff]
    %v295 = vld [vmem:[%s7 + $0x18] sm:$0xff]
    %v296 = vld [vmem:[#allocation7] sm:$0x1]
    %v297 = vld [vmem:[%s11] sm:$0xff]
    %v298 = vld [vmem:[%s11 + $0x8] sm:$0xff]
    %v299 = vld [vmem:[%s11 + $0x10] sm:$0xff]
    %v300 = vld [vmem:[%s11 + $0x18] sm:$0xff]
    %v301 = vld [vmem:[%s11 + $0x20] sm:$0xff]
    %v302 = vld [vmem:[%s11 + $0x28] sm:$0xff]
    %v303 = vld [vmem:[%s11 + $0x30] sm:$0xff]
    %v304 = vld [vmem:[%s11 + $0x38] sm:$0xff]
    %v305 = vld [vmem:[%s11 + $0x40] sm:$0xff]
    %v306 = vld [vmem:[%s11 + $0x48] sm:$0xff]
    %v307 = vld [vmem:[%s11 + $0x50] sm:$0xff]
    %v308 = vld [vmem:[%s11 + $0x58] sm:$0xff]
    %v309 = vld [vmem:[%s11 + $0x60] sm:$0xff]
    %v310 = vld [vmem:[%s11 + $0x68] sm:$0xff]
    %v311 = vld [vmem:[%s11 + $0x70] sm:$0xff]
    %v312 = vld [vmem:[%s11 + $0x78] sm:$0xff]
    %v313 = vld [vmem:[#allocation8] sm:$0x1]
    %vm314 = vcmask 261120
    %v315 = vsel %vm314, %v274, 0.0
    %316 = vadd.xlane.f32.xlu0 %v315
    %v317 = vpop.xlane.xlu0 %316
    %v318 = vsel %vm314, %v275, 0.0
    %319 = vadd.xlane.f32.xlu0 %v318
    %v320 = vpop.xlane.xlu0 %319
    %v321 = vsel %vm314, %v276, 0.0
    %322 = vadd.xlane.f32.xlu0 %v321
    %v323 = vpop.xlane.xlu0 %322
    %v324 = vsel %vm314, %v277, 0.0
    %325 = vadd.xlane.f32.xlu0 %v324
    %v326 = vpop.xlane.xlu0 %325
    %v327 = vsel %vm314, %v278, 0.0
    %328 = vadd.xlane.f32.xlu0 %v327
    %v329 = vpop.xlane.xlu0 %328
    %v330 = vsel %vm314, %v279, 0.0
    %331 = vadd.xlane.f32.xlu0 %v330
    %v332 = vpop.xlane.xlu0 %331
    %v333 = vsel %vm314, %v280, 0.0
    %334 = vadd.xlane.f32.xlu0 %v333
    %v335 = vpop.xlane.xlu0 %334
    %v336 = vsel %vm314, %v281, 0.0
    %337 = vadd.xlane.f32.xlu0 %v336
    %v338 = vpop.xlane.xlu0 %337
    %v339 = vsel %vm314, %v282, 0.0
    %340 = vadd.xlane.f32.xlu0 %v339
    %v341 = vpop.xlane.xlu0 %340
    %v342 = vsel %vm314, %v283, 0.0
    %343 = vadd.xlane.f32.xlu0 %v342
    %v344 = vpop.xlane.xlu0 %343
    %v345 = vsel %vm314, %v284, 0.0
    %346 = vadd.xlane.f32.xlu0 %v345
    %v347 = vpop.xlane.xlu0 %346
    %v348 = vsel %vm314, %v285, 0.0
    %349 = vadd.xlane.f32.xlu0 %v348
    %v350 = vpop.xlane.xlu0 %349
    %v351 = vsel %vm314, %v286, 0.0
    %352 = vadd.xlane.f32.xlu0 %v351
    %v353 = vpop.xlane.xlu0 %352
    %v354 = vsel %vm314, %v287, 0.0
    %355 = vadd.xlane.f32.xlu0 %v354
    %v356 = vpop.xlane.xlu0 %355
    %v357 = vsel %vm314, %v288, 0.0
    %358 = vadd.xlane.f32.xlu0 %v357
    %v359 = vpop.xlane.xlu0 %358
    %v360 = vsel %vm314, %v289, 0.0
    %361 = vadd.xlane.f32.xlu0 %v360
    %v362 = vpop.xlane.xlu0 %361
    %v363 = vrcp.pop 32.0
    %v364 = vmul.f32 %v317, %v363
    %v365 = vmul.f32 %v320, %v363
    %v366 = vmul.f32 %v323, %v363
    %v367 = vmul.f32 %v326, %v363
    %v368 = vmul.f32 %v329, %v363
    %v369 = vmul.f32 %v332, %v363
    %v370 = vmul.f32 %v335, %v363
    %v371 = vmul.f32 %v338, %v363
    %v372 = vmul.f32 %v341, %v363
    %v373 = vmul.f32 %v344, %v363
    %v374 = vmul.f32 %v347, %v363
    %v375 = vmul.f32 %v350, %v363
    %v376 = vmul.f32 %v353, %v363
    %v377 = vmul.f32 %v356, %v363
    %v378 = vmul.f32 %v359, %v363
    %v379 = vmul.f32 %v362, %v363
    %v380 = vsub.f32 %v274, %v364
    %v381 = vsub.f32 %v275, %v365
    %v382 = vsub.f32 %v276, %v366
    %v383 = vsub.f32 %v277, %v367
    %v384 = vsub.f32 %v278, %v368
    %v385 = vsub.f32 %v279, %v369
    %v386 = vsub.f32 %v280, %v370
    %v387 = vsub.f32 %v281, %v371
    %v388 = vsub.f32 %v282, %v372
    %v389 = vsub.f32 %v283, %v373
    %v390 = vsub.f32 %v284, %v374
    %v391 = vsub.f32 %v285, %v375
    %v392 = vsub.f32 %v286, %v376
    %v393 = vsub.f32 %v287, %v377
    %v394 = vsub.f32 %v288, %v378
    %v395 = vsub.f32 %v289, %v379
    %v396 = vmul.f32 %v380, %v380
    %v397 = vmul.f32 %v381, %v381
    %v398 = vmul.f32 %v382, %v382
    %v399 = vmul.f32 %v383, %v383
    %v400 = vmul.f32 %v384, %v384
    %v401 = vmul.f32 %v385, %v385
    %v402 = vmul.f32 %v386, %v386
    %v403 = vmul.f32 %v387, %v387
    %v404 = vmul.f32 %v388, %v388
    %v405 = vmul.f32 %v389, %v389
    %v406 = vmul.f32 %v390, %v390
    %v407 = vmul.f32 %v391, %v391
    %v408 = vmul.f32 %v392, %v392
    %v409 = vmul.f32 %v393, %v393
    %v410 = vmul.f32 %v394, %v394
    %v411 = vmul.f32 %v395, %v395
    %v412 = vsel %vm314, %v396, 0.0
    %413 = vadd.xlane.f32.xlu0 %v412
    %v414 = vpop.xlane.xlu0 %413
    %v415 = vsel %vm314, %v397, 0.0
    %416 = vadd.xlane.f32.xlu0 %v415
    %v417 = vpop.xlane.xlu0 %416
    %v418 = vsel %vm314, %v398, 0.0
    %419 = vadd.xlane.f32.xlu0 %v418
    %v420 = vpop.xlane.xlu0 %419
    %v421 = vsel %vm314, %v399, 0.0
    %422 = vadd.xlane.f32.xlu0 %v421
    %v423 = vpop.xlane.xlu0 %422
    %v424 = vsel %vm314, %v400, 0.0
    %425 = vadd.xlane.f32.xlu0 %v424
    %v426 = vpop.xlane.xlu0 %425
    %v427 = vsel %vm314, %v401, 0.0
    %428 = vadd.xlane.f32.xlu0 %v427
    %v429 = vpop.xlane.xlu0 %428
    %v430 = vsel %vm314, %v402, 0.0
    %431 = vadd.xlane.f32.xlu0 %v430
    %v432 = vpop.xlane.xlu0 %431
    %v433 = vsel %vm314, %v403, 0.0
    %434 = vadd.xlane.f32.xlu0 %v433
    %v435 = vpop.xlane.xlu0 %434
    %v436 = vsel %vm314, %v404, 0.0
    %437 = vadd.xlane.f32.xlu0 %v436
    %v438 = vpop.xlane.xlu0 %437
    %v439 = vsel %vm314, %v405, 0.0
    %440 = vadd.xlane.f32.xlu0 %v439
    %v441 = vpop.xlane.xlu0 %440
    %v442 = vsel %vm314, %v406, 0.0
    %443 = vadd.xlane.f32.xlu0 %v442
    %v444 = vpop.xlane.xlu0 %443
    %v445 = vsel %vm314, %v407, 0.0
    %446 = vadd.xlane.f32.xlu0 %v445
    %v447 = vpop.xlane.xlu0 %446
    %v448 = vsel %vm314, %v408, 0.0
    %449 = vadd.xlane.f32.xlu0 %v448
    %v450 = vpop.xlane.xlu0 %449
    %v451 = vsel %vm314, %v409, 0.0
    %452 = vadd.xlane.f32.xlu0 %v451
    %v453 = vpop.xlane.xlu0 %452
    %v454 = vsel %vm314, %v410, 0.0
    %455 = vadd.xlane.f32.xlu0 %v454
    %v456 = vpop.xlane.xlu0 %455
    %v457 = vsel %vm314, %v411, 0.0
    %458 = vadd.xlane.f32.xlu0 %v457
    %v459 = vpop.xlane.xlu0 %458
    %v460 = vmul.f32 %v414, %v363
    %v461 = vmul.f32 %v417, %v363
    %v462 = vmul.f32 %v420, %v363
    %v463 = vmul.f32 %v423, %v363
    %v464 = vmul.f32 %v426, %v363
    %v465 = vmul.f32 %v429, %v363
    %v466 = vmul.f32 %v432, %v363
    %v467 = vmul.f32 %v435, %v363
    %v468 = vmul.f32 %v438, %v363
    %v469 = vmul.f32 %v441, %v363
    %v470 = vmul.f32 %v444, %v363
    %v471 = vmul.f32 %v447, %v363
    %v472 = vmul.f32 %v450, %v363
    %v473 = vmul.f32 %v453, %v363
    %v474 = vmul.f32 %v456, %v363
    %v475 = vmul.f32 %v459, %v363
    %v476 = vadd.f32 %v460, 1e-05
    %v477 = vadd.f32 %v461, 1e-05
    %v478 = vadd.f32 %v462, 1e-05
    %v479 = vadd.f32 %v463, 1e-05
    %v480 = vadd.f32 %v464, 1e-05
    %v481 = vadd.f32 %v465, 1e-05
    %v482 = vadd.f32 %v466, 1e-05
    %v483 = vadd.f32 %v467, 1e-05
    %v484 = vadd.f32 %v468, 1e-05
    %v485 = vadd.f32 %v469, 1e-05
    %v486 = vadd.f32 %v470, 1e-05
    %v487 = vadd.f32 %v471, 1e-05
    %v488 = vadd.f32 %v472, 1e-05
    %v489 = vadd.f32 %v473, 1e-05
    %v490 = vadd.f32 %v474, 1e-05
    %v491 = vadd.f32 %v475, 1e-05
    %v492 = vrsqrt.pop %v476
    %v493 = vrsqrt.pop %v477
    %v494 = vrsqrt.pop %v478
    %v495 = vrsqrt.pop %v479
    %v496 = vrsqrt.pop %v480
    %v497 = vrsqrt.pop %v481
    %v498 = vrsqrt.pop %v482
    %v499 = vrsqrt.pop %v483
    %v500 = vrsqrt.pop %v484
    %v501 = vrsqrt.pop %v485
    %v502 = vrsqrt.pop %v486
    %v503 = vrsqrt.pop %v487
    %v504 = vrsqrt.pop %v488
    %v505 = vrsqrt.pop %v489
    %v506 = vrsqrt.pop %v490
    %v507 = vrsqrt.pop %v491
    %v508 = vmul.f32 %v380, %v492
    %v509 = vmul.f32 %v381, %v493
    %v510 = vmul.f32 %v382, %v494
    %v511 = vmul.f32 %v383, %v495
    %v512 = vmul.f32 %v384, %v496
    %v513 = vmul.f32 %v385, %v497
    %v514 = vmul.f32 %v386, %v498
    %v515 = vmul.f32 %v387, %v499
    %v516 = vmul.f32 %v388, %v500
    %v517 = vmul.f32 %v389, %v501
    %v518 = vmul.f32 %v390, %v502
    %v519 = vmul.f32 %v391, %v503
    %v520 = vmul.f32 %v392, %v504
    %v521 = vmul.f32 %v393, %v505
    %v522 = vmul.f32 %v394, %v506
    %v523 = vmul.f32 %v395, %v507
    %v525 = vlaneseq
    %v526 = vshrl.u32 %v525, 7
    %v527 = vsub.s32 0, %v526
    %v528 = vrot.slane %v290, %v527
    %v530 = vmul.f32 %v508, %v528
    %v531 = vmul.f32 %v509, %v528
    %v532 = vmul.f32 %v510, %v528
    %v533 = vmul.f32 %v511, %v528
    %v534 = vmul.f32 %v512, %v528
    %v535 = vmul.f32 %v513, %v528
    %v536 = vmul.f32 %v514, %v528
    %v537 = vmul.f32 %v515, %v528
    %v538 = vmul.f32 %v516, %v528
    %v539 = vmul.f32 %v517, %v528
    %v540 = vmul.f32 %v518, %v528
    %v541 = vmul.f32 %v519, %v528
    %v542 = vmul.f32 %v520, %v528
    %v543 = vmul.f32 %v521, %v528
    %v544 = vmul.f32 %v522, %v528
    %v545 = vmul.f32 %v523, %v528
    %v547 = vlaneseq
    %v548 = vshrl.u32 %v547, 7
    %v549 = vsub.s32 0, %v548
    %v550 = vrot.slane %v291, %v549
    %v552 = vadd.f32 %v530, %v550
    %v553 = vadd.f32 %v531, %v550
    %v554 = vadd.f32 %v532, %v550
    %v555 = vadd.f32 %v533, %v550
    %v556 = vadd.f32 %v534, %v550
    %v557 = vadd.f32 %v535, %v550
    %v558 = vadd.f32 %v536, %v550
    %v559 = vadd.f32 %v537, %v550
    %v560 = vadd.f32 %v538, %v550
    %v561 = vadd.f32 %v539, %v550
    %v562 = vadd.f32 %v540, %v550
    %v563 = vadd.f32 %v541, %v550
    %v564 = vadd.f32 %v542, %v550
    %v565 = vadd.f32 %v543, %v550
    %v566 = vadd.f32 %v544, %v550
    %v567 = vadd.f32 %v545, %v550
    %v569 = vlaneseq
    %v570 = vshrl.u32 %v569, 7
    %v571 = vsub.s32 0, %v570
    %v572 = vrot.slane %v296, %v571
    %v575 = vsel %vm314, %v552, 0
    %v578 = vsel %vm314, %v553, 0
    %v581 = vsel %vm314, %v554, 0
    %v584 = vsel %vm314, %v555, 0
    %v587 = vsel %vm314, %v556, 0
    %v590 = vsel %vm314, %v557, 0
    %v593 = vsel %vm314, %v558, 0
    %v596 = vsel %vm314, %v559, 0
    %v599 = vsel %vm314, %v560, 0
    %v602 = vsel %vm314, %v561, 0
    %v605 = vsel %vm314, %v562, 0
    %v608 = vsel %vm314, %v563, 0
    %v611 = vsel %vm314, %v564, 0
    %v614 = vsel %vm314, %v565, 0
    %v617 = vsel %vm314, %v566, 0
    %v620 = vsel %vm314, %v567, 0
    %622 = vmatprep.subr.mxu0 0.0
    %623 = vmatpush1.msra.mxu0 %v292
    %624 = vmatprep.subr.mxu0 0.0
    %625 = vmatpush1.msra.mxu0 %v293
    %626 = vmatprep.subr.mxu0 0.0
    %627 = vmatpush1.msra.mxu0 %v294
    %628 = vmatprep.subr.mxu0 0.0
    %629 = vmatpush1.msra.mxu0 %v295
    %630 = vmatprep.subr.mxu0 0.0
    %631 = vmatpush1.msra.mxu0 0.0
    %632 = vmatprep.subr.mxu0 0.0
    %633 = vmatpush1.msra.mxu0 0.0
    %634 = vmatprep.subr.mxu0 0.0
    %635 = vmatpush1.msra.mxu0 0.0
    %636 = vmatprep.subr.mxu0 0.0
    %637 = vmatpush1.msra.mxu0 0.0
    %638 = vmatprep.subr.mxu0 0.0
    %639 = vmatpush1.msra.mxu0 0.0
    %640 = vmatprep.subr.mxu0 0.0
    %641 = vmatpush1.msra.mxu0 0.0
    %642 = vmatprep.subr.mxu0 0.0
    %643 = vmatpush1.msra.mxu0 0.0
    %644 = vmatprep.subr.mxu0 0.0
    %645 = vmatpush1.msra.mxu0 0.0
    %646 = vmatprep.subr.mxu0 0.0
    %647 = vmatpush1.msra.mxu0 0.0
    %648 = vmatprep.subr.mxu0 0.0
    %649 = vmatpush1.msra.mxu0 0.0
    %650 = vmatprep.subr.mxu0 0.0
    %651 = vmatpush1.msra.mxu0 0.0
    %652 = vmatprep.subr.mxu0 0.0
    %653 = vmatpush1.msra.mxu0 0.0
    %654 = vmatprep.subr.mxu0 0.0
    %655 = vmatpush1.msra.mxu0 0.0
    %656 = vmatprep.subr.mxu0 0.0
    %657 = vmatpush1.msra.mxu0 0.0
    %658 = vmatprep.subr.mxu0 0.0
    %659 = vmatpush1.msra.mxu0 0.0
    %660 = vmatprep.subr.mxu0 0.0
    %661 = vmatpush1.msra.mxu0 0.0
    %662 = vmatprep.subr.mxu0 0.0
    %663 = vmatpush1.msra.mxu0 0.0
    %664 = vmatprep.subr.mxu0 0.0
    %665 = vmatpush1.msra.mxu0 0.0
    %666 = vmatprep.subr.mxu0 0.0
    %667 = vmatpush1.msra.mxu0 0.0
    %668 = vmatprep.subr.mxu0 0.0
    %669 = vmatpush1.msra.mxu0 0.0
    %670 = vmatprep.subr.mxu0 0.0
    %671 = vmatpush1.msra.mxu0 0.0
    %672 = vmatprep.subr.mxu0 0.0
    %673 = vmatpush1.msra.mxu0 0.0
    %674 = vmatprep.subr.mxu0 0.0
    %675 = vmatpush1.msra.mxu0 0.0
    %676 = vmatprep.subr.mxu0 0.0
    %677 = vmatpush1.msra.mxu0 0.0
    %678 = vmatprep.subr.mxu0 0.0
    %679 = vmatpush1.msra.mxu0 0.0
    %680 = vmatprep.subr.mxu0 0.0
    %681 = vmatpush1.msra.mxu0 0.0
    %682 = vmatprep.subr.mxu0 0.0
    %683 = vmatpush1.msra.mxu0 0.0
    %684 = vmatprep.subr.mxu0 0.0
    %685 = vmatpush1.msra.mxu0 0.0
    %686 = vmatprep.mubr.f32.mxu0 0.0
    %687 = vmatmul.mubr.f32.gmra.mrb[0].mxu0 %v575
    %v688 = vpop.f32.mrb[0].mxu0
    %v689 = vadd.f32 %v572, %v688
    %v690 = vpop.f32.mrb[0].mxu0
    %691 = vmatprep.mubr.f32.mxu0 0.0
    %692 = vmatmul.mubr.f32.gmra.mrb[0].mxu0 %v578
    %v693 = vpop.f32.mrb[0].mxu0
    %v694 = vadd.f32 %v572, %v693
    %v695 = vpop.f32.mrb[0].mxu0
    %696 = vmatprep.mubr.f32.mxu0 0.0
    %697 = vmatmul.mubr.f32.gmra.mrb[0].mxu0 %v581
    %v698 = vpop.f32.mrb[0].mxu0
    %v699 = vadd.f32 %v572, %v698
    %v700 = vpop.f32.mrb[0].mxu0
    %701 = vmatprep.mubr.f32.mxu0 0.0
    %702 = vmatmul.mubr.f32.gmra.mrb[0].mxu0 %v584
    %v703 = vpop.f32.mrb[0].mxu0
    %v704 = vadd.f32 %v572, %v703
    %v705 = vpop.f32.mrb[0].mxu0
    %706 = vmatprep.mubr.f32.mxu0 0.0
    %707 = vmatmul.mubr.f32.gmra.mrb[0].mxu0 %v587
    %v708 = vpop.f32.mrb[0].mxu0
    %v709 = vadd.f32 %v572, %v708
    %v710 = vpop.f32.mrb[0].mxu0
    %711 = vmatprep.mubr.f32.mxu0 0.0
    %712 = vmatmul.mubr.f32.gmra.mrb[0].mxu0 %v590
    %v713 = vpop.f32.mrb[0].mxu0
    %v714 = vadd.f32 %v572, %v713
    %v715 = vpop.f32.mrb[0].mxu0
    %716 = vmatprep.mubr.f32.mxu0 0.0
    %717 = vmatmul.mubr.f32.gmra.mrb[0].mxu0 %v593
    %v718 = vpop.f32.mrb[0].mxu0
    %v719 = vadd.f32 %v572, %v718
    %v720 = vpop.f32.mrb[0].mxu0
    %721 = vmatprep.mubr.f32.mxu0 0.0
    %722 = vmatmul.mubr.f32.gmra.mrb[0].mxu0 %v596
    %v723 = vpop.f32.mrb[0].mxu0
    %v724 = vadd.f32 %v572, %v723
    %v725 = vpop.f32.mrb[0].mxu0
    %726 = vmatprep.mubr.f32.mxu0 0.0
    %727 = vmatmul.mubr.f32.gmra.mrb[0].mxu0 %v599
    %v728 = vpop.f32.mrb[0].mxu0
    %v729 = vadd.f32 %v572, %v728
    %v730 = vpop.f32.mrb[0].mxu0
    %731 = vmatprep.mubr.f32.mxu0 0.0
    %732 = vmatmul.mubr.f32.gmra.mrb[0].mxu0 %v602
    %v733 = vpop.f32.mrb[0].mxu0
    %v734 = vadd.f32 %v572, %v733
    %v735 = vpop.f32.mrb[0].mxu0
    %736 = vmatprep.mubr.f32.mxu0 0.0
    %737 = vmatmul.mubr.f32.gmra.mrb[0].mxu0 %v605
    %v738 = vpop.f32.mrb[0].mxu0
    %v739 = vadd.f32 %v572, %v738
    %v740 = vpop.f32.mrb[0].mxu0
    %741 = vmatprep.mubr.f32.mxu0 0.0
    %742 = vmatmul.mubr.f32.gmra.mrb[0].mxu0 %v608
    %v743 = vpop.f32.mrb[0].mxu0
    %v744 = vadd.f32 %v572, %v743
    %v745 = vpop.f32.mrb[0].mxu0
    %746 = vmatprep.mubr.f32.mxu0 0.0
    %747 = vmatmul.mubr.f32.gmra.mrb[0].mxu0 %v611
    %v748 = vpop.f32.mrb[0].mxu0
    %v749 = vadd.f32 %v572, %v748
    %v750 = vpop.f32.mrb[0].mxu0
    %751 = vmatprep.mubr.f32.mxu0 0.0
    %752 = vmatmul.mubr.f32.gmra.mrb[0].mxu0 %v614
    %v753 = vpop.f32.mrb[0].mxu0
    %v754 = vadd.f32 %v572, %v753
    %v755 = vpop.f32.mrb[0].mxu0
    %756 = vmatprep.mubr.f32.mxu0 0.0
    %757 = vmatmul.mubr.f32.gmra.mrb[0].mxu0 %v617
    %v758 = vpop.f32.mrb[0].mxu0
    %v759 = vadd.f32 %v572, %v758
    %v760 = vpop.f32.mrb[0].mxu0
    %761 = vmatprep.mubr.f32.mxu0 0.0
    %762 = vmatmul.mubr.f32.gmra.mrb[0].mxu0 %v620
    %v763 = vpop.f32.mrb[0].mxu0
    %v764 = vadd.f32 %v572, %v763
    %v765 = vpop.f32.mrb[0].mxu0
    %766 = vdwg.mxu0
    %v767 = vxor.u32 %v689, 2147483648
    %v768 = vxor.u32 %v694, 2147483648
    %v769 = vxor.u32 %v699, 2147483648
    %v770 = vxor.u32 %v704, 2147483648
    %v771 = vxor.u32 %v709, 2147483648
    %v772 = vxor.u32 %v714, 2147483648
    %v773 = vxor.u32 %v719, 2147483648
    %v774 = vxor.u32 %v724, 2147483648
    %v775 = vxor.u32 %v729, 2147483648
    %v776 = vxor.u32 %v734, 2147483648
    %v777 = vxor.u32 %v739, 2147483648
    %v778 = vxor.u32 %v744, 2147483648
    %v779 = vxor.u32 %v749, 2147483648
    %v780 = vxor.u32 %v754, 2147483648
    %v781 = vxor.u32 %v759, 2147483648
    %v782 = vxor.u32 %v764, 2147483648
    %v783 = vmul.f32 %v767, 1.442695
    %v784 = vpow.pop %v783
    %v785 = vmul.f32 %v768, 1.442695
    %v786 = vpow.pop %v785
    %v787 = vmul.f32 %v769, 1.442695
    %v788 = vpow.pop %v787
    %v789 = vmul.f32 %v770, 1.442695
    %v790 = vpow.pop %v789
    %v791 = vmul.f32 %v771, 1.442695
    %v792 = vpow.pop %v791
    %v793 = vmul.f32 %v772, 1.442695
    %v794 = vpow.pop %v793
    %v795 = vmul.f32 %v773, 1.442695
    %v796 = vpow.pop %v795
    %v797 = vmul.f32 %v774, 1.442695
    %v798 = vpow.pop %v797
    %v799 = vmul.f32 %v775, 1.442695
    %v800 = vpow.pop %v799
    %v801 = vmul.f32 %v776, 1.442695
    %v802 = vpow.pop %v801
    %v803 = vmul.f32 %v777, 1.442695
    %v804 = vpow.pop %v803
    %v805 = vmul.f32 %v778, 1.442695
    %v806 = vpow.pop %v805
    %v807 = vmul.f32 %v779, 1.442695
    %v808 = vpow.pop %v807
    %v809 = vmul.f32 %v780, 1.442695
    %v810 = vpow.pop %v809
    %v811 = vmul.f32 %v781, 1.442695
    %v812 = vpow.pop %v811
    %v813 = vmul.f32 %v782, 1.442695
    %v814 = vpow.pop %v813
    %v815 = vadd.f32 %v784, 1.0
    %v816 = vadd.f32 %v786, 1.0
    %v817 = vadd.f32 %v788, 1.0
    %v818 = vadd.f32 %v790, 1.0
    %v819 = vadd.f32 %v792, 1.0
    %v820 = vadd.f32 %v794, 1.0
    %v821 = vadd.f32 %v796, 1.0
    %v822 = vadd.f32 %v798, 1.0
    %v823 = vadd.f32 %v800, 1.0
    %v824 = vadd.f32 %v802, 1.0
    %v825 = vadd.f32 %v804, 1.0
    %v826 = vadd.f32 %v806, 1.0
    %v827 = vadd.f32 %v808, 1.0
    %v828 = vadd.f32 %v810, 1.0
    %v829 = vadd.f32 %v812, 1.0
    %v830 = vadd.f32 %v814, 1.0
    %v831 = vrcp.pop %v815
    %v832 = vmul.f32 1.0, %v831
    %v833 = vrcp.pop %v816
    %v834 = vmul.f32 1.0, %v833
    %v835 = vrcp.pop %v817
    %v836 = vmul.f32 1.0, %v835
    %v837 = vrcp.pop %v818
    %v838 = vmul.f32 1.0, %v837
    %v839 = vrcp.pop %v819
    %v840 = vmul.f32 1.0, %v839
    %v841 = vrcp.pop %v820
    %v842 = vmul.f32 1.0, %v841
    %v843 = vrcp.pop %v821
    %v844 = vmul.f32 1.0, %v843
    %v845 = vrcp.pop %v822
    %v846 = vmul.f32 1.0, %v845
    %v847 = vrcp.pop %v823
    %v848 = vmul.f32 1.0, %v847
    %v849 = vrcp.pop %v824
    %v850 = vmul.f32 1.0, %v849
    %v851 = vrcp.pop %v825
    %v852 = vmul.f32 1.0, %v851
    %v853 = vrcp.pop %v826
    %v854 = vmul.f32 1.0, %v853
    %v855 = vrcp.pop %v827
    %v856 = vmul.f32 1.0, %v855
    %v857 = vrcp.pop %v828
    %v858 = vmul.f32 1.0, %v857
    %v859 = vrcp.pop %v829
    %v860 = vmul.f32 1.0, %v859
    %v861 = vrcp.pop %v830
    %v862 = vmul.f32 1.0, %v861
    %v863 = vmul.f32 %v689, %v832
    %v864 = vmul.f32 %v694, %v834
    %v865 = vmul.f32 %v699, %v836
    %v866 = vmul.f32 %v704, %v838
    %v867 = vmul.f32 %v709, %v840
    %v868 = vmul.f32 %v714, %v842
    %v869 = vmul.f32 %v719, %v844
    %v870 = vmul.f32 %v724, %v846
    %v871 = vmul.f32 %v729, %v848
    %v872 = vmul.f32 %v734, %v850
    %v873 = vmul.f32 %v739, %v852
    %v874 = vmul.f32 %v744, %v854
    %v875 = vmul.f32 %v749, %v856
    %v876 = vmul.f32 %v754, %v858
    %v877 = vmul.f32 %v759, %v860
    %v878 = vmul.f32 %v764, %v862
    %v880 = vlaneseq
    %v881 = vshrl.u32 %v880, 7
    %v882 = vsub.s32 0, %v881
    %v883 = vrot.slane %v313, %v882
    %885 = vmatprep.subr.mxu0 0.0
    %886 = vmatpush1.msra.mxu0 %v297
    %887 = vmatprep.subr.mxu0 0.0
    %888 = vmatpush1.msra.mxu0 %v298
    %889 = vmatprep.subr.mxu0 0.0
    %890 = vmatpush1.msra.mxu0 %v299
    %891 = vmatprep.subr.mxu0 0.0
    %892 = vmatpush1.msra.mxu0 %v300
    %893 = vmatprep.subr.mxu0 0.0
    %894 = vmatpush1.msra.mxu0 %v301
    %895 = vmatprep.subr.mxu0 0.0
    %896 = vmatpush1.msra.mxu0 %v302
    %897 = vmatprep.subr.mxu0 0.0
    %898 = vmatpush1.msra.mxu0 %v303
    %899 = vmatprep.subr.mxu0 0.0
    %900 = vmatpush1.msra.mxu0 %v304
    %901 = vmatprep.subr.mxu0 0.0
    %902 = vmatpush1.msra.mxu0 %v305
    %903 = vmatprep.subr.mxu0 0.0
    %904 = vmatpush1.msra.mxu0 %v306
    %905 = vmatprep.subr.mxu0 0.0
    %906 = vmatpush1.msra.mxu0 %v307
    %907 = vmatprep.subr.mxu0 0.0
    %908 = vmatpush1.msra.mxu0 %v308
    %909 = vmatprep.subr.mxu0 0.0
    %910 = vmatpush1.msra.mxu0 %v309
    %911 = vmatprep.subr.mxu0 0.0
    %912 = vmatpush1.msra.mxu0 %v310
    %913 = vmatprep.subr.mxu0 0.0
    %914 = vmatpush1.msra.mxu0 %v311
    %915 = vmatprep.subr.mxu0 0.0
    %916 = vmatpush1.msra.mxu0 %v312
    %917 = vmatprep.subr.mxu0 0.0
    %918 = vmatpush1.msra.mxu0 0.0
    %919 = vmatprep.subr.mxu0 0.0
    %920 = vmatpush1.msra.mxu0 0.0
    %921 = vmatprep.subr.mxu0 0.0
    %922 = vmatpush1.msra.mxu0 0.0
    %923 = vmatprep.subr.mxu0 0.0
    %924 = vmatpush1.msra.mxu0 0.0
    %925 = vmatprep.subr.mxu0 0.0
    %926 = vmatpush1.msra.mxu0 0.0
    %927 = vmatprep.subr.mxu0 0.0
    %928 = vmatpush1.msra.mxu0 0.0
    %929 = vmatprep.subr.mxu0 0.0
    %930 = vmatpush1.msra.mxu0 0.0
    %931 = vmatprep.subr.mxu0 0.0
    %932 = vmatpush1.msra.mxu0 0.0
    %933 = vmatprep.subr.mxu0 0.0
    %934 = vmatpush1.msra.mxu0 0.0
    %935 = vmatprep.subr.mxu0 0.0
    %936 = vmatpush1.msra.mxu0 0.0
    %937 = vmatprep.subr.mxu0 0.0
    %938 = vmatpush1.msra.mxu0 0.0
    %939 = vmatprep.subr.mxu0 0.0
    %940 = vmatpush1.msra.mxu0 0.0
    %941 = vmatprep.subr.mxu0 0.0
    %942 = vmatpush1.msra.mxu0 0.0
    %943 = vmatprep.subr.mxu0 0.0
    %944 = vmatpush1.msra.mxu0 0.0
    %945 = vmatprep.subr.mxu0 0.0
    %946 = vmatpush1.msra.mxu0 0.0
    %947 = vmatprep.subr.mxu0 0.0
    %948 = vmatpush1.msra.mxu0 0.0
    %949 = vmatprep.mubr.f32.mxu0 0.0
    %950 = vmatmul.mubr.f32.gmra.mrb[0].mxu0 %v863
    %v951 = vpop.f32.mrb[0].mxu0
    %v952 = vadd.f32 %v883, %v951
    %v953 = vpop.f32.mrb[0].mxu0
    %954 = vmatprep.mubr.f32.mxu0 0.0
    %955 = vmatmul.mubr.f32.gmra.mrb[0].mxu0 %v864
    %v956 = vpop.f32.mrb[0].mxu0
    %v957 = vadd.f32 %v883, %v956
    %v958 = vpop.f32.mrb[0].mxu0
    %959 = vmatprep.mubr.f32.mxu0 0.0
    %960 = vmatmul.mubr.f32.gmra.mrb[0].mxu0 %v865
    %v961 = vpop.f32.mrb[0].mxu0
    %v962 = vadd.f32 %v883, %v961
    %v963 = vpop.f32.mrb[0].mxu0
    %964 = vmatprep.mubr.f32.mxu0 0.0
    %965 = vmatmul.mubr.f32.gmra.mrb[0].mxu0 %v866
    %v966 = vpop.f32.mrb[0].mxu0
    %v967 = vadd.f32 %v883, %v966
    %v968 = vpop.f32.mrb[0].mxu0
    %969 = vmatprep.mubr.f32.mxu0 0.0
    %970 = vmatmul.mubr.f32.gmra.mrb[0].mxu0 %v867
    %v971 = vpop.f32.mrb[0].mxu0
    %v972 = vadd.f32 %v883, %v971
    %v973 = vpop.f32.mrb[0].mxu0
    %974 = vmatprep.mubr.f32.mxu0 0.0
    %975 = vmatmul.mubr.f32.gmra.mrb[0].mxu0 %v868
    %v976 = vpop.f32.mrb[0].mxu0
    %v977 = vadd.f32 %v883, %v976
    %v978 = vpop.f32.mrb[0].mxu0
    %979 = vmatprep.mubr.f32.mxu0 0.0
    %980 = vmatmul.mubr.f32.gmra.mrb[0].mxu0 %v869
    %v981 = vpop.f32.mrb[0].mxu0
    %v982 = vadd.f32 %v883, %v981
    %v983 = vpop.f32.mrb[0].mxu0
    %984 = vmatprep.mubr.f32.mxu0 0.0
    %985 = vmatmul.mubr.f32.gmra.mrb[0].mxu0 %v870
    %v986 = vpop.f32.mrb[0].mxu0
    %v987 = vadd.f32 %v883, %v986
    %v988 = vpop.f32.mrb[0].mxu0
    %989 = vmatprep.mubr.f32.mxu0 0.0
    %990 = vmatmul.mubr.f32.gmra.mrb[0].mxu0 %v871
    %v991 = vpop.f32.mrb[0].mxu0
    %v992 = vadd.f32 %v883, %v991
    %v993 = vpop.f32.mrb[0].mxu0
    %994 = vmatprep.mubr.f32.mxu0 0.0
    %995 = vmatmul.mubr.f32.gmra.mrb[0].mxu0 %v872
    %v996 = vpop.f32.mrb[0].mxu0
    %v997 = vadd.f32 %v883, %v996
    %v998 = vpop.f32.mrb[0].mxu0
    %999 = vmatprep.mubr.f32.mxu0 0.0
    %1000 = vmatmul.mubr.f32.gmra.mrb[0].mxu0 %v873
    %v1001 = vpop.f32.mrb[0].mxu0
    %v1002 = vadd.f32 %v883, %v1001
    %v1003 = vpop.f32.mrb[0].mxu0
    %1004 = vmatprep.mubr.f32.mxu0 0.0
    %1005 = vmatmul.mubr.f32.gmra.mrb[0].mxu0 %v874
    %v1006 = vpop.f32.mrb[0].mxu0
    %v1007 = vadd.f32 %v883, %v1006
    %v1008 = vpop.f32.mrb[0].mxu0
    %1009 = vmatprep.mubr.f32.mxu0 0.0
    %1010 = vmatmul.mubr.f32.gmra.mrb[0].mxu0 %v875
    %v1011 = vpop.f32.mrb[0].mxu0
    %v1012 = vadd.f32 %v883, %v1011
    %v1013 = vpop.f32.mrb[0].mxu0
    %1014 = vmatprep.mubr.f32.mxu0 0.0
    %1015 = vmatmul.mubr.f32.gmra.mrb[0].mxu0 %v876
    %v1016 = vpop.f32.mrb[0].mxu0
    %v1017 = vadd.f32 %v883, %v1016
    %v1018 = vpop.f32.mrb[0].mxu0
    %1019 = vmatprep.mubr.f32.mxu0 0.0
    %1020 = vmatmul.mubr.f32.gmra.mrb[0].mxu0 %v877
    %v1021 = vpop.f32.mrb[0].mxu0
    %v1022 = vadd.f32 %v883, %v1021
    %v1023 = vpop.f32.mrb[0].mxu0
    %1024 = vmatprep.mubr.f32.mxu0 0.0
    %1025 = vmatmul.mubr.f32.gmra.mrb[0].mxu0 %v878
    %v1026 = vpop.f32.mrb[0].mxu0
    %v1027 = vadd.f32 %v883, %v1026
    %v1028 = vpop.f32.mrb[0].mxu0
    %1029 = vdwg.mxu0
    %v1030 = vmul.f32 %v952, 0.5
    %v1031 = vmul.f32 %v957, 0.5
    %v1032 = vmul.f32 %v962, 0.5
    %v1033 = vmul.f32 %v967, 0.5
    %v1034 = vmul.f32 %v972, 0.5
    %v1035 = vmul.f32 %v977, 0.5
    %v1036 = vmul.f32 %v982, 0.5
    %v1037 = vmul.f32 %v987, 0.5
    %v1038 = vmul.f32 %v992, 0.5
    %v1039 = vmul.f32 %v997, 0.5
    %v1040 = vmul.f32 %v1002, 0.5
    %v1041 = vmul.f32 %v1007, 0.5
    %v1042 = vmul.f32 %v1012, 0.5
    %v1043 = vmul.f32 %v1017, 0.5
    %v1044 = vmul.f32 %v1022, 0.5
    %v1045 = vmul.f32 %v1027, 0.5
    %v1046 = vadd.f32 %v274, %v1030
    %v1047 = vadd.f32 %v275, %v1031
    %v1048 = vadd.f32 %v276, %v1032
    %v1049 = vadd.f32 %v277, %v1033
    %v1050 = vadd.f32 %v278, %v1034
    %v1051 = vadd.f32 %v279, %v1035
    %v1052 = vadd.f32 %v280, %v1036
    %v1053 = vadd.f32 %v281, %v1037
    %v1054 = vadd.f32 %v282, %v1038
    %v1055 = vadd.f32 %v283, %v1039
    %v1056 = vadd.f32 %v284, %v1040
    %v1057 = vadd.f32 %v285, %v1041
    %v1058 = vadd.f32 %v286, %v1042
    %v1059 = vadd.f32 %v287, %v1043
    %v1060 = vadd.f32 %v288, %v1044
    %v1061 = vadd.f32 %v289, %v1045
    %v1062 = vld [vmem:[#allocation10] sm:$0x1]
    %v1063 = vld [vmem:[#allocation11] sm:$0x1]
    %v1064 = vsel %vm314, %v1046, 0.0
    %1065 = vadd.xlane.f32.xlu0 %v1064
    %v1066 = vpop.xlane.xlu0 %1065
    %v1067 = vsel %vm314, %v1047, 0.0
    %1068 = vadd.xlane.f32.xlu0 %v1067
    %v1069 = vpop.xlane.xlu0 %1068
    %v1070 = vsel %vm314, %v1048, 0.0
    %1071 = vadd.xlane.f32.xlu0 %v1070
    %v1072 = vpop.xlane.xlu0 %1071
    %v1073 = vsel %vm314, %v1049, 0.0
    %1074 = vadd.xlane.f32.xlu0 %v1073
    %v1075 = vpop.xlane.xlu0 %1074
    %v1076 = vsel %vm314, %v1050, 0.0
    %1077 = vadd.xlane.f32.xlu0 %v1076
    %v1078 = vpop.xlane.xlu0 %1077
    %v1079 = vsel %vm314, %v1051, 0.0
    %1080 = vadd.xlane.f32.xlu0 %v1079
    %v1081 = vpop.xlane.xlu0 %1080
    %v1082 = vsel %vm314, %v1052, 0.0
    %1083 = vadd.xlane.f32.xlu0 %v1082
    %v1084 = vpop.xlane.xlu0 %1083
    %v1085 = vsel %vm314, %v1053, 0.0
    %1086 = vadd.xlane.f32.xlu0 %v1085
    %v1087 = vpop.xlane.xlu0 %1086
    %v1088 = vsel %vm314, %v1054, 0.0
    %1089 = vadd.xlane.f32.xlu0 %v1088
    %v1090 = vpop.xlane.xlu0 %1089
    %v1091 = vsel %vm314, %v1055, 0.0
    %1092 = vadd.xlane.f32.xlu0 %v1091
    %v1093 = vpop.xlane.xlu0 %1092
    %v1094 = vsel %vm314, %v1056, 0.0
    %1095 = vadd.xlane.f32.xlu0 %v1094
    %v1096 = vpop.xlane.xlu0 %1095
    %v1097 = vsel %vm314, %v1057, 0.0
    %1098 = vadd.xlane.f32.xlu0 %v1097
    %v1099 = vpop.xlane.xlu0 %1098
    %v1100 = vsel %vm314, %v1058, 0.0
    %1101 = vadd.xlane.f32.xlu0 %v1100
    %v1102 = vpop.xlane.xlu0 %1101
    %v1103 = vsel %vm314, %v1059, 0.0
    %1104 = vadd.xlane.f32.xlu0 %v1103
    %v1105 = vpop.xlane.xlu0 %1104
    %v1106 = vsel %vm314, %v1060, 0.0
    %1107 = vadd.xlane.f32.xlu0 %v1106
    %v1108 = vpop.xlane.xlu0 %1107
    %v1109 = vsel %vm314, %v1061, 0.0
    %1110 = vadd.xlane.f32.xlu0 %v1109
    %v1111 = vpop.xlane.xlu0 %1110
    %v1112 = vmul.f32 %v1066, %v363
    %v1113 = vmul.f32 %v1069, %v363
    %v1114 = vmul.f32 %v1072, %v363
    %v1115 = vmul.f32 %v1075, %v363
    %v1116 = vmul.f32 %v1078, %v363
    %v1117 = vmul.f32 %v1081, %v363
    %v1118 = vmul.f32 %v1084, %v363
    %v1119 = vmul.f32 %v1087, %v363
    %v1120 = vmul.f32 %v1090, %v363
    %v1121 = vmul.f32 %v1093, %v363
    %v1122 = vmul.f32 %v1096, %v363
    %v1123 = vmul.f32 %v1099, %v363
    %v1124 = vmul.f32 %v1102, %v363
    %v1125 = vmul.f32 %v1105, %v363
    %v1126 = vmul.f32 %v1108, %v363
    %v1127 = vmul.f32 %v1111, %v363
    %v1128 = vsub.f32 %v1046, %v1112
    %v1129 = vsub.f32 %v1047, %v1113
    %v1130 = vsub.f32 %v1048, %v1114
    %v1131 = vsub.f32 %v1049, %v1115
    %v1132 = vsub.f32 %v1050, %v1116
    %v1133 = vsub.f32 %v1051, %v1117
    %v1134 = vsub.f32 %v1052, %v1118
    %v1135 = vsub.f32 %v1053, %v1119
    %v1136 = vsub.f32 %v1054, %v1120
    %v1137 = vsub.f32 %v1055, %v1121
    %v1138 = vsub.f32 %v1056, %v1122
    %v1139 = vsub.f32 %v1057, %v1123
    %v1140 = vsub.f32 %v1058, %v1124
    %v1141 = vsub.f32 %v1059, %v1125
    %v1142 = vsub.f32 %v1060, %v1126
    %v1143 = vsub.f32 %v1061, %v1127
    %v1144 = vmul.f32 %v1128, %v1128
    %v1145 = vmul.f32 %v1129, %v1129
    %v1146 = vmul.f32 %v1130, %v1130
    %v1147 = vmul.f32 %v1131, %v1131
    %v1148 = vmul.f32 %v1132, %v1132
    %v1149 = vmul.f32 %v1133, %v1133
    %v1150 = vmul.f32 %v1134, %v1134
    %v1151 = vmul.f32 %v1135, %v1135
    %v1152 = vmul.f32 %v1136, %v1136
    %v1153 = vmul.f32 %v1137, %v1137
    %v1154 = vmul.f32 %v1138, %v1138
    %v1155 = vmul.f32 %v1139, %v1139
    %v1156 = vmul.f32 %v1140, %v1140
    %v1157 = vmul.f32 %v1141, %v1141
    %v1158 = vmul.f32 %v1142, %v1142
    %v1159 = vmul.f32 %v1143, %v1143
    %v1160 = vsel %vm314, %v1144, 0.0
    %1161 = vadd.xlane.f32.xlu0 %v1160
    %v1162 = vpop.xlane.xlu0 %1161
    %v1163 = vsel %vm314, %v1145, 0.0
    %1164 = vadd.xlane.f32.xlu0 %v1163
    %v1165 = vpop.xlane.xlu0 %1164
    %v1166 = vsel %vm314, %v1146, 0.0
    %1167 = vadd.xlane.f32.xlu0 %v1166
    %v1168 = vpop.xlane.xlu0 %1167
    %v1169 = vsel %vm314, %v1147, 0.0
    %1170 = vadd.xlane.f32.xlu0 %v1169
    %v1171 = vpop.xlane.xlu0 %1170
    %v1172 = vsel %vm314, %v1148, 0.0
    %1173 = vadd.xlane.f32.xlu0 %v1172
    %v1174 = vpop.xlane.xlu0 %1173
    %v1175 = vsel %vm314, %v1149, 0.0
    %1176 = vadd.xlane.f32.xlu0 %v1175
    %v1177 = vpop.xlane.xlu0 %1176
    %v1178 = vsel %vm314, %v1150, 0.0
    %1179 = vadd.xlane.f32.xlu0 %v1178
    %v1180 = vpop.xlane.xlu0 %1179
    %v1181 = vsel %vm314, %v1151, 0.0
    %1182 = vadd.xlane.f32.xlu0 %v1181
    %v1183 = vpop.xlane.xlu0 %1182
    %v1184 = vsel %vm314, %v1152, 0.0
    %1185 = vadd.xlane.f32.xlu0 %v1184
    %v1186 = vpop.xlane.xlu0 %1185
    %v1187 = vsel %vm314, %v1153, 0.0
    %1188 = vadd.xlane.f32.xlu0 %v1187
    %v1189 = vpop.xlane.xlu0 %1188
    %v1190 = vsel %vm314, %v1154, 0.0
    %1191 = vadd.xlane.f32.xlu0 %v1190
    %v1192 = vpop.xlane.xlu0 %1191
    %v1193 = vsel %vm314, %v1155, 0.0
    %1194 = vadd.xlane.f32.xlu0 %v1193
    %v1195 = vpop.xlane.xlu0 %1194
    %v1196 = vsel %vm314, %v1156, 0.0
    %1197 = vadd.xlane.f32.xlu0 %v1196
    %v1198 = vpop.xlane.xlu0 %1197
    %v1199 = vsel %vm314, %v1157, 0.0
    %1200 = vadd.xlane.f32.xlu0 %v1199
    %v1201 = vpop.xlane.xlu0 %1200
    %v1202 = vsel %vm314, %v1158, 0.0
    %1203 = vadd.xlane.f32.xlu0 %v1202
    %v1204 = vpop.xlane.xlu0 %1203
    %v1205 = vsel %vm314, %v1159, 0.0
    %1206 = vadd.xlane.f32.xlu0 %v1205
    %v1207 = vpop.xlane.xlu0 %1206
    %v1208 = vmul.f32 %v1162, %v363
    %v1209 = vmul.f32 %v1165, %v363
    %v1210 = vmul.f32 %v1168, %v363
    %v1211 = vmul.f32 %v1171, %v363
    %v1212 = vmul.f32 %v1174, %v363
    %v1213 = vmul.f32 %v1177, %v363
    %v1214 = vmul.f32 %v1180, %v363
    %v1215 = vmul.f32 %v1183, %v363
    %v1216 = vmul.f32 %v1186, %v363
    %v1217 = vmul.f32 %v1189, %v363
    %v1218 = vmul.f32 %v1192, %v363
    %v1219 = vmul.f32 %v1195, %v363
    %v1220 = vmul.f32 %v1198, %v363
    %v1221 = vmul.f32 %v1201, %v363
    %v1222 = vmul.f32 %v1204, %v363
    %v1223 = vmul.f32 %v1207, %v363
    %v1224 = vadd.f32 %v1208, 1e-05
    %v1225 = vadd.f32 %v1209, 1e-05
    %v1226 = vadd.f32 %v1210, 1e-05
    %v1227 = vadd.f32 %v1211, 1e-05
    %v1228 = vadd.f32 %v1212, 1e-05
    %v1229 = vadd.f32 %v1213, 1e-05
    %v1230 = vadd.f32 %v1214, 1e-05
    %v1231 = vadd.f32 %v1215, 1e-05
    %v1232 = vadd.f32 %v1216, 1e-05
    %v1233 = vadd.f32 %v1217, 1e-05
    %v1234 = vadd.f32 %v1218, 1e-05
    %v1235 = vadd.f32 %v1219, 1e-05
    %v1236 = vadd.f32 %v1220, 1e-05
    %v1237 = vadd.f32 %v1221, 1e-05
    %v1238 = vadd.f32 %v1222, 1e-05
    %v1239 = vadd.f32 %v1223, 1e-05
    %v1240 = vrsqrt.pop %v1224
    %v1241 = vrsqrt.pop %v1225
    %v1242 = vrsqrt.pop %v1226
    %v1243 = vrsqrt.pop %v1227
    %v1244 = vrsqrt.pop %v1228
    %v1245 = vrsqrt.pop %v1229
    %v1246 = vrsqrt.pop %v1230
    %v1247 = vrsqrt.pop %v1231
    %v1248 = vrsqrt.pop %v1232
    %v1249 = vrsqrt.pop %v1233
    %v1250 = vrsqrt.pop %v1234
    %v1251 = vrsqrt.pop %v1235
    %v1252 = vrsqrt.pop %v1236
    %v1253 = vrsqrt.pop %v1237
    %v1254 = vrsqrt.pop %v1238
    %v1255 = vrsqrt.pop %v1239
    %v1256 = vmul.f32 %v1128, %v1240
    %v1257 = vmul.f32 %v1129, %v1241
    %v1258 = vmul.f32 %v1130, %v1242
    %v1259 = vmul.f32 %v1131, %v1243
    %v1260 = vmul.f32 %v1132, %v1244
    %v1261 = vmul.f32 %v1133, %v1245
    %v1262 = vmul.f32 %v1134, %v1246
    %v1263 = vmul.f32 %v1135, %v1247
    %v1264 = vmul.f32 %v1136, %v1248
    %v1265 = vmul.f32 %v1137, %v1249
    %v1266 = vmul.f32 %v1138, %v1250
    %v1267 = vmul.f32 %v1139, %v1251
    %v1268 = vmul.f32 %v1140, %v1252
    %v1269 = vmul.f32 %v1141, %v1253
    %v1270 = vmul.f32 %v1142, %v1254
    %v1271 = vmul.f32 %v1143, %v1255
    %v1273 = vlaneseq
    %v1274 = vshrl.u32 %v1273, 7
    %v1275 = vsub.s32 0, %v1274
    %v1276 = vrot.slane %v1062, %v1275
    %v1278 = vmul.f32 %v1256, %v1276
    %v1279 = vmul.f32 %v1257, %v1276
    %v1280 = vmul.f32 %v1258, %v1276
    %v1281 = vmul.f32 %v1259, %v1276
    %v1282 = vmul.f32 %v1260, %v1276
    %v1283 = vmul.f32 %v1261, %v1276
    %v1284 = vmul.f32 %v1262, %v1276
    %v1285 = vmul.f32 %v1263, %v1276
    %v1286 = vmul.f32 %v1264, %v1276
    %v1287 = vmul.f32 %v1265, %v1276
    %v1288 = vmul.f32 %v1266, %v1276
    %v1289 = vmul.f32 %v1267, %v1276
    %v1290 = vmul.f32 %v1268, %v1276
    %v1291 = vmul.f32 %v1269, %v1276
    %v1292 = vmul.f32 %v1270, %v1276
    %v1293 = vmul.f32 %v1271, %v1276
    %v1295 = vlaneseq
    %v1296 = vshrl.u32 %v1295, 7
    %v1297 = vsub.s32 0, %v1296
    %v1298 = vrot.slane %v1063, %v1297
    %v1300 = vadd.f32 %v1278, %v1298
    %v1301 = vadd.f32 %v1279, %v1298
    %v1302 = vadd.f32 %v1280, %v1298
    %v1303 = vadd.f32 %v1281, %v1298
    %v1304 = vadd.f32 %v1282, %v1298
    %v1305 = vadd.f32 %v1283, %v1298
    %v1306 = vadd.f32 %v1284, %v1298
    %v1307 = vadd.f32 %v1285, %v1298
    %v1308 = vadd.f32 %v1286, %v1298
    %v1309 = vadd.f32 %v1287, %v1298
    %v1310 = vadd.f32 %v1288, %v1298
    %v1311 = vadd.f32 %v1289, %v1298
    %v1312 = vadd.f32 %v1290, %v1298
    %v1313 = vadd.f32 %v1291, %v1298
    %v1314 = vadd.f32 %v1292, %v1298
    %v1315 = vadd.f32 %v1293, %v1298
    %v1316 = vld [vmem:[%s19] sm:$0xff]
    %v1317 = vld [vmem:[%s19 + $0x8] sm:$0xff]
    %v1318 = vld [vmem:[%s19 + $0x10] sm:$0xff]
    %v1319 = vld [vmem:[%s19 + $0x18] sm:$0xff]
    %v1320 = vld [vmem:[#allocation13] sm:$0x1]
    %v1322 = vlaneseq
    %v1323 = vshrl.u32 %v1322, 7
    %v1324 = vsub.s32 0, %v1323
    %v1325 = vrot.slane %v1320, %v1324
    %v1328 = vsel %vm314, %v1300, 0
    %v1331 = vsel %vm314, %v1301, 0
    %v1334 = vsel %vm314, %v1302, 0
    %v1337 = vsel %vm314, %v1303, 0
    %v1340 = vsel %vm314, %v1304, 0
    %v1343 = vsel %vm314, %v1305, 0
    %v1346 = vsel %vm314, %v1306, 0
    %v1349 = vsel %vm314, %v1307, 0
    %v1352 = vsel %vm314, %v1308, 0
    %v1355 = vsel %vm314, %v1309, 0
    %v1358 = vsel %vm314, %v1310, 0
    %v1361 = vsel %vm314, %v1311, 0
    %v1364 = vsel %vm314, %v1312, 0
    %v1367 = vsel %vm314, %v1313, 0
    %v1370 = vsel %vm314, %v1314, 0
    %v1373 = vsel %vm314, %v1315, 0
    %1375 = vmatprep.subr.mxu0 0.0
    %1376 = vmatpush1.msra.mxu0 %v1316
    %1377 = vmatprep.subr.mxu0 0.0
    %1378 = vmatpush1.msra.mxu0 %v1317
    %1379 = vmatprep.subr.mxu0 0.0
    %1380 = vmatpush1.msra.mxu0 %v1318
    %1381 = vmatprep.subr.mxu0 0.0
    %1382 = vmatpush1.msra.mxu0 %v1319
    %1383 = vmatprep.subr.mxu0 0.0
    %1384 = vmatpush1.msra.mxu0 0.0
    %1385 = vmatprep.subr.mxu0 0.0
    %1386 = vmatpush1.msra.mxu0 0.0
    %1387 = vmatprep.subr.mxu0 0.0
    %1388 = vmatpush1.msra.mxu0 0.0
    %1389 = vmatprep.subr.mxu0 0.0
    %1390 = vmatpush1.msra.mxu0 0.0
    %1391 = vmatprep.subr.mxu0 0.0
    %1392 = vmatpush1.msra.mxu0 0.0
    %1393 = vmatprep.subr.mxu0 0.0
    %1394 = vmatpush1.msra.mxu0 0.0
    %1395 = vmatprep.subr.mxu0 0.0
    %1396 = vmatpush1.msra.mxu0 0.0
    %1397 = vmatprep.subr.mxu0 0.0
    %1398 = vmatpush1.msra.mxu0 0.0
    %1399 = vmatprep.subr.mxu0 0.0
    %1400 = vmatpush1.msra.mxu0 0.0
    %1401 = vmatprep.subr.mxu0 0.0
    %1402 = vmatpush1.msra.mxu0 0.0
    %1403 = vmatprep.subr.mxu0 0.0
    %1404 = vmatpush1.msra.mxu0 0.0
    %1405 = vmatprep.subr.mxu0 0.0
    %1406 = vmatpush1.msra.mxu0 0.0
    %1407 = vmatprep.subr.mxu0 0.0
    %1408 = vmatpush1.msra.mxu0 0.0
    %1409 = vmatprep.subr.mxu0 0.0
    %1410 = vmatpush1.msra.mxu0 0.0
    %1411 = vmatprep.subr.mxu0 0.0
    %1412 = vmatpush1.msra.mxu0 0.0
    %1413 = vmatprep.subr.mxu0 0.0
    %1414 = vmatpush1.msra.mxu0 0.0
    %1415 = vmatprep.subr.mxu0 0.0
    %1416 = vmatpush1.msra.mxu0 0.0
    %1417 = vmatprep.subr.mxu0 0.0
    %1418 = vmatpush1.msra.mxu0 0.0
    %1419 = vmatprep.subr.mxu0 0.0
    %1420 = vmatpush1.msra.mxu0 0.0
    %1421 = vmatprep.subr.mxu0 0.0
    %1422 = vmatpush1.msra.mxu0 0.0
    %1423 = vmatprep.subr.mxu0 0.0
    %1424 = vmatpush1.msra.mxu0 0.0
    %1425 = vmatprep.subr.mxu0 0.0
    %1426 = vmatpush1.msra.mxu0 0.0
    %1427 = vmatprep.subr.mxu0 0.0
    %1428 = vmatpush1.msra.mxu0 0.0
    %1429 = vmatprep.subr.mxu0 0.0
    %1430 = vmatpush1.msra.mxu0 0.0
    %1431 = vmatprep.subr.mxu0 0.0
    %1432 = vmatpush1.msra.mxu0 0.0
    %1433 = vmatprep.subr.mxu0 0.0
    %1434 = vmatpush1.msra.mxu0 0.0
    %1435 = vmatprep.subr.mxu0 0.0
    %1436 = vmatpush1.msra.mxu0 0.0
    %1437 = vmatprep.subr.mxu0 0.0
    %1438 = vmatpush1.msra.mxu0 0.0
    %1439 = vmatprep.mubr.f32.mxu0 0.0
    %1440 = vmatmul.mubr.f32.gmra.mrb[0].mxu0 %v1328
    %v1441 = vpop.f32.mrb[0].mxu0
    %v1442 = vadd.f32 %v1325, %v1441
    %v1443 = vpop.f32.mrb[0].mxu0
    %1444 = vmatprep.mubr.f32.mxu0 0.0
    %1445 = vmatmul.mubr.f32.gmra.mrb[0].mxu0 %v1331
    %v1446 = vpop.f32.mrb[0].mxu0
    %v1447 = vadd.f32 %v1325, %v1446
    %v1448 = vpop.f32.mrb[0].mxu0
    %1449 = vmatprep.mubr.f32.mxu0 0.0
    %1450 = vmatmul.mubr.f32.gmra.mrb[0].mxu0 %v1334
    %v1451 = vpop.f32.mrb[0].mxu0
    %v1452 = vadd.f32 %v1325, %v1451
    %v1453 = vpop.f32.mrb[0].mxu0
    %1454 = vmatprep.mubr.f32.mxu0 0.0
    %1455 = vmatmul.mubr.f32.gmra.mrb[0].mxu0 %v1337
    %v1456 = vpop.f32.mrb[0].mxu0
    %v1457 = vadd.f32 %v1325, %v1456
    %v1458 = vpop.f32.mrb[0].mxu0
    %1459 = vmatprep.mubr.f32.mxu0 0.0
    %1460 = vmatmul.mubr.f32.gmra.mrb[0].mxu0 %v1340
    %v1461 = vpop.f32.mrb[0].mxu0
    %v1462 = vadd.f32 %v1325, %v1461
    %v1463 = vpop.f32.mrb[0].mxu0
    %1464 = vmatprep.mubr.f32.mxu0 0.0
    %1465 = vmatmul.mubr.f32.gmra.mrb[0].mxu0 %v1343
    %v1466 = vpop.f32.mrb[0].mxu0
    %v1467 = vadd.f32 %v1325, %v1466
    %v1468 = vpop.f32.mrb[0].mxu0
    %1469 = vmatprep.mubr.f32.mxu0 0.0
    %1470 = vmatmul.mubr.f32.gmra.mrb[0].mxu0 %v1346
    %v1471 = vpop.f32.mrb[0].mxu0
    %v1472 = vadd.f32 %v1325, %v1471
    %v1473 = vpop.f32.mrb[0].mxu0
    %1474 = vmatprep.mubr.f32.mxu0 0.0
    %1475 = vmatmul.mubr.f32.gmra.mrb[0].mxu0 %v1349
    %v1476 = vpop.f32.mrb[0].mxu0
    %v1477 = vadd.f32 %v1325, %v1476
    %v1478 = vpop.f32.mrb[0].mxu0
    %1479 = vmatprep.mubr.f32.mxu0 0.0
    %1480 = vmatmul.mubr.f32.gmra.mrb[0].mxu0 %v1352
    %v1481 = vpop.f32.mrb[0].mxu0
    %v1482 = vadd.f32 %v1325, %v1481
    %v1483 = vpop.f32.mrb[0].mxu0
    %1484 = vmatprep.mubr.f32.mxu0 0.0
    %1485 = vmatmul.mubr.f32.gmra.mrb[0].mxu0 %v1355
    %v1486 = vpop.f32.mrb[0].mxu0
    %v1487 = vadd.f32 %v1325, %v1486
    %v1488 = vpop.f32.mrb[0].mxu0
    %1489 = vmatprep.mubr.f32.mxu0 0.0
    %1490 = vmatmul.mubr.f32.gmra.mrb[0].mxu0 %v1358
    %v1491 = vpop.f32.mrb[0].mxu0
    %v1492 = vadd.f32 %v1325, %v1491
    %v1493 = vpop.f32.mrb[0].mxu0
    %1494 = vmatprep.mubr.f32.mxu0 0.0
    %1495 = vmatmul.mubr.f32.gmra.mrb[0].mxu0 %v1361
    %v1496 = vpop.f32.mrb[0].mxu0
    %v1497 = vadd.f32 %v1325, %v1496
    %v1498 = vpop.f32.mrb[0].mxu0
    %1499 = vmatprep.mubr.f32.mxu0 0.0
    %1500 = vmatmul.mubr.f32.gmra.mrb[0].mxu0 %v1364
    %v1501 = vpop.f32.mrb[0].mxu0
    %v1502 = vadd.f32 %v1325, %v1501
    %v1503 = vpop.f32.mrb[0].mxu0
    %1504 = vmatprep.mubr.f32.mxu0 0.0
    %1505 = vmatmul.mubr.f32.gmra.mrb[0].mxu0 %v1367
    %v1506 = vpop.f32.mrb[0].mxu0
    %v1507 = vadd.f32 %v1325, %v1506
    %v1508 = vpop.f32.mrb[0].mxu0
    %1509 = vmatprep.mubr.f32.mxu0 0.0
    %1510 = vmatmul.mubr.f32.gmra.mrb[0].mxu0 %v1370
    %v1511 = vpop.f32.mrb[0].mxu0
    %v1512 = vadd.f32 %v1325, %v1511
    %v1513 = vpop.f32.mrb[0].mxu0
    %1514 = vmatprep.mubr.f32.mxu0 0.0
    %1515 = vmatmul.mubr.f32.gmra.mrb[0].mxu0 %v1373
    %v1516 = vpop.f32.mrb[0].mxu0
    %v1517 = vadd.f32 %v1325, %v1516
    %v1518 = vpop.f32.mrb[0].mxu0
    %1519 = vdwg.mxu0
    %v1520 = vld [vmem:[%s23] sm:$0xff]
    %v1521 = vld [vmem:[%s23 + $0x8] sm:$0xff]
    %v1522 = vld [vmem:[%s23 + $0x10] sm:$0xff]
    %v1523 = vld [vmem:[%s23 + $0x18] sm:$0xff]
    %v1524 = vld [vmem:[#allocation14] sm:$0x1]
    %v1526 = vlaneseq
    %v1527 = vshrl.u32 %v1526, 7
    %v1528 = vsub.s32 0, %v1527
    %v1529 = vrot.slane %v1524, %v1528
    %1531 = vmatprep.subr.mxu0 0.0
    %1532 = vmatpush1.msra.mxu0 %v1520
    %1533 = vmatprep.subr.mxu0 0.0
    %1534 = vmatpush1.msra.mxu0 %v1521
    %1535 = vmatprep.subr.mxu0 0.0
    %1536 = vmatpush1.msra.mxu0 %v1522
    %1537 = vmatprep.subr.mxu0 0.0
    %1538 = vmatpush1.msra.mxu0 %v1523
    %1539 = vmatprep.subr.mxu0 0.0
    %1540 = vmatpush1.msra.mxu0 0.0
    %1541 = vmatprep.subr.mxu0 0.0
    %1542 = vmatpush1.msra.mxu0 0.0
    %1543 = vmatprep.subr.mxu0 0.0
    %1544 = vmatpush1.msra.mxu0 0.0
    %1545 = vmatprep.subr.mxu0 0.0
    %1546 = vmatpush1.msra.mxu0 0.0
    %1547 = vmatprep.subr.mxu0 0.0
    %1548 = vmatpush1.msra.mxu0 0.0
    %1549 = vmatprep.subr.mxu0 0.0
    %1550 = vmatpush1.msra.mxu0 0.0
    %1551 = vmatprep.subr.mxu0 0.0
    %1552 = vmatpush1.msra.mxu0 0.0
    %1553 = vmatprep.subr.mxu0 0.0
    %1554 = vmatpush1.msra.mxu0 0.0
    %1555 = vmatprep.subr.mxu0 0.0
    %1556 = vmatpush1.msra.mxu0 0.0
    %1557 = vmatprep.subr.mxu0 0.0
    %1558 = vmatpush1.msra.mxu0 0.0
    %1559 = vmatprep.subr.mxu0 0.0
    %1560 = vmatpush1.msra.mxu0 0.0
    %1561 = vmatprep.subr.mxu0 0.0
    %1562 = vmatpush1.msra.mxu0 0.0
    %1563 = vmatprep.subr.mxu0 0.0
    %1564 = vmatpush1.msra.mxu0 0.0
    %1565 = vmatprep.subr.mxu0 0.0
    %1566 = vmatpush1.msra.mxu0 0.0
    %1567 = vmatprep.subr.mxu0 0.0
    %1568 = vmatpush1.msra.mxu0 0.0
    %1569 = vmatprep.subr.mxu0 0.0
    %1570 = vmatpush1.msra.mxu0 0.0
    %1571 = vmatprep.subr.mxu0 0.0
    %1572 = vmatpush1.msra.mxu0 0.0
    %1573 = vmatprep.subr.mxu0 0.0
    %1574 = vmatpush1.msra.mxu0 0.0
    %1575 = vmatprep.subr.mxu0 0.0
    %1576 = vmatpush1.msra.mxu0 0.0
    %1577 = vmatprep.subr.mxu0 0.0
    %1578 = vmatpush1.msra.mxu0 0.0
    %1579 = vmatprep.subr.mxu0 0.0
    %1580 = vmatpush1.msra.mxu0 0.0
    %1581 = vmatprep.subr.mxu0 0.0
    %1582 = vmatpush1.msra.mxu0 0.0
    %1583 = vmatprep.subr.mxu0 0.0
    %1584 = vmatpush1.msra.mxu0 0.0
    %1585 = vmatprep.subr.mxu0 0.0
    %1586 = vmatpush1.msra.mxu0 0.0
    %1587 = vmatprep.subr.mxu0 0.0
    %1588 = vmatpush1.msra.mxu0 0.0
    %1589 = vmatprep.subr.mxu0 0.0
    %1590 = vmatpush1.msra.mxu0 0.0
    %1591 = vmatprep.subr.mxu0 0.0
    %1592 = vmatpush1.msra.mxu0 0.0
    %1593 = vmatprep.subr.mxu0 0.0
    %1594 = vmatpush1.msra.mxu0 0.0
    %1595 = vmatprep.mubr.f32.mxu0 0.0
    %1596 = vmatmul.mubr.f32.gmra.mrb[0].mxu0 %v1328
    %v1597 = vpop.f32.mrb[0].mxu0
    %v1598 = vadd.f32 %v1529, %v1597
    %v1599 = vpop.f32.mrb[0].mxu0
    %1600 = vmatprep.mubr.f32.mxu0 0.0
    %1601 = vmatmul.mubr.f32.gmra.mrb[0].mxu0 %v1331
    %v1602 = vpop.f32.mrb[0].mxu0
    %v1603 = vadd.f32 %v1529, %v1602
    %v1604 = vpop.f32.mrb[0].mxu0
    %1605 = vmatprep.mubr.f32.mxu0 0.0
    %1606 = vmatmul.mubr.f32.gmra.mrb[0].mxu0 %v1334
    %v1607 = vpop.f32.mrb[0].mxu0
    %v1608 = vadd.f32 %v1529, %v1607
    %v1609 = vpop.f32.mrb[0].mxu0
    %1610 = vmatprep.mubr.f32.mxu0 0.0
    %1611 = vmatmul.mubr.f32.gmra.mrb[0].mxu0 %v1337
    %v1612 = vpop.f32.mrb[0].mxu0
    %v1613 = vadd.f32 %v1529, %v1612
    %v1614 = vpop.f32.mrb[0].mxu0
    %1615 = vmatprep.mubr.f32.mxu0 0.0
    %1616 = vmatmul.mubr.f32.gmra.mrb[0].mxu0 %v1340
    %v1617 = vpop.f32.mrb[0].mxu0
    %v1618 = vadd.f32 %v1529, %v1617
    %v1619 = vpop.f32.mrb[0].mxu0
    %1620 = vmatprep.mubr.f32.mxu0 0.0
    %1621 = vmatmul.mubr.f32.gmra.mrb[0].mxu0 %v1343
    %v1622 = vpop.f32.mrb[0].mxu0
    %v1623 = vadd.f32 %v1529, %v1622
    %v1624 = vpop.f32.mrb[0].mxu0
    %1625 = vmatprep.mubr.f32.mxu0 0.0
    %1626 = vmatmul.mubr.f32.gmra.mrb[0].mxu0 %v1346
    %v1627 = vpop.f32.mrb[0].mxu0
    %v1628 = vadd.f32 %v1529, %v1627
    %v1629 = vpop.f32.mrb[0].mxu0
    %1630 = vmatprep.mubr.f32.mxu0 0.0
    %1631 = vmatmul.mubr.f32.gmra.mrb[0].mxu0 %v1349
    %v1632 = vpop.f32.mrb[0].mxu0
    %v1633 = vadd.f32 %v1529, %v1632
    %v1634 = vpop.f32.mrb[0].mxu0
    %1635 = vmatprep.mubr.f32.mxu0 0.0
    %1636 = vmatmul.mubr.f32.gmra.mrb[0].mxu0 %v1352
    %v1637 = vpop.f32.mrb[0].mxu0
    %v1638 = vadd.f32 %v1529, %v1637
    %v1639 = vpop.f32.mrb[0].mxu0
    %1640 = vmatprep.mubr.f32.mxu0 0.0
    %1641 = vmatmul.mubr.f32.gmra.mrb[0].mxu0 %v1355
    %v1642 = vpop.f32.mrb[0].mxu0
    %v1643 = vadd.f32 %v1529, %v1642
    %v1644 = vpop.f32.mrb[0].mxu0
    %1645 = vmatprep.mubr.f32.mxu0 0.0
    %1646 = vmatmul.mubr.f32.gmra.mrb[0].mxu0 %v1358
    %v1647 = vpop.f32.mrb[0].mxu0
    %v1648 = vadd.f32 %v1529, %v1647
    %v1649 = vpop.f32.mrb[0].mxu0
    %1650 = vmatprep.mubr.f32.mxu0 0.0
    %1651 = vmatmul.mubr.f32.gmra.mrb[0].mxu0 %v1361
    %v1652 = vpop.f32.mrb[0].mxu0
    %v1653 = vadd.f32 %v1529, %v1652
    %v1654 = vpop.f32.mrb[0].mxu0
    %1655 = vmatprep.mubr.f32.mxu0 0.0
    %1656 = vmatmul.mubr.f32.gmra.mrb[0].mxu0 %v1364
    %v1657 = vpop.f32.mrb[0].mxu0
    %v1658 = vadd.f32 %v1529, %v1657
    %v1659 = vpop.f32.mrb[0].mxu0
    %1660 = vmatprep.mubr.f32.mxu0 0.0
    %1661 = vmatmul.mubr.f32.gmra.mrb[0].mxu0 %v1367
    %v1662 = vpop.f32.mrb[0].mxu0
    %v1663 = vadd.f32 %v1529, %v1662
    %v1664 = vpop.f32.mrb[0].mxu0
    %1665 = vmatprep.mubr.f32.mxu0 0.0
    %1666 = vmatmul.mubr.f32.gmra.mrb[0].mxu0 %v1370
    %v1667 = vpop.f32.mrb[0].mxu0
    %v1668 = vadd.f32 %v1529, %v1667
    %v1669 = vpop.f32.mrb[0].mxu0
    %1670 = vmatprep.mubr.f32.mxu0 0.0
    %1671 = vmatmul.mubr.f32.gmra.mrb[0].mxu0 %v1373
    %v1672 = vpop.f32.mrb[0].mxu0
    %v1673 = vadd.f32 %v1529, %v1672
    %v1674 = vpop.f32.mrb[0].mxu0
    %1675 = vdwg.mxu0
    %v1676 = vld [vmem:[%s27] sm:$0xff]
    %v1677 = vld [vmem:[%s27 + $0x8] sm:$0xff]
    %v1678 = vld [vmem:[%s27 + $0x10] sm:$0xff]
    %v1679 = vld [vmem:[%s27 + $0x18] sm:$0xff]
    %v1680 = vld [vmem:[#allocation16] sm:$0x1]
    %v1682 = vlaneseq
    %v1683 = vshrl.u32 %v1682, 7
    %v1684 = vsub.s32 0, %v1683
    %v1685 = vrot.slane %v1680, %v1684
    %1687 = vmatprep.subr.mxu0 0.0
    %1688 = vmatpush1.msra.mxu0 %v1676
    %1689 = vmatprep.subr.mxu0 0.0
    %1690 = vmatpush1.msra.mxu0 %v1677
    %1691 = vmatprep.subr.mxu0 0.0
    %1692 = vmatpush1.msra.mxu0 %v1678
    %1693 = vmatprep.subr.mxu0 0.0
    %1694 = vmatpush1.msra.mxu0 %v1679
    %1695 = vmatprep.subr.mxu0 0.0
    %1696 = vmatpush1.msra.mxu0 0.0
    %1697 = vmatprep.subr.mxu0 0.0
    %1698 = vmatpush1.msra.mxu0 0.0
    %1699 = vmatprep.subr.mxu0 0.0
    %1700 = vmatpush1.msra.mxu0 0.0
    %1701 = vmatprep.subr.mxu0 0.0
    %1702 = vmatpush1.msra.mxu0 0.0
    %1703 = vmatprep.subr.mxu0 0.0
    %1704 = vmatpush1.msra.mxu0 0.0
    %1705 = vmatprep.subr.mxu0 0.0
    %1706 = vmatpush1.msra.mxu0 0.0
    %1707 = vmatprep.subr.mxu0 0.0
    %1708 = vmatpush1.msra.mxu0 0.0
    %1709 = vmatprep.subr.mxu0 0.0
    %1710 = vmatpush1.msra.mxu0 0.0
    %1711 = vmatprep.subr.mxu0 0.0
    %1712 = vmatpush1.msra.mxu0 0.0
    %1713 = vmatprep.subr.mxu0 0.0
    %1714 = vmatpush1.msra.mxu0 0.0
    %1715 = vmatprep.subr.mxu0 0.0
    %1716 = vmatpush1.msra.mxu0 0.0
    %1717 = vmatprep.subr.mxu0 0.0
    %1718 = vmatpush1.msra.mxu0 0.0
    %1719 = vmatprep.subr.mxu0 0.0
    %1720 = vmatpush1.msra.mxu0 0.0
    %1721 = vmatprep.subr.mxu0 0.0
    %1722 = vmatpush1.msra.mxu0 0.0
    %1723 = vmatprep.subr.mxu0 0.0
    %1724 = vmatpush1.msra.mxu0 0.0
    %1725 = vmatprep.subr.mxu0 0.0
    %1726 = vmatpush1.msra.mxu0 0.0
    %1727 = vmatprep.subr.mxu0 0.0
    %1728 = vmatpush1.msra.mxu0 0.0
    %1729 = vmatprep.subr.mxu0 0.0
    %1730 = vmatpush1.msra.mxu0 0.0
    %1731 = vmatprep.subr.mxu0 0.0
    %1732 = vmatpush1.msra.mxu0 0.0
    %1733 = vmatprep.subr.mxu0 0.0
    %1734 = vmatpush1.msra.mxu0 0.0
    %1735 = vmatprep.subr.mxu0 0.0
    %1736 = vmatpush1.msra.mxu0 0.0
    %1737 = vmatprep.subr.mxu0 0.0
    %1738 = vmatpush1.msra.mxu0 0.0
    %1739 = vmatprep.subr.mxu0 0.0
    %1740 = vmatpush1.msra.mxu0 0.0
    %1741 = vmatprep.subr.mxu0 0.0
    %1742 = vmatpush1.msra.mxu0 0.0
    %1743 = vmatprep.subr.mxu0 0.0
    %1744 = vmatpush1.msra.mxu0 0.0
    %1745 = vmatprep.subr.mxu0 0.0
    %1746 = vmatpush1.msra.mxu0 0.0
    %1747 = vmatprep.subr.mxu0 0.0
    %1748 = vmatpush1.msra.mxu0 0.0
    %1749 = vmatprep.subr.mxu0 0.0
    %1750 = vmatpush1.msra.mxu0 0.0
    %1751 = vmatprep.mubr.f32.mxu0 0.0
    %1752 = vmatmul.mubr.f32.gmra.mrb[0].mxu0 %v1328
    %v1753 = vpop.f32.mrb[0].mxu0
    %v1754 = vadd.f32 %v1685, %v1753
    %v1755 = vpop.f32.mrb[0].mxu0
    %1756 = vmatprep.mubr.f32.mxu0 0.0
    %1757 = vmatmul.mubr.f32.gmra.mrb[0].mxu0 %v1331
    %v1758 = vpop.f32.mrb[0].mxu0
    %v1759 = vadd.f32 %v1685, %v1758
    %v1760 = vpop.f32.mrb[0].mxu0
    %1761 = vmatprep.mubr.f32.mxu0 0.0
    %1762 = vmatmul.mubr.f32.gmra.mrb[0].mxu0 %v1334
    %v1763 = vpop.f32.mrb[0].mxu0
    %v1764 = vadd.f32 %v1685, %v1763
    %v1765 = vpop.f32.mrb[0].mxu0
    %1766 = vmatprep.mubr.f32.mxu0 0.0
    %1767 = vmatmul.mubr.f32.gmra.mrb[0].mxu0 %v1337
    %v1768 = vpop.f32.mrb[0].mxu0
    %v1769 = vadd.f32 %v1685, %v1768
    %v1770 = vpop.f32.mrb[0].mxu0
    %1771 = vmatprep.mubr.f32.mxu0 0.0
    %1772 = vmatmul.mubr.f32.gmra.mrb[0].mxu0 %v1340
    %v1773 = vpop.f32.mrb[0].mxu0
    %v1774 = vadd.f32 %v1685, %v1773
    %v1775 = vpop.f32.mrb[0].mxu0
    %1776 = vmatprep.mubr.f32.mxu0 0.0
    %1777 = vmatmul.mubr.f32.gmra.mrb[0].mxu0 %v1343
    %v1778 = vpop.f32.mrb[0].mxu0
    %v1779 = vadd.f32 %v1685, %v1778
    %v1780 = vpop.f32.mrb[0].mxu0
    %1781 = vmatprep.mubr.f32.mxu0 0.0
    %1782 = vmatmul.mubr.f32.gmra.mrb[0].mxu0 %v1346
    %v1783 = vpop.f32.mrb[0].mxu0
    %v1784 = vadd.f32 %v1685, %v1783
    %v1785 = vpop.f32.mrb[0].mxu0
    %1786 = vmatprep.mubr.f32.mxu0 0.0
    %1787 = vmatmul.mubr.f32.gmra.mrb[0].mxu0 %v1349
    %v1788 = vpop.f32.mrb[0].mxu0
    %v1789 = vadd.f32 %v1685, %v1788
    %v1790 = vpop.f32.mrb[0].mxu0
    %1791 = vmatprep.mubr.f32.mxu0 0.0
    %1792 = vmatmul.mubr.f32.gmra.mrb[0].mxu0 %v1352
    %v1793 = vpop.f32.mrb[0].mxu0
    %v1794 = vadd.f32 %v1685, %v1793
    %v1795 = vpop.f32.mrb[0].mxu0
    %1796 = vmatprep.mubr.f32.mxu0 0.0
    %1797 = vmatmul.mubr.f32.gmra.mrb[0].mxu0 %v1355
    %v1798 = vpop.f32.mrb[0].mxu0
    %v1799 = vadd.f32 %v1685, %v1798
    %v1800 = vpop.f32.mrb[0].mxu0
    %1801 = vmatprep.mubr.f32.mxu0 0.0
    %1802 = vmatmul.mubr.f32.gmra.mrb[0].mxu0 %v1358
    %v1803 = vpop.f32.mrb[0].mxu0
    %v1804 = vadd.f32 %v1685, %v1803
    %v1805 = vpop.f32.mrb[0].mxu0
    %1806 = vmatprep.mubr.f32.mxu0 0.0
    %1807 = vmatmul.mubr.f32.gmra.mrb[0].mxu0 %v1361
    %v1808 = vpop.f32.mrb[0].mxu0
    %v1809 = vadd.f32 %v1685, %v1808
    %v1810 = vpop.f32.mrb[0].mxu0
    %1811 = vmatprep.mubr.f32.mxu0 0.0
    %1812 = vmatmul.mubr.f32.gmra.mrb[0].mxu0 %v1364
    %v1813 = vpop.f32.mrb[0].mxu0
    %v1814 = vadd.f32 %v1685, %v1813
    %v1815 = vpop.f32.mrb[0].mxu0
    %1816 = vmatprep.mubr.f32.mxu0 0.0
    %1817 = vmatmul.mubr.f32.gmra.mrb[0].mxu0 %v1367
    %v1818 = vpop.f32.mrb[0].mxu0
    %v1819 = vadd.f32 %v1685, %v1818
    %v1820 = vpop.f32.mrb[0].mxu0
    %1821 = vmatprep.mubr.f32.mxu0 0.0
    %1822 = vmatmul.mubr.f32.gmra.mrb[0].mxu0 %v1370
    %v1823 = vpop.f32.mrb[0].mxu0
    %v1824 = vadd.f32 %v1685, %v1823
    %v1825 = vpop.f32.mrb[0].mxu0
    %1826 = vmatprep.mubr.f32.mxu0 0.0
    %1827 = vmatmul.mubr.f32.gmra.mrb[0].mxu0 %v1373
    %v1828 = vpop.f32.mrb[0].mxu0
    %v1829 = vadd.f32 %v1685, %v1828
    %v1830 = vpop.f32.mrb[0].mxu0
    %1831 = vdwg.mxu0
    %v1832 = vlaneseq
    %v1833 = vshrl.u32 %v1832, 7
    %v1834 = vadd.s32 %v1833, 8
    %v1835 = vadd.s32 %v1833, 16
    %v1836 = vadd.s32 %v1833, 24
    %v1837 = vadd.s32 %v1833, 32
    %v1838 = vadd.s32 %v1833, 40
    %v1839 = vadd.s32 %v1833, 48
    %v1840 = vadd.s32 %v1833, 56
    %v1841 = vadd.s32 %v1833, 64
    %v1842 = vadd.s32 %v1833, 72
    %v1843 = vadd.s32 %v1833, 80
    %v1844 = vadd.s32 %v1833, 88
    %v1845 = vadd.s32 %v1833, 96
    %v1846 = vadd.s32 %v1833, 104
    %v1847 = vadd.s32 %v1833, 112
    %v1848 = vadd.s32 %v1833, 120
    %vm1849 = vcmp.lt.s32.totalorder %v1833, 0
    %v1850 = vsub.s32 0, %v1833
    %v1851 = vsel %vm1849, %v1850, %v1833
    %v1852 = vshrl.u32 %v1851, 3
    %v1853 = vand.u32 %v1851, 7
    %v1854 = vsub.s32 0, %v1853
    %v1855 = vsel %vm1849, %v1854, %v1853
    %vm1856 = vcmp.lt.s32.totalorder %v1834, 0
    %v1857 = vsub.s32 0, %v1834
    %v1858 = vsel %vm1856, %v1857, %v1834
    %v1859 = vshrl.u32 %v1858, 3
    %v1860 = vand.u32 %v1858, 7
    %v1861 = vsub.s32 0, %v1860
    %v1862 = vsel %vm1856, %v1861, %v1860
    %vm1863 = vcmp.lt.s32.totalorder %v1835, 0
    %v1864 = vsub.s32 0, %v1835
    %v1865 = vsel %vm1863, %v1864, %v1835
    %v1866 = vshrl.u32 %v1865, 3
    %v1867 = vand.u32 %v1865, 7
    %v1868 = vsub.s32 0, %v1867
    %v1869 = vsel %vm1863, %v1868, %v1867
    %vm1870 = vcmp.lt.s32.totalorder %v1836, 0
    %v1871 = vsub.s32 0, %v1836
    %v1872 = vsel %vm1870, %v1871, %v1836
    %v1873 = vshrl.u32 %v1872, 3
    %v1874 = vand.u32 %v1872, 7
    %v1875 = vsub.s32 0, %v1874
    %v1876 = vsel %vm1870, %v1875, %v1874
    %vm1877 = vcmp.lt.s32.totalorder %v1837, 0
    %v1878 = vsub.s32 0, %v1837
    %v1879 = vsel %vm1877, %v1878, %v1837
    %v1880 = vshrl.u32 %v1879, 3
    %v1881 = vand.u32 %v1879, 7
    %v1882 = vsub.s32 0, %v1881
    %v1883 = vsel %vm1877, %v1882, %v1881
    %vm1884 = vcmp.lt.s32.totalorder %v1838, 0
    %v1885 = vsub.s32 0, %v1838
    %v1886 = vsel %vm1884, %v1885, %v1838
    %v1887 = vshrl.u32 %v1886, 3
    %v1888 = vand.u32 %v1886, 7
    %v1889 = vsub.s32 0, %v1888
    %v1890 = vsel %vm1884, %v1889, %v1888
    %vm1891 = vcmp.lt.s32.totalorder %v1839, 0
    %v1892 = vsub.s32 0, %v1839
    %v1893 = vsel %vm1891, %v1892, %v1839
    %v1894 = vshrl.u32 %v1893, 3
    %v1895 = vand.u32 %v1893, 7
    %v1896 = vsub.s32 0, %v1895
    %v1897 = vsel %vm1891, %v1896, %v1895
    %vm1898 = vcmp.lt.s32.totalorder %v1840, 0
    %v1899 = vsub.s32 0, %v1840
    %v1900 = vsel %vm1898, %v1899, %v1840
    %v1901 = vshrl.u32 %v1900, 3
    %v1902 = vand.u32 %v1900, 7
    %v1903 = vsub.s32 0, %v1902
    %v1904 = vsel %vm1898, %v1903, %v1902
    %vm1905 = vcmp.lt.s32.totalorder %v1841, 0
    %v1906 = vsub.s32 0, %v1841
    %v1907 = vsel %vm1905, %v1906, %v1841
    %v1908 = vshrl.u32 %v1907, 3
    %v1909 = vand.u32 %v1907, 7
    %v1910 = vsub.s32 0, %v1909
    %v1911 = vsel %vm1905, %v1910, %v1909
    %vm1912 = vcmp.lt.s32.totalorder %v1842, 0
    %v1913 = vsub.s32 0, %v1842
    %v1914 = vsel %vm1912, %v1913, %v1842
    %v1915 = vshrl.u32 %v1914, 3
    %v1916 = vand.u32 %v1914, 7
    %v1917 = vsub.s32 0, %v1916
    %v1918 = vsel %vm1912, %v1917, %v1916
    %vm1919 = vcmp.lt.s32.totalorder %v1843, 0
    %v1920 = vsub.s32 0, %v1843
    %v1921 = vsel %vm1919, %v1920, %v1843
    %v1922 = vshrl.u32 %v1921, 3
    %v1923 = vand.u32 %v1921, 7
    %v1924 = vsub.s32 0, %v1923
    %v1925 = vsel %vm1919, %v1924, %v1923
    %vm1926 = vcmp.lt.s32.totalorder %v1844, 0
    %v1927 = vsub.s32 0, %v1844
    %v1928 = vsel %vm1926, %v1927, %v1844
    %v1929 = vshrl.u32 %v1928, 3
    %v1930 = vand.u32 %v1928, 7
    %v1931 = vsub.s32 0, %v1930
    %v1932 = vsel %vm1926, %v1931, %v1930
    %vm1933 = vcmp.lt.s32.totalorder %v1845, 0
    %v1934 = vsub.s32 0, %v1845
    %v1935 = vsel %vm1933, %v1934, %v1845
    %v1936 = vshrl.u32 %v1935, 3
    %v1937 = vand.u32 %v1935, 7
    %v1938 = vsub.s32 0, %v1937
    %v1939 = vsel %vm1933, %v1938, %v1937
    %vm1940 = vcmp.lt.s32.totalorder %v1846, 0
    %v1941 = vsub.s32 0, %v1846
    %v1942 = vsel %vm1940, %v1941, %v1846
    %v1943 = vshrl.u32 %v1942, 3
    %v1944 = vand.u32 %v1942, 7
    %v1945 = vsub.s32 0, %v1944
    %v1946 = vsel %vm1940, %v1945, %v1944
    %vm1947 = vcmp.lt.s32.totalorder %v1847, 0
    %v1948 = vsub.s32 0, %v1847
    %v1949 = vsel %vm1947, %v1948, %v1847
    %v1950 = vshrl.u32 %v1949, 3
    %v1951 = vand.u32 %v1949, 7
    %v1952 = vsub.s32 0, %v1951
    %v1953 = vsel %vm1947, %v1952, %v1951
    %vm1954 = vcmp.lt.s32.totalorder %v1848, 0
    %v1955 = vsub.s32 0, %v1848
    %v1956 = vsel %vm1954, %v1955, %v1848
    %v1957 = vshrl.u32 %v1956, 3
    %v1958 = vand.u32 %v1956, 7
    %v1959 = vsub.s32 0, %v1958
    %v1960 = vsel %vm1954, %v1959, %v1958
    %vm1961 = vcmp.ne.s32.totalorder %v1855, 0
    %vm1962 = vcmp.ne.s32.totalorder %v1862, 0
    %vm1963 = vcmp.ne.s32.totalorder %v1869, 0
    %vm1964 = vcmp.ne.s32.totalorder %v1876, 0
    %vm1965 = vcmp.ne.s32.totalorder %v1883, 0
    %vm1966 = vcmp.ne.s32.totalorder %v1890, 0
    %vm1967 = vcmp.ne.s32.totalorder %v1897, 0
    %vm1968 = vcmp.ne.s32.totalorder %v1904, 0
    %vm1969 = vcmp.ne.s32.totalorder %v1911, 0
    %vm1970 = vcmp.ne.s32.totalorder %v1918, 0
    %vm1971 = vcmp.ne.s32.totalorder %v1925, 0
    %vm1972 = vcmp.ne.s32.totalorder %v1932, 0
    %vm1973 = vcmp.ne.s32.totalorder %v1939, 0
    %vm1974 = vcmp.ne.s32.totalorder %v1946, 0
    %vm1975 = vcmp.ne.s32.totalorder %v1953, 0
    %vm1976 = vcmp.ne.s32.totalorder %v1960, 0
    %vm1977 = vcmp.lt.s32.totalorder %v1855, 0
    %vm1978 = vcmp.lt.s32.totalorder %v1862, 0
    %vm1979 = vcmp.lt.s32.totalorder %v1869, 0
    %vm1980 = vcmp.lt.s32.totalorder %v1876, 0
    %vm1981 = vcmp.lt.s32.totalorder %v1883, 0
    %vm1982 = vcmp.lt.s32.totalorder %v1890, 0
    %vm1983 = vcmp.lt.s32.totalorder %v1897, 0
    %vm1984 = vcmp.lt.s32.totalorder %v1904, 0
    %vm1985 = vcmp.lt.s32.totalorder %v1911, 0
    %vm1986 = vcmp.lt.s32.totalorder %v1918, 0
    %vm1987 = vcmp.lt.s32.totalorder %v1925, 0
    %vm1988 = vcmp.lt.s32.totalorder %v1932, 0
    %vm1989 = vcmp.lt.s32.totalorder %v1939, 0
    %vm1990 = vcmp.lt.s32.totalorder %v1946, 0
    %vm1991 = vcmp.lt.s32.totalorder %v1953, 0
    %vm1992 = vcmp.lt.s32.totalorder %v1960, 0
    %vm1993 = vmand %vm1977, %vm1961
    %vm1994 = vmand %vm1978, %vm1962
    %vm1995 = vmand %vm1979, %vm1963
    %vm1996 = vmand %vm1980, %vm1964
    %vm1997 = vmand %vm1981, %vm1965
    %vm1998 = vmand %vm1982, %vm1966
    %vm1999 = vmand %vm1983, %vm1967
    %vm2000 = vmand %vm1984, %vm1968
    %vm2001 = vmand %vm1985, %vm1969
    %vm2002 = vmand %vm1986, %vm1970
    %vm2003 = vmand %vm1987, %vm1971
    %vm2004 = vmand %vm1988, %vm1972
    %vm2005 = vmand %vm1989, %vm1973
    %vm2006 = vmand %vm1990, %vm1974
    %vm2007 = vmand %vm1991, %vm1975
    %vm2008 = vmand %vm1992, %vm1976
    %v2009 = vadd.s32 %v1855, 8
    %v2010 = vadd.s32 %v1862, 8
    %v2011 = vadd.s32 %v1869, 8
    %v2012 = vadd.s32 %v1876, 8
    %v2013 = vadd.s32 %v1883, 8
    %v2014 = vadd.s32 %v1890, 8
    %v2015 = vadd.s32 %v1897, 8
    %v2016 = vadd.s32 %v1904, 8
    %v2017 = vadd.s32 %v1911, 8
    %v2018 = vadd.s32 %v1918, 8
    %v2019 = vadd.s32 %v1925, 8
    %v2020 = vadd.s32 %v1932, 8
    %v2021 = vadd.s32 %v1939, 8
    %v2022 = vadd.s32 %v1946, 8
    %v2023 = vadd.s32 %v1953, 8
    %v2024 = vadd.s32 %v1960, 8
    %v2025 = vsel %vm1993, %v2009, %v1855
    %v2026 = vsel %vm1994, %v2010, %v1862
    %v2027 = vsel %vm1995, %v2011, %v1869
    %v2028 = vsel %vm1996, %v2012, %v1876
    %v2029 = vsel %vm1997, %v2013, %v1883
    %v2030 = vsel %vm1998, %v2014, %v1890
    %v2031 = vsel %vm1999, %v2015, %v1897
    %v2032 = vsel %vm2000, %v2016, %v1904
    %v2033 = vsel %vm2001, %v2017, %v1911
    %v2034 = vsel %vm2002, %v2018, %v1918
    %v2035 = vsel %vm2003, %v2019, %v1925
    %v2036 = vsel %vm2004, %v2020, %v1932
    %v2037 = vsel %vm2005, %v2021, %v1939
    %v2038 = vsel %vm2006, %v2022, %v1946
    %v2039 = vsel %vm2007, %v2023, %v1953
    %v2040 = vsel %vm2008, %v2024, %v1960
    %v2041 = vlaneseq
    %v2042 = vand.u32 %v2041, 127
    %vm2043 = vcmp.lt.s32.totalorder %v2042, 0
    %v2044 = vsub.s32 0, %v2042
    %v2045 = vsel %vm2043, %v2044, %v2042
    %v2046 = vshrl.u32 %v2045, 3
    %v2047 = vand.u32 %v2045, 7
    %v2048 = vsub.s32 0, %v2047
    %v2049 = vsel %vm2043, %v2048, %v2047
    %vm2050 = vcmp.ne.s32.totalorder %v2049, 0
    %vm2051 = vcmp.lt.s32.totalorder %v2049, 0
    %vm2052 = vmand %vm2051, %vm2050
    %v2053 = vadd.s32 %v2049, 8
    %v2054 = vsel %vm2052, %v2053, %v2049
    %vm2055 = vcmp.eq.s32.totalorder %v2025, %v2054
    %vm2056 = vcmp.eq.s32.totalorder %v2026, %v2054
    %vm2057 = vcmp.eq.s32.totalorder %v2027, %v2054
    %vm2058 = vcmp.eq.s32.totalorder %v2028, %v2054
    %vm2059 = vcmp.eq.s32.totalorder %v2029, %v2054
    %vm2060 = vcmp.eq.s32.totalorder %v2030, %v2054
    %vm2061 = vcmp.eq.s32.totalorder %v2031, %v2054
    %vm2062 = vcmp.eq.s32.totalorder %v2032, %v2054
    %vm2063 = vcmp.eq.s32.totalorder %v2033, %v2054
    %vm2064 = vcmp.eq.s32.totalorder %v2034, %v2054
    %vm2065 = vcmp.eq.s32.totalorder %v2035, %v2054
    %vm2066 = vcmp.eq.s32.totalorder %v2036, %v2054
    %vm2067 = vcmp.eq.s32.totalorder %v2037, %v2054
    %vm2068 = vcmp.eq.s32.totalorder %v2038, %v2054
    %vm2069 = vcmp.eq.s32.totalorder %v2039, %v2054
    %vm2070 = vcmp.eq.s32.totalorder %v2040, %v2054
    %v2071 = vmul.f32 %v1442, 0.5
    %v2072 = vmul.f32 %v1447, 0.5
    %v2073 = vmul.f32 %v1452, 0.5
    %v2074 = vmul.f32 %v1457, 0.5
    %v2075 = vmul.f32 %v1462, 0.5
    %v2076 = vmul.f32 %v1467, 0.5
    %v2077 = vmul.f32 %v1472, 0.5
    %v2078 = vmul.f32 %v1477, 0.5
    %v2079 = vmul.f32 %v1482, 0.5
    %v2080 = vmul.f32 %v1487, 0.5
    %v2081 = vmul.f32 %v1492, 0.5
    %v2082 = vmul.f32 %v1497, 0.5
    %v2083 = vmul.f32 %v1502, 0.5
    %v2084 = vmul.f32 %v1507, 0.5
    %v2085 = vmul.f32 %v1512, 0.5
    %v2086 = vmul.f32 %v1517, 0.5
    %vm2087 = vcmask 31744
    %v2089 = vsel %vm2087, %v2071, 0
    %v2092 = vsel %vm2087, %v2072, 0
    %v2095 = vsel %vm2087, %v2073, 0
    %v2098 = vsel %vm2087, %v2074, 0
    %v2101 = vsel %vm2087, %v2075, 0
    %v2104 = vsel %vm2087, %v2076, 0
    %v2107 = vsel %vm2087, %v2077, 0
    %v2110 = vsel %vm2087, %v2078, 0
    %v2113 = vsel %vm2087, %v2079, 0
    %v2116 = vsel %vm2087, %v2080, 0
    %v2119 = vsel %vm2087, %v2081, 0
    %v2122 = vsel %vm2087, %v2082, 0
    %v2125 = vsel %vm2087, %v2083, 0
    %v2128 = vsel %vm2087, %v2084, 0
    %v2131 = vsel %vm2087, %v2085, 0
    %v2134 = vsel %vm2087, %v2086, 0
    %v2137 = vsel %vm2087, %v1598, 0
    %v2140 = vsel %vm2087, %v1603, 0
    %v2143 = vsel %vm2087, %v1608, 0
    %v2146 = vsel %vm2087, %v1613, 0
    %v2149 = vsel %vm2087, %v1618, 0
    %v2152 = vsel %vm2087, %v1623, 0
    %v2155 = vsel %vm2087, %v1628, 0
    %v2158 = vsel %vm2087, %v1633, 0
    %v2161 = vsel %vm2087, %v1638, 0
    %v2164 = vsel %vm2087, %v1643, 0
    %v2167 = vsel %vm2087, %v1648, 0
    %v2170 = vsel %vm2087, %v1653, 0
    %v2173 = vsel %vm2087, %v1658, 0
    %v2176 = vsel %vm2087, %v1663, 0
    %v2179 = vsel %vm2087, %v1668, 0
    %v2182 = vsel %vm2087, %v1673, 0
    %2184 = vmatprep.subr.mxu0 0.0
    %2185 = vmatpush1.xpose.msra.mxu0 %v2137
    %2186 = vmatprep.subr.mxu0 0.0
    %2187 = vmatpush1.xpose.msra.mxu0 %v2140
    %2188 = vmatprep.subr.mxu0 0.0
    %2189 = vmatpush1.xpose.msra.mxu0 %v2143
    %2190 = vmatprep.subr.mxu0 0.0
    %2191 = vmatpush1.xpose.msra.mxu0 %v2146
    %2192 = vmatprep.subr.mxu0 0.0
    %2193 = vmatpush1.xpose.msra.mxu0 %v2149
    %2194 = vmatprep.subr.mxu0 0.0
    %2195 = vmatpush1.xpose.msra.mxu0 %v2152
    %2196 = vmatprep.subr.mxu0 0.0
    %2197 = vmatpush1.xpose.msra.mxu0 %v2155
    %2198 = vmatprep.subr.mxu0 0.0
    %2199 = vmatpush1.xpose.msra.mxu0 %v2158
    %2200 = vmatprep.subr.mxu0 0.0
    %2201 = vmatpush1.xpose.msra.mxu0 %v2161
    %2202 = vmatprep.subr.mxu0 0.0
    %2203 = vmatpush1.xpose.msra.mxu0 %v2164
    %2204 = vmatprep.subr.mxu0 0.0
    %2205 = vmatpush1.xpose.msra.mxu0 %v2167
    %2206 = vmatprep.subr.mxu0 0.0
    %2207 = vmatpush1.xpose.msra.mxu0 %v2170
    %2208 = vmatprep.subr.mxu0 0.0
    %2209 = vmatpush1.xpose.msra.mxu0 %v2173
    %2210 = vmatprep.subr.mxu0 0.0
    %2211 = vmatpush1.xpose.msra.mxu0 %v2176
    %2212 = vmatprep.subr.mxu0 0.0
    %2213 = vmatpush1.xpose.msra.mxu0 %v2179
    %2214 = vmatprep.subr.mxu0 0.0
    %2215 = vmatpush1.xpose.msra.mxu0 %v2182
    %2216 = vmatprep.subr.mxu0 0.0
    %2217 = vmatpush1.xpose.msra.mxu0 0.0
    %2218 = vmatprep.subr.mxu0 0.0
    %2219 = vmatpush1.xpose.msra.mxu0 0.0
    %2220 = vmatprep.subr.mxu0 0.0
    %2221 = vmatpush1.xpose.msra.mxu0 0.0
    %2222 = vmatprep.subr.mxu0 0.0
    %2223 = vmatpush1.xpose.msra.mxu0 0.0
    %2224 = vmatprep.subr.mxu0 0.0
    %2225 = vmatpush1.xpose.msra.mxu0 0.0
    %2226 = vmatprep.subr.mxu0 0.0
    %2227 = vmatpush1.xpose.msra.mxu0 0.0
    %2228 = vmatprep.subr.mxu0 0.0
    %2229 = vmatpush1.xpose.msra.mxu0 0.0
    %2230 = vmatprep.subr.mxu0 0.0
    %2231 = vmatpush1.xpose.msra.mxu0 0.0
    %2232 = vmatprep.subr.mxu0 0.0
    %2233 = vmatpush1.xpose.msra.mxu0 0.0
    %2234 = vmatprep.subr.mxu0 0.0
    %2235 = vmatpush1.xpose.msra.mxu0 0.0
    %2236 = vmatprep.subr.mxu0 0.0
    %2237 = vmatpush1.xpose.msra.mxu0 0.0
    %2238 = vmatprep.subr.mxu0 0.0
    %2239 = vmatpush1.xpose.msra.mxu0 0.0
    %2240 = vmatprep.subr.mxu0 0.0
    %2241 = vmatpush1.xpose.msra.mxu0 0.0
    %2242 = vmatprep.subr.mxu0 0.0
    %2243 = vmatpush1.xpose.msra.mxu0 0.0
    %2244 = vmatprep.subr.mxu0 0.0
    %2245 = vmatpush1.xpose.msra.mxu0 0.0
    %2246 = vmatprep.subr.mxu0 0.0
    %2247 = vmatpush1.xpose.msra.mxu0 0.0
    %2248 = vmatprep.mubr.f32.mxu0 0.0
    %2249 = vmatmul.mubr.f32.gmra.mrb[0].mxu0 %v2089
    %v2250 = vpop.f32.mrb[0].mxu0
    %v2251 = vadd.f32 0.0, %v2250
    %v2252 = vpop.f32.mrb[0].mxu0
    %2253 = vmatprep.mubr.f32.mxu0 0.0
    %2254 = vmatmul.mubr.f32.gmra.mrb[0].mxu0 %v2092
    %v2255 = vpop.f32.mrb[0].mxu0
    %v2256 = vadd.f32 0.0, %v2255
    %v2257 = vpop.f32.mrb[0].mxu0
    %2258 = vmatprep.mubr.f32.mxu0 0.0
    %2259 = vmatmul.mubr.f32.gmra.mrb[0].mxu0 %v2095
    %v2260 = vpop.f32.mrb[0].mxu0
    %v2261 = vadd.f32 0.0, %v2260
    %v2262 = vpop.f32.mrb[0].mxu0
    %2263 = vmatprep.mubr.f32.mxu0 0.0
    %2264 = vmatmul.mubr.f32.gmra.mrb[0].mxu0 %v2098
    %v2265 = vpop.f32.mrb[0].mxu0
    %v2266 = vadd.f32 0.0, %v2265
    %v2267 = vpop.f32.mrb[0].mxu0
    %2268 = vmatprep.mubr.f32.mxu0 0.0
    %2269 = vmatmul.mubr.f32.gmra.mrb[0].mxu0 %v2101
    %v2270 = vpop.f32.mrb[0].mxu0
    %v2271 = vadd.f32 0.0, %v2270
    %v2272 = vpop.f32.mrb[0].mxu0
    %2273 = vmatprep.mubr.f32.mxu0 0.0
    %2274 = vmatmul.mubr.f32.gmra.mrb[0].mxu0 %v2104
    %v2275 = vpop.f32.mrb[0].mxu0
    %v2276 = vadd.f32 0.0, %v2275
    %v2277 = vpop.f32.mrb[0].mxu0
    %2278 = vmatprep.mubr.f32.mxu0 0.0
    %2279 = vmatmul.mubr.f32.gmra.mrb[0].mxu0 %v2107
    %v2280 = vpop.f32.mrb[0].mxu0
    %v2281 = vadd.f32 0.0, %v2280
    %v2282 = vpop.f32.mrb[0].mxu0
    %2283 = vmatprep.mubr.f32.mxu0 0.0
    %2284 = vmatmul.mubr.f32.gmra.mrb[0].mxu0 %v2110
    %v2285 = vpop.f32.mrb[0].mxu0
    %v2286 = vadd.f32 0.0, %v2285
    %v2287 = vpop.f32.mrb[0].mxu0
    %2288 = vmatprep.mubr.f32.mxu0 0.0
    %2289 = vmatmul.mubr.f32.gmra.mrb[0].mxu0 %v2113
    %v2290 = vpop.f32.mrb[0].mxu0
    %v2291 = vadd.f32 0.0, %v2290
    %v2292 = vpop.f32.mrb[0].mxu0
    %2293 = vmatprep.mubr.f32.mxu0 0.0
    %2294 = vmatmul.mubr.f32.gmra.mrb[0].mxu0 %v2116
    %v2295 = vpop.f32.mrb[0].mxu0
    %v2296 = vadd.f32 0.0, %v2295
    %v2297 = vpop.f32.mrb[0].mxu0
    %2298 = vmatprep.mubr.f32.mxu0 0.0
    %2299 = vmatmul.mubr.f32.gmra.mrb[0].mxu0 %v2119
    %v2300 = vpop.f32.mrb[0].mxu0
    %v2301 = vadd.f32 0.0, %v2300
    %v2302 = vpop.f32.mrb[0].mxu0
    %2303 = vmatprep.mubr.f32.mxu0 0.0
    %2304 = vmatmul.mubr.f32.gmra.mrb[0].mxu0 %v2122
    %v2305 = vpop.f32.mrb[0].mxu0
    %v2306 = vadd.f32 0.0, %v2305
    %v2307 = vpop.f32.mrb[0].mxu0
    %2308 = vmatprep.mubr.f32.mxu0 0.0
    %2309 = vmatmul.mubr.f32.gmra.mrb[0].mxu0 %v2125
    %v2310 = vpop.f32.mrb[0].mxu0
    %v2311 = vadd.f32 0.0, %v2310
    %v2312 = vpop.f32.mrb[0].mxu0
    %2313 = vmatprep.mubr.f32.mxu0 0.0
    %2314 = vmatmul.mubr.f32.gmra.mrb[0].mxu0 %v2128
    %v2315 = vpop.f32.mrb[0].mxu0
    %v2316 = vadd.f32 0.0, %v2315
    %v2317 = vpop.f32.mrb[0].mxu0
    %2318 = vmatprep.mubr.f32.mxu0 0.0
    %2319 = vmatmul.mubr.f32.gmra.mrb[0].mxu0 %v2131
    %v2320 = vpop.f32.mrb[0].mxu0
    %v2321 = vadd.f32 0.0, %v2320
    %v2322 = vpop.f32.mrb[0].mxu0
    %2323 = vmatprep.mubr.f32.mxu0 0.0
    %2324 = vmatmul.mubr.f32.gmra.mrb[0].mxu0 %v2134
    %v2325 = vpop.f32.mrb[0].mxu0
    %v2326 = vadd.f32 0.0, %v2325
    %v2327 = vpop.f32.mrb[0].mxu0
    %2328 = vdwg.mxu0
    %v2329 = vsel %vm2055, %v2251, -1e+30
    %v2330 = vsel %vm2056, %v2256, -1e+30
    %v2331 = vsel %vm2057, %v2261, -1e+30
    %v2332 = vsel %vm2058, %v2266, -1e+30
    %v2333 = vsel %vm2059, %v2271, -1e+30
    %v2334 = vsel %vm2060, %v2276, -1e+30
    %v2335 = vsel %vm2061, %v2281, -1e+30
    %v2336 = vsel %vm2062, %v2286, -1e+30
    %v2337 = vsel %vm2063, %v2291, -1e+30
    %v2338 = vsel %vm2064, %v2296, -1e+30
    %v2339 = vsel %vm2065, %v2301, -1e+30
    %v2340 = vsel %vm2066, %v2306, -1e+30
    %v2341 = vsel %vm2067, %v2311, -1e+30
    %v2342 = vsel %vm2068, %v2316, -1e+30
    %v2343 = vsel %vm2069, %v2321, -1e+30
    %v2344 = vsel %vm2070, %v2326, -1e+30
    %2345 = vmax.xlane.f32.xlu0 %v2329
    %v2346 = vpop.xlane.xlu0 %2345
    %2347 = vmax.xlane.f32.xlu0 %v2330
    %v2348 = vpop.xlane.xlu0 %2347
    %2349 = vmax.xlane.f32.xlu0 %v2331
    %v2350 = vpop.xlane.xlu0 %2349
    %2351 = vmax.xlane.f32.xlu0 %v2332
    %v2352 = vpop.xlane.xlu0 %2351
    %2353 = vmax.xlane.f32.xlu0 %v2333
    %v2354 = vpop.xlane.xlu0 %2353
    %2355 = vmax.xlane.f32.xlu0 %v2334
    %v2356 = vpop.xlane.xlu0 %2355
    %2357 = vmax.xlane.f32.xlu0 %v2335
    %v2358 = vpop.xlane.xlu0 %2357
    %2359 = vmax.xlane.f32.xlu0 %v2336
    %v2360 = vpop.xlane.xlu0 %2359
    %2361 = vmax.xlane.f32.xlu0 %v2337
    %v2362 = vpop.xlane.xlu0 %2361
    %2363 = vmax.xlane.f32.xlu0 %v2338
    %v2364 = vpop.xlane.xlu0 %2363
    %2365 = vmax.xlane.f32.xlu0 %v2339
    %v2366 = vpop.xlane.xlu0 %2365
    %2367 = vmax.xlane.f32.xlu0 %v2340
    %v2368 = vpop.xlane.xlu0 %2367
    %2369 = vmax.xlane.f32.xlu0 %v2341
    %v2370 = vpop.xlane.xlu0 %2369
    %2371 = vmax.xlane.f32.xlu0 %v2342
    %v2372 = vpop.xlane.xlu0 %2371
    %2373 = vmax.xlane.f32.xlu0 %v2343
    %v2374 = vpop.xlane.xlu0 %2373
    %2375 = vmax.xlane.f32.xlu0 %v2344
    %v2376 = vpop.xlane.xlu0 %2375
    %v2377 = vsub.f32 %v2329, %v2346
    %v2378 = vsub.f32 %v2330, %v2348
    %v2379 = vsub.f32 %v2331, %v2350
    %v2380 = vsub.f32 %v2332, %v2352
    %v2381 = vsub.f32 %v2333, %v2354
    %v2382 = vsub.f32 %v2334, %v2356
    %v2383 = vsub.f32 %v2335, %v2358
    %v2384 = vsub.f32 %v2336, %v2360
    %v2385 = vsub.f32 %v2337, %v2362
    %v2386 = vsub.f32 %v2338, %v2364
    %v2387 = vsub.f32 %v2339, %v2366
    %v2388 = vsub.f32 %v2340, %v2368
    %v2389 = vsub.f32 %v2341, %v2370
    %v2390 = vsub.f32 %v2342, %v2372
    %v2391 = vsub.f32 %v2343, %v2374
    %v2392 = vsub.f32 %v2344, %v2376
    %v2393 = vmul.f32 %v2377, 1.442695
    %v2394 = vpow.pop %v2393
    %v2395 = vmul.f32 %v2378, 1.442695
    %v2396 = vpow.pop %v2395
    %v2397 = vmul.f32 %v2379, 1.442695
    %v2398 = vpow.pop %v2397
    %v2399 = vmul.f32 %v2380, 1.442695
    %v2400 = vpow.pop %v2399
    %v2401 = vmul.f32 %v2381, 1.442695
    %v2402 = vpow.pop %v2401
    %v2403 = vmul.f32 %v2382, 1.442695
    %v2404 = vpow.pop %v2403
    %v2405 = vmul.f32 %v2383, 1.442695
    %v2406 = vpow.pop %v2405
    %v2407 = vmul.f32 %v2384, 1.442695
    %v2408 = vpow.pop %v2407
    %v2409 = vmul.f32 %v2385, 1.442695
    %v2410 = vpow.pop %v2409
    %v2411 = vmul.f32 %v2386, 1.442695
    %v2412 = vpow.pop %v2411
    %v2413 = vmul.f32 %v2387, 1.442695
    %v2414 = vpow.pop %v2413
    %v2415 = vmul.f32 %v2388, 1.442695
    %v2416 = vpow.pop %v2415
    %v2417 = vmul.f32 %v2389, 1.442695
    %v2418 = vpow.pop %v2417
    %v2419 = vmul.f32 %v2390, 1.442695
    %v2420 = vpow.pop %v2419
    %v2421 = vmul.f32 %v2391, 1.442695
    %v2422 = vpow.pop %v2421
    %v2423 = vmul.f32 %v2392, 1.442695
    %v2424 = vpow.pop %v2423
    %2425 = vadd.xlane.f32.xlu0 %v2394
    %v2426 = vpop.xlane.xlu0 %2425
    %2427 = vadd.xlane.f32.xlu0 %v2396
    %v2428 = vpop.xlane.xlu0 %2427
    %2429 = vadd.xlane.f32.xlu0 %v2398
    %v2430 = vpop.xlane.xlu0 %2429
    %2431 = vadd.xlane.f32.xlu0 %v2400
    %v2432 = vpop.xlane.xlu0 %2431
    %2433 = vadd.xlane.f32.xlu0 %v2402
    %v2434 = vpop.xlane.xlu0 %2433
    %2435 = vadd.xlane.f32.xlu0 %v2404
    %v2436 = vpop.xlane.xlu0 %2435
    %2437 = vadd.xlane.f32.xlu0 %v2406
    %v2438 = vpop.xlane.xlu0 %2437
    %2439 = vadd.xlane.f32.xlu0 %v2408
    %v2440 = vpop.xlane.xlu0 %2439
    %2441 = vadd.xlane.f32.xlu0 %v2410
    %v2442 = vpop.xlane.xlu0 %2441
    %2443 = vadd.xlane.f32.xlu0 %v2412
    %v2444 = vpop.xlane.xlu0 %2443
    %2445 = vadd.xlane.f32.xlu0 %v2414
    %v2446 = vpop.xlane.xlu0 %2445
    %2447 = vadd.xlane.f32.xlu0 %v2416
    %v2448 = vpop.xlane.xlu0 %2447
    %2449 = vadd.xlane.f32.xlu0 %v2418
    %v2450 = vpop.xlane.xlu0 %2449
    %2451 = vadd.xlane.f32.xlu0 %v2420
    %v2452 = vpop.xlane.xlu0 %2451
    %2453 = vadd.xlane.f32.xlu0 %v2422
    %v2454 = vpop.xlane.xlu0 %2453
    %2455 = vadd.xlane.f32.xlu0 %v2424
    %v2456 = vpop.xlane.xlu0 %2455
    %v2457 = vrcp.pop %v2426
    %v2458 = vrcp.pop %v2428
    %v2459 = vrcp.pop %v2430
    %v2460 = vrcp.pop %v2432
    %v2461 = vrcp.pop %v2434
    %v2462 = vrcp.pop %v2436
    %v2463 = vrcp.pop %v2438
    %v2464 = vrcp.pop %v2440
    %v2465 = vrcp.pop %v2442
    %v2466 = vrcp.pop %v2444
    %v2467 = vrcp.pop %v2446
    %v2468 = vrcp.pop %v2448
    %v2469 = vrcp.pop %v2450
    %v2470 = vrcp.pop %v2452
    %v2471 = vrcp.pop %v2454
    %v2472 = vrcp.pop %v2456
    %v2473 = vmul.f32 %v2394, %v2457
    %v2474 = vmul.f32 %v2396, %v2458
    %v2475 = vmul.f32 %v2398, %v2459
    %v2476 = vmul.f32 %v2400, %v2460
    %v2477 = vmul.f32 %v2402, %v2461
    %v2478 = vmul.f32 %v2404, %v2462
    %v2479 = vmul.f32 %v2406, %v2463
    %v2480 = vmul.f32 %v2408, %v2464
    %v2481 = vmul.f32 %v2410, %v2465
    %v2482 = vmul.f32 %v2412, %v2466
    %v2483 = vmul.f32 %v2414, %v2467
    %v2484 = vmul.f32 %v2416, %v2468
    %v2485 = vmul.f32 %v2418, %v2469
    %v2486 = vmul.f32 %v2420, %v2470
    %v2487 = vmul.f32 %v2422, %v2471
    %v2488 = vmul.f32 %v2424, %v2472
    %2489 = vmatprep.subr.mxu0 0.0
    %2490 = vmatpush1.msra.mxu0 %v1754
    %2491 = vmatprep.subr.mxu0 0.0
    %2492 = vmatpush1.msra.mxu0 %v1759
    %2493 = vmatprep.subr.mxu0 0.0
    %2494 = vmatpush1.msra.mxu0 %v1764
    %2495 = vmatprep.subr.mxu0 0.0
    %2496 = vmatpush1.msra.mxu0 %v1769
    %2497 = vmatprep.subr.mxu0 0.0
    %2498 = vmatpush1.msra.mxu0 %v1774
    %2499 = vmatprep.subr.mxu0 0.0
    %2500 = vmatpush1.msra.mxu0 %v1779
    %2501 = vmatprep.subr.mxu0 0.0
    %2502 = vmatpush1.msra.mxu0 %v1784
    %2503 = vmatprep.subr.mxu0 0.0
    %2504 = vmatpush1.msra.mxu0 %v1789
    %2505 = vmatprep.subr.mxu0 0.0
    %2506 = vmatpush1.msra.mxu0 %v1794
    %2507 = vmatprep.subr.mxu0 0.0
    %2508 = vmatpush1.msra.mxu0 %v1799
    %2509 = vmatprep.subr.mxu0 0.0
    %2510 = vmatpush1.msra.mxu0 %v1804
    %2511 = vmatprep.subr.mxu0 0.0
    %2512 = vmatpush1.msra.mxu0 %v1809
    %2513 = vmatprep.subr.mxu0 0.0
    %2514 = vmatpush1.msra.mxu0 %v1814
    %2515 = vmatprep.subr.mxu0 0.0
    %2516 = vmatpush1.msra.mxu0 %v1819
    %2517 = vmatprep.subr.mxu0 0.0
    %2518 = vmatpush1.msra.mxu0 %v1824
    %2519 = vmatprep.subr.mxu0 0.0
    %2520 = vmatpush1.msra.mxu0 %v1829
    %2521 = vmatprep.subr.mxu0 0.0
    %2522 = vmatpush1.msra.mxu0 0.0
    %2523 = vmatprep.subr.mxu0 0.0
    %2524 = vmatpush1.msra.mxu0 0.0
    %2525 = vmatprep.subr.mxu0 0.0
    %2526 = vmatpush1.msra.mxu0 0.0
    %2527 = vmatprep.subr.mxu0 0.0
    %2528 = vmatpush1.msra.mxu0 0.0
    %2529 = vmatprep.subr.mxu0 0.0
    %2530 = vmatpush1.msra.mxu0 0.0
    %2531 = vmatprep.subr.mxu0 0.0
    %2532 = vmatpush1.msra.mxu0 0.0
    %2533 = vmatprep.subr.mxu0 0.0
    %2534 = vmatpush1.msra.mxu0 0.0
    %2535 = vmatprep.subr.mxu0 0.0
    %2536 = vmatpush1.msra.mxu0 0.0
    %2537 = vmatprep.subr.mxu0 0.0
    %2538 = vmatpush1.msra.mxu0 0.0
    %2539 = vmatprep.subr.mxu0 0.0
    %2540 = vmatpush1.msra.mxu0 0.0
    %2541 = vmatprep.subr.mxu0 0.0
    %2542 = vmatpush1.msra.mxu0 0.0
    %2543 = vmatprep.subr.mxu0 0.0
    %2544 = vmatpush1.msra.mxu0 0.0
    %2545 = vmatprep.subr.mxu0 0.0
    %2546 = vmatpush1.msra.mxu0 0.0
    %2547 = vmatprep.subr.mxu0 0.0
    %2548 = vmatpush1.msra.mxu0 0.0
    %2549 = vmatprep.subr.mxu0 0.0
    %2550 = vmatpush1.msra.mxu0 0.0
    %2551 = vmatprep.subr.mxu0 0.0
    %2552 = vmatpush1.msra.mxu0 0.0
    %2553 = vmatprep.mubr.f32.mxu0 0.0
    %2554 = vmatmul.mubr.f32.gmra.mrb[0].mxu0 %v2473
    %v2555 = vpop.f32.mrb[0].mxu0
    %v2556 = vadd.f32 0.0, %v2555
    %v2557 = vpop.f32.mrb[0].mxu0
    %2558 = vmatprep.mubr.f32.mxu0 0.0
    %2559 = vmatmul.mubr.f32.gmra.mrb[0].mxu0 %v2474
    %v2560 = vpop.f32.mrb[0].mxu0
    %v2561 = vadd.f32 0.0, %v2560
    %v2562 = vpop.f32.mrb[0].mxu0
    %2563 = vmatprep.mubr.f32.mxu0 0.0
    %2564 = vmatmul.mubr.f32.gmra.mrb[0].mxu0 %v2475
    %v2565 = vpop.f32.mrb[0].mxu0
    %v2566 = vadd.f32 0.0, %v2565
    %v2567 = vpop.f32.mrb[0].mxu0
    %2568 = vmatprep.mubr.f32.mxu0 0.0
    %2569 = vmatmul.mubr.f32.gmra.mrb[0].mxu0 %v2476
    %v2570 = vpop.f32.mrb[0].mxu0
    %v2571 = vadd.f32 0.0, %v2570
    %v2572 = vpop.f32.mrb[0].mxu0
    %2573 = vmatprep.mubr.f32.mxu0 0.0
    %2574 = vmatmul.mubr.f32.gmra.mrb[0].mxu0 %v2477
    %v2575 = vpop.f32.mrb[0].mxu0
    %v2576 = vadd.f32 0.0, %v2575
    %v2577 = vpop.f32.mrb[0].mxu0
    %2578 = vmatprep.mubr.f32.mxu0 0.0
    %2579 = vmatmul.mubr.f32.gmra.mrb[0].mxu0 %v2478
    %v2580 = vpop.f32.mrb[0].mxu0
    %v2581 = vadd.f32 0.0, %v2580
    %v2582 = vpop.f32.mrb[0].mxu0
    %2583 = vmatprep.mubr.f32.mxu0 0.0
    %2584 = vmatmul.mubr.f32.gmra.mrb[0].mxu0 %v2479
    %v2585 = vpop.f32.mrb[0].mxu0
    %v2586 = vadd.f32 0.0, %v2585
    %v2587 = vpop.f32.mrb[0].mxu0
    %2588 = vmatprep.mubr.f32.mxu0 0.0
    %2589 = vmatmul.mubr.f32.gmra.mrb[0].mxu0 %v2480
    %v2590 = vpop.f32.mrb[0].mxu0
    %v2591 = vadd.f32 0.0, %v2590
    %v2592 = vpop.f32.mrb[0].mxu0
    %2593 = vmatprep.mubr.f32.mxu0 0.0
    %2594 = vmatmul.mubr.f32.gmra.mrb[0].mxu0 %v2481
    %v2595 = vpop.f32.mrb[0].mxu0
    %v2596 = vadd.f32 0.0, %v2595
    %v2597 = vpop.f32.mrb[0].mxu0
    %2598 = vmatprep.mubr.f32.mxu0 0.0
    %2599 = vmatmul.mubr.f32.gmra.mrb[0].mxu0 %v2482
    %v2600 = vpop.f32.mrb[0].mxu0
    %v2601 = vadd.f32 0.0, %v2600
    %v2602 = vpop.f32.mrb[0].mxu0
    %2603 = vmatprep.mubr.f32.mxu0 0.0
    %2604 = vmatmul.mubr.f32.gmra.mrb[0].mxu0 %v2483
    %v2605 = vpop.f32.mrb[0].mxu0
    %v2606 = vadd.f32 0.0, %v2605
    %v2607 = vpop.f32.mrb[0].mxu0
    %2608 = vmatprep.mubr.f32.mxu0 0.0
    %2609 = vmatmul.mubr.f32.gmra.mrb[0].mxu0 %v2484
    %v2610 = vpop.f32.mrb[0].mxu0
    %v2611 = vadd.f32 0.0, %v2610
    %v2612 = vpop.f32.mrb[0].mxu0
    %2613 = vmatprep.mubr.f32.mxu0 0.0
    %2614 = vmatmul.mubr.f32.gmra.mrb[0].mxu0 %v2485
    %v2615 = vpop.f32.mrb[0].mxu0
    %v2616 = vadd.f32 0.0, %v2615
    %v2617 = vpop.f32.mrb[0].mxu0
    %2618 = vmatprep.mubr.f32.mxu0 0.0
    %2619 = vmatmul.mubr.f32.gmra.mrb[0].mxu0 %v2486
    %v2620 = vpop.f32.mrb[0].mxu0
    %v2621 = vadd.f32 0.0, %v2620
    %v2622 = vpop.f32.mrb[0].mxu0
    %2623 = vmatprep.mubr.f32.mxu0 0.0
    %2624 = vmatmul.mubr.f32.gmra.mrb[0].mxu0 %v2487
    %v2625 = vpop.f32.mrb[0].mxu0
    %v2626 = vadd.f32 0.0, %v2625
    %v2627 = vpop.f32.mrb[0].mxu0
    %2628 = vmatprep.mubr.f32.mxu0 0.0
    %2629 = vmatmul.mubr.f32.gmra.mrb[0].mxu0 %v2488
    %v2630 = vpop.f32.mrb[0].mxu0
    %v2631 = vadd.f32 0.0, %v2630
    %v2632 = vpop.f32.mrb[0].mxu0
    %2633 = vdwg.mxu0
    %2634 = vrot.lane.b32.xlu0 %v2071, 124
    %v2635 = vpop.permute.xlu0 %2634
    %2636 = vrot.lane.b32.xlu0 %v2072, 124
    %v2637 = vpop.permute.xlu0 %2636
    %2638 = vrot.lane.b32.xlu0 %v2073, 124
    %v2639 = vpop.permute.xlu0 %2638
    %2640 = vrot.lane.b32.xlu0 %v2074, 124
    %v2641 = vpop.permute.xlu0 %2640
    %2642 = vrot.lane.b32.xlu0 %v2075, 124
    %v2643 = vpop.permute.xlu0 %2642
    %2644 = vrot.lane.b32.xlu0 %v2076, 124
    %v2645 = vpop.permute.xlu0 %2644
    %2646 = vrot.lane.b32.xlu0 %v2077, 124
    %v2647 = vpop.permute.xlu0 %2646
    %2648 = vrot.lane.b32.xlu0 %v2078, 124
    %v2649 = vpop.permute.xlu0 %2648
    %2650 = vrot.lane.b32.xlu0 %v2079, 124
    %v2651 = vpop.permute.xlu0 %2650
    %2652 = vrot.lane.b32.xlu0 %v2080, 124
    %v2653 = vpop.permute.xlu0 %2652
    %2654 = vrot.lane.b32.xlu0 %v2081, 124
    %v2655 = vpop.permute.xlu0 %2654
    %2656 = vrot.lane.b32.xlu0 %v2082, 124
    %v2657 = vpop.permute.xlu0 %2656
    %2658 = vrot.lane.b32.xlu0 %v2083, 124
    %v2659 = vpop.permute.xlu0 %2658
    %2660 = vrot.lane.b32.xlu0 %v2084, 124
    %v2661 = vpop.permute.xlu0 %2660
    %2662 = vrot.lane.b32.xlu0 %v2085, 124
    %v2663 = vpop.permute.xlu0 %2662
    %2664 = vrot.lane.b32.xlu0 %v2086, 124
    %v2665 = vpop.permute.xlu0 %2664
    %2666 = vrot.lane.b32.xlu0 %v1598, 124
    %v2667 = vpop.permute.xlu0 %2666
    %2668 = vrot.lane.b32.xlu0 %v1603, 124
    %v2669 = vpop.permute.xlu0 %2668
    %2670 = vrot.lane.b32.xlu0 %v1608, 124
    %v2671 = vpop.permute.xlu0 %2670
    %2672 = vrot.lane.b32.xlu0 %v1613, 124
    %v2673 = vpop.permute.xlu0 %2672
    %2674 = vrot.lane.b32.xlu0 %v1618, 124
    %v2675 = vpop.permute.xlu0 %2674
    %2676 = vrot.lane.b32.xlu0 %v1623, 124
    %v2677 = vpop.permute.xlu0 %2676
    %2678 = vrot.lane.b32.xlu0 %v1628, 124
    %v2679 = vpop.permute.xlu0 %2678
    %2680 = vrot.lane.b32.xlu0 %v1633, 124
    %v2681 = vpop.permute.xlu0 %2680
    %2682 = vrot.lane.b32.xlu0 %v1638, 124
    %v2683 = vpop.permute.xlu0 %2682
    %2684 = vrot.lane.b32.xlu0 %v1643, 124
    %v2685 = vpop.permute.xlu0 %2684
    %2686 = vrot.lane.b32.xlu0 %v1648, 124
    %v2687 = vpop.permute.xlu0 %2686
    %2688 = vrot.lane.b32.xlu0 %v1653, 124
    %v2689 = vpop.permute.xlu0 %2688
    %2690 = vrot.lane.b32.xlu0 %v1658, 124
    %v2691 = vpop.permute.xlu0 %2690
    %2692 = vrot.lane.b32.xlu0 %v1663, 124
    %v2693 = vpop.permute.xlu0 %2692
    %2694 = vrot.lane.b32.xlu0 %v1668, 124
    %v2695 = vpop.permute.xlu0 %2694
    %2696 = vrot.lane.b32.xlu0 %v1673, 124
    %v2697 = vpop.permute.xlu0 %2696
    %v2698 = vsel %vm2087, %v2635, 0
    %v2700 = vsel %vm2087, %v2637, 0
    %v2702 = vsel %vm2087, %v2639, 0
    %v2704 = vsel %vm2087, %v2641, 0
    %v2706 = vsel %vm2087, %v2643, 0
    %v2708 = vsel %vm2087, %v2645, 0
    %v2710 = vsel %vm2087, %v2647, 0
    %v2712 = vsel %vm2087, %v2649, 0
    %v2714 = vsel %vm2087, %v2651, 0
    %v2716 = vsel %vm2087, %v2653, 0
    %v2718 = vsel %vm2087, %v2655, 0
    %v2720 = vsel %vm2087, %v2657, 0
    %v2722 = vsel %vm2087, %v2659, 0
    %v2724 = vsel %vm2087, %v2661, 0
    %v2726 = vsel %vm2087, %v2663, 0
    %v2728 = vsel %vm2087, %v2665, 0
    %v2730 = vsel %vm2087, %v2667, 0
    %v2732 = vsel %vm2087, %v2669, 0
    %v2734 = vsel %vm2087, %v2671, 0
    %v2736 = vsel %vm2087, %v2673, 0
    %v2738 = vsel %vm2087, %v2675, 0
    %v2740 = vsel %vm2087, %v2677, 0
    %v2742 = vsel %vm2087, %v2679, 0
    %v2744 = vsel %vm2087, %v2681, 0
    %v2746 = vsel %vm2087, %v2683, 0
    %v2748 = vsel %vm2087, %v2685, 0
    %v2750 = vsel %vm2087, %v2687, 0
    %v2752 = vsel %vm2087, %v2689, 0
    %v2754 = vsel %vm2087, %v2691, 0
    %v2756 = vsel %vm2087, %v2693, 0
    %v2758 = vsel %vm2087, %v2695, 0
    %v2760 = vsel %vm2087, %v2697, 0
    %2762 = vmatprep.subr.mxu0 0.0
    %2763 = vmatpush1.xpose.msra.mxu0 %v2730
    %2764 = vmatprep.subr.mxu0 0.0
    %2765 = vmatpush1.xpose.msra.mxu0 %v2732
    %2766 = vmatprep.subr.mxu0 0.0
    %2767 = vmatpush1.xpose.msra.mxu0 %v2734
    %2768 = vmatprep.subr.mxu0 0.0
    %2769 = vmatpush1.xpose.msra.mxu0 %v2736
    %2770 = vmatprep.subr.mxu0 0.0
    %2771 = vmatpush1.xpose.msra.mxu0 %v2738
    %2772 = vmatprep.subr.mxu0 0.0
    %2773 = vmatpush1.xpose.msra.mxu0 %v2740
    %2774 = vmatprep.subr.mxu0 0.0
    %2775 = vmatpush1.xpose.msra.mxu0 %v2742
    %2776 = vmatprep.subr.mxu0 0.0
    %2777 = vmatpush1.xpose.msra.mxu0 %v2744
    %2778 = vmatprep.subr.mxu0 0.0
    %2779 = vmatpush1.xpose.msra.mxu0 %v2746
    %2780 = vmatprep.subr.mxu0 0.0
    %2781 = vmatpush1.xpose.msra.mxu0 %v2748
    %2782 = vmatprep.subr.mxu0 0.0
    %2783 = vmatpush1.xpose.msra.mxu0 %v2750
    %2784 = vmatprep.subr.mxu0 0.0
    %2785 = vmatpush1.xpose.msra.mxu0 %v2752
    %2786 = vmatprep.subr.mxu0 0.0
    %2787 = vmatpush1.xpose.msra.mxu0 %v2754
    %2788 = vmatprep.subr.mxu0 0.0
    %2789 = vmatpush1.xpose.msra.mxu0 %v2756
    %2790 = vmatprep.subr.mxu0 0.0
    %2791 = vmatpush1.xpose.msra.mxu0 %v2758
    %2792 = vmatprep.subr.mxu0 0.0
    %2793 = vmatpush1.xpose.msra.mxu0 %v2760
    %2794 = vmatprep.subr.mxu0 0.0
    %2795 = vmatpush1.xpose.msra.mxu0 0.0
    %2796 = vmatprep.subr.mxu0 0.0
    %2797 = vmatpush1.xpose.msra.mxu0 0.0
    %2798 = vmatprep.subr.mxu0 0.0
    %2799 = vmatpush1.xpose.msra.mxu0 0.0
    %2800 = vmatprep.subr.mxu0 0.0
    %2801 = vmatpush1.xpose.msra.mxu0 0.0
    %2802 = vmatprep.subr.mxu0 0.0
    %2803 = vmatpush1.xpose.msra.mxu0 0.0
    %2804 = vmatprep.subr.mxu0 0.0
    %2805 = vmatpush1.xpose.msra.mxu0 0.0
    %2806 = vmatprep.subr.mxu0 0.0
    %2807 = vmatpush1.xpose.msra.mxu0 0.0
    %2808 = vmatprep.subr.mxu0 0.0
    %2809 = vmatpush1.xpose.msra.mxu0 0.0
    %2810 = vmatprep.subr.mxu0 0.0
    %2811 = vmatpush1.xpose.msra.mxu0 0.0
    %2812 = vmatprep.subr.mxu0 0.0
    %2813 = vmatpush1.xpose.msra.mxu0 0.0
    %2814 = vmatprep.subr.mxu0 0.0
    %2815 = vmatpush1.xpose.msra.mxu0 0.0
    %2816 = vmatprep.subr.mxu0 0.0
    %2817 = vmatpush1.xpose.msra.mxu0 0.0
    %2818 = vmatprep.subr.mxu0 0.0
    %2819 = vmatpush1.xpose.msra.mxu0 0.0
    %2820 = vmatprep.subr.mxu0 0.0
    %2821 = vmatpush1.xpose.msra.mxu0 0.0
    %2822 = vmatprep.subr.mxu0 0.0
    %2823 = vmatpush1.xpose.msra.mxu0 0.0
    %2824 = vmatprep.subr.mxu0 0.0
    %2825 = vmatpush1.xpose.msra.mxu0 0.0
    %2826 = vmatprep.mubr.f32.mxu0 0.0
    %2827 = vmatmul.mubr.f32.gmra.mrb[0].mxu0 %v2698
    %v2828 = vpop.f32.mrb[0].mxu0
    %v2829 = vadd.f32 0.0, %v2828
    %v2830 = vpop.f32.mrb[0].mxu0
    %2831 = vmatprep.mubr.f32.mxu0 0.0
    %2832 = vmatmul.mubr.f32.gmra.mrb[0].mxu0 %v2700
    %v2833 = vpop.f32.mrb[0].mxu0
    %v2834 = vadd.f32 0.0, %v2833
    %v2835 = vpop.f32.mrb[0].mxu0
    %2836 = vmatprep.mubr.f32.mxu0 0.0
    %2837 = vmatmul.mubr.f32.gmra.mrb[0].mxu0 %v2702
    %v2838 = vpop.f32.mrb[0].mxu0
    %v2839 = vadd.f32 0.0, %v2838
    %v2840 = vpop.f32.mrb[0].mxu0
    %2841 = vmatprep.mubr.f32.mxu0 0.0
    %2842 = vmatmul.mubr.f32.gmra.mrb[0].mxu0 %v2704
    %v2843 = vpop.f32.mrb[0].mxu0
    %v2844 = vadd.f32 0.0, %v2843
    %v2845 = vpop.f32.mrb[0].mxu0
    %2846 = vmatprep.mubr.f32.mxu0 0.0
    %2847 = vmatmul.mubr.f32.gmra.mrb[0].mxu0 %v2706
    %v2848 = vpop.f32.mrb[0].mxu0
    %v2849 = vadd.f32 0.0, %v2848
    %v2850 = vpop.f32.mrb[0].mxu0
    %2851 = vmatprep.mubr.f32.mxu0 0.0
    %2852 = vmatmul.mubr.f32.gmra.mrb[0].mxu0 %v2708
    %v2853 = vpop.f32.mrb[0].mxu0
    %v2854 = vadd.f32 0.0, %v2853
    %v2855 = vpop.f32.mrb[0].mxu0
    %2856 = vmatprep.mubr.f32.mxu0 0.0
    %2857 = vmatmul.mubr.f32.gmra.mrb[0].mxu0 %v2710
    %v2858 = vpop.f32.mrb[0].mxu0
    %v2859 = vadd.f32 0.0, %v2858
    %v2860 = vpop.f32.mrb[0].mxu0
    %2861 = vmatprep.mubr.f32.mxu0 0.0
    %2862 = vmatmul.mubr.f32.gmra.mrb[0].mxu0 %v2712
    %v2863 = vpop.f32.mrb[0].mxu0
    %v2864 = vadd.f32 0.0, %v2863
    %v2865 = vpop.f32.mrb[0].mxu0
    %2866 = vmatprep.mubr.f32.mxu0 0.0
    %2867 = vmatmul.mubr.f32.gmra.mrb[0].mxu0 %v2714
    %v2868 = vpop.f32.mrb[0].mxu0
    %v2869 = vadd.f32 0.0, %v2868
    %v2870 = vpop.f32.mrb[0].mxu0
    %2871 = vmatprep.mubr.f32.mxu0 0.0
    %2872 = vmatmul.mubr.f32.gmra.mrb[0].mxu0 %v2716
    %v2873 = vpop.f32.mrb[0].mxu0
    %v2874 = vadd.f32 0.0, %v2873
    %v2875 = vpop.f32.mrb[0].mxu0
    %2876 = vmatprep.mubr.f32.mxu0 0.0
    %2877 = vmatmul.mubr.f32.gmra.mrb[0].mxu0 %v2718
    %v2878 = vpop.f32.mrb[0].mxu0
    %v2879 = vadd.f32 0.0, %v2878
    %v2880 = vpop.f32.mrb[0].mxu0
    %2881 = vmatprep.mubr.f32.mxu0 0.0
    %2882 = vmatmul.mubr.f32.gmra.mrb[0].mxu0 %v2720
    %v2883 = vpop.f32.mrb[0].mxu0
    %v2884 = vadd.f32 0.0, %v2883
    %v2885 = vpop.f32.mrb[0].mxu0
    %2886 = vmatprep.mubr.f32.mxu0 0.0
    %2887 = vmatmul.mubr.f32.gmra.mrb[0].mxu0 %v2722
    %v2888 = vpop.f32.mrb[0].mxu0
    %v2889 = vadd.f32 0.0, %v2888
    %v2890 = vpop.f32.mrb[0].mxu0
    %2891 = vmatprep.mubr.f32.mxu0 0.0
    %2892 = vmatmul.mubr.f32.gmra.mrb[0].mxu0 %v2724
    %v2893 = vpop.f32.mrb[0].mxu0
    %v2894 = vadd.f32 0.0, %v2893
    %v2895 = vpop.f32.mrb[0].mxu0
    %2896 = vmatprep.mubr.f32.mxu0 0.0
    %2897 = vmatmul.mubr.f32.gmra.mrb[0].mxu0 %v2726
    %v2898 = vpop.f32.mrb[0].mxu0
    %v2899 = vadd.f32 0.0, %v2898
    %v2900 = vpop.f32.mrb[0].mxu0
    %2901 = vmatprep.mubr.f32.mxu0 0.0
    %2902 = vmatmul.mubr.f32.gmra.mrb[0].mxu0 %v2728
    %v2903 = vpop.f32.mrb[0].mxu0
    %v2904 = vadd.f32 0.0, %v2903
    %v2905 = vpop.f32.mrb[0].mxu0
    %2906 = vdwg.mxu0
    %v2907 = vsel %vm2055, %v2829, -1e+30
    %v2908 = vsel %vm2056, %v2834, -1e+30
    %v2909 = vsel %vm2057, %v2839, -1e+30
    %v2910 = vsel %vm2058, %v2844, -1e+30
    %v2911 = vsel %vm2059, %v2849, -1e+30
    %v2912 = vsel %vm2060, %v2854, -1e+30
    %v2913 = vsel %vm2061, %v2859, -1e+30
    %v2914 = vsel %vm2062, %v2864, -1e+30
    %v2915 = vsel %vm2063, %v2869, -1e+30
    %v2916 = vsel %vm2064, %v2874, -1e+30
    %v2917 = vsel %vm2065, %v2879, -1e+30
    %v2918 = vsel %vm2066, %v2884, -1e+30
    %v2919 = vsel %vm2067, %v2889, -1e+30
    %v2920 = vsel %vm2068, %v2894, -1e+30
    %v2921 = vsel %vm2069, %v2899, -1e+30
    %v2922 = vsel %vm2070, %v2904, -1e+30
    %2923 = vmax.xlane.f32.xlu0 %v2907
    %v2924 = vpop.xlane.xlu0 %2923
    %2925 = vmax.xlane.f32.xlu0 %v2908
    %v2926 = vpop.xlane.xlu0 %2925
    %2927 = vmax.xlane.f32.xlu0 %v2909
    %v2928 = vpop.xlane.xlu0 %2927
    %2929 = vmax.xlane.f32.xlu0 %v2910
    %v2930 = vpop.xlane.xlu0 %2929
    %2931 = vmax.xlane.f32.xlu0 %v2911
    %v2932 = vpop.xlane.xlu0 %2931
    %2933 = vmax.xlane.f32.xlu0 %v2912
    %v2934 = vpop.xlane.xlu0 %2933
    %2935 = vmax.xlane.f32.xlu0 %v2913
    %v2936 = vpop.xlane.xlu0 %2935
    %2937 = vmax.xlane.f32.xlu0 %v2914
    %v2938 = vpop.xlane.xlu0 %2937
    %2939 = vmax.xlane.f32.xlu0 %v2915
    %v2940 = vpop.xlane.xlu0 %2939
    %2941 = vmax.xlane.f32.xlu0 %v2916
    %v2942 = vpop.xlane.xlu0 %2941
    %2943 = vmax.xlane.f32.xlu0 %v2917
    %v2944 = vpop.xlane.xlu0 %2943
    %2945 = vmax.xlane.f32.xlu0 %v2918
    %v2946 = vpop.xlane.xlu0 %2945
    %2947 = vmax.xlane.f32.xlu0 %v2919
    %v2948 = vpop.xlane.xlu0 %2947
    %2949 = vmax.xlane.f32.xlu0 %v2920
    %v2950 = vpop.xlane.xlu0 %2949
    %2951 = vmax.xlane.f32.xlu0 %v2921
    %v2952 = vpop.xlane.xlu0 %2951
    %2953 = vmax.xlane.f32.xlu0 %v2922
    %v2954 = vpop.xlane.xlu0 %2953
    %v2955 = vsub.f32 %v2907, %v2924
    %v2956 = vsub.f32 %v2908, %v2926
    %v2957 = vsub.f32 %v2909, %v2928
    %v2958 = vsub.f32 %v2910, %v2930
    %v2959 = vsub.f32 %v2911, %v2932
    %v2960 = vsub.f32 %v2912, %v2934
    %v2961 = vsub.f32 %v2913, %v2936
    %v2962 = vsub.f32 %v2914, %v2938
    %v2963 = vsub.f32 %v2915, %v2940
    %v2964 = vsub.f32 %v2916, %v2942
    %v2965 = vsub.f32 %v2917, %v2944
    %v2966 = vsub.f32 %v2918, %v2946
    %v2967 = vsub.f32 %v2919, %v2948
    %v2968 = vsub.f32 %v2920, %v2950
    %v2969 = vsub.f32 %v2921, %v2952
    %v2970 = vsub.f32 %v2922, %v2954
    %v2971 = vmul.f32 %v2955, 1.442695
    %v2972 = vpow.pop %v2971
    %v2973 = vmul.f32 %v2956, 1.442695
    %v2974 = vpow.pop %v2973
    %v2975 = vmul.f32 %v2957, 1.442695
    %v2976 = vpow.pop %v2975
    %v2977 = vmul.f32 %v2958, 1.442695
    %v2978 = vpow.pop %v2977
    %v2979 = vmul.f32 %v2959, 1.442695
    %v2980 = vpow.pop %v2979
    %v2981 = vmul.f32 %v2960, 1.442695
    %v2982 = vpow.pop %v2981
    %v2983 = vmul.f32 %v2961, 1.442695
    %v2984 = vpow.pop %v2983
    %v2985 = vmul.f32 %v2962, 1.442695
    %v2986 = vpow.pop %v2985
    %v2987 = vmul.f32 %v2963, 1.442695
    %v2988 = vpow.pop %v2987
    %v2989 = vmul.f32 %v2964, 1.442695
    %v2990 = vpow.pop %v2989
    %v2991 = vmul.f32 %v2965, 1.442695
    %v2992 = vpow.pop %v2991
    %v2993 = vmul.f32 %v2966, 1.442695
    %v2994 = vpow.pop %v2993
    %v2995 = vmul.f32 %v2967, 1.442695
    %v2996 = vpow.pop %v2995
    %v2997 = vmul.f32 %v2968, 1.442695
    %v2998 = vpow.pop %v2997
    %v2999 = vmul.f32 %v2969, 1.442695
    %v3000 = vpow.pop %v2999
    %v3001 = vmul.f32 %v2970, 1.442695
    %v3002 = vpow.pop %v3001
    %3003 = vadd.xlane.f32.xlu0 %v2972
    %v3004 = vpop.xlane.xlu0 %3003
    %3005 = vadd.xlane.f32.xlu0 %v2974
    %v3006 = vpop.xlane.xlu0 %3005
    %3007 = vadd.xlane.f32.xlu0 %v2976
    %v3008 = vpop.xlane.xlu0 %3007
    %3009 = vadd.xlane.f32.xlu0 %v2978
    %v3010 = vpop.xlane.xlu0 %3009
    %3011 = vadd.xlane.f32.xlu0 %v2980
    %v3012 = vpop.xlane.xlu0 %3011
    %3013 = vadd.xlane.f32.xlu0 %v2982
    %v3014 = vpop.xlane.xlu0 %3013
    %3015 = vadd.xlane.f32.xlu0 %v2984
    %v3016 = vpop.xlane.xlu0 %3015
    %3017 = vadd.xlane.f32.xlu0 %v2986
    %v3018 = vpop.xlane.xlu0 %3017
    %3019 = vadd.xlane.f32.xlu0 %v2988
    %v3020 = vpop.xlane.xlu0 %3019
    %3021 = vadd.xlane.f32.xlu0 %v2990
    %v3022 = vpop.xlane.xlu0 %3021
    %3023 = vadd.xlane.f32.xlu0 %v2992
    %v3024 = vpop.xlane.xlu0 %3023
    %3025 = vadd.xlane.f32.xlu0 %v2994
    %v3026 = vpop.xlane.xlu0 %3025
    %3027 = vadd.xlane.f32.xlu0 %v2996
    %v3028 = vpop.xlane.xlu0 %3027
    %3029 = vadd.xlane.f32.xlu0 %v2998
    %v3030 = vpop.xlane.xlu0 %3029
    %3031 = vadd.xlane.f32.xlu0 %v3000
    %v3032 = vpop.xlane.xlu0 %3031
    %3033 = vadd.xlane.f32.xlu0 %v3002
    %v3034 = vpop.xlane.xlu0 %3033
    %v3035 = vrcp.pop %v3004
    %v3036 = vrcp.pop %v3006
    %v3037 = vrcp.pop %v3008
    %v3038 = vrcp.pop %v3010
    %v3039 = vrcp.pop %v3012
    %v3040 = vrcp.pop %v3014
    %v3041 = vrcp.pop %v3016
    %v3042 = vrcp.pop %v3018
    %v3043 = vrcp.pop %v3020
    %v3044 = vrcp.pop %v3022
    %v3045 = vrcp.pop %v3024
    %v3046 = vrcp.pop %v3026
    %v3047 = vrcp.pop %v3028
    %v3048 = vrcp.pop %v3030
    %v3049 = vrcp.pop %v3032
    %v3050 = vrcp.pop %v3034
    %v3051 = vmul.f32 %v2972, %v3035
    %v3052 = vmul.f32 %v2974, %v3036
    %v3053 = vmul.f32 %v2976, %v3037
    %v3054 = vmul.f32 %v2978, %v3038
    %v3055 = vmul.f32 %v2980, %v3039
    %v3056 = vmul.f32 %v2982, %v3040
    %v3057 = vmul.f32 %v2984, %v3041
    %v3058 = vmul.f32 %v2986, %v3042
    %v3059 = vmul.f32 %v2988, %v3043
    %v3060 = vmul.f32 %v2990, %v3044
    %v3061 = vmul.f32 %v2992, %v3045
    %v3062 = vmul.f32 %v2994, %v3046
    %v3063 = vmul.f32 %v2996, %v3047
    %v3064 = vmul.f32 %v2998, %v3048
    %v3065 = vmul.f32 %v3000, %v3049
    %v3066 = vmul.f32 %v3002, %v3050
    %3083 = vrot.lane.b32.xlu0 %v1754, 124
    %v3084 = vpop.permute.xlu0 %3083
    %3085 = vrot.lane.b32.xlu0 %v1759, 124
    %v3086 = vpop.permute.xlu0 %3085
    %3087 = vrot.lane.b32.xlu0 %v1764, 124
    %v3088 = vpop.permute.xlu0 %3087
    %3089 = vrot.lane.b32.xlu0 %v1769, 124
    %v3090 = vpop.permute.xlu0 %3089
    %3091 = vrot.lane.b32.xlu0 %v1774, 124
    %v3092 = vpop.permute.xlu0 %3091
    %3093 = vrot.lane.b32.xlu0 %v1779, 124
    %v3094 = vpop.permute.xlu0 %3093
    %3095 = vrot.lane.b32.xlu0 %v1784, 124
    %v3096 = vpop.permute.xlu0 %3095
    %3097 = vrot.lane.b32.xlu0 %v1789, 124
    %v3098 = vpop.permute.xlu0 %3097
    %3099 = vrot.lane.b32.xlu0 %v1794, 124
    %v3100 = vpop.permute.xlu0 %3099
    %3101 = vrot.lane.b32.xlu0 %v1799, 124
    %v3102 = vpop.permute.xlu0 %3101
    %3103 = vrot.lane.b32.xlu0 %v1804, 124
    %v3104 = vpop.permute.xlu0 %3103
    %3105 = vrot.lane.b32.xlu0 %v1809, 124
    %v3106 = vpop.permute.xlu0 %3105
    %3107 = vrot.lane.b32.xlu0 %v1814, 124
    %v3108 = vpop.permute.xlu0 %3107
    %3109 = vrot.lane.b32.xlu0 %v1819, 124
    %v3110 = vpop.permute.xlu0 %3109
    %3111 = vrot.lane.b32.xlu0 %v1824, 124
    %v3112 = vpop.permute.xlu0 %3111
    %3113 = vrot.lane.b32.xlu0 %v1829, 124
    %v3114 = vpop.permute.xlu0 %3113
    %3131 = vmatprep.subr.mxu0 0.0
    %3132 = vmatpush1.msra.mxu0 %v3084
    %3133 = vmatprep.subr.mxu0 0.0
    %3134 = vmatpush1.msra.mxu0 %v3086
    %3135 = vmatprep.subr.mxu0 0.0
    %3136 = vmatpush1.msra.mxu0 %v3088
    %3137 = vmatprep.subr.mxu0 0.0
    %3138 = vmatpush1.msra.mxu0 %v3090
    %3139 = vmatprep.subr.mxu0 0.0
    %3140 = vmatpush1.msra.mxu0 %v3092
    %3141 = vmatprep.subr.mxu0 0.0
    %3142 = vmatpush1.msra.mxu0 %v3094
    %3143 = vmatprep.subr.mxu0 0.0
    %3144 = vmatpush1.msra.mxu0 %v3096
    %3145 = vmatprep.subr.mxu0 0.0
    %3146 = vmatpush1.msra.mxu0 %v3098
    %3147 = vmatprep.subr.mxu0 0.0
    %3148 = vmatpush1.msra.mxu0 %v3100
    %3149 = vmatprep.subr.mxu0 0.0
    %3150 = vmatpush1.msra.mxu0 %v3102
    %3151 = vmatprep.subr.mxu0 0.0
    %3152 = vmatpush1.msra.mxu0 %v3104
    %3153 = vmatprep.subr.mxu0 0.0
    %3154 = vmatpush1.msra.mxu0 %v3106
    %3155 = vmatprep.subr.mxu0 0.0
    %3156 = vmatpush1.msra.mxu0 %v3108
    %3157 = vmatprep.subr.mxu0 0.0
    %3158 = vmatpush1.msra.mxu0 %v3110
    %3159 = vmatprep.subr.mxu0 0.0
    %3160 = vmatpush1.msra.mxu0 %v3112
    %3161 = vmatprep.subr.mxu0 0.0
    %3162 = vmatpush1.msra.mxu0 %v3114
    %3163 = vmatprep.subr.mxu0 0.0
    %3164 = vmatpush1.msra.mxu0 0.0
    %3165 = vmatprep.subr.mxu0 0.0
    %3166 = vmatpush1.msra.mxu0 0.0
    %3167 = vmatprep.subr.mxu0 0.0
    %3168 = vmatpush1.msra.mxu0 0.0
    %3169 = vmatprep.subr.mxu0 0.0
    %3170 = vmatpush1.msra.mxu0 0.0
    %3171 = vmatprep.subr.mxu0 0.0
    %3172 = vmatpush1.msra.mxu0 0.0
    %3173 = vmatprep.subr.mxu0 0.0
    %3174 = vmatpush1.msra.mxu0 0.0
    %3175 = vmatprep.subr.mxu0 0.0
    %3176 = vmatpush1.msra.mxu0 0.0
    %3177 = vmatprep.subr.mxu0 0.0
    %3178 = vmatpush1.msra.mxu0 0.0
    %3179 = vmatprep.subr.mxu0 0.0
    %3180 = vmatpush1.msra.mxu0 0.0
    %3181 = vmatprep.subr.mxu0 0.0
    %3182 = vmatpush1.msra.mxu0 0.0
    %3183 = vmatprep.subr.mxu0 0.0
    %3184 = vmatpush1.msra.mxu0 0.0
    %3185 = vmatprep.subr.mxu0 0.0
    %3186 = vmatpush1.msra.mxu0 0.0
    %3187 = vmatprep.subr.mxu0 0.0
    %3188 = vmatpush1.msra.mxu0 0.0
    %3189 = vmatprep.subr.mxu0 0.0
    %3190 = vmatpush1.msra.mxu0 0.0
    %3191 = vmatprep.subr.mxu0 0.0
    %3192 = vmatpush1.msra.mxu0 0.0
    %3193 = vmatprep.subr.mxu0 0.0
    %3194 = vmatpush1.msra.mxu0 0.0
    %3195 = vmatprep.mubr.f32.mxu0 0.0
    %3196 = vmatmul.mubr.f32.gmra.mrb[0].mxu0 %v3051
    %v3197 = vpop.f32.mrb[0].mxu0
    %v3198 = vadd.f32 0.0, %v3197
    %v3199 = vpop.f32.mrb[0].mxu0
    %3200 = vmatprep.mubr.f32.mxu0 0.0
    %3201 = vmatmul.mubr.f32.gmra.mrb[0].mxu0 %v3052
    %v3202 = vpop.f32.mrb[0].mxu0
    %v3203 = vadd.f32 0.0, %v3202
    %v3204 = vpop.f32.mrb[0].mxu0
    %3205 = vmatprep.mubr.f32.mxu0 0.0
    %3206 = vmatmul.mubr.f32.gmra.mrb[0].mxu0 %v3053
    %v3207 = vpop.f32.mrb[0].mxu0
    %v3208 = vadd.f32 0.0, %v3207
    %v3209 = vpop.f32.mrb[0].mxu0
    %3210 = vmatprep.mubr.f32.mxu0 0.0
    %3211 = vmatmul.mubr.f32.gmra.mrb[0].mxu0 %v3054
    %v3212 = vpop.f32.mrb[0].mxu0
    %v3213 = vadd.f32 0.0, %v3212
    %v3214 = vpop.f32.mrb[0].mxu0
    %3215 = vmatprep.mubr.f32.mxu0 0.0
    %3216 = vmatmul.mubr.f32.gmra.mrb[0].mxu0 %v3055
    %v3217 = vpop.f32.mrb[0].mxu0
    %v3218 = vadd.f32 0.0, %v3217
    %v3219 = vpop.f32.mrb[0].mxu0
    %3220 = vmatprep.mubr.f32.mxu0 0.0
    %3221 = vmatmul.mubr.f32.gmra.mrb[0].mxu0 %v3056
    %v3222 = vpop.f32.mrb[0].mxu0
    %v3223 = vadd.f32 0.0, %v3222
    %v3224 = vpop.f32.mrb[0].mxu0
    %3225 = vmatprep.mubr.f32.mxu0 0.0
    %3226 = vmatmul.mubr.f32.gmra.mrb[0].mxu0 %v3057
    %v3227 = vpop.f32.mrb[0].mxu0
    %v3228 = vadd.f32 0.0, %v3227
    %v3229 = vpop.f32.mrb[0].mxu0
    %3230 = vmatprep.mubr.f32.mxu0 0.0
    %3231 = vmatmul.mubr.f32.gmra.mrb[0].mxu0 %v3058
    %v3232 = vpop.f32.mrb[0].mxu0
    %v3233 = vadd.f32 0.0, %v3232
    %v3234 = vpop.f32.mrb[0].mxu0
    %3235 = vmatprep.mubr.f32.mxu0 0.0
    %3236 = vmatmul.mubr.f32.gmra.mrb[0].mxu0 %v3059
    %v3237 = vpop.f32.mrb[0].mxu0
    %v3238 = vadd.f32 0.0, %v3237
    %v3239 = vpop.f32.mrb[0].mxu0
    %3240 = vmatprep.mubr.f32.mxu0 0.0
    %3241 = vmatmul.mubr.f32.gmra.mrb[0].mxu0 %v3060
    %v3242 = vpop.f32.mrb[0].mxu0
    %v3243 = vadd.f32 0.0, %v3242
    %v3244 = vpop.f32.mrb[0].mxu0
    %3245 = vmatprep.mubr.f32.mxu0 0.0
    %3246 = vmatmul.mubr.f32.gmra.mrb[0].mxu0 %v3061
    %v3247 = vpop.f32.mrb[0].mxu0
    %v3248 = vadd.f32 0.0, %v3247
    %v3249 = vpop.f32.mrb[0].mxu0
    %3250 = vmatprep.mubr.f32.mxu0 0.0
    %3251 = vmatmul.mubr.f32.gmra.mrb[0].mxu0 %v3062
    %v3252 = vpop.f32.mrb[0].mxu0
    %v3253 = vadd.f32 0.0, %v3252
    %v3254 = vpop.f32.mrb[0].mxu0
    %3255 = vmatprep.mubr.f32.mxu0 0.0
    %3256 = vmatmul.mubr.f32.gmra.mrb[0].mxu0 %v3063
    %v3257 = vpop.f32.mrb[0].mxu0
    %v3258 = vadd.f32 0.0, %v3257
    %v3259 = vpop.f32.mrb[0].mxu0
    %3260 = vmatprep.mubr.f32.mxu0 0.0
    %3261 = vmatmul.mubr.f32.gmra.mrb[0].mxu0 %v3064
    %v3262 = vpop.f32.mrb[0].mxu0
    %v3263 = vadd.f32 0.0, %v3262
    %v3264 = vpop.f32.mrb[0].mxu0
    %3265 = vmatprep.mubr.f32.mxu0 0.0
    %3266 = vmatmul.mubr.f32.gmra.mrb[0].mxu0 %v3065
    %v3267 = vpop.f32.mrb[0].mxu0
    %v3268 = vadd.f32 0.0, %v3267
    %v3269 = vpop.f32.mrb[0].mxu0
    %3270 = vmatprep.mubr.f32.mxu0 0.0
    %3271 = vmatmul.mubr.f32.gmra.mrb[0].mxu0 %v3066
    %v3272 = vpop.f32.mrb[0].mxu0
    %v3273 = vadd.f32 0.0, %v3272
    %v3274 = vpop.f32.mrb[0].mxu0
    %3275 = vdwg.mxu0
    %3276 = vrot.lane.b32.xlu0 %v2071, 120
    %v3277 = vpop.permute.xlu0 %3276
    %3278 = vrot.lane.b32.xlu0 %v2072, 120
    %v3279 = vpop.permute.xlu0 %3278
    %3280 = vrot.lane.b32.xlu0 %v2073, 120
    %v3281 = vpop.permute.xlu0 %3280
    %3282 = vrot.lane.b32.xlu0 %v2074, 120
    %v3283 = vpop.permute.xlu0 %3282
    %3284 = vrot.lane.b32.xlu0 %v2075, 120
    %v3285 = vpop.permute.xlu0 %3284
    %3286 = vrot.lane.b32.xlu0 %v2076, 120
    %v3287 = vpop.permute.xlu0 %3286
    %3288 = vrot.lane.b32.xlu0 %v2077, 120
    %v3289 = vpop.permute.xlu0 %3288
    %3290 = vrot.lane.b32.xlu0 %v2078, 120
    %v3291 = vpop.permute.xlu0 %3290
    %3292 = vrot.lane.b32.xlu0 %v2079, 120
    %v3293 = vpop.permute.xlu0 %3292
    %3294 = vrot.lane.b32.xlu0 %v2080, 120
    %v3295 = vpop.permute.xlu0 %3294
    %3296 = vrot.lane.b32.xlu0 %v2081, 120
    %v3297 = vpop.permute.xlu0 %3296
    %3298 = vrot.lane.b32.xlu0 %v2082, 120
    %v3299 = vpop.permute.xlu0 %3298
    %3300 = vrot.lane.b32.xlu0 %v2083, 120
    %v3301 = vpop.permute.xlu0 %3300
    %3302 = vrot.lane.b32.xlu0 %v2084, 120
    %v3303 = vpop.permute.xlu0 %3302
    %3304 = vrot.lane.b32.xlu0 %v2085, 120
    %v3305 = vpop.permute.xlu0 %3304
    %3306 = vrot.lane.b32.xlu0 %v2086, 120
    %v3307 = vpop.permute.xlu0 %3306
    %3308 = vrot.lane.b32.xlu0 %v1598, 120
    %v3309 = vpop.permute.xlu0 %3308
    %3310 = vrot.lane.b32.xlu0 %v1603, 120
    %v3311 = vpop.permute.xlu0 %3310
    %3312 = vrot.lane.b32.xlu0 %v1608, 120
    %v3313 = vpop.permute.xlu0 %3312
    %3314 = vrot.lane.b32.xlu0 %v1613, 120
    %v3315 = vpop.permute.xlu0 %3314
    %3316 = vrot.lane.b32.xlu0 %v1618, 120
    %v3317 = vpop.permute.xlu0 %3316
    %3318 = vrot.lane.b32.xlu0 %v1623, 120
    %v3319 = vpop.permute.xlu0 %3318
    %3320 = vrot.lane.b32.xlu0 %v1628, 120
    %v3321 = vpop.permute.xlu0 %3320
    %3322 = vrot.lane.b32.xlu0 %v1633, 120
    %v3323 = vpop.permute.xlu0 %3322
    %3324 = vrot.lane.b32.xlu0 %v1638, 120
    %v3325 = vpop.permute.xlu0 %3324
    %3326 = vrot.lane.b32.xlu0 %v1643, 120
    %v3327 = vpop.permute.xlu0 %3326
    %3328 = vrot.lane.b32.xlu0 %v1648, 120
    %v3329 = vpop.permute.xlu0 %3328
    %3330 = vrot.lane.b32.xlu0 %v1653, 120
    %v3331 = vpop.permute.xlu0 %3330
    %3332 = vrot.lane.b32.xlu0 %v1658, 120
    %v3333 = vpop.permute.xlu0 %3332
    %3334 = vrot.lane.b32.xlu0 %v1663, 120
    %v3335 = vpop.permute.xlu0 %3334
    %3336 = vrot.lane.b32.xlu0 %v1668, 120
    %v3337 = vpop.permute.xlu0 %3336
    %3338 = vrot.lane.b32.xlu0 %v1673, 120
    %v3339 = vpop.permute.xlu0 %3338
    %v3340 = vsel %vm2087, %v3277, 0
    %v3342 = vsel %vm2087, %v3279, 0
    %v3344 = vsel %vm2087, %v3281, 0
    %v3346 = vsel %vm2087, %v3283, 0
    %v3348 = vsel %vm2087, %v3285, 0
    %v3350 = vsel %vm2087, %v3287, 0
    %v3352 = vsel %vm2087, %v3289, 0
    %v3354 = vsel %vm2087, %v3291, 0
    %v3356 = vsel %vm2087, %v3293, 0
    %v3358 = vsel %vm2087, %v3295, 0
    %v3360 = vsel %vm2087, %v3297, 0
    %v3362 = vsel %vm2087, %v3299, 0
    %v3364 = vsel %vm2087, %v3301, 0
    %v3366 = vsel %vm2087, %v3303, 0
    %v3368 = vsel %vm2087, %v3305, 0
    %v3370 = vsel %vm2087, %v3307, 0
    %v3372 = vsel %vm2087, %v3309, 0
    %v3374 = vsel %vm2087, %v3311, 0
    %v3376 = vsel %vm2087, %v3313, 0
    %v3378 = vsel %vm2087, %v3315, 0
    %v3380 = vsel %vm2087, %v3317, 0
    %v3382 = vsel %vm2087, %v3319, 0
    %v3384 = vsel %vm2087, %v3321, 0
    %v3386 = vsel %vm2087, %v3323, 0
    %v3388 = vsel %vm2087, %v3325, 0
    %v3390 = vsel %vm2087, %v3327, 0
    %v3392 = vsel %vm2087, %v3329, 0
    %v3394 = vsel %vm2087, %v3331, 0
    %v3396 = vsel %vm2087, %v3333, 0
    %v3398 = vsel %vm2087, %v3335, 0
    %v3400 = vsel %vm2087, %v3337, 0
    %v3402 = vsel %vm2087, %v3339, 0
    %3404 = vmatprep.subr.mxu0 0.0
    %3405 = vmatpush1.xpose.msra.mxu0 %v3372
    %3406 = vmatprep.subr.mxu0 0.0
    %3407 = vmatpush1.xpose.msra.mxu0 %v3374
    %3408 = vmatprep.subr.mxu0 0.0
    %3409 = vmatpush1.xpose.msra.mxu0 %v3376
    %3410 = vmatprep.subr.mxu0 0.0
    %3411 = vmatpush1.xpose.msra.mxu0 %v3378
    %3412 = vmatprep.subr.mxu0 0.0
    %3413 = vmatpush1.xpose.msra.mxu0 %v3380
    %3414 = vmatprep.subr.mxu0 0.0
    %3415 = vmatpush1.xpose.msra.mxu0 %v3382
    %3416 = vmatprep.subr.mxu0 0.0
    %3417 = vmatpush1.xpose.msra.mxu0 %v3384
    %3418 = vmatprep.subr.mxu0 0.0
    %3419 = vmatpush1.xpose.msra.mxu0 %v3386
    %3420 = vmatprep.subr.mxu0 0.0
    %3421 = vmatpush1.xpose.msra.mxu0 %v3388
    %3422 = vmatprep.subr.mxu0 0.0
    %3423 = vmatpush1.xpose.msra.mxu0 %v3390
    %3424 = vmatprep.subr.mxu0 0.0
    %3425 = vmatpush1.xpose.msra.mxu0 %v3392
    %3426 = vmatprep.subr.mxu0 0.0
    %3427 = vmatpush1.xpose.msra.mxu0 %v3394
    %3428 = vmatprep.subr.mxu0 0.0
    %3429 = vmatpush1.xpose.msra.mxu0 %v3396
    %3430 = vmatprep.subr.mxu0 0.0
    %3431 = vmatpush1.xpose.msra.mxu0 %v3398
    %3432 = vmatprep.subr.mxu0 0.0
    %3433 = vmatpush1.xpose.msra.mxu0 %v3400
    %3434 = vmatprep.subr.mxu0 0.0
    %3435 = vmatpush1.xpose.msra.mxu0 %v3402
    %3436 = vmatprep.subr.mxu0 0.0
    %3437 = vmatpush1.xpose.msra.mxu0 0.0
    %3438 = vmatprep.subr.mxu0 0.0
    %3439 = vmatpush1.xpose.msra.mxu0 0.0
    %3440 = vmatprep.subr.mxu0 0.0
    %3441 = vmatpush1.xpose.msra.mxu0 0.0
    %3442 = vmatprep.subr.mxu0 0.0
    %3443 = vmatpush1.xpose.msra.mxu0 0.0
    %3444 = vmatprep.subr.mxu0 0.0
    %3445 = vmatpush1.xpose.msra.mxu0 0.0
    %3446 = vmatprep.subr.mxu0 0.0
    %3447 = vmatpush1.xpose.msra.mxu0 0.0
    %3448 = vmatprep.subr.mxu0 0.0
    %3449 = vmatpush1.xpose.msra.mxu0 0.0
    %3450 = vmatprep.subr.mxu0 0.0
    %3451 = vmatpush1.xpose.msra.mxu0 0.0
    %3452 = vmatprep.subr.mxu0 0.0
    %3453 = vmatpush1.xpose.msra.mxu0 0.0
    %3454 = vmatprep.subr.mxu0 0.0
    %3455 = vmatpush1.xpose.msra.mxu0 0.0
    %3456 = vmatprep.subr.mxu0 0.0
    %3457 = vmatpush1.xpose.msra.mxu0 0.0
    %3458 = vmatprep.subr.mxu0 0.0
    %3459 = vmatpush1.xpose.msra.mxu0 0.0
    %3460 = vmatprep.subr.mxu0 0.0
    %3461 = vmatpush1.xpose.msra.mxu0 0.0
    %3462 = vmatprep.subr.mxu0 0.0
    %3463 = vmatpush1.xpose.msra.mxu0 0.0
    %3464 = vmatprep.subr.mxu0 0.0
    %3465 = vmatpush1.xpose.msra.mxu0 0.0
    %3466 = vmatprep.subr.mxu0 0.0
    %3467 = vmatpush1.xpose.msra.mxu0 0.0
    %3468 = vmatprep.mubr.f32.mxu0 0.0
    %3469 = vmatmul.mubr.f32.gmra.mrb[0].mxu0 %v3340
    %v3470 = vpop.f32.mrb[0].mxu0
    %v3471 = vadd.f32 0.0, %v3470
    %v3472 = vpop.f32.mrb[0].mxu0
    %3473 = vmatprep.mubr.f32.mxu0 0.0
    %3474 = vmatmul.mubr.f32.gmra.mrb[0].mxu0 %v3342
    %v3475 = vpop.f32.mrb[0].mxu0
    %v3476 = vadd.f32 0.0, %v3475
    %v3477 = vpop.f32.mrb[0].mxu0
    %3478 = vmatprep.mubr.f32.mxu0 0.0
    %3479 = vmatmul.mubr.f32.gmra.mrb[0].mxu0 %v3344
    %v3480 = vpop.f32.mrb[0].mxu0
    %v3481 = vadd.f32 0.0, %v3480
    %v3482 = vpop.f32.mrb[0].mxu0
    %3483 = vmatprep.mubr.f32.mxu0 0.0
    %3484 = vmatmul.mubr.f32.gmra.mrb[0].mxu0 %v3346
    %v3485 = vpop.f32.mrb[0].mxu0
    %v3486 = vadd.f32 0.0, %v3485
    %v3487 = vpop.f32.mrb[0].mxu0
    %3488 = vmatprep.mubr.f32.mxu0 0.0
    %3489 = vmatmul.mubr.f32.gmra.mrb[0].mxu0 %v3348
    %v3490 = vpop.f32.mrb[0].mxu0
    %v3491 = vadd.f32 0.0, %v3490
    %v3492 = vpop.f32.mrb[0].mxu0
    %3493 = vmatprep.mubr.f32.mxu0 0.0
    %3494 = vmatmul.mubr.f32.gmra.mrb[0].mxu0 %v3350
    %v3495 = vpop.f32.mrb[0].mxu0
    %v3496 = vadd.f32 0.0, %v3495
    %v3497 = vpop.f32.mrb[0].mxu0
    %3498 = vmatprep.mubr.f32.mxu0 0.0
    %3499 = vmatmul.mubr.f32.gmra.mrb[0].mxu0 %v3352
    %v3500 = vpop.f32.mrb[0].mxu0
    %v3501 = vadd.f32 0.0, %v3500
    %v3502 = vpop.f32.mrb[0].mxu0
    %3503 = vmatprep.mubr.f32.mxu0 0.0
    %3504 = vmatmul.mubr.f32.gmra.mrb[0].mxu0 %v3354
    %v3505 = vpop.f32.mrb[0].mxu0
    %v3506 = vadd.f32 0.0, %v3505
    %v3507 = vpop.f32.mrb[0].mxu0
    %3508 = vmatprep.mubr.f32.mxu0 0.0
    %3509 = vmatmul.mubr.f32.gmra.mrb[0].mxu0 %v3356
    %v3510 = vpop.f32.mrb[0].mxu0
    %v3511 = vadd.f32 0.0, %v3510
    %v3512 = vpop.f32.mrb[0].mxu0
    %3513 = vmatprep.mubr.f32.mxu0 0.0
    %3514 = vmatmul.mubr.f32.gmra.mrb[0].mxu0 %v3358
    %v3515 = vpop.f32.mrb[0].mxu0
    %v3516 = vadd.f32 0.0, %v3515
    %v3517 = vpop.f32.mrb[0].mxu0
    %3518 = vmatprep.mubr.f32.mxu0 0.0
    %3519 = vmatmul.mubr.f32.gmra.mrb[0].mxu0 %v3360
    %v3520 = vpop.f32.mrb[0].mxu0
    %v3521 = vadd.f32 0.0, %v3520
    %v3522 = vpop.f32.mrb[0].mxu0
    %3523 = vmatprep.mubr.f32.mxu0 0.0
    %3524 = vmatmul.mubr.f32.gmra.mrb[0].mxu0 %v3362
    %v3525 = vpop.f32.mrb[0].mxu0
    %v3526 = vadd.f32 0.0, %v3525
    %v3527 = vpop.f32.mrb[0].mxu0
    %3528 = vmatprep.mubr.f32.mxu0 0.0
    %3529 = vmatmul.mubr.f32.gmra.mrb[0].mxu0 %v3364
    %v3530 = vpop.f32.mrb[0].mxu0
    %v3531 = vadd.f32 0.0, %v3530
    %v3532 = vpop.f32.mrb[0].mxu0
    %3533 = vmatprep.mubr.f32.mxu0 0.0
    %3534 = vmatmul.mubr.f32.gmra.mrb[0].mxu0 %v3366
    %v3535 = vpop.f32.mrb[0].mxu0
    %v3536 = vadd.f32 0.0, %v3535
    %v3537 = vpop.f32.mrb[0].mxu0
    %3538 = vmatprep.mubr.f32.mxu0 0.0
    %3539 = vmatmul.mubr.f32.gmra.mrb[0].mxu0 %v3368
    %v3540 = vpop.f32.mrb[0].mxu0
    %v3541 = vadd.f32 0.0, %v3540
    %v3542 = vpop.f32.mrb[0].mxu0
    %3543 = vmatprep.mubr.f32.mxu0 0.0
    %3544 = vmatmul.mubr.f32.gmra.mrb[0].mxu0 %v3370
    %v3545 = vpop.f32.mrb[0].mxu0
    %v3546 = vadd.f32 0.0, %v3545
    %v3547 = vpop.f32.mrb[0].mxu0
    %3548 = vdwg.mxu0
    %v3549 = vsel %vm2055, %v3471, -1e+30
    %v3550 = vsel %vm2056, %v3476, -1e+30
    %v3551 = vsel %vm2057, %v3481, -1e+30
    %v3552 = vsel %vm2058, %v3486, -1e+30
    %v3553 = vsel %vm2059, %v3491, -1e+30
    %v3554 = vsel %vm2060, %v3496, -1e+30
    %v3555 = vsel %vm2061, %v3501, -1e+30
    %v3556 = vsel %vm2062, %v3506, -1e+30
    %v3557 = vsel %vm2063, %v3511, -1e+30
    %v3558 = vsel %vm2064, %v3516, -1e+30
    %v3559 = vsel %vm2065, %v3521, -1e+30
    %v3560 = vsel %vm2066, %v3526, -1e+30
    %v3561 = vsel %vm2067, %v3531, -1e+30
    %v3562 = vsel %vm2068, %v3536, -1e+30
    %v3563 = vsel %vm2069, %v3541, -1e+30
    %v3564 = vsel %vm2070, %v3546, -1e+30
    %3565 = vmax.xlane.f32.xlu0 %v3549
    %v3566 = vpop.xlane.xlu0 %3565
    %3567 = vmax.xlane.f32.xlu0 %v3550
    %v3568 = vpop.xlane.xlu0 %3567
    %3569 = vmax.xlane.f32.xlu0 %v3551
    %v3570 = vpop.xlane.xlu0 %3569
    %3571 = vmax.xlane.f32.xlu0 %v3552
    %v3572 = vpop.xlane.xlu0 %3571
    %3573 = vmax.xlane.f32.xlu0 %v3553
    %v3574 = vpop.xlane.xlu0 %3573
    %3575 = vmax.xlane.f32.xlu0 %v3554
    %v3576 = vpop.xlane.xlu0 %3575
    %3577 = vmax.xlane.f32.xlu0 %v3555
    %v3578 = vpop.xlane.xlu0 %3577
    %3579 = vmax.xlane.f32.xlu0 %v3556
    %v3580 = vpop.xlane.xlu0 %3579
    %3581 = vmax.xlane.f32.xlu0 %v3557
    %v3582 = vpop.xlane.xlu0 %3581
    %3583 = vmax.xlane.f32.xlu0 %v3558
    %v3584 = vpop.xlane.xlu0 %3583
    %3585 = vmax.xlane.f32.xlu0 %v3559
    %v3586 = vpop.xlane.xlu0 %3585
    %3587 = vmax.xlane.f32.xlu0 %v3560
    %v3588 = vpop.xlane.xlu0 %3587
    %3589 = vmax.xlane.f32.xlu0 %v3561
    %v3590 = vpop.xlane.xlu0 %3589
    %3591 = vmax.xlane.f32.xlu0 %v3562
    %v3592 = vpop.xlane.xlu0 %3591
    %3593 = vmax.xlane.f32.xlu0 %v3563
    %v3594 = vpop.xlane.xlu0 %3593
    %3595 = vmax.xlane.f32.xlu0 %v3564
    %v3596 = vpop.xlane.xlu0 %3595
    %v3597 = vsub.f32 %v3549, %v3566
    %v3598 = vsub.f32 %v3550, %v3568
    %v3599 = vsub.f32 %v3551, %v3570
    %v3600 = vsub.f32 %v3552, %v3572
    %v3601 = vsub.f32 %v3553, %v3574
    %v3602 = vsub.f32 %v3554, %v3576
    %v3603 = vsub.f32 %v3555, %v3578
    %v3604 = vsub.f32 %v3556, %v3580
    %v3605 = vsub.f32 %v3557, %v3582
    %v3606 = vsub.f32 %v3558, %v3584
    %v3607 = vsub.f32 %v3559, %v3586
    %v3608 = vsub.f32 %v3560, %v3588
    %v3609 = vsub.f32 %v3561, %v3590
    %v3610 = vsub.f32 %v3562, %v3592
    %v3611 = vsub.f32 %v3563, %v3594
    %v3612 = vsub.f32 %v3564, %v3596
    %v3613 = vmul.f32 %v3597, 1.442695
    %v3614 = vpow.pop %v3613
    %v3615 = vmul.f32 %v3598, 1.442695
    %v3616 = vpow.pop %v3615
    %v3617 = vmul.f32 %v3599, 1.442695
    %v3618 = vpow.pop %v3617
    %v3619 = vmul.f32 %v3600, 1.442695
    %v3620 = vpow.pop %v3619
    %v3621 = vmul.f32 %v3601, 1.442695
    %v3622 = vpow.pop %v3621
    %v3623 = vmul.f32 %v3602, 1.442695
    %v3624 = vpow.pop %v3623
    %v3625 = vmul.f32 %v3603, 1.442695
    %v3626 = vpow.pop %v3625
    %v3627 = vmul.f32 %v3604, 1.442695
    %v3628 = vpow.pop %v3627
    %v3629 = vmul.f32 %v3605, 1.442695
    %v3630 = vpow.pop %v3629
    %v3631 = vmul.f32 %v3606, 1.442695
    %v3632 = vpow.pop %v3631
    %v3633 = vmul.f32 %v3607, 1.442695
    %v3634 = vpow.pop %v3633
    %v3635 = vmul.f32 %v3608, 1.442695
    %v3636 = vpow.pop %v3635
    %v3637 = vmul.f32 %v3609, 1.442695
    %v3638 = vpow.pop %v3637
    %v3639 = vmul.f32 %v3610, 1.442695
    %v3640 = vpow.pop %v3639
    %v3641 = vmul.f32 %v3611, 1.442695
    %v3642 = vpow.pop %v3641
    %v3643 = vmul.f32 %v3612, 1.442695
    %v3644 = vpow.pop %v3643
    %3645 = vadd.xlane.f32.xlu0 %v3614
    %v3646 = vpop.xlane.xlu0 %3645
    %3647 = vadd.xlane.f32.xlu0 %v3616
    %v3648 = vpop.xlane.xlu0 %3647
    %3649 = vadd.xlane.f32.xlu0 %v3618
    %v3650 = vpop.xlane.xlu0 %3649
    %3651 = vadd.xlane.f32.xlu0 %v3620
    %v3652 = vpop.xlane.xlu0 %3651
    %3653 = vadd.xlane.f32.xlu0 %v3622
    %v3654 = vpop.xlane.xlu0 %3653
    %3655 = vadd.xlane.f32.xlu0 %v3624
    %v3656 = vpop.xlane.xlu0 %3655
    %3657 = vadd.xlane.f32.xlu0 %v3626
    %v3658 = vpop.xlane.xlu0 %3657
    %3659 = vadd.xlane.f32.xlu0 %v3628
    %v3660 = vpop.xlane.xlu0 %3659
    %3661 = vadd.xlane.f32.xlu0 %v3630
    %v3662 = vpop.xlane.xlu0 %3661
    %3663 = vadd.xlane.f32.xlu0 %v3632
    %v3664 = vpop.xlane.xlu0 %3663
    %3665 = vadd.xlane.f32.xlu0 %v3634
    %v3666 = vpop.xlane.xlu0 %3665
    %3667 = vadd.xlane.f32.xlu0 %v3636
    %v3668 = vpop.xlane.xlu0 %3667
    %3669 = vadd.xlane.f32.xlu0 %v3638
    %v3670 = vpop.xlane.xlu0 %3669
    %3671 = vadd.xlane.f32.xlu0 %v3640
    %v3672 = vpop.xlane.xlu0 %3671
    %3673 = vadd.xlane.f32.xlu0 %v3642
    %v3674 = vpop.xlane.xlu0 %3673
    %3675 = vadd.xlane.f32.xlu0 %v3644
    %v3676 = vpop.xlane.xlu0 %3675
    %v3677 = vrcp.pop %v3646
    %v3678 = vrcp.pop %v3648
    %v3679 = vrcp.pop %v3650
    %v3680 = vrcp.pop %v3652
    %v3681 = vrcp.pop %v3654
    %v3682 = vrcp.pop %v3656
    %v3683 = vrcp.pop %v3658
    %v3684 = vrcp.pop %v3660
    %v3685 = vrcp.pop %v3662
    %v3686 = vrcp.pop %v3664
    %v3687 = vrcp.pop %v3666
    %v3688 = vrcp.pop %v3668
    %v3689 = vrcp.pop %v3670
    %v3690 = vrcp.pop %v3672
    %v3691 = vrcp.pop %v3674
    %v3692 = vrcp.pop %v3676
    %v3693 = vmul.f32 %v3614, %v3677
    %v3694 = vmul.f32 %v3616, %v3678
    %v3695 = vmul.f32 %v3618, %v3679
    %v3696 = vmul.f32 %v3620, %v3680
    %v3697 = vmul.f32 %v3622, %v3681
    %v3698 = vmul.f32 %v3624, %v3682
    %v3699 = vmul.f32 %v3626, %v3683
    %v3700 = vmul.f32 %v3628, %v3684
    %v3701 = vmul.f32 %v3630, %v3685
    %v3702 = vmul.f32 %v3632, %v3686
    %v3703 = vmul.f32 %v3634, %v3687
    %v3704 = vmul.f32 %v3636, %v3688
    %v3705 = vmul.f32 %v3638, %v3689
    %v3706 = vmul.f32 %v3640, %v3690
    %v3707 = vmul.f32 %v3642, %v3691
    %v3708 = vmul.f32 %v3644, %v3692
    %3709 = vrot.lane.b32.xlu0 %v1754, 120
    %v3710 = vpop.permute.xlu0 %3709
    %3711 = vrot.lane.b32.xlu0 %v1759, 120
    %v3712 = vpop.permute.xlu0 %3711
    %3713 = vrot.lane.b32.xlu0 %v1764, 120
    %v3714 = vpop.permute.xlu0 %3713
    %3715 = vrot.lane.b32.xlu0 %v1769, 120
    %v3716 = vpop.permute.xlu0 %3715
    %3717 = vrot.lane.b32.xlu0 %v1774, 120
    %v3718 = vpop.permute.xlu0 %3717
    %3719 = vrot.lane.b32.xlu0 %v1779, 120
    %v3720 = vpop.permute.xlu0 %3719
    %3721 = vrot.lane.b32.xlu0 %v1784, 120
    %v3722 = vpop.permute.xlu0 %3721
    %3723 = vrot.lane.b32.xlu0 %v1789, 120
    %v3724 = vpop.permute.xlu0 %3723
    %3725 = vrot.lane.b32.xlu0 %v1794, 120
    %v3726 = vpop.permute.xlu0 %3725
    %3727 = vrot.lane.b32.xlu0 %v1799, 120
    %v3728 = vpop.permute.xlu0 %3727
    %3729 = vrot.lane.b32.xlu0 %v1804, 120
    %v3730 = vpop.permute.xlu0 %3729
    %3731 = vrot.lane.b32.xlu0 %v1809, 120
    %v3732 = vpop.permute.xlu0 %3731
    %3733 = vrot.lane.b32.xlu0 %v1814, 120
    %v3734 = vpop.permute.xlu0 %3733
    %3735 = vrot.lane.b32.xlu0 %v1819, 120
    %v3736 = vpop.permute.xlu0 %3735
    %3737 = vrot.lane.b32.xlu0 %v1824, 120
    %v3738 = vpop.permute.xlu0 %3737
    %3739 = vrot.lane.b32.xlu0 %v1829, 120
    %v3740 = vpop.permute.xlu0 %3739
    %3757 = vmatprep.subr.mxu0 0.0
    %3758 = vmatpush1.msra.mxu0 %v3710
    %3759 = vmatprep.subr.mxu0 0.0
    %3760 = vmatpush1.msra.mxu0 %v3712
    %3761 = vmatprep.subr.mxu0 0.0
    %3762 = vmatpush1.msra.mxu0 %v3714
    %3763 = vmatprep.subr.mxu0 0.0
    %3764 = vmatpush1.msra.mxu0 %v3716
    %3765 = vmatprep.subr.mxu0 0.0
    %3766 = vmatpush1.msra.mxu0 %v3718
    %3767 = vmatprep.subr.mxu0 0.0
    %3768 = vmatpush1.msra.mxu0 %v3720
    %3769 = vmatprep.subr.mxu0 0.0
    %3770 = vmatpush1.msra.mxu0 %v3722
    %3771 = vmatprep.subr.mxu0 0.0
    %3772 = vmatpush1.msra.mxu0 %v3724
    %3773 = vmatprep.subr.mxu0 0.0
    %3774 = vmatpush1.msra.mxu0 %v3726
    %3775 = vmatprep.subr.mxu0 0.0
    %3776 = vmatpush1.msra.mxu0 %v3728
    %3777 = vmatprep.subr.mxu0 0.0
    %3778 = vmatpush1.msra.mxu0 %v3730
    %3779 = vmatprep.subr.mxu0 0.0
    %3780 = vmatpush1.msra.mxu0 %v3732
    %3781 = vmatprep.subr.mxu0 0.0
    %3782 = vmatpush1.msra.mxu0 %v3734
    %3783 = vmatprep.subr.mxu0 0.0
    %3784 = vmatpush1.msra.mxu0 %v3736
    %3785 = vmatprep.subr.mxu0 0.0
    %3786 = vmatpush1.msra.mxu0 %v3738
    %3787 = vmatprep.subr.mxu0 0.0
    %3788 = vmatpush1.msra.mxu0 %v3740
    %3789 = vmatprep.subr.mxu0 0.0
    %3790 = vmatpush1.msra.mxu0 0.0
    %3791 = vmatprep.subr.mxu0 0.0
    %3792 = vmatpush1.msra.mxu0 0.0
    %3793 = vmatprep.subr.mxu0 0.0
    %3794 = vmatpush1.msra.mxu0 0.0
    %3795 = vmatprep.subr.mxu0 0.0
    %3796 = vmatpush1.msra.mxu0 0.0
    %3797 = vmatprep.subr.mxu0 0.0
    %3798 = vmatpush1.msra.mxu0 0.0
    %3799 = vmatprep.subr.mxu0 0.0
    %3800 = vmatpush1.msra.mxu0 0.0
    %3801 = vmatprep.subr.mxu0 0.0
    %3802 = vmatpush1.msra.mxu0 0.0
    %3803 = vmatprep.subr.mxu0 0.0
    %3804 = vmatpush1.msra.mxu0 0.0
    %3805 = vmatprep.subr.mxu0 0.0
    %3806 = vmatpush1.msra.mxu0 0.0
    %3807 = vmatprep.subr.mxu0 0.0
    %3808 = vmatpush1.msra.mxu0 0.0
    %3809 = vmatprep.subr.mxu0 0.0
    %3810 = vmatpush1.msra.mxu0 0.0
    %3811 = vmatprep.subr.mxu0 0.0
    %3812 = vmatpush1.msra.mxu0 0.0
    %3813 = vmatprep.subr.mxu0 0.0
    %3814 = vmatpush1.msra.mxu0 0.0
    %3815 = vmatprep.subr.mxu0 0.0
    %3816 = vmatpush1.msra.mxu0 0.0
    %3817 = vmatprep.subr.mxu0 0.0
    %3818 = vmatpush1.msra.mxu0 0.0
    %3819 = vmatprep.subr.mxu0 0.0
    %3820 = vmatpush1.msra.mxu0 0.0
    %3821 = vmatprep.mubr.f32.mxu0 0.0
    %3822 = vmatmul.mubr.f32.gmra.mrb[0].mxu0 %v3693
    %v3823 = vpop.f32.mrb[0].mxu0
    %v3824 = vadd.f32 0.0, %v3823
    %v3825 = vpop.f32.mrb[0].mxu0
    %3826 = vmatprep.mubr.f32.mxu0 0.0
    %3827 = vmatmul.mubr.f32.gmra.mrb[0].mxu0 %v3694
    %v3828 = vpop.f32.mrb[0].mxu0
    %v3829 = vadd.f32 0.0, %v3828
    %v3830 = vpop.f32.mrb[0].mxu0
    %3831 = vmatprep.mubr.f32.mxu0 0.0
    %3832 = vmatmul.mubr.f32.gmra.mrb[0].mxu0 %v3695
    %v3833 = vpop.f32.mrb[0].mxu0
    %v3834 = vadd.f32 0.0, %v3833
    %v3835 = vpop.f32.mrb[0].mxu0
    %3836 = vmatprep.mubr.f32.mxu0 0.0
    %3837 = vmatmul.mubr.f32.gmra.mrb[0].mxu0 %v3696
    %v3838 = vpop.f32.mrb[0].mxu0
    %v3839 = vadd.f32 0.0, %v3838
    %v3840 = vpop.f32.mrb[0].mxu0
    %3841 = vmatprep.mubr.f32.mxu0 0.0
    %3842 = vmatmul.mubr.f32.gmra.mrb[0].mxu0 %v3697
    %v3843 = vpop.f32.mrb[0].mxu0
    %v3844 = vadd.f32 0.0, %v3843
    %v3845 = vpop.f32.mrb[0].mxu0
    %3846 = vmatprep.mubr.f32.mxu0 0.0
    %3847 = vmatmul.mubr.f32.gmra.mrb[0].mxu0 %v3698
    %v3848 = vpop.f32.mrb[0].mxu0
    %v3849 = vadd.f32 0.0, %v3848
    %v3850 = vpop.f32.mrb[0].mxu0
    %3851 = vmatprep.mubr.f32.mxu0 0.0
    %3852 = vmatmul.mubr.f32.gmra.mrb[0].mxu0 %v3699
    %v3853 = vpop.f32.mrb[0].mxu0
    %v3854 = vadd.f32 0.0, %v3853
    %v3855 = vpop.f32.mrb[0].mxu0
    %3856 = vmatprep.mubr.f32.mxu0 0.0
    %3857 = vmatmul.mubr.f32.gmra.mrb[0].mxu0 %v3700
    %v3858 = vpop.f32.mrb[0].mxu0
    %v3859 = vadd.f32 0.0, %v3858
    %v3860 = vpop.f32.mrb[0].mxu0
    %3861 = vmatprep.mubr.f32.mxu0 0.0
    %3862 = vmatmul.mubr.f32.gmra.mrb[0].mxu0 %v3701
    %v3863 = vpop.f32.mrb[0].mxu0
    %v3864 = vadd.f32 0.0, %v3863
    %v3865 = vpop.f32.mrb[0].mxu0
    %3866 = vmatprep.mubr.f32.mxu0 0.0
    %3867 = vmatmul.mubr.f32.gmra.mrb[0].mxu0 %v3702
    %v3868 = vpop.f32.mrb[0].mxu0
    %v3869 = vadd.f32 0.0, %v3868
    %v3870 = vpop.f32.mrb[0].mxu0
    %3871 = vmatprep.mubr.f32.mxu0 0.0
    %3872 = vmatmul.mubr.f32.gmra.mrb[0].mxu0 %v3703
    %v3873 = vpop.f32.mrb[0].mxu0
    %v3874 = vadd.f32 0.0, %v3873
    %v3875 = vpop.f32.mrb[0].mxu0
    %3876 = vmatprep.mubr.f32.mxu0 0.0
    %3877 = vmatmul.mubr.f32.gmra.mrb[0].mxu0 %v3704
    %v3878 = vpop.f32.mrb[0].mxu0
    %v3879 = vadd.f32 0.0, %v3878
    %v3880 = vpop.f32.mrb[0].mxu0
    %3881 = vmatprep.mubr.f32.mxu0 0.0
    %3882 = vmatmul.mubr.f32.gmra.mrb[0].mxu0 %v3705
    %v3883 = vpop.f32.mrb[0].mxu0
    %v3884 = vadd.f32 0.0, %v3883
    %v3885 = vpop.f32.mrb[0].mxu0
    %3886 = vmatprep.mubr.f32.mxu0 0.0
    %3887 = vmatmul.mubr.f32.gmra.mrb[0].mxu0 %v3706
    %v3888 = vpop.f32.mrb[0].mxu0
    %v3889 = vadd.f32 0.0, %v3888
    %v3890 = vpop.f32.mrb[0].mxu0
    %3891 = vmatprep.mubr.f32.mxu0 0.0
    %3892 = vmatmul.mubr.f32.gmra.mrb[0].mxu0 %v3707
    %v3893 = vpop.f32.mrb[0].mxu0
    %v3894 = vadd.f32 0.0, %v3893
    %v3895 = vpop.f32.mrb[0].mxu0
    %3896 = vmatprep.mubr.f32.mxu0 0.0
    %3897 = vmatmul.mubr.f32.gmra.mrb[0].mxu0 %v3708
    %v3898 = vpop.f32.mrb[0].mxu0
    %v3899 = vadd.f32 0.0, %v3898
    %v3900 = vpop.f32.mrb[0].mxu0
    %3901 = vdwg.mxu0
    %3902 = vrot.lane.b32.xlu0 %v2071, 116
    %v3903 = vpop.permute.xlu0 %3902
    %3904 = vrot.lane.b32.xlu0 %v2072, 116
    %v3905 = vpop.permute.xlu0 %3904
    %3906 = vrot.lane.b32.xlu0 %v2073, 116
    %v3907 = vpop.permute.xlu0 %3906
    %3908 = vrot.lane.b32.xlu0 %v2074, 116
    %v3909 = vpop.permute.xlu0 %3908
    %3910 = vrot.lane.b32.xlu0 %v2075, 116
    %v3911 = vpop.permute.xlu0 %3910
    %3912 = vrot.lane.b32.xlu0 %v2076, 116
    %v3913 = vpop.permute.xlu0 %3912
    %3914 = vrot.lane.b32.xlu0 %v2077, 116
    %v3915 = vpop.permute.xlu0 %3914
    %3916 = vrot.lane.b32.xlu0 %v2078, 116
    %v3917 = vpop.permute.xlu0 %3916
    %3918 = vrot.lane.b32.xlu0 %v2079, 116
    %v3919 = vpop.permute.xlu0 %3918
    %3920 = vrot.lane.b32.xlu0 %v2080, 116
    %v3921 = vpop.permute.xlu0 %3920
    %3922 = vrot.lane.b32.xlu0 %v2081, 116
    %v3923 = vpop.permute.xlu0 %3922
    %3924 = vrot.lane.b32.xlu0 %v2082, 116
    %v3925 = vpop.permute.xlu0 %3924
    %3926 = vrot.lane.b32.xlu0 %v2083, 116
    %v3927 = vpop.permute.xlu0 %3926
    %3928 = vrot.lane.b32.xlu0 %v2084, 116
    %v3929 = vpop.permute.xlu0 %3928
    %3930 = vrot.lane.b32.xlu0 %v2085, 116
    %v3931 = vpop.permute.xlu0 %3930
    %3932 = vrot.lane.b32.xlu0 %v2086, 116
    %v3933 = vpop.permute.xlu0 %3932
    %3934 = vrot.lane.b32.xlu0 %v1598, 116
    %v3935 = vpop.permute.xlu0 %3934
    %3936 = vrot.lane.b32.xlu0 %v1603, 116
    %v3937 = vpop.permute.xlu0 %3936
    %3938 = vrot.lane.b32.xlu0 %v1608, 116
    %v3939 = vpop.permute.xlu0 %3938
    %3940 = vrot.lane.b32.xlu0 %v1613, 116
    %v3941 = vpop.permute.xlu0 %3940
    %3942 = vrot.lane.b32.xlu0 %v1618, 116
    %v3943 = vpop.permute.xlu0 %3942
    %3944 = vrot.lane.b32.xlu0 %v1623, 116
    %v3945 = vpop.permute.xlu0 %3944
    %3946 = vrot.lane.b32.xlu0 %v1628, 116
    %v3947 = vpop.permute.xlu0 %3946
    %3948 = vrot.lane.b32.xlu0 %v1633, 116
    %v3949 = vpop.permute.xlu0 %3948
    %3950 = vrot.lane.b32.xlu0 %v1638, 116
    %v3951 = vpop.permute.xlu0 %3950
    %3952 = vrot.lane.b32.xlu0 %v1643, 116
    %v3953 = vpop.permute.xlu0 %3952
    %3954 = vrot.lane.b32.xlu0 %v1648, 116
    %v3955 = vpop.permute.xlu0 %3954
    %3956 = vrot.lane.b32.xlu0 %v1653, 116
    %v3957 = vpop.permute.xlu0 %3956
    %3958 = vrot.lane.b32.xlu0 %v1658, 116
    %v3959 = vpop.permute.xlu0 %3958
    %3960 = vrot.lane.b32.xlu0 %v1663, 116
    %v3961 = vpop.permute.xlu0 %3960
    %3962 = vrot.lane.b32.xlu0 %v1668, 116
    %v3963 = vpop.permute.xlu0 %3962
    %3964 = vrot.lane.b32.xlu0 %v1673, 116
    %v3965 = vpop.permute.xlu0 %3964
    %v3966 = vsel %vm2087, %v3903, 0
    %v3968 = vsel %vm2087, %v3905, 0
    %v3970 = vsel %vm2087, %v3907, 0
    %v3972 = vsel %vm2087, %v3909, 0
    %v3974 = vsel %vm2087, %v3911, 0
    %v3976 = vsel %vm2087, %v3913, 0
    %v3978 = vsel %vm2087, %v3915, 0
    %v3980 = vsel %vm2087, %v3917, 0
    %v3982 = vsel %vm2087, %v3919, 0
    %v3984 = vsel %vm2087, %v3921, 0
    %v3986 = vsel %vm2087, %v3923, 0
    %v3988 = vsel %vm2087, %v3925, 0
    %v3990 = vsel %vm2087, %v3927, 0
    %v3992 = vsel %vm2087, %v3929, 0
    %v3994 = vsel %vm2087, %v3931, 0
    %v3996 = vsel %vm2087, %v3933, 0
    %v3998 = vsel %vm2087, %v3935, 0
    %v4000 = vsel %vm2087, %v3937, 0
    %v4002 = vsel %vm2087, %v3939, 0
    %v4004 = vsel %vm2087, %v3941, 0
    %v4006 = vsel %vm2087, %v3943, 0
    %v4008 = vsel %vm2087, %v3945, 0
    %v4010 = vsel %vm2087, %v3947, 0
    %v4012 = vsel %vm2087, %v3949, 0
    %v4014 = vsel %vm2087, %v3951, 0
    %v4016 = vsel %vm2087, %v3953, 0
    %v4018 = vsel %vm2087, %v3955, 0
    %v4020 = vsel %vm2087, %v3957, 0
    %v4022 = vsel %vm2087, %v3959, 0
    %v4024 = vsel %vm2087, %v3961, 0
    %v4026 = vsel %vm2087, %v3963, 0
    %v4028 = vsel %vm2087, %v3965, 0
    %4030 = vmatprep.subr.mxu0 0.0
    %4031 = vmatpush1.xpose.msra.mxu0 %v3998
    %4032 = vmatprep.subr.mxu0 0.0
    %4033 = vmatpush1.xpose.msra.mxu0 %v4000
    %4034 = vmatprep.subr.mxu0 0.0
    %4035 = vmatpush1.xpose.msra.mxu0 %v4002
    %4036 = vmatprep.subr.mxu0 0.0
    %4037 = vmatpush1.xpose.msra.mxu0 %v4004
    %4038 = vmatprep.subr.mxu0 0.0
    %4039 = vmatpush1.xpose.msra.mxu0 %v4006
    %4040 = vmatprep.subr.mxu0 0.0
    %4041 = vmatpush1.xpose.msra.mxu0 %v4008
    %4042 = vmatprep.subr.mxu0 0.0
    %4043 = vmatpush1.xpose.msra.mxu0 %v4010
    %4044 = vmatprep.subr.mxu0 0.0
    %4045 = vmatpush1.xpose.msra.mxu0 %v4012
    %4046 = vmatprep.subr.mxu0 0.0
    %4047 = vmatpush1.xpose.msra.mxu0 %v4014
    %4048 = vmatprep.subr.mxu0 0.0
    %4049 = vmatpush1.xpose.msra.mxu0 %v4016
    %4050 = vmatprep.subr.mxu0 0.0
    %4051 = vmatpush1.xpose.msra.mxu0 %v4018
    %4052 = vmatprep.subr.mxu0 0.0
    %4053 = vmatpush1.xpose.msra.mxu0 %v4020
    %4054 = vmatprep.subr.mxu0 0.0
    %4055 = vmatpush1.xpose.msra.mxu0 %v4022
    %4056 = vmatprep.subr.mxu0 0.0
    %4057 = vmatpush1.xpose.msra.mxu0 %v4024
    %4058 = vmatprep.subr.mxu0 0.0
    %4059 = vmatpush1.xpose.msra.mxu0 %v4026
    %4060 = vmatprep.subr.mxu0 0.0
    %4061 = vmatpush1.xpose.msra.mxu0 %v4028
    %4062 = vmatprep.subr.mxu0 0.0
    %4063 = vmatpush1.xpose.msra.mxu0 0.0
    %4064 = vmatprep.subr.mxu0 0.0
    %4065 = vmatpush1.xpose.msra.mxu0 0.0
    %4066 = vmatprep.subr.mxu0 0.0
    %4067 = vmatpush1.xpose.msra.mxu0 0.0
    %4068 = vmatprep.subr.mxu0 0.0
    %4069 = vmatpush1.xpose.msra.mxu0 0.0
    %4070 = vmatprep.subr.mxu0 0.0
    %4071 = vmatpush1.xpose.msra.mxu0 0.0
    %4072 = vmatprep.subr.mxu0 0.0
    %4073 = vmatpush1.xpose.msra.mxu0 0.0
    %4074 = vmatprep.subr.mxu0 0.0
    %4075 = vmatpush1.xpose.msra.mxu0 0.0
    %4076 = vmatprep.subr.mxu0 0.0
    %4077 = vmatpush1.xpose.msra.mxu0 0.0
    %4078 = vmatprep.subr.mxu0 0.0
    %4079 = vmatpush1.xpose.msra.mxu0 0.0
    %4080 = vmatprep.subr.mxu0 0.0
    %4081 = vmatpush1.xpose.msra.mxu0 0.0
    %4082 = vmatprep.subr.mxu0 0.0
    %4083 = vmatpush1.xpose.msra.mxu0 0.0
    %4084 = vmatprep.subr.mxu0 0.0
    %4085 = vmatpush1.xpose.msra.mxu0 0.0
    %4086 = vmatprep.subr.mxu0 0.0
    %4087 = vmatpush1.xpose.msra.mxu0 0.0
    %4088 = vmatprep.subr.mxu0 0.0
    %4089 = vmatpush1.xpose.msra.mxu0 0.0
    %4090 = vmatprep.subr.mxu0 0.0
    %4091 = vmatpush1.xpose.msra.mxu0 0.0
    %4092 = vmatprep.subr.mxu0 0.0
    %4093 = vmatpush1.xpose.msra.mxu0 0.0
    %4094 = vmatprep.mubr.f32.mxu0 0.0
    %4095 = vmatmul.mubr.f32.gmra.mrb[0].mxu0 %v3966
    %v4096 = vpop.f32.mrb[0].mxu0
    %v4097 = vadd.f32 0.0, %v4096
    %v4098 = vpop.f32.mrb[0].mxu0
    %4099 = vmatprep.mubr.f32.mxu0 0.0
    %4100 = vmatmul.mubr.f32.gmra.mrb[0].mxu0 %v3968
    %v4101 = vpop.f32.mrb[0].mxu0
    %v4102 = vadd.f32 0.0, %v4101
    %v4103 = vpop.f32.mrb[0].mxu0
    %4104 = vmatprep.mubr.f32.mxu0 0.0
    %4105 = vmatmul.mubr.f32.gmra.mrb[0].mxu0 %v3970
    %v4106 = vpop.f32.mrb[0].mxu0
    %v4107 = vadd.f32 0.0, %v4106
    %v4108 = vpop.f32.mrb[0].mxu0
    %4109 = vmatprep.mubr.f32.mxu0 0.0
    %4110 = vmatmul.mubr.f32.gmra.mrb[0].mxu0 %v3972
    %v4111 = vpop.f32.mrb[0].mxu0
    %v4112 = vadd.f32 0.0, %v4111
    %v4113 = vpop.f32.mrb[0].mxu0
    %4114 = vmatprep.mubr.f32.mxu0 0.0
    %4115 = vmatmul.mubr.f32.gmra.mrb[0].mxu0 %v3974
    %v4116 = vpop.f32.mrb[0].mxu0
    %v4117 = vadd.f32 0.0, %v4116
    %v4118 = vpop.f32.mrb[0].mxu0
    %4119 = vmatprep.mubr.f32.mxu0 0.0
    %4120 = vmatmul.mubr.f32.gmra.mrb[0].mxu0 %v3976
    %v4121 = vpop.f32.mrb[0].mxu0
    %v4122 = vadd.f32 0.0, %v4121
    %v4123 = vpop.f32.mrb[0].mxu0
    %4124 = vmatprep.mubr.f32.mxu0 0.0
    %4125 = vmatmul.mubr.f32.gmra.mrb[0].mxu0 %v3978
    %v4126 = vpop.f32.mrb[0].mxu0
    %v4127 = vadd.f32 0.0, %v4126
    %v4128 = vpop.f32.mrb[0].mxu0
    %4129 = vmatprep.mubr.f32.mxu0 0.0
    %4130 = vmatmul.mubr.f32.gmra.mrb[0].mxu0 %v3980
    %v4131 = vpop.f32.mrb[0].mxu0
    %v4132 = vadd.f32 0.0, %v4131
    %v4133 = vpop.f32.mrb[0].mxu0
    %4134 = vmatprep.mubr.f32.mxu0 0.0
    %4135 = vmatmul.mubr.f32.gmra.mrb[0].mxu0 %v3982
    %v4136 = vpop.f32.mrb[0].mxu0
    %v4137 = vadd.f32 0.0, %v4136
    %v4138 = vpop.f32.mrb[0].mxu0
    %4139 = vmatprep.mubr.f32.mxu0 0.0
    %4140 = vmatmul.mubr.f32.gmra.mrb[0].mxu0 %v3984
    %v4141 = vpop.f32.mrb[0].mxu0
    %v4142 = vadd.f32 0.0, %v4141
    %v4143 = vpop.f32.mrb[0].mxu0
    %4144 = vmatprep.mubr.f32.mxu0 0.0
    %4145 = vmatmul.mubr.f32.gmra.mrb[0].mxu0 %v3986
    %v4146 = vpop.f32.mrb[0].mxu0
    %v4147 = vadd.f32 0.0, %v4146
    %v4148 = vpop.f32.mrb[0].mxu0
    %4149 = vmatprep.mubr.f32.mxu0 0.0
    %4150 = vmatmul.mubr.f32.gmra.mrb[0].mxu0 %v3988
    %v4151 = vpop.f32.mrb[0].mxu0
    %v4152 = vadd.f32 0.0, %v4151
    %v4153 = vpop.f32.mrb[0].mxu0
    %4154 = vmatprep.mubr.f32.mxu0 0.0
    %4155 = vmatmul.mubr.f32.gmra.mrb[0].mxu0 %v3990
    %v4156 = vpop.f32.mrb[0].mxu0
    %v4157 = vadd.f32 0.0, %v4156
    %v4158 = vpop.f32.mrb[0].mxu0
    %4159 = vmatprep.mubr.f32.mxu0 0.0
    %4160 = vmatmul.mubr.f32.gmra.mrb[0].mxu0 %v3992
    %v4161 = vpop.f32.mrb[0].mxu0
    %v4162 = vadd.f32 0.0, %v4161
    %v4163 = vpop.f32.mrb[0].mxu0
    %4164 = vmatprep.mubr.f32.mxu0 0.0
    %4165 = vmatmul.mubr.f32.gmra.mrb[0].mxu0 %v3994
    %v4166 = vpop.f32.mrb[0].mxu0
    %v4167 = vadd.f32 0.0, %v4166
    %v4168 = vpop.f32.mrb[0].mxu0
    %4169 = vmatprep.mubr.f32.mxu0 0.0
    %4170 = vmatmul.mubr.f32.gmra.mrb[0].mxu0 %v3996
    %v4171 = vpop.f32.mrb[0].mxu0
    %v4172 = vadd.f32 0.0, %v4171
    %v4173 = vpop.f32.mrb[0].mxu0
    %4174 = vdwg.mxu0
    %v4175 = vsel %vm2055, %v4097, -1e+30
    %v4176 = vsel %vm2056, %v4102, -1e+30
    %v4177 = vsel %vm2057, %v4107, -1e+30
    %v4178 = vsel %vm2058, %v4112, -1e+30
    %v4179 = vsel %vm2059, %v4117, -1e+30
    %v4180 = vsel %vm2060, %v4122, -1e+30
    %v4181 = vsel %vm2061, %v4127, -1e+30
    %v4182 = vsel %vm2062, %v4132, -1e+30
    %v4183 = vsel %vm2063, %v4137, -1e+30
    %v4184 = vsel %vm2064, %v4142, -1e+30
    %v4185 = vsel %vm2065, %v4147, -1e+30
    %v4186 = vsel %vm2066, %v4152, -1e+30
    %v4187 = vsel %vm2067, %v4157, -1e+30
    %v4188 = vsel %vm2068, %v4162, -1e+30
    %v4189 = vsel %vm2069, %v4167, -1e+30
    %v4190 = vsel %vm2070, %v4172, -1e+30
    %4191 = vmax.xlane.f32.xlu0 %v4175
    %v4192 = vpop.xlane.xlu0 %4191
    %4193 = vmax.xlane.f32.xlu0 %v4176
    %v4194 = vpop.xlane.xlu0 %4193
    %4195 = vmax.xlane.f32.xlu0 %v4177
    %v4196 = vpop.xlane.xlu0 %4195
    %4197 = vmax.xlane.f32.xlu0 %v4178
    %v4198 = vpop.xlane.xlu0 %4197
    %4199 = vmax.xlane.f32.xlu0 %v4179
    %v4200 = vpop.xlane.xlu0 %4199
    %4201 = vmax.xlane.f32.xlu0 %v4180
    %v4202 = vpop.xlane.xlu0 %4201
    %4203 = vmax.xlane.f32.xlu0 %v4181
    %v4204 = vpop.xlane.xlu0 %4203
    %4205 = vmax.xlane.f32.xlu0 %v4182
    %v4206 = vpop.xlane.xlu0 %4205
    %4207 = vmax.xlane.f32.xlu0 %v4183
    %v4208 = vpop.xlane.xlu0 %4207
    %4209 = vmax.xlane.f32.xlu0 %v4184
    %v4210 = vpop.xlane.xlu0 %4209
    %4211 = vmax.xlane.f32.xlu0 %v4185
    %v4212 = vpop.xlane.xlu0 %4211
    %4213 = vmax.xlane.f32.xlu0 %v4186
    %v4214 = vpop.xlane.xlu0 %4213
    %4215 = vmax.xlane.f32.xlu0 %v4187
    %v4216 = vpop.xlane.xlu0 %4215
    %4217 = vmax.xlane.f32.xlu0 %v4188
    %v4218 = vpop.xlane.xlu0 %4217
    %4219 = vmax.xlane.f32.xlu0 %v4189
    %v4220 = vpop.xlane.xlu0 %4219
    %4221 = vmax.xlane.f32.xlu0 %v4190
    %v4222 = vpop.xlane.xlu0 %4221
    %v4223 = vsub.f32 %v4175, %v4192
    %v4224 = vsub.f32 %v4176, %v4194
    %v4225 = vsub.f32 %v4177, %v4196
    %v4226 = vsub.f32 %v4178, %v4198
    %v4227 = vsub.f32 %v4179, %v4200
    %v4228 = vsub.f32 %v4180, %v4202
    %v4229 = vsub.f32 %v4181, %v4204
    %v4230 = vsub.f32 %v4182, %v4206
    %v4231 = vsub.f32 %v4183, %v4208
    %v4232 = vsub.f32 %v4184, %v4210
    %v4233 = vsub.f32 %v4185, %v4212
    %v4234 = vsub.f32 %v4186, %v4214
    %v4235 = vsub.f32 %v4187, %v4216
    %v4236 = vsub.f32 %v4188, %v4218
    %v4237 = vsub.f32 %v4189, %v4220
    %v4238 = vsub.f32 %v4190, %v4222
    %v4239 = vmul.f32 %v4223, 1.442695
    %v4240 = vpow.pop %v4239
    %v4241 = vmul.f32 %v4224, 1.442695
    %v4242 = vpow.pop %v4241
    %v4243 = vmul.f32 %v4225, 1.442695
    %v4244 = vpow.pop %v4243
    %v4245 = vmul.f32 %v4226, 1.442695
    %v4246 = vpow.pop %v4245
    %v4247 = vmul.f32 %v4227, 1.442695
    %v4248 = vpow.pop %v4247
    %v4249 = vmul.f32 %v4228, 1.442695
    %v4250 = vpow.pop %v4249
    %v4251 = vmul.f32 %v4229, 1.442695
    %v4252 = vpow.pop %v4251
    %v4253 = vmul.f32 %v4230, 1.442695
    %v4254 = vpow.pop %v4253
    %v4255 = vmul.f32 %v4231, 1.442695
    %v4256 = vpow.pop %v4255
    %v4257 = vmul.f32 %v4232, 1.442695
    %v4258 = vpow.pop %v4257
    %v4259 = vmul.f32 %v4233, 1.442695
    %v4260 = vpow.pop %v4259
    %v4261 = vmul.f32 %v4234, 1.442695
    %v4262 = vpow.pop %v4261
    %v4263 = vmul.f32 %v4235, 1.442695
    %v4264 = vpow.pop %v4263
    %v4265 = vmul.f32 %v4236, 1.442695
    %v4266 = vpow.pop %v4265
    %v4267 = vmul.f32 %v4237, 1.442695
    %v4268 = vpow.pop %v4267
    %v4269 = vmul.f32 %v4238, 1.442695
    %v4270 = vpow.pop %v4269
    %4271 = vadd.xlane.f32.xlu0 %v4240
    %v4272 = vpop.xlane.xlu0 %4271
    %4273 = vadd.xlane.f32.xlu0 %v4242
    %v4274 = vpop.xlane.xlu0 %4273
    %4275 = vadd.xlane.f32.xlu0 %v4244
    %v4276 = vpop.xlane.xlu0 %4275
    %4277 = vadd.xlane.f32.xlu0 %v4246
    %v4278 = vpop.xlane.xlu0 %4277
    %4279 = vadd.xlane.f32.xlu0 %v4248
    %v4280 = vpop.xlane.xlu0 %4279
    %4281 = vadd.xlane.f32.xlu0 %v4250
    %v4282 = vpop.xlane.xlu0 %4281
    %4283 = vadd.xlane.f32.xlu0 %v4252
    %v4284 = vpop.xlane.xlu0 %4283
    %4285 = vadd.xlane.f32.xlu0 %v4254
    %v4286 = vpop.xlane.xlu0 %4285
    %4287 = vadd.xlane.f32.xlu0 %v4256
    %v4288 = vpop.xlane.xlu0 %4287
    %4289 = vadd.xlane.f32.xlu0 %v4258
    %v4290 = vpop.xlane.xlu0 %4289
    %4291 = vadd.xlane.f32.xlu0 %v4260
    %v4292 = vpop.xlane.xlu0 %4291
    %4293 = vadd.xlane.f32.xlu0 %v4262
    %v4294 = vpop.xlane.xlu0 %4293
    %4295 = vadd.xlane.f32.xlu0 %v4264
    %v4296 = vpop.xlane.xlu0 %4295
    %4297 = vadd.xlane.f32.xlu0 %v4266
    %v4298 = vpop.xlane.xlu0 %4297
    %4299 = vadd.xlane.f32.xlu0 %v4268
    %v4300 = vpop.xlane.xlu0 %4299
    %4301 = vadd.xlane.f32.xlu0 %v4270
    %v4302 = vpop.xlane.xlu0 %4301
    %v4303 = vrcp.pop %v4272
    %v4304 = vrcp.pop %v4274
    %v4305 = vrcp.pop %v4276
    %v4306 = vrcp.pop %v4278
    %v4307 = vrcp.pop %v4280
    %v4308 = vrcp.pop %v4282
    %v4309 = vrcp.pop %v4284
    %v4310 = vrcp.pop %v4286
    %v4311 = vrcp.pop %v4288
    %v4312 = vrcp.pop %v4290
    %v4313 = vrcp.pop %v4292
    %v4314 = vrcp.pop %v4294
    %v4315 = vrcp.pop %v4296
    %v4316 = vrcp.pop %v4298
    %v4317 = vrcp.pop %v4300
    %v4318 = vrcp.pop %v4302
    %v4319 = vmul.f32 %v4240, %v4303
    %v4320 = vmul.f32 %v4242, %v4304
    %v4321 = vmul.f32 %v4244, %v4305
    %v4322 = vmul.f32 %v4246, %v4306
    %v4323 = vmul.f32 %v4248, %v4307
    %v4324 = vmul.f32 %v4250, %v4308
    %v4325 = vmul.f32 %v4252, %v4309
    %v4326 = vmul.f32 %v4254, %v4310
    %v4327 = vmul.f32 %v4256, %v4311
    %v4328 = vmul.f32 %v4258, %v4312
    %v4329 = vmul.f32 %v4260, %v4313
    %v4330 = vmul.f32 %v4262, %v4314
    %v4331 = vmul.f32 %v4264, %v4315
    %v4332 = vmul.f32 %v4266, %v4316
    %v4333 = vmul.f32 %v4268, %v4317
    %v4334 = vmul.f32 %v4270, %v4318
    %4335 = vrot.lane.b32.xlu0 %v1754, 116
    %v4336 = vpop.permute.xlu0 %4335
    %4337 = vrot.lane.b32.xlu0 %v1759, 116
    %v4338 = vpop.permute.xlu0 %4337
    %4339 = vrot.lane.b32.xlu0 %v1764, 116
    %v4340 = vpop.permute.xlu0 %4339
    %4341 = vrot.lane.b32.xlu0 %v1769, 116
    %v4342 = vpop.permute.xlu0 %4341
    %4343 = vrot.lane.b32.xlu0 %v1774, 116
    %v4344 = vpop.permute.xlu0 %4343
    %4345 = vrot.lane.b32.xlu0 %v1779, 116
    %v4346 = vpop.permute.xlu0 %4345
    %4347 = vrot.lane.b32.xlu0 %v1784, 116
    %v4348 = vpop.permute.xlu0 %4347
    %4349 = vrot.lane.b32.xlu0 %v1789, 116
    %v4350 = vpop.permute.xlu0 %4349
    %4351 = vrot.lane.b32.xlu0 %v1794, 116
    %v4352 = vpop.permute.xlu0 %4351
    %4353 = vrot.lane.b32.xlu0 %v1799, 116
    %v4354 = vpop.permute.xlu0 %4353
    %4355 = vrot.lane.b32.xlu0 %v1804, 116
    %v4356 = vpop.permute.xlu0 %4355
    %4357 = vrot.lane.b32.xlu0 %v1809, 116
    %v4358 = vpop.permute.xlu0 %4357
    %4359 = vrot.lane.b32.xlu0 %v1814, 116
    %v4360 = vpop.permute.xlu0 %4359
    %4361 = vrot.lane.b32.xlu0 %v1819, 116
    %v4362 = vpop.permute.xlu0 %4361
    %4363 = vrot.lane.b32.xlu0 %v1824, 116
    %v4364 = vpop.permute.xlu0 %4363
    %4365 = vrot.lane.b32.xlu0 %v1829, 116
    %v4366 = vpop.permute.xlu0 %4365
    %4383 = vmatprep.subr.mxu0 0.0
    %4384 = vmatpush1.msra.mxu0 %v4336
    %4385 = vmatprep.subr.mxu0 0.0
    %4386 = vmatpush1.msra.mxu0 %v4338
    %4387 = vmatprep.subr.mxu0 0.0
    %4388 = vmatpush1.msra.mxu0 %v4340
    %4389 = vmatprep.subr.mxu0 0.0
    %4390 = vmatpush1.msra.mxu0 %v4342
    %4391 = vmatprep.subr.mxu0 0.0
    %4392 = vmatpush1.msra.mxu0 %v4344
    %4393 = vmatprep.subr.mxu0 0.0
    %4394 = vmatpush1.msra.mxu0 %v4346
    %4395 = vmatprep.subr.mxu0 0.0
    %4396 = vmatpush1.msra.mxu0 %v4348
    %4397 = vmatprep.subr.mxu0 0.0
    %4398 = vmatpush1.msra.mxu0 %v4350
    %4399 = vmatprep.subr.mxu0 0.0
    %4400 = vmatpush1.msra.mxu0 %v4352
    %4401 = vmatprep.subr.mxu0 0.0
    %4402 = vmatpush1.msra.mxu0 %v4354
    %4403 = vmatprep.subr.mxu0 0.0
    %4404 = vmatpush1.msra.mxu0 %v4356
    %4405 = vmatprep.subr.mxu0 0.0
    %4406 = vmatpush1.msra.mxu0 %v4358
    %4407 = vmatprep.subr.mxu0 0.0
    %4408 = vmatpush1.msra.mxu0 %v4360
    %4409 = vmatprep.subr.mxu0 0.0
    %4410 = vmatpush1.msra.mxu0 %v4362
    %4411 = vmatprep.subr.mxu0 0.0
    %4412 = vmatpush1.msra.mxu0 %v4364
    %4413 = vmatprep.subr.mxu0 0.0
    %4414 = vmatpush1.msra.mxu0 %v4366
    %4415 = vmatprep.subr.mxu0 0.0
    %4416 = vmatpush1.msra.mxu0 0.0
    %4417 = vmatprep.subr.mxu0 0.0
    %4418 = vmatpush1.msra.mxu0 0.0
    %4419 = vmatprep.subr.mxu0 0.0
    %4420 = vmatpush1.msra.mxu0 0.0
    %4421 = vmatprep.subr.mxu0 0.0
    %4422 = vmatpush1.msra.mxu0 0.0
    %4423 = vmatprep.subr.mxu0 0.0
    %4424 = vmatpush1.msra.mxu0 0.0
    %4425 = vmatprep.subr.mxu0 0.0
    %4426 = vmatpush1.msra.mxu0 0.0
    %4427 = vmatprep.subr.mxu0 0.0
    %4428 = vmatpush1.msra.mxu0 0.0
    %4429 = vmatprep.subr.mxu0 0.0
    %4430 = vmatpush1.msra.mxu0 0.0
    %4431 = vmatprep.subr.mxu0 0.0
    %4432 = vmatpush1.msra.mxu0 0.0
    %4433 = vmatprep.subr.mxu0 0.0
    %4434 = vmatpush1.msra.mxu0 0.0
    %4435 = vmatprep.subr.mxu0 0.0
    %4436 = vmatpush1.msra.mxu0 0.0
    %4437 = vmatprep.subr.mxu0 0.0
    %4438 = vmatpush1.msra.mxu0 0.0
    %4439 = vmatprep.subr.mxu0 0.0
    %4440 = vmatpush1.msra.mxu0 0.0
    %4441 = vmatprep.subr.mxu0 0.0
    %4442 = vmatpush1.msra.mxu0 0.0
    %4443 = vmatprep.subr.mxu0 0.0
    %4444 = vmatpush1.msra.mxu0 0.0
    %4445 = vmatprep.subr.mxu0 0.0
    %4446 = vmatpush1.msra.mxu0 0.0
    %4447 = vmatprep.mubr.f32.mxu0 0.0
    %4448 = vmatmul.mubr.f32.gmra.mrb[0].mxu0 %v4319
    %v4449 = vpop.f32.mrb[0].mxu0
    %v4450 = vadd.f32 0.0, %v4449
    %v4451 = vpop.f32.mrb[0].mxu0
    %4452 = vmatprep.mubr.f32.mxu0 0.0
    %4453 = vmatmul.mubr.f32.gmra.mrb[0].mxu0 %v4320
    %v4454 = vpop.f32.mrb[0].mxu0
    %v4455 = vadd.f32 0.0, %v4454
    %v4456 = vpop.f32.mrb[0].mxu0
    %4457 = vmatprep.mubr.f32.mxu0 0.0
    %4458 = vmatmul.mubr.f32.gmra.mrb[0].mxu0 %v4321
    %v4459 = vpop.f32.mrb[0].mxu0
    %v4460 = vadd.f32 0.0, %v4459
    %v4461 = vpop.f32.mrb[0].mxu0
    %4462 = vmatprep.mubr.f32.mxu0 0.0
    %4463 = vmatmul.mubr.f32.gmra.mrb[0].mxu0 %v4322
    %v4464 = vpop.f32.mrb[0].mxu0
    %v4465 = vadd.f32 0.0, %v4464
    %v4466 = vpop.f32.mrb[0].mxu0
    %4467 = vmatprep.mubr.f32.mxu0 0.0
    %4468 = vmatmul.mubr.f32.gmra.mrb[0].mxu0 %v4323
    %v4469 = vpop.f32.mrb[0].mxu0
    %v4470 = vadd.f32 0.0, %v4469
    %v4471 = vpop.f32.mrb[0].mxu0
    %4472 = vmatprep.mubr.f32.mxu0 0.0
    %4473 = vmatmul.mubr.f32.gmra.mrb[0].mxu0 %v4324
    %v4474 = vpop.f32.mrb[0].mxu0
    %v4475 = vadd.f32 0.0, %v4474
    %v4476 = vpop.f32.mrb[0].mxu0
    %4477 = vmatprep.mubr.f32.mxu0 0.0
    %4478 = vmatmul.mubr.f32.gmra.mrb[0].mxu0 %v4325
    %v4479 = vpop.f32.mrb[0].mxu0
    %v4480 = vadd.f32 0.0, %v4479
    %v4481 = vpop.f32.mrb[0].mxu0
    %4482 = vmatprep.mubr.f32.mxu0 0.0
    %4483 = vmatmul.mubr.f32.gmra.mrb[0].mxu0 %v4326
    %v4484 = vpop.f32.mrb[0].mxu0
    %v4485 = vadd.f32 0.0, %v4484
    %v4486 = vpop.f32.mrb[0].mxu0
    %4487 = vmatprep.mubr.f32.mxu0 0.0
    %4488 = vmatmul.mubr.f32.gmra.mrb[0].mxu0 %v4327
    %v4489 = vpop.f32.mrb[0].mxu0
    %v4490 = vadd.f32 0.0, %v4489
    %v4491 = vpop.f32.mrb[0].mxu0
    %4492 = vmatprep.mubr.f32.mxu0 0.0
    %4493 = vmatmul.mubr.f32.gmra.mrb[0].mxu0 %v4328
    %v4494 = vpop.f32.mrb[0].mxu0
    %v4495 = vadd.f32 0.0, %v4494
    %v4496 = vpop.f32.mrb[0].mxu0
    %4497 = vmatprep.mubr.f32.mxu0 0.0
    %4498 = vmatmul.mubr.f32.gmra.mrb[0].mxu0 %v4329
    %v4499 = vpop.f32.mrb[0].mxu0
    %v4500 = vadd.f32 0.0, %v4499
    %v4501 = vpop.f32.mrb[0].mxu0
    %4502 = vmatprep.mubr.f32.mxu0 0.0
    %4503 = vmatmul.mubr.f32.gmra.mrb[0].mxu0 %v4330
    %v4504 = vpop.f32.mrb[0].mxu0
    %v4505 = vadd.f32 0.0, %v4504
    %v4506 = vpop.f32.mrb[0].mxu0
    %4507 = vmatprep.mubr.f32.mxu0 0.0
    %4508 = vmatmul.mubr.f32.gmra.mrb[0].mxu0 %v4331
    %v4509 = vpop.f32.mrb[0].mxu0
    %v4510 = vadd.f32 0.0, %v4509
    %v4511 = vpop.f32.mrb[0].mxu0
    %4512 = vmatprep.mubr.f32.mxu0 0.0
    %4513 = vmatmul.mubr.f32.gmra.mrb[0].mxu0 %v4332
    %v4514 = vpop.f32.mrb[0].mxu0
    %v4515 = vadd.f32 0.0, %v4514
    %v4516 = vpop.f32.mrb[0].mxu0
    %4517 = vmatprep.mubr.f32.mxu0 0.0
    %4518 = vmatmul.mubr.f32.gmra.mrb[0].mxu0 %v4333
    %v4519 = vpop.f32.mrb[0].mxu0
    %v4520 = vadd.f32 0.0, %v4519
    %v4521 = vpop.f32.mrb[0].mxu0
    %4522 = vmatprep.mubr.f32.mxu0 0.0
    %4523 = vmatmul.mubr.f32.gmra.mrb[0].mxu0 %v4334
    %v4524 = vpop.f32.mrb[0].mxu0
    %v4525 = vadd.f32 0.0, %v4524
    %v4526 = vpop.f32.mrb[0].mxu0
    %4527 = vdwg.mxu0
    %4528 = vrot.lane.b32.xlu0 %v2071, 112
    %v4529 = vpop.permute.xlu0 %4528
    %4530 = vrot.lane.b32.xlu0 %v2072, 112
    %v4531 = vpop.permute.xlu0 %4530
    %4532 = vrot.lane.b32.xlu0 %v2073, 112
    %v4533 = vpop.permute.xlu0 %4532
    %4534 = vrot.lane.b32.xlu0 %v2074, 112
    %v4535 = vpop.permute.xlu0 %4534
    %4536 = vrot.lane.b32.xlu0 %v2075, 112
    %v4537 = vpop.permute.xlu0 %4536
    %4538 = vrot.lane.b32.xlu0 %v2076, 112
    %v4539 = vpop.permute.xlu0 %4538
    %4540 = vrot.lane.b32.xlu0 %v2077, 112
    %v4541 = vpop.permute.xlu0 %4540
    %4542 = vrot.lane.b32.xlu0 %v2078, 112
    %v4543 = vpop.permute.xlu0 %4542
    %4544 = vrot.lane.b32.xlu0 %v2079, 112
    %v4545 = vpop.permute.xlu0 %4544
    %4546 = vrot.lane.b32.xlu0 %v2080, 112
    %v4547 = vpop.permute.xlu0 %4546
    %4548 = vrot.lane.b32.xlu0 %v2081, 112
    %v4549 = vpop.permute.xlu0 %4548
    %4550 = vrot.lane.b32.xlu0 %v2082, 112
    %v4551 = vpop.permute.xlu0 %4550
    %4552 = vrot.lane.b32.xlu0 %v2083, 112
    %v4553 = vpop.permute.xlu0 %4552
    %4554 = vrot.lane.b32.xlu0 %v2084, 112
    %v4555 = vpop.permute.xlu0 %4554
    %4556 = vrot.lane.b32.xlu0 %v2085, 112
    %v4557 = vpop.permute.xlu0 %4556
    %4558 = vrot.lane.b32.xlu0 %v2086, 112
    %v4559 = vpop.permute.xlu0 %4558
    %4560 = vrot.lane.b32.xlu0 %v1598, 112
    %v4561 = vpop.permute.xlu0 %4560
    %4562 = vrot.lane.b32.xlu0 %v1603, 112
    %v4563 = vpop.permute.xlu0 %4562
    %4564 = vrot.lane.b32.xlu0 %v1608, 112
    %v4565 = vpop.permute.xlu0 %4564
    %4566 = vrot.lane.b32.xlu0 %v1613, 112
    %v4567 = vpop.permute.xlu0 %4566
    %4568 = vrot.lane.b32.xlu0 %v1618, 112
    %v4569 = vpop.permute.xlu0 %4568
    %4570 = vrot.lane.b32.xlu0 %v1623, 112
    %v4571 = vpop.permute.xlu0 %4570
    %4572 = vrot.lane.b32.xlu0 %v1628, 112
    %v4573 = vpop.permute.xlu0 %4572
    %4574 = vrot.lane.b32.xlu0 %v1633, 112
    %v4575 = vpop.permute.xlu0 %4574
    %4576 = vrot.lane.b32.xlu0 %v1638, 112
    %v4577 = vpop.permute.xlu0 %4576
    %4578 = vrot.lane.b32.xlu0 %v1643, 112
    %v4579 = vpop.permute.xlu0 %4578
    %4580 = vrot.lane.b32.xlu0 %v1648, 112
    %v4581 = vpop.permute.xlu0 %4580
    %4582 = vrot.lane.b32.xlu0 %v1653, 112
    %v4583 = vpop.permute.xlu0 %4582
    %4584 = vrot.lane.b32.xlu0 %v1658, 112
    %v4585 = vpop.permute.xlu0 %4584
    %4586 = vrot.lane.b32.xlu0 %v1663, 112
    %v4587 = vpop.permute.xlu0 %4586
    %4588 = vrot.lane.b32.xlu0 %v1668, 112
    %v4589 = vpop.permute.xlu0 %4588
    %4590 = vrot.lane.b32.xlu0 %v1673, 112
    %v4591 = vpop.permute.xlu0 %4590
    %v4592 = vsel %vm2087, %v4529, 0
    %v4594 = vsel %vm2087, %v4531, 0
    %v4596 = vsel %vm2087, %v4533, 0
    %v4598 = vsel %vm2087, %v4535, 0
    %v4600 = vsel %vm2087, %v4537, 0
    %v4602 = vsel %vm2087, %v4539, 0
    %v4604 = vsel %vm2087, %v4541, 0
    %v4606 = vsel %vm2087, %v4543, 0
    %v4608 = vsel %vm2087, %v4545, 0
    %v4610 = vsel %vm2087, %v4547, 0
    %v4612 = vsel %vm2087, %v4549, 0
    %v4614 = vsel %vm2087, %v4551, 0
    %v4616 = vsel %vm2087, %v4553, 0
    %v4618 = vsel %vm2087, %v4555, 0
    %v4620 = vsel %vm2087, %v4557, 0
    %v4622 = vsel %vm2087, %v4559, 0
    %v4624 = vsel %vm2087, %v4561, 0
    %v4626 = vsel %vm2087, %v4563, 0
    %v4628 = vsel %vm2087, %v4565, 0
    %v4630 = vsel %vm2087, %v4567, 0
    %v4632 = vsel %vm2087, %v4569, 0
    %v4634 = vsel %vm2087, %v4571, 0
    %v4636 = vsel %vm2087, %v4573, 0
    %v4638 = vsel %vm2087, %v4575, 0
    %v4640 = vsel %vm2087, %v4577, 0
    %v4642 = vsel %vm2087, %v4579, 0
    %v4644 = vsel %vm2087, %v4581, 0
    %v4646 = vsel %vm2087, %v4583, 0
    %v4648 = vsel %vm2087, %v4585, 0
    %v4650 = vsel %vm2087, %v4587, 0
    %v4652 = vsel %vm2087, %v4589, 0
    %v4654 = vsel %vm2087, %v4591, 0
    %4656 = vmatprep.subr.mxu0 0.0
    %4657 = vmatpush1.xpose.msra.mxu0 %v4624
    %4658 = vmatprep.subr.mxu0 0.0
    %4659 = vmatpush1.xpose.msra.mxu0 %v4626
    %4660 = vmatprep.subr.mxu0 0.0
    %4661 = vmatpush1.xpose.msra.mxu0 %v4628
    %4662 = vmatprep.subr.mxu0 0.0
    %4663 = vmatpush1.xpose.msra.mxu0 %v4630
    %4664 = vmatprep.subr.mxu0 0.0
    %4665 = vmatpush1.xpose.msra.mxu0 %v4632
    %4666 = vmatprep.subr.mxu0 0.0
    %4667 = vmatpush1.xpose.msra.mxu0 %v4634
    %4668 = vmatprep.subr.mxu0 0.0
    %4669 = vmatpush1.xpose.msra.mxu0 %v4636
    %4670 = vmatprep.subr.mxu0 0.0
    %4671 = vmatpush1.xpose.msra.mxu0 %v4638
    %4672 = vmatprep.subr.mxu0 0.0
    %4673 = vmatpush1.xpose.msra.mxu0 %v4640
    %4674 = vmatprep.subr.mxu0 0.0
    %4675 = vmatpush1.xpose.msra.mxu0 %v4642
    %4676 = vmatprep.subr.mxu0 0.0
    %4677 = vmatpush1.xpose.msra.mxu0 %v4644
    %4678 = vmatprep.subr.mxu0 0.0
    %4679 = vmatpush1.xpose.msra.mxu0 %v4646
    %4680 = vmatprep.subr.mxu0 0.0
    %4681 = vmatpush1.xpose.msra.mxu0 %v4648
    %4682 = vmatprep.subr.mxu0 0.0
    %4683 = vmatpush1.xpose.msra.mxu0 %v4650
    %4684 = vmatprep.subr.mxu0 0.0
    %4685 = vmatpush1.xpose.msra.mxu0 %v4652
    %4686 = vmatprep.subr.mxu0 0.0
    %4687 = vmatpush1.xpose.msra.mxu0 %v4654
    %4688 = vmatprep.subr.mxu0 0.0
    %4689 = vmatpush1.xpose.msra.mxu0 0.0
    %4690 = vmatprep.subr.mxu0 0.0
    %4691 = vmatpush1.xpose.msra.mxu0 0.0
    %4692 = vmatprep.subr.mxu0 0.0
    %4693 = vmatpush1.xpose.msra.mxu0 0.0
    %4694 = vmatprep.subr.mxu0 0.0
    %4695 = vmatpush1.xpose.msra.mxu0 0.0
    %4696 = vmatprep.subr.mxu0 0.0
    %4697 = vmatpush1.xpose.msra.mxu0 0.0
    %4698 = vmatprep.subr.mxu0 0.0
    %4699 = vmatpush1.xpose.msra.mxu0 0.0
    %4700 = vmatprep.subr.mxu0 0.0
    %4701 = vmatpush1.xpose.msra.mxu0 0.0
    %4702 = vmatprep.subr.mxu0 0.0
    %4703 = vmatpush1.xpose.msra.mxu0 0.0
    %4704 = vmatprep.subr.mxu0 0.0
    %4705 = vmatpush1.xpose.msra.mxu0 0.0
    %4706 = vmatprep.subr.mxu0 0.0
    %4707 = vmatpush1.xpose.msra.mxu0 0.0
    %4708 = vmatprep.subr.mxu0 0.0
    %4709 = vmatpush1.xpose.msra.mxu0 0.0
    %4710 = vmatprep.subr.mxu0 0.0
    %4711 = vmatpush1.xpose.msra.mxu0 0.0
    %4712 = vmatprep.subr.mxu0 0.0
    %4713 = vmatpush1.xpose.msra.mxu0 0.0
    %4714 = vmatprep.subr.mxu0 0.0
    %4715 = vmatpush1.xpose.msra.mxu0 0.0
    %4716 = vmatprep.subr.mxu0 0.0
    %4717 = vmatpush1.xpose.msra.mxu0 0.0
    %4718 = vmatprep.subr.mxu0 0.0
    %4719 = vmatpush1.xpose.msra.mxu0 0.0
    %4720 = vmatprep.mubr.f32.mxu0 0.0
    %4721 = vmatmul.mubr.f32.gmra.mrb[0].mxu0 %v4592
    %v4722 = vpop.f32.mrb[0].mxu0
    %v4723 = vadd.f32 0.0, %v4722
    %v4724 = vpop.f32.mrb[0].mxu0
    %4725 = vmatprep.mubr.f32.mxu0 0.0
    %4726 = vmatmul.mubr.f32.gmra.mrb[0].mxu0 %v4594
    %v4727 = vpop.f32.mrb[0].mxu0
    %v4728 = vadd.f32 0.0, %v4727
    %v4729 = vpop.f32.mrb[0].mxu0
    %4730 = vmatprep.mubr.f32.mxu0 0.0
    %4731 = vmatmul.mubr.f32.gmra.mrb[0].mxu0 %v4596
    %v4732 = vpop.f32.mrb[0].mxu0
    %v4733 = vadd.f32 0.0, %v4732
    %v4734 = vpop.f32.mrb[0].mxu0
    %4735 = vmatprep.mubr.f32.mxu0 0.0
    %4736 = vmatmul.mubr.f32.gmra.mrb[0].mxu0 %v4598
    %v4737 = vpop.f32.mrb[0].mxu0
    %v4738 = vadd.f32 0.0, %v4737
    %v4739 = vpop.f32.mrb[0].mxu0
    %4740 = vmatprep.mubr.f32.mxu0 0.0
    %4741 = vmatmul.mubr.f32.gmra.mrb[0].mxu0 %v4600
    %v4742 = vpop.f32.mrb[0].mxu0
    %v4743 = vadd.f32 0.0, %v4742
    %v4744 = vpop.f32.mrb[0].mxu0
    %4745 = vmatprep.mubr.f32.mxu0 0.0
    %4746 = vmatmul.mubr.f32.gmra.mrb[0].mxu0 %v4602
    %v4747 = vpop.f32.mrb[0].mxu0
    %v4748 = vadd.f32 0.0, %v4747
    %v4749 = vpop.f32.mrb[0].mxu0
    %4750 = vmatprep.mubr.f32.mxu0 0.0
    %4751 = vmatmul.mubr.f32.gmra.mrb[0].mxu0 %v4604
    %v4752 = vpop.f32.mrb[0].mxu0
    %v4753 = vadd.f32 0.0, %v4752
    %v4754 = vpop.f32.mrb[0].mxu0
    %4755 = vmatprep.mubr.f32.mxu0 0.0
    %4756 = vmatmul.mubr.f32.gmra.mrb[0].mxu0 %v4606
    %v4757 = vpop.f32.mrb[0].mxu0
    %v4758 = vadd.f32 0.0, %v4757
    %v4759 = vpop.f32.mrb[0].mxu0
    %4760 = vmatprep.mubr.f32.mxu0 0.0
    %4761 = vmatmul.mubr.f32.gmra.mrb[0].mxu0 %v4608
    %v4762 = vpop.f32.mrb[0].mxu0
    %v4763 = vadd.f32 0.0, %v4762
    %v4764 = vpop.f32.mrb[0].mxu0
    %4765 = vmatprep.mubr.f32.mxu0 0.0
    %4766 = vmatmul.mubr.f32.gmra.mrb[0].mxu0 %v4610
    %v4767 = vpop.f32.mrb[0].mxu0
    %v4768 = vadd.f32 0.0, %v4767
    %v4769 = vpop.f32.mrb[0].mxu0
    %4770 = vmatprep.mubr.f32.mxu0 0.0
    %4771 = vmatmul.mubr.f32.gmra.mrb[0].mxu0 %v4612
    %v4772 = vpop.f32.mrb[0].mxu0
    %v4773 = vadd.f32 0.0, %v4772
    %v4774 = vpop.f32.mrb[0].mxu0
    %4775 = vmatprep.mubr.f32.mxu0 0.0
    %4776 = vmatmul.mubr.f32.gmra.mrb[0].mxu0 %v4614
    %v4777 = vpop.f32.mrb[0].mxu0
    %v4778 = vadd.f32 0.0, %v4777
    %v4779 = vpop.f32.mrb[0].mxu0
    %4780 = vmatprep.mubr.f32.mxu0 0.0
    %4781 = vmatmul.mubr.f32.gmra.mrb[0].mxu0 %v4616
    %v4782 = vpop.f32.mrb[0].mxu0
    %v4783 = vadd.f32 0.0, %v4782
    %v4784 = vpop.f32.mrb[0].mxu0
    %4785 = vmatprep.mubr.f32.mxu0 0.0
    %4786 = vmatmul.mubr.f32.gmra.mrb[0].mxu0 %v4618
    %v4787 = vpop.f32.mrb[0].mxu0
    %v4788 = vadd.f32 0.0, %v4787
    %v4789 = vpop.f32.mrb[0].mxu0
    %4790 = vmatprep.mubr.f32.mxu0 0.0
    %4791 = vmatmul.mubr.f32.gmra.mrb[0].mxu0 %v4620
    %v4792 = vpop.f32.mrb[0].mxu0
    %v4793 = vadd.f32 0.0, %v4792
    %v4794 = vpop.f32.mrb[0].mxu0
    %4795 = vmatprep.mubr.f32.mxu0 0.0
    %4796 = vmatmul.mubr.f32.gmra.mrb[0].mxu0 %v4622
    %v4797 = vpop.f32.mrb[0].mxu0
    %v4798 = vadd.f32 0.0, %v4797
    %v4799 = vpop.f32.mrb[0].mxu0
    %4800 = vdwg.mxu0
    %v4801 = vsel %vm2055, %v4723, -1e+30
    %v4802 = vsel %vm2056, %v4728, -1e+30
    %v4803 = vsel %vm2057, %v4733, -1e+30
    %v4804 = vsel %vm2058, %v4738, -1e+30
    %v4805 = vsel %vm2059, %v4743, -1e+30
    %v4806 = vsel %vm2060, %v4748, -1e+30
    %v4807 = vsel %vm2061, %v4753, -1e+30
    %v4808 = vsel %vm2062, %v4758, -1e+30
    %v4809 = vsel %vm2063, %v4763, -1e+30
    %v4810 = vsel %vm2064, %v4768, -1e+30
    %v4811 = vsel %vm2065, %v4773, -1e+30
    %v4812 = vsel %vm2066, %v4778, -1e+30
    %v4813 = vsel %vm2067, %v4783, -1e+30
    %v4814 = vsel %vm2068, %v4788, -1e+30
    %v4815 = vsel %vm2069, %v4793, -1e+30
    %v4816 = vsel %vm2070, %v4798, -1e+30
    %4817 = vmax.xlane.f32.xlu0 %v4801
    %v4818 = vpop.xlane.xlu0 %4817
    %4819 = vmax.xlane.f32.xlu0 %v4802
    %v4820 = vpop.xlane.xlu0 %4819
    %4821 = vmax.xlane.f32.xlu0 %v4803
    %v4822 = vpop.xlane.xlu0 %4821
    %4823 = vmax.xlane.f32.xlu0 %v4804
    %v4824 = vpop.xlane.xlu0 %4823
    %4825 = vmax.xlane.f32.xlu0 %v4805
    %v4826 = vpop.xlane.xlu0 %4825
    %4827 = vmax.xlane.f32.xlu0 %v4806
    %v4828 = vpop.xlane.xlu0 %4827
    %4829 = vmax.xlane.f32.xlu0 %v4807
    %v4830 = vpop.xlane.xlu0 %4829
    %4831 = vmax.xlane.f32.xlu0 %v4808
    %v4832 = vpop.xlane.xlu0 %4831
    %4833 = vmax.xlane.f32.xlu0 %v4809
    %v4834 = vpop.xlane.xlu0 %4833
    %4835 = vmax.xlane.f32.xlu0 %v4810
    %v4836 = vpop.xlane.xlu0 %4835
    %4837 = vmax.xlane.f32.xlu0 %v4811
    %v4838 = vpop.xlane.xlu0 %4837
    %4839 = vmax.xlane.f32.xlu0 %v4812
    %v4840 = vpop.xlane.xlu0 %4839
    %4841 = vmax.xlane.f32.xlu0 %v4813
    %v4842 = vpop.xlane.xlu0 %4841
    %4843 = vmax.xlane.f32.xlu0 %v4814
    %v4844 = vpop.xlane.xlu0 %4843
    %4845 = vmax.xlane.f32.xlu0 %v4815
    %v4846 = vpop.xlane.xlu0 %4845
    %4847 = vmax.xlane.f32.xlu0 %v4816
    %v4848 = vpop.xlane.xlu0 %4847
    %v4849 = vsub.f32 %v4801, %v4818
    %v4850 = vsub.f32 %v4802, %v4820
    %v4851 = vsub.f32 %v4803, %v4822
    %v4852 = vsub.f32 %v4804, %v4824
    %v4853 = vsub.f32 %v4805, %v4826
    %v4854 = vsub.f32 %v4806, %v4828
    %v4855 = vsub.f32 %v4807, %v4830
    %v4856 = vsub.f32 %v4808, %v4832
    %v4857 = vsub.f32 %v4809, %v4834
    %v4858 = vsub.f32 %v4810, %v4836
    %v4859 = vsub.f32 %v4811, %v4838
    %v4860 = vsub.f32 %v4812, %v4840
    %v4861 = vsub.f32 %v4813, %v4842
    %v4862 = vsub.f32 %v4814, %v4844
    %v4863 = vsub.f32 %v4815, %v4846
    %v4864 = vsub.f32 %v4816, %v4848
    %v4865 = vmul.f32 %v4849, 1.442695
    %v4866 = vpow.pop %v4865
    %v4867 = vmul.f32 %v4850, 1.442695
    %v4868 = vpow.pop %v4867
    %v4869 = vmul.f32 %v4851, 1.442695
    %v4870 = vpow.pop %v4869
    %v4871 = vmul.f32 %v4852, 1.442695
    %v4872 = vpow.pop %v4871
    %v4873 = vmul.f32 %v4853, 1.442695
    %v4874 = vpow.pop %v4873
    %v4875 = vmul.f32 %v4854, 1.442695
    %v4876 = vpow.pop %v4875
    %v4877 = vmul.f32 %v4855, 1.442695
    %v4878 = vpow.pop %v4877
    %v4879 = vmul.f32 %v4856, 1.442695
    %v4880 = vpow.pop %v4879
    %v4881 = vmul.f32 %v4857, 1.442695
    %v4882 = vpow.pop %v4881
    %v4883 = vmul.f32 %v4858, 1.442695
    %v4884 = vpow.pop %v4883
    %v4885 = vmul.f32 %v4859, 1.442695
    %v4886 = vpow.pop %v4885
    %v4887 = vmul.f32 %v4860, 1.442695
    %v4888 = vpow.pop %v4887
    %v4889 = vmul.f32 %v4861, 1.442695
    %v4890 = vpow.pop %v4889
    %v4891 = vmul.f32 %v4862, 1.442695
    %v4892 = vpow.pop %v4891
    %v4893 = vmul.f32 %v4863, 1.442695
    %v4894 = vpow.pop %v4893
    %v4895 = vmul.f32 %v4864, 1.442695
    %v4896 = vpow.pop %v4895
    %4897 = vadd.xlane.f32.xlu0 %v4866
    %v4898 = vpop.xlane.xlu0 %4897
    %4899 = vadd.xlane.f32.xlu0 %v4868
    %v4900 = vpop.xlane.xlu0 %4899
    %4901 = vadd.xlane.f32.xlu0 %v4870
    %v4902 = vpop.xlane.xlu0 %4901
    %4903 = vadd.xlane.f32.xlu0 %v4872
    %v4904 = vpop.xlane.xlu0 %4903
    %4905 = vadd.xlane.f32.xlu0 %v4874
    %v4906 = vpop.xlane.xlu0 %4905
    %4907 = vadd.xlane.f32.xlu0 %v4876
    %v4908 = vpop.xlane.xlu0 %4907
    %4909 = vadd.xlane.f32.xlu0 %v4878
    %v4910 = vpop.xlane.xlu0 %4909
    %4911 = vadd.xlane.f32.xlu0 %v4880
    %v4912 = vpop.xlane.xlu0 %4911
    %4913 = vadd.xlane.f32.xlu0 %v4882
    %v4914 = vpop.xlane.xlu0 %4913
    %4915 = vadd.xlane.f32.xlu0 %v4884
    %v4916 = vpop.xlane.xlu0 %4915
    %4917 = vadd.xlane.f32.xlu0 %v4886
    %v4918 = vpop.xlane.xlu0 %4917
    %4919 = vadd.xlane.f32.xlu0 %v4888
    %v4920 = vpop.xlane.xlu0 %4919
    %4921 = vadd.xlane.f32.xlu0 %v4890
    %v4922 = vpop.xlane.xlu0 %4921
    %4923 = vadd.xlane.f32.xlu0 %v4892
    %v4924 = vpop.xlane.xlu0 %4923
    %4925 = vadd.xlane.f32.xlu0 %v4894
    %v4926 = vpop.xlane.xlu0 %4925
    %4927 = vadd.xlane.f32.xlu0 %v4896
    %v4928 = vpop.xlane.xlu0 %4927
    %v4929 = vrcp.pop %v4898
    %v4930 = vrcp.pop %v4900
    %v4931 = vrcp.pop %v4902
    %v4932 = vrcp.pop %v4904
    %v4933 = vrcp.pop %v4906
    %v4934 = vrcp.pop %v4908
    %v4935 = vrcp.pop %v4910
    %v4936 = vrcp.pop %v4912
    %v4937 = vrcp.pop %v4914
    %v4938 = vrcp.pop %v4916
    %v4939 = vrcp.pop %v4918
    %v4940 = vrcp.pop %v4920
    %v4941 = vrcp.pop %v4922
    %v4942 = vrcp.pop %v4924
    %v4943 = vrcp.pop %v4926
    %v4944 = vrcp.pop %v4928
    %v4945 = vmul.f32 %v4866, %v4929
    %v4946 = vmul.f32 %v4868, %v4930
    %v4947 = vmul.f32 %v4870, %v4931
    %v4948 = vmul.f32 %v4872, %v4932
    %v4949 = vmul.f32 %v4874, %v4933
    %v4950 = vmul.f32 %v4876, %v4934
    %v4951 = vmul.f32 %v4878, %v4935
    %v4952 = vmul.f32 %v4880, %v4936
    %v4953 = vmul.f32 %v4882, %v4937
    %v4954 = vmul.f32 %v4884, %v4938
    %v4955 = vmul.f32 %v4886, %v4939
    %v4956 = vmul.f32 %v4888, %v4940
    %v4957 = vmul.f32 %v4890, %v4941
    %v4958 = vmul.f32 %v4892, %v4942
    %v4959 = vmul.f32 %v4894, %v4943
    %v4960 = vmul.f32 %v4896, %v4944
    %4961 = vrot.lane.b32.xlu0 %v1754, 112
    %v4962 = vpop.permute.xlu0 %4961
    %4963 = vrot.lane.b32.xlu0 %v1759, 112
    %v4964 = vpop.permute.xlu0 %4963
    %4965 = vrot.lane.b32.xlu0 %v1764, 112
    %v4966 = vpop.permute.xlu0 %4965
    %4967 = vrot.lane.b32.xlu0 %v1769, 112
    %v4968 = vpop.permute.xlu0 %4967
    %4969 = vrot.lane.b32.xlu0 %v1774, 112
    %v4970 = vpop.permute.xlu0 %4969
    %4971 = vrot.lane.b32.xlu0 %v1779, 112
    %v4972 = vpop.permute.xlu0 %4971
    %4973 = vrot.lane.b32.xlu0 %v1784, 112
    %v4974 = vpop.permute.xlu0 %4973
    %4975 = vrot.lane.b32.xlu0 %v1789, 112
    %v4976 = vpop.permute.xlu0 %4975
    %4977 = vrot.lane.b32.xlu0 %v1794, 112
    %v4978 = vpop.permute.xlu0 %4977
    %4979 = vrot.lane.b32.xlu0 %v1799, 112
    %v4980 = vpop.permute.xlu0 %4979
    %4981 = vrot.lane.b32.xlu0 %v1804, 112
    %v4982 = vpop.permute.xlu0 %4981
    %4983 = vrot.lane.b32.xlu0 %v1809, 112
    %v4984 = vpop.permute.xlu0 %4983
    %4985 = vrot.lane.b32.xlu0 %v1814, 112
    %v4986 = vpop.permute.xlu0 %4985
    %4987 = vrot.lane.b32.xlu0 %v1819, 112
    %v4988 = vpop.permute.xlu0 %4987
    %4989 = vrot.lane.b32.xlu0 %v1824, 112
    %v4990 = vpop.permute.xlu0 %4989
    %4991 = vrot.lane.b32.xlu0 %v1829, 112
    %v4992 = vpop.permute.xlu0 %4991
    %5009 = vmatprep.subr.mxu0 0.0
    %5010 = vmatpush1.msra.mxu0 %v4962
    %5011 = vmatprep.subr.mxu0 0.0
    %5012 = vmatpush1.msra.mxu0 %v4964
    %5013 = vmatprep.subr.mxu0 0.0
    %5014 = vmatpush1.msra.mxu0 %v4966
    %5015 = vmatprep.subr.mxu0 0.0
    %5016 = vmatpush1.msra.mxu0 %v4968
    %5017 = vmatprep.subr.mxu0 0.0
    %5018 = vmatpush1.msra.mxu0 %v4970
    %5019 = vmatprep.subr.mxu0 0.0
    %5020 = vmatpush1.msra.mxu0 %v4972
    %5021 = vmatprep.subr.mxu0 0.0
    %5022 = vmatpush1.msra.mxu0 %v4974
    %5023 = vmatprep.subr.mxu0 0.0
    %5024 = vmatpush1.msra.mxu0 %v4976
    %5025 = vmatprep.subr.mxu0 0.0
    %5026 = vmatpush1.msra.mxu0 %v4978
    %5027 = vmatprep.subr.mxu0 0.0
    %5028 = vmatpush1.msra.mxu0 %v4980
    %5029 = vmatprep.subr.mxu0 0.0
    %5030 = vmatpush1.msra.mxu0 %v4982
    %5031 = vmatprep.subr.mxu0 0.0
    %5032 = vmatpush1.msra.mxu0 %v4984
    %5033 = vmatprep.subr.mxu0 0.0
    %5034 = vmatpush1.msra.mxu0 %v4986
    %5035 = vmatprep.subr.mxu0 0.0
    %5036 = vmatpush1.msra.mxu0 %v4988
    %5037 = vmatprep.subr.mxu0 0.0
    %5038 = vmatpush1.msra.mxu0 %v4990
    %5039 = vmatprep.subr.mxu0 0.0
    %5040 = vmatpush1.msra.mxu0 %v4992
    %5041 = vmatprep.subr.mxu0 0.0
    %5042 = vmatpush1.msra.mxu0 0.0
    %5043 = vmatprep.subr.mxu0 0.0
    %5044 = vmatpush1.msra.mxu0 0.0
    %5045 = vmatprep.subr.mxu0 0.0
    %5046 = vmatpush1.msra.mxu0 0.0
    %5047 = vmatprep.subr.mxu0 0.0
    %5048 = vmatpush1.msra.mxu0 0.0
    %5049 = vmatprep.subr.mxu0 0.0
    %5050 = vmatpush1.msra.mxu0 0.0
    %5051 = vmatprep.subr.mxu0 0.0
    %5052 = vmatpush1.msra.mxu0 0.0
    %5053 = vmatprep.subr.mxu0 0.0
    %5054 = vmatpush1.msra.mxu0 0.0
    %5055 = vmatprep.subr.mxu0 0.0
    %5056 = vmatpush1.msra.mxu0 0.0
    %5057 = vmatprep.subr.mxu0 0.0
    %5058 = vmatpush1.msra.mxu0 0.0
    %5059 = vmatprep.subr.mxu0 0.0
    %5060 = vmatpush1.msra.mxu0 0.0
    %5061 = vmatprep.subr.mxu0 0.0
    %5062 = vmatpush1.msra.mxu0 0.0
    %5063 = vmatprep.subr.mxu0 0.0
    %5064 = vmatpush1.msra.mxu0 0.0
    %5065 = vmatprep.subr.mxu0 0.0
    %5066 = vmatpush1.msra.mxu0 0.0
    %5067 = vmatprep.subr.mxu0 0.0
    %5068 = vmatpush1.msra.mxu0 0.0
    %5069 = vmatprep.subr.mxu0 0.0
    %5070 = vmatpush1.msra.mxu0 0.0
    %5071 = vmatprep.subr.mxu0 0.0
    %5072 = vmatpush1.msra.mxu0 0.0
    %5073 = vmatprep.mubr.f32.mxu0 0.0
    %5074 = vmatmul.mubr.f32.gmra.mrb[0].mxu0 %v4945
    %v5075 = vpop.f32.mrb[0].mxu0
    %v5076 = vadd.f32 0.0, %v5075
    %v5077 = vpop.f32.mrb[0].mxu0
    %5078 = vmatprep.mubr.f32.mxu0 0.0
    %5079 = vmatmul.mubr.f32.gmra.mrb[0].mxu0 %v4946
    %v5080 = vpop.f32.mrb[0].mxu0
    %v5081 = vadd.f32 0.0, %v5080
    %v5082 = vpop.f32.mrb[0].mxu0
    %5083 = vmatprep.mubr.f32.mxu0 0.0
    %5084 = vmatmul.mubr.f32.gmra.mrb[0].mxu0 %v4947
    %v5085 = vpop.f32.mrb[0].mxu0
    %v5086 = vadd.f32 0.0, %v5085
    %v5087 = vpop.f32.mrb[0].mxu0
    %5088 = vmatprep.mubr.f32.mxu0 0.0
    %5089 = vmatmul.mubr.f32.gmra.mrb[0].mxu0 %v4948
    %v5090 = vpop.f32.mrb[0].mxu0
    %v5091 = vadd.f32 0.0, %v5090
    %v5092 = vpop.f32.mrb[0].mxu0
    %5093 = vmatprep.mubr.f32.mxu0 0.0
    %5094 = vmatmul.mubr.f32.gmra.mrb[0].mxu0 %v4949
    %v5095 = vpop.f32.mrb[0].mxu0
    %v5096 = vadd.f32 0.0, %v5095
    %v5097 = vpop.f32.mrb[0].mxu0
    %5098 = vmatprep.mubr.f32.mxu0 0.0
    %5099 = vmatmul.mubr.f32.gmra.mrb[0].mxu0 %v4950
    %v5100 = vpop.f32.mrb[0].mxu0
    %v5101 = vadd.f32 0.0, %v5100
    %v5102 = vpop.f32.mrb[0].mxu0
    %5103 = vmatprep.mubr.f32.mxu0 0.0
    %5104 = vmatmul.mubr.f32.gmra.mrb[0].mxu0 %v4951
    %v5105 = vpop.f32.mrb[0].mxu0
    %v5106 = vadd.f32 0.0, %v5105
    %v5107 = vpop.f32.mrb[0].mxu0
    %5108 = vmatprep.mubr.f32.mxu0 0.0
    %5109 = vmatmul.mubr.f32.gmra.mrb[0].mxu0 %v4952
    %v5110 = vpop.f32.mrb[0].mxu0
    %v5111 = vadd.f32 0.0, %v5110
    %v5112 = vpop.f32.mrb[0].mxu0
    %5113 = vmatprep.mubr.f32.mxu0 0.0
    %5114 = vmatmul.mubr.f32.gmra.mrb[0].mxu0 %v4953
    %v5115 = vpop.f32.mrb[0].mxu0
    %v5116 = vadd.f32 0.0, %v5115
    %v5117 = vpop.f32.mrb[0].mxu0
    %5118 = vmatprep.mubr.f32.mxu0 0.0
    %5119 = vmatmul.mubr.f32.gmra.mrb[0].mxu0 %v4954
    %v5120 = vpop.f32.mrb[0].mxu0
    %v5121 = vadd.f32 0.0, %v5120
    %v5122 = vpop.f32.mrb[0].mxu0
    %5123 = vmatprep.mubr.f32.mxu0 0.0
    %5124 = vmatmul.mubr.f32.gmra.mrb[0].mxu0 %v4955
    %v5125 = vpop.f32.mrb[0].mxu0
    %v5126 = vadd.f32 0.0, %v5125
    %v5127 = vpop.f32.mrb[0].mxu0
    %5128 = vmatprep.mubr.f32.mxu0 0.0
    %5129 = vmatmul.mubr.f32.gmra.mrb[0].mxu0 %v4956
    %v5130 = vpop.f32.mrb[0].mxu0
    %v5131 = vadd.f32 0.0, %v5130
    %v5132 = vpop.f32.mrb[0].mxu0
    %5133 = vmatprep.mubr.f32.mxu0 0.0
    %5134 = vmatmul.mubr.f32.gmra.mrb[0].mxu0 %v4957
    %v5135 = vpop.f32.mrb[0].mxu0
    %v5136 = vadd.f32 0.0, %v5135
    %v5137 = vpop.f32.mrb[0].mxu0
    %5138 = vmatprep.mubr.f32.mxu0 0.0
    %5139 = vmatmul.mubr.f32.gmra.mrb[0].mxu0 %v4958
    %v5140 = vpop.f32.mrb[0].mxu0
    %v5141 = vadd.f32 0.0, %v5140
    %v5142 = vpop.f32.mrb[0].mxu0
    %5143 = vmatprep.mubr.f32.mxu0 0.0
    %5144 = vmatmul.mubr.f32.gmra.mrb[0].mxu0 %v4959
    %v5145 = vpop.f32.mrb[0].mxu0
    %v5146 = vadd.f32 0.0, %v5145
    %v5147 = vpop.f32.mrb[0].mxu0
    %5148 = vmatprep.mubr.f32.mxu0 0.0
    %5149 = vmatmul.mubr.f32.gmra.mrb[0].mxu0 %v4960
    %v5150 = vpop.f32.mrb[0].mxu0
    %v5151 = vadd.f32 0.0, %v5150
    %v5152 = vpop.f32.mrb[0].mxu0
    %5153 = vdwg.mxu0
    %5154 = vrot.lane.b32.xlu0 %v2071, 108
    %v5155 = vpop.permute.xlu0 %5154
    %5156 = vrot.lane.b32.xlu0 %v2072, 108
    %v5157 = vpop.permute.xlu0 %5156
    %5158 = vrot.lane.b32.xlu0 %v2073, 108
    %v5159 = vpop.permute.xlu0 %5158
    %5160 = vrot.lane.b32.xlu0 %v2074, 108
    %v5161 = vpop.permute.xlu0 %5160
    %5162 = vrot.lane.b32.xlu0 %v2075, 108
    %v5163 = vpop.permute.xlu0 %5162
    %5164 = vrot.lane.b32.xlu0 %v2076, 108
    %v5165 = vpop.permute.xlu0 %5164
    %5166 = vrot.lane.b32.xlu0 %v2077, 108
    %v5167 = vpop.permute.xlu0 %5166
    %5168 = vrot.lane.b32.xlu0 %v2078, 108
    %v5169 = vpop.permute.xlu0 %5168
    %5170 = vrot.lane.b32.xlu0 %v2079, 108
    %v5171 = vpop.permute.xlu0 %5170
    %5172 = vrot.lane.b32.xlu0 %v2080, 108
    %v5173 = vpop.permute.xlu0 %5172
    %5174 = vrot.lane.b32.xlu0 %v2081, 108
    %v5175 = vpop.permute.xlu0 %5174
    %5176 = vrot.lane.b32.xlu0 %v2082, 108
    %v5177 = vpop.permute.xlu0 %5176
    %5178 = vrot.lane.b32.xlu0 %v2083, 108
    %v5179 = vpop.permute.xlu0 %5178
    %5180 = vrot.lane.b32.xlu0 %v2084, 108
    %v5181 = vpop.permute.xlu0 %5180
    %5182 = vrot.lane.b32.xlu0 %v2085, 108
    %v5183 = vpop.permute.xlu0 %5182
    %5184 = vrot.lane.b32.xlu0 %v2086, 108
    %v5185 = vpop.permute.xlu0 %5184
    %5186 = vrot.lane.b32.xlu0 %v1598, 108
    %v5187 = vpop.permute.xlu0 %5186
    %5188 = vrot.lane.b32.xlu0 %v1603, 108
    %v5189 = vpop.permute.xlu0 %5188
    %5190 = vrot.lane.b32.xlu0 %v1608, 108
    %v5191 = vpop.permute.xlu0 %5190
    %5192 = vrot.lane.b32.xlu0 %v1613, 108
    %v5193 = vpop.permute.xlu0 %5192
    %5194 = vrot.lane.b32.xlu0 %v1618, 108
    %v5195 = vpop.permute.xlu0 %5194
    %5196 = vrot.lane.b32.xlu0 %v1623, 108
    %v5197 = vpop.permute.xlu0 %5196
    %5198 = vrot.lane.b32.xlu0 %v1628, 108
    %v5199 = vpop.permute.xlu0 %5198
    %5200 = vrot.lane.b32.xlu0 %v1633, 108
    %v5201 = vpop.permute.xlu0 %5200
    %5202 = vrot.lane.b32.xlu0 %v1638, 108
    %v5203 = vpop.permute.xlu0 %5202
    %5204 = vrot.lane.b32.xlu0 %v1643, 108
    %v5205 = vpop.permute.xlu0 %5204
    %5206 = vrot.lane.b32.xlu0 %v1648, 108
    %v5207 = vpop.permute.xlu0 %5206
    %5208 = vrot.lane.b32.xlu0 %v1653, 108
    %v5209 = vpop.permute.xlu0 %5208
    %5210 = vrot.lane.b32.xlu0 %v1658, 108
    %v5211 = vpop.permute.xlu0 %5210
    %5212 = vrot.lane.b32.xlu0 %v1663, 108
    %v5213 = vpop.permute.xlu0 %5212
    %5214 = vrot.lane.b32.xlu0 %v1668, 108
    %v5215 = vpop.permute.xlu0 %5214
    %5216 = vrot.lane.b32.xlu0 %v1673, 108
    %v5217 = vpop.permute.xlu0 %5216
    %v5218 = vsel %vm2087, %v5155, 0
    %v5220 = vsel %vm2087, %v5157, 0
    %v5222 = vsel %vm2087, %v5159, 0
    %v5224 = vsel %vm2087, %v5161, 0
    %v5226 = vsel %vm2087, %v5163, 0
    %v5228 = vsel %vm2087, %v5165, 0
    %v5230 = vsel %vm2087, %v5167, 0
    %v5232 = vsel %vm2087, %v5169, 0
    %v5234 = vsel %vm2087, %v5171, 0
    %v5236 = vsel %vm2087, %v5173, 0
    %v5238 = vsel %vm2087, %v5175, 0
    %v5240 = vsel %vm2087, %v5177, 0
    %v5242 = vsel %vm2087, %v5179, 0
    %v5244 = vsel %vm2087, %v5181, 0
    %v5246 = vsel %vm2087, %v5183, 0
    %v5248 = vsel %vm2087, %v5185, 0
    %v5250 = vsel %vm2087, %v5187, 0
    %v5252 = vsel %vm2087, %v5189, 0
    %v5254 = vsel %vm2087, %v5191, 0
    %v5256 = vsel %vm2087, %v5193, 0
    %v5258 = vsel %vm2087, %v5195, 0
    %v5260 = vsel %vm2087, %v5197, 0
    %v5262 = vsel %vm2087, %v5199, 0
    %v5264 = vsel %vm2087, %v5201, 0
    %v5266 = vsel %vm2087, %v5203, 0
    %v5268 = vsel %vm2087, %v5205, 0
    %v5270 = vsel %vm2087, %v5207, 0
    %v5272 = vsel %vm2087, %v5209, 0
    %v5274 = vsel %vm2087, %v5211, 0
    %v5276 = vsel %vm2087, %v5213, 0
    %v5278 = vsel %vm2087, %v5215, 0
    %v5280 = vsel %vm2087, %v5217, 0
    %5282 = vmatprep.subr.mxu0 0.0
    %5283 = vmatpush1.xpose.msra.mxu0 %v5250
    %5284 = vmatprep.subr.mxu0 0.0
    %5285 = vmatpush1.xpose.msra.mxu0 %v5252
    %5286 = vmatprep.subr.mxu0 0.0
    %5287 = vmatpush1.xpose.msra.mxu0 %v5254
    %5288 = vmatprep.subr.mxu0 0.0
    %5289 = vmatpush1.xpose.msra.mxu0 %v5256
    %5290 = vmatprep.subr.mxu0 0.0
    %5291 = vmatpush1.xpose.msra.mxu0 %v5258
    %5292 = vmatprep.subr.mxu0 0.0
    %5293 = vmatpush1.xpose.msra.mxu0 %v5260
    %5294 = vmatprep.subr.mxu0 0.0
    %5295 = vmatpush1.xpose.msra.mxu0 %v5262
    %5296 = vmatprep.subr.mxu0 0.0
    %5297 = vmatpush1.xpose.msra.mxu0 %v5264
    %5298 = vmatprep.subr.mxu0 0.0
    %5299 = vmatpush1.xpose.msra.mxu0 %v5266
    %5300 = vmatprep.subr.mxu0 0.0
    %5301 = vmatpush1.xpose.msra.mxu0 %v5268
    %5302 = vmatprep.subr.mxu0 0.0
    %5303 = vmatpush1.xpose.msra.mxu0 %v5270
    %5304 = vmatprep.subr.mxu0 0.0
    %5305 = vmatpush1.xpose.msra.mxu0 %v5272
    %5306 = vmatprep.subr.mxu0 0.0
    %5307 = vmatpush1.xpose.msra.mxu0 %v5274
    %5308 = vmatprep.subr.mxu0 0.0
    %5309 = vmatpush1.xpose.msra.mxu0 %v5276
    %5310 = vmatprep.subr.mxu0 0.0
    %5311 = vmatpush1.xpose.msra.mxu0 %v5278
    %5312 = vmatprep.subr.mxu0 0.0
    %5313 = vmatpush1.xpose.msra.mxu0 %v5280
    %5314 = vmatprep.subr.mxu0 0.0
    %5315 = vmatpush1.xpose.msra.mxu0 0.0
    %5316 = vmatprep.subr.mxu0 0.0
    %5317 = vmatpush1.xpose.msra.mxu0 0.0
    %5318 = vmatprep.subr.mxu0 0.0
    %5319 = vmatpush1.xpose.msra.mxu0 0.0
    %5320 = vmatprep.subr.mxu0 0.0
    %5321 = vmatpush1.xpose.msra.mxu0 0.0
    %5322 = vmatprep.subr.mxu0 0.0
    %5323 = vmatpush1.xpose.msra.mxu0 0.0
    %5324 = vmatprep.subr.mxu0 0.0
    %5325 = vmatpush1.xpose.msra.mxu0 0.0
    %5326 = vmatprep.subr.mxu0 0.0
    %5327 = vmatpush1.xpose.msra.mxu0 0.0
    %5328 = vmatprep.subr.mxu0 0.0
    %5329 = vmatpush1.xpose.msra.mxu0 0.0
    %5330 = vmatprep.subr.mxu0 0.0
    %5331 = vmatpush1.xpose.msra.mxu0 0.0
    %5332 = vmatprep.subr.mxu0 0.0
    %5333 = vmatpush1.xpose.msra.mxu0 0.0
    %5334 = vmatprep.subr.mxu0 0.0
    %5335 = vmatpush1.xpose.msra.mxu0 0.0
    %5336 = vmatprep.subr.mxu0 0.0
    %5337 = vmatpush1.xpose.msra.mxu0 0.0
    %5338 = vmatprep.subr.mxu0 0.0
    %5339 = vmatpush1.xpose.msra.mxu0 0.0
    %5340 = vmatprep.subr.mxu0 0.0
    %5341 = vmatpush1.xpose.msra.mxu0 0.0
    %5342 = vmatprep.subr.mxu0 0.0
    %5343 = vmatpush1.xpose.msra.mxu0 0.0
    %5344 = vmatprep.subr.mxu0 0.0
    %5345 = vmatpush1.xpose.msra.mxu0 0.0
    %5346 = vmatprep.mubr.f32.mxu0 0.0
    %5347 = vmatmul.mubr.f32.gmra.mrb[0].mxu0 %v5218
    %v5348 = vpop.f32.mrb[0].mxu0
    %v5349 = vadd.f32 0.0, %v5348
    %v5350 = vpop.f32.mrb[0].mxu0
    %5351 = vmatprep.mubr.f32.mxu0 0.0
    %5352 = vmatmul.mubr.f32.gmra.mrb[0].mxu0 %v5220
    %v5353 = vpop.f32.mrb[0].mxu0
    %v5354 = vadd.f32 0.0, %v5353
    %v5355 = vpop.f32.mrb[0].mxu0
    %5356 = vmatprep.mubr.f32.mxu0 0.0
    %5357 = vmatmul.mubr.f32.gmra.mrb[0].mxu0 %v5222
    %v5358 = vpop.f32.mrb[0].mxu0
    %v5359 = vadd.f32 0.0, %v5358
    %v5360 = vpop.f32.mrb[0].mxu0
    %5361 = vmatprep.mubr.f32.mxu0 0.0
    %5362 = vmatmul.mubr.f32.gmra.mrb[0].mxu0 %v5224
    %v5363 = vpop.f32.mrb[0].mxu0
    %v5364 = vadd.f32 0.0, %v5363
    %v5365 = vpop.f32.mrb[0].mxu0
    %5366 = vmatprep.mubr.f32.mxu0 0.0
    %5367 = vmatmul.mubr.f32.gmra.mrb[0].mxu0 %v5226
    %v5368 = vpop.f32.mrb[0].mxu0
    %v5369 = vadd.f32 0.0, %v5368
    %v5370 = vpop.f32.mrb[0].mxu0
    %5371 = vmatprep.mubr.f32.mxu0 0.0
    %5372 = vmatmul.mubr.f32.gmra.mrb[0].mxu0 %v5228
    %v5373 = vpop.f32.mrb[0].mxu0
    %v5374 = vadd.f32 0.0, %v5373
    %v5375 = vpop.f32.mrb[0].mxu0
    %5376 = vmatprep.mubr.f32.mxu0 0.0
    %5377 = vmatmul.mubr.f32.gmra.mrb[0].mxu0 %v5230
    %v5378 = vpop.f32.mrb[0].mxu0
    %v5379 = vadd.f32 0.0, %v5378
    %v5380 = vpop.f32.mrb[0].mxu0
    %5381 = vmatprep.mubr.f32.mxu0 0.0
    %5382 = vmatmul.mubr.f32.gmra.mrb[0].mxu0 %v5232
    %v5383 = vpop.f32.mrb[0].mxu0
    %v5384 = vadd.f32 0.0, %v5383
    %v5385 = vpop.f32.mrb[0].mxu0
    %5386 = vmatprep.mubr.f32.mxu0 0.0
    %5387 = vmatmul.mubr.f32.gmra.mrb[0].mxu0 %v5234
    %v5388 = vpop.f32.mrb[0].mxu0
    %v5389 = vadd.f32 0.0, %v5388
    %v5390 = vpop.f32.mrb[0].mxu0
    %5391 = vmatprep.mubr.f32.mxu0 0.0
    %5392 = vmatmul.mubr.f32.gmra.mrb[0].mxu0 %v5236
    %v5393 = vpop.f32.mrb[0].mxu0
    %v5394 = vadd.f32 0.0, %v5393
    %v5395 = vpop.f32.mrb[0].mxu0
    %5396 = vmatprep.mubr.f32.mxu0 0.0
    %5397 = vmatmul.mubr.f32.gmra.mrb[0].mxu0 %v5238
    %v5398 = vpop.f32.mrb[0].mxu0
    %v5399 = vadd.f32 0.0, %v5398
    %v5400 = vpop.f32.mrb[0].mxu0
    %5401 = vmatprep.mubr.f32.mxu0 0.0
    %5402 = vmatmul.mubr.f32.gmra.mrb[0].mxu0 %v5240
    %v5403 = vpop.f32.mrb[0].mxu0
    %v5404 = vadd.f32 0.0, %v5403
    %v5405 = vpop.f32.mrb[0].mxu0
    %5406 = vmatprep.mubr.f32.mxu0 0.0
    %5407 = vmatmul.mubr.f32.gmra.mrb[0].mxu0 %v5242
    %v5408 = vpop.f32.mrb[0].mxu0
    %v5409 = vadd.f32 0.0, %v5408
    %v5410 = vpop.f32.mrb[0].mxu0
    %5411 = vmatprep.mubr.f32.mxu0 0.0
    %5412 = vmatmul.mubr.f32.gmra.mrb[0].mxu0 %v5244
    %v5413 = vpop.f32.mrb[0].mxu0
    %v5414 = vadd.f32 0.0, %v5413
    %v5415 = vpop.f32.mrb[0].mxu0
    %5416 = vmatprep.mubr.f32.mxu0 0.0
    %5417 = vmatmul.mubr.f32.gmra.mrb[0].mxu0 %v5246
    %v5418 = vpop.f32.mrb[0].mxu0
    %v5419 = vadd.f32 0.0, %v5418
    %v5420 = vpop.f32.mrb[0].mxu0
    %5421 = vmatprep.mubr.f32.mxu0 0.0
    %5422 = vmatmul.mubr.f32.gmra.mrb[0].mxu0 %v5248
    %v5423 = vpop.f32.mrb[0].mxu0
    %v5424 = vadd.f32 0.0, %v5423
    %v5425 = vpop.f32.mrb[0].mxu0
    %5426 = vdwg.mxu0
    %v5427 = vsel %vm2055, %v5349, -1e+30
    %v5428 = vsel %vm2056, %v5354, -1e+30
    %v5429 = vsel %vm2057, %v5359, -1e+30
    %v5430 = vsel %vm2058, %v5364, -1e+30
    %v5431 = vsel %vm2059, %v5369, -1e+30
    %v5432 = vsel %vm2060, %v5374, -1e+30
    %v5433 = vsel %vm2061, %v5379, -1e+30
    %v5434 = vsel %vm2062, %v5384, -1e+30
    %v5435 = vsel %vm2063, %v5389, -1e+30
    %v5436 = vsel %vm2064, %v5394, -1e+30
    %v5437 = vsel %vm2065, %v5399, -1e+30
    %v5438 = vsel %vm2066, %v5404, -1e+30
    %v5439 = vsel %vm2067, %v5409, -1e+30
    %v5440 = vsel %vm2068, %v5414, -1e+30
    %v5441 = vsel %vm2069, %v5419, -1e+30
    %v5442 = vsel %vm2070, %v5424, -1e+30
    %5443 = vmax.xlane.f32.xlu0 %v5427
    %v5444 = vpop.xlane.xlu0 %5443
    %5445 = vmax.xlane.f32.xlu0 %v5428
    %v5446 = vpop.xlane.xlu0 %5445
    %5447 = vmax.xlane.f32.xlu0 %v5429
    %v5448 = vpop.xlane.xlu0 %5447
    %5449 = vmax.xlane.f32.xlu0 %v5430
    %v5450 = vpop.xlane.xlu0 %5449
    %5451 = vmax.xlane.f32.xlu0 %v5431
    %v5452 = vpop.xlane.xlu0 %5451
    %5453 = vmax.xlane.f32.xlu0 %v5432
    %v5454 = vpop.xlane.xlu0 %5453
    %5455 = vmax.xlane.f32.xlu0 %v5433
    %v5456 = vpop.xlane.xlu0 %5455
    %5457 = vmax.xlane.f32.xlu0 %v5434
    %v5458 = vpop.xlane.xlu0 %5457
    %5459 = vmax.xlane.f32.xlu0 %v5435
    %v5460 = vpop.xlane.xlu0 %5459
    %5461 = vmax.xlane.f32.xlu0 %v5436
    %v5462 = vpop.xlane.xlu0 %5461
    %5463 = vmax.xlane.f32.xlu0 %v5437
    %v5464 = vpop.xlane.xlu0 %5463
    %5465 = vmax.xlane.f32.xlu0 %v5438
    %v5466 = vpop.xlane.xlu0 %5465
    %5467 = vmax.xlane.f32.xlu0 %v5439
    %v5468 = vpop.xlane.xlu0 %5467
    %5469 = vmax.xlane.f32.xlu0 %v5440
    %v5470 = vpop.xlane.xlu0 %5469
    %5471 = vmax.xlane.f32.xlu0 %v5441
    %v5472 = vpop.xlane.xlu0 %5471
    %5473 = vmax.xlane.f32.xlu0 %v5442
    %v5474 = vpop.xlane.xlu0 %5473
    %v5475 = vsub.f32 %v5427, %v5444
    %v5476 = vsub.f32 %v5428, %v5446
    %v5477 = vsub.f32 %v5429, %v5448
    %v5478 = vsub.f32 %v5430, %v5450
    %v5479 = vsub.f32 %v5431, %v5452
    %v5480 = vsub.f32 %v5432, %v5454
    %v5481 = vsub.f32 %v5433, %v5456
    %v5482 = vsub.f32 %v5434, %v5458
    %v5483 = vsub.f32 %v5435, %v5460
    %v5484 = vsub.f32 %v5436, %v5462
    %v5485 = vsub.f32 %v5437, %v5464
    %v5486 = vsub.f32 %v5438, %v5466
    %v5487 = vsub.f32 %v5439, %v5468
    %v5488 = vsub.f32 %v5440, %v5470
    %v5489 = vsub.f32 %v5441, %v5472
    %v5490 = vsub.f32 %v5442, %v5474
    %v5491 = vmul.f32 %v5475, 1.442695
    %v5492 = vpow.pop %v5491
    %v5493 = vmul.f32 %v5476, 1.442695
    %v5494 = vpow.pop %v5493
    %v5495 = vmul.f32 %v5477, 1.442695
    %v5496 = vpow.pop %v5495
    %v5497 = vmul.f32 %v5478, 1.442695
    %v5498 = vpow.pop %v5497
    %v5499 = vmul.f32 %v5479, 1.442695
    %v5500 = vpow.pop %v5499
    %v5501 = vmul.f32 %v5480, 1.442695
    %v5502 = vpow.pop %v5501
    %v5503 = vmul.f32 %v5481, 1.442695
    %v5504 = vpow.pop %v5503
    %v5505 = vmul.f32 %v5482, 1.442695
    %v5506 = vpow.pop %v5505
    %v5507 = vmul.f32 %v5483, 1.442695
    %v5508 = vpow.pop %v5507
    %v5509 = vmul.f32 %v5484, 1.442695
    %v5510 = vpow.pop %v5509
    %v5511 = vmul.f32 %v5485, 1.442695
    %v5512 = vpow.pop %v5511
    %v5513 = vmul.f32 %v5486, 1.442695
    %v5514 = vpow.pop %v5513
    %v5515 = vmul.f32 %v5487, 1.442695
    %v5516 = vpow.pop %v5515
    %v5517 = vmul.f32 %v5488, 1.442695
    %v5518 = vpow.pop %v5517
    %v5519 = vmul.f32 %v5489, 1.442695
    %v5520 = vpow.pop %v5519
    %v5521 = vmul.f32 %v5490, 1.442695
    %v5522 = vpow.pop %v5521
    %5523 = vadd.xlane.f32.xlu0 %v5492
    %v5524 = vpop.xlane.xlu0 %5523
    %5525 = vadd.xlane.f32.xlu0 %v5494
    %v5526 = vpop.xlane.xlu0 %5525
    %5527 = vadd.xlane.f32.xlu0 %v5496
    %v5528 = vpop.xlane.xlu0 %5527
    %5529 = vadd.xlane.f32.xlu0 %v5498
    %v5530 = vpop.xlane.xlu0 %5529
    %5531 = vadd.xlane.f32.xlu0 %v5500
    %v5532 = vpop.xlane.xlu0 %5531
    %5533 = vadd.xlane.f32.xlu0 %v5502
    %v5534 = vpop.xlane.xlu0 %5533
    %5535 = vadd.xlane.f32.xlu0 %v5504
    %v5536 = vpop.xlane.xlu0 %5535
    %5537 = vadd.xlane.f32.xlu0 %v5506
    %v5538 = vpop.xlane.xlu0 %5537
    %5539 = vadd.xlane.f32.xlu0 %v5508
    %v5540 = vpop.xlane.xlu0 %5539
    %5541 = vadd.xlane.f32.xlu0 %v5510
    %v5542 = vpop.xlane.xlu0 %5541
    %5543 = vadd.xlane.f32.xlu0 %v5512
    %v5544 = vpop.xlane.xlu0 %5543
    %5545 = vadd.xlane.f32.xlu0 %v5514
    %v5546 = vpop.xlane.xlu0 %5545
    %5547 = vadd.xlane.f32.xlu0 %v5516
    %v5548 = vpop.xlane.xlu0 %5547
    %5549 = vadd.xlane.f32.xlu0 %v5518
    %v5550 = vpop.xlane.xlu0 %5549
    %5551 = vadd.xlane.f32.xlu0 %v5520
    %v5552 = vpop.xlane.xlu0 %5551
    %5553 = vadd.xlane.f32.xlu0 %v5522
    %v5554 = vpop.xlane.xlu0 %5553
    %v5555 = vrcp.pop %v5524
    %v5556 = vrcp.pop %v5526
    %v5557 = vrcp.pop %v5528
    %v5558 = vrcp.pop %v5530
    %v5559 = vrcp.pop %v5532
    %v5560 = vrcp.pop %v5534
    %v5561 = vrcp.pop %v5536
    %v5562 = vrcp.pop %v5538
    %v5563 = vrcp.pop %v5540
    %v5564 = vrcp.pop %v5542
    %v5565 = vrcp.pop %v5544
    %v5566 = vrcp.pop %v5546
    %v5567 = vrcp.pop %v5548
    %v5568 = vrcp.pop %v5550
    %v5569 = vrcp.pop %v5552
    %v5570 = vrcp.pop %v5554
    %v5571 = vmul.f32 %v5492, %v5555
    %v5572 = vmul.f32 %v5494, %v5556
    %v5573 = vmul.f32 %v5496, %v5557
    %v5574 = vmul.f32 %v5498, %v5558
    %v5575 = vmul.f32 %v5500, %v5559
    %v5576 = vmul.f32 %v5502, %v5560
    %v5577 = vmul.f32 %v5504, %v5561
    %v5578 = vmul.f32 %v5506, %v5562
    %v5579 = vmul.f32 %v5508, %v5563
    %v5580 = vmul.f32 %v5510, %v5564
    %v5581 = vmul.f32 %v5512, %v5565
    %v5582 = vmul.f32 %v5514, %v5566
    %v5583 = vmul.f32 %v5516, %v5567
    %v5584 = vmul.f32 %v5518, %v5568
    %v5585 = vmul.f32 %v5520, %v5569
    %v5586 = vmul.f32 %v5522, %v5570
    %5587 = vrot.lane.b32.xlu0 %v1754, 108
    %v5588 = vpop.permute.xlu0 %5587
    %5589 = vrot.lane.b32.xlu0 %v1759, 108
    %v5590 = vpop.permute.xlu0 %5589
    %5591 = vrot.lane.b32.xlu0 %v1764, 108
    %v5592 = vpop.permute.xlu0 %5591
    %5593 = vrot.lane.b32.xlu0 %v1769, 108
    %v5594 = vpop.permute.xlu0 %5593
    %5595 = vrot.lane.b32.xlu0 %v1774, 108
    %v5596 = vpop.permute.xlu0 %5595
    %5597 = vrot.lane.b32.xlu0 %v1779, 108
    %v5598 = vpop.permute.xlu0 %5597
    %5599 = vrot.lane.b32.xlu0 %v1784, 108
    %v5600 = vpop.permute.xlu0 %5599
    %5601 = vrot.lane.b32.xlu0 %v1789, 108
    %v5602 = vpop.permute.xlu0 %5601
    %5603 = vrot.lane.b32.xlu0 %v1794, 108
    %v5604 = vpop.permute.xlu0 %5603
    %5605 = vrot.lane.b32.xlu0 %v1799, 108
    %v5606 = vpop.permute.xlu0 %5605
    %5607 = vrot.lane.b32.xlu0 %v1804, 108
    %v5608 = vpop.permute.xlu0 %5607
    %5609 = vrot.lane.b32.xlu0 %v1809, 108
    %v5610 = vpop.permute.xlu0 %5609
    %5611 = vrot.lane.b32.xlu0 %v1814, 108
    %v5612 = vpop.permute.xlu0 %5611
    %5613 = vrot.lane.b32.xlu0 %v1819, 108
    %v5614 = vpop.permute.xlu0 %5613
    %5615 = vrot.lane.b32.xlu0 %v1824, 108
    %v5616 = vpop.permute.xlu0 %5615
    %5617 = vrot.lane.b32.xlu0 %v1829, 108
    %v5618 = vpop.permute.xlu0 %5617
    %5635 = vmatprep.subr.mxu0 0.0
    %5636 = vmatpush1.msra.mxu0 %v5588
    %5637 = vmatprep.subr.mxu0 0.0
    %5638 = vmatpush1.msra.mxu0 %v5590
    %5639 = vmatprep.subr.mxu0 0.0
    %5640 = vmatpush1.msra.mxu0 %v5592
    %5641 = vmatprep.subr.mxu0 0.0
    %5642 = vmatpush1.msra.mxu0 %v5594
    %5643 = vmatprep.subr.mxu0 0.0
    %5644 = vmatpush1.msra.mxu0 %v5596
    %5645 = vmatprep.subr.mxu0 0.0
    %5646 = vmatpush1.msra.mxu0 %v5598
    %5647 = vmatprep.subr.mxu0 0.0
    %5648 = vmatpush1.msra.mxu0 %v5600
    %5649 = vmatprep.subr.mxu0 0.0
    %5650 = vmatpush1.msra.mxu0 %v5602
    %5651 = vmatprep.subr.mxu0 0.0
    %5652 = vmatpush1.msra.mxu0 %v5604
    %5653 = vmatprep.subr.mxu0 0.0
    %5654 = vmatpush1.msra.mxu0 %v5606
    %5655 = vmatprep.subr.mxu0 0.0
    %5656 = vmatpush1.msra.mxu0 %v5608
    %5657 = vmatprep.subr.mxu0 0.0
    %5658 = vmatpush1.msra.mxu0 %v5610
    %5659 = vmatprep.subr.mxu0 0.0
    %5660 = vmatpush1.msra.mxu0 %v5612
    %5661 = vmatprep.subr.mxu0 0.0
    %5662 = vmatpush1.msra.mxu0 %v5614
    %5663 = vmatprep.subr.mxu0 0.0
    %5664 = vmatpush1.msra.mxu0 %v5616
    %5665 = vmatprep.subr.mxu0 0.0
    %5666 = vmatpush1.msra.mxu0 %v5618
    %5667 = vmatprep.subr.mxu0 0.0
    %5668 = vmatpush1.msra.mxu0 0.0
    %5669 = vmatprep.subr.mxu0 0.0
    %5670 = vmatpush1.msra.mxu0 0.0
    %5671 = vmatprep.subr.mxu0 0.0
    %5672 = vmatpush1.msra.mxu0 0.0
    %5673 = vmatprep.subr.mxu0 0.0
    %5674 = vmatpush1.msra.mxu0 0.0
    %5675 = vmatprep.subr.mxu0 0.0
    %5676 = vmatpush1.msra.mxu0 0.0
    %5677 = vmatprep.subr.mxu0 0.0
    %5678 = vmatpush1.msra.mxu0 0.0
    %5679 = vmatprep.subr.mxu0 0.0
    %5680 = vmatpush1.msra.mxu0 0.0
    %5681 = vmatprep.subr.mxu0 0.0
    %5682 = vmatpush1.msra.mxu0 0.0
    %5683 = vmatprep.subr.mxu0 0.0
    %5684 = vmatpush1.msra.mxu0 0.0
    %5685 = vmatprep.subr.mxu0 0.0
    %5686 = vmatpush1.msra.mxu0 0.0
    %5687 = vmatprep.subr.mxu0 0.0
    %5688 = vmatpush1.msra.mxu0 0.0
    %5689 = vmatprep.subr.mxu0 0.0
    %5690 = vmatpush1.msra.mxu0 0.0
    %5691 = vmatprep.subr.mxu0 0.0
    %5692 = vmatpush1.msra.mxu0 0.0
    %5693 = vmatprep.subr.mxu0 0.0
    %5694 = vmatpush1.msra.mxu0 0.0
    %5695 = vmatprep.subr.mxu0 0.0
    %5696 = vmatpush1.msra.mxu0 0.0
    %5697 = vmatprep.subr.mxu0 0.0
    %5698 = vmatpush1.msra.mxu0 0.0
    %5699 = vmatprep.mubr.f32.mxu0 0.0
    %5700 = vmatmul.mubr.f32.gmra.mrb[0].mxu0 %v5571
    %v5701 = vpop.f32.mrb[0].mxu0
    %v5702 = vadd.f32 0.0, %v5701
    %v5703 = vpop.f32.mrb[0].mxu0
    %5704 = vmatprep.mubr.f32.mxu0 0.0
    %5705 = vmatmul.mubr.f32.gmra.mrb[0].mxu0 %v5572
    %v5706 = vpop.f32.mrb[0].mxu0
    %v5707 = vadd.f32 0.0, %v5706
    %v5708 = vpop.f32.mrb[0].mxu0
    %5709 = vmatprep.mubr.f32.mxu0 0.0
    %5710 = vmatmul.mubr.f32.gmra.mrb[0].mxu0 %v5573
    %v5711 = vpop.f32.mrb[0].mxu0
    %v5712 = vadd.f32 0.0, %v5711
    %v5713 = vpop.f32.mrb[0].mxu0
    %5714 = vmatprep.mubr.f32.mxu0 0.0
    %5715 = vmatmul.mubr.f32.gmra.mrb[0].mxu0 %v5574
    %v5716 = vpop.f32.mrb[0].mxu0
    %v5717 = vadd.f32 0.0, %v5716
    %v5718 = vpop.f32.mrb[0].mxu0
    %5719 = vmatprep.mubr.f32.mxu0 0.0
    %5720 = vmatmul.mubr.f32.gmra.mrb[0].mxu0 %v5575
    %v5721 = vpop.f32.mrb[0].mxu0
    %v5722 = vadd.f32 0.0, %v5721
    %v5723 = vpop.f32.mrb[0].mxu0
    %5724 = vmatprep.mubr.f32.mxu0 0.0
    %5725 = vmatmul.mubr.f32.gmra.mrb[0].mxu0 %v5576
    %v5726 = vpop.f32.mrb[0].mxu0
    %v5727 = vadd.f32 0.0, %v5726
    %v5728 = vpop.f32.mrb[0].mxu0
    %5729 = vmatprep.mubr.f32.mxu0 0.0
    %5730 = vmatmul.mubr.f32.gmra.mrb[0].mxu0 %v5577
    %v5731 = vpop.f32.mrb[0].mxu0
    %v5732 = vadd.f32 0.0, %v5731
    %v5733 = vpop.f32.mrb[0].mxu0
    %5734 = vmatprep.mubr.f32.mxu0 0.0
    %5735 = vmatmul.mubr.f32.gmra.mrb[0].mxu0 %v5578
    %v5736 = vpop.f32.mrb[0].mxu0
    %v5737 = vadd.f32 0.0, %v5736
    %v5738 = vpop.f32.mrb[0].mxu0
    %5739 = vmatprep.mubr.f32.mxu0 0.0
    %5740 = vmatmul.mubr.f32.gmra.mrb[0].mxu0 %v5579
    %v5741 = vpop.f32.mrb[0].mxu0
    %v5742 = vadd.f32 0.0, %v5741
    %v5743 = vpop.f32.mrb[0].mxu0
    %5744 = vmatprep.mubr.f32.mxu0 0.0
    %5745 = vmatmul.mubr.f32.gmra.mrb[0].mxu0 %v5580
    %v5746 = vpop.f32.mrb[0].mxu0
    %v5747 = vadd.f32 0.0, %v5746
    %v5748 = vpop.f32.mrb[0].mxu0
    %5749 = vmatprep.mubr.f32.mxu0 0.0
    %5750 = vmatmul.mubr.f32.gmra.mrb[0].mxu0 %v5581
    %v5751 = vpop.f32.mrb[0].mxu0
    %v5752 = vadd.f32 0.0, %v5751
    %v5753 = vpop.f32.mrb[0].mxu0
    %5754 = vmatprep.mubr.f32.mxu0 0.0
    %5755 = vmatmul.mubr.f32.gmra.mrb[0].mxu0 %v5582
    %v5756 = vpop.f32.mrb[0].mxu0
    %v5757 = vadd.f32 0.0, %v5756
    %v5758 = vpop.f32.mrb[0].mxu0
    %5759 = vmatprep.mubr.f32.mxu0 0.0
    %5760 = vmatmul.mubr.f32.gmra.mrb[0].mxu0 %v5583
    %v5761 = vpop.f32.mrb[0].mxu0
    %v5762 = vadd.f32 0.0, %v5761
    %v5763 = vpop.f32.mrb[0].mxu0
    %5764 = vmatprep.mubr.f32.mxu0 0.0
    %5765 = vmatmul.mubr.f32.gmra.mrb[0].mxu0 %v5584
    %v5766 = vpop.f32.mrb[0].mxu0
    %v5767 = vadd.f32 0.0, %v5766
    %v5768 = vpop.f32.mrb[0].mxu0
    %5769 = vmatprep.mubr.f32.mxu0 0.0
    %5770 = vmatmul.mubr.f32.gmra.mrb[0].mxu0 %v5585
    %v5771 = vpop.f32.mrb[0].mxu0
    %v5772 = vadd.f32 0.0, %v5771
    %v5773 = vpop.f32.mrb[0].mxu0
    %5774 = vmatprep.mubr.f32.mxu0 0.0
    %5775 = vmatmul.mubr.f32.gmra.mrb[0].mxu0 %v5586
    %v5776 = vpop.f32.mrb[0].mxu0
    %v5777 = vadd.f32 0.0, %v5776
    %v5778 = vpop.f32.mrb[0].mxu0
    %5779 = vdwg.mxu0
    %5780 = vrot.lane.b32.xlu0 %v2071, 104
    %v5781 = vpop.permute.xlu0 %5780
    %5782 = vrot.lane.b32.xlu0 %v2072, 104
    %v5783 = vpop.permute.xlu0 %5782
    %5784 = vrot.lane.b32.xlu0 %v2073, 104
    %v5785 = vpop.permute.xlu0 %5784
    %5786 = vrot.lane.b32.xlu0 %v2074, 104
    %v5787 = vpop.permute.xlu0 %5786
    %5788 = vrot.lane.b32.xlu0 %v2075, 104
    %v5789 = vpop.permute.xlu0 %5788
    %5790 = vrot.lane.b32.xlu0 %v2076, 104
    %v5791 = vpop.permute.xlu0 %5790
    %5792 = vrot.lane.b32.xlu0 %v2077, 104
    %v5793 = vpop.permute.xlu0 %5792
    %5794 = vrot.lane.b32.xlu0 %v2078, 104
    %v5795 = vpop.permute.xlu0 %5794
    %5796 = vrot.lane.b32.xlu0 %v2079, 104
    %v5797 = vpop.permute.xlu0 %5796
    %5798 = vrot.lane.b32.xlu0 %v2080, 104
    %v5799 = vpop.permute.xlu0 %5798
    %5800 = vrot.lane.b32.xlu0 %v2081, 104
    %v5801 = vpop.permute.xlu0 %5800
    %5802 = vrot.lane.b32.xlu0 %v2082, 104
    %v5803 = vpop.permute.xlu0 %5802
    %5804 = vrot.lane.b32.xlu0 %v2083, 104
    %v5805 = vpop.permute.xlu0 %5804
    %5806 = vrot.lane.b32.xlu0 %v2084, 104
    %v5807 = vpop.permute.xlu0 %5806
    %5808 = vrot.lane.b32.xlu0 %v2085, 104
    %v5809 = vpop.permute.xlu0 %5808
    %5810 = vrot.lane.b32.xlu0 %v2086, 104
    %v5811 = vpop.permute.xlu0 %5810
    %5812 = vrot.lane.b32.xlu0 %v1598, 104
    %v5813 = vpop.permute.xlu0 %5812
    %5814 = vrot.lane.b32.xlu0 %v1603, 104
    %v5815 = vpop.permute.xlu0 %5814
    %5816 = vrot.lane.b32.xlu0 %v1608, 104
    %v5817 = vpop.permute.xlu0 %5816
    %5818 = vrot.lane.b32.xlu0 %v1613, 104
    %v5819 = vpop.permute.xlu0 %5818
    %5820 = vrot.lane.b32.xlu0 %v1618, 104
    %v5821 = vpop.permute.xlu0 %5820
    %5822 = vrot.lane.b32.xlu0 %v1623, 104
    %v5823 = vpop.permute.xlu0 %5822
    %5824 = vrot.lane.b32.xlu0 %v1628, 104
    %v5825 = vpop.permute.xlu0 %5824
    %5826 = vrot.lane.b32.xlu0 %v1633, 104
    %v5827 = vpop.permute.xlu0 %5826
    %5828 = vrot.lane.b32.xlu0 %v1638, 104
    %v5829 = vpop.permute.xlu0 %5828
    %5830 = vrot.lane.b32.xlu0 %v1643, 104
    %v5831 = vpop.permute.xlu0 %5830
    %5832 = vrot.lane.b32.xlu0 %v1648, 104
    %v5833 = vpop.permute.xlu0 %5832
    %5834 = vrot.lane.b32.xlu0 %v1653, 104
    %v5835 = vpop.permute.xlu0 %5834
    %5836 = vrot.lane.b32.xlu0 %v1658, 104
    %v5837 = vpop.permute.xlu0 %5836
    %5838 = vrot.lane.b32.xlu0 %v1663, 104
    %v5839 = vpop.permute.xlu0 %5838
    %5840 = vrot.lane.b32.xlu0 %v1668, 104
    %v5841 = vpop.permute.xlu0 %5840
    %5842 = vrot.lane.b32.xlu0 %v1673, 104
    %v5843 = vpop.permute.xlu0 %5842
    %v5844 = vsel %vm2087, %v5781, 0
    %v5846 = vsel %vm2087, %v5783, 0
    %v5848 = vsel %vm2087, %v5785, 0
    %v5850 = vsel %vm2087, %v5787, 0
    %v5852 = vsel %vm2087, %v5789, 0
    %v5854 = vsel %vm2087, %v5791, 0
    %v5856 = vsel %vm2087, %v5793, 0
    %v5858 = vsel %vm2087, %v5795, 0
    %v5860 = vsel %vm2087, %v5797, 0
    %v5862 = vsel %vm2087, %v5799, 0
    %v5864 = vsel %vm2087, %v5801, 0
    %v5866 = vsel %vm2087, %v5803, 0
    %v5868 = vsel %vm2087, %v5805, 0
    %v5870 = vsel %vm2087, %v5807, 0
    %v5872 = vsel %vm2087, %v5809, 0
    %v5874 = vsel %vm2087, %v5811, 0
    %v5876 = vsel %vm2087, %v5813, 0
    %v5878 = vsel %vm2087, %v5815, 0
    %v5880 = vsel %vm2087, %v5817, 0
    %v5882 = vsel %vm2087, %v5819, 0
    %v5884 = vsel %vm2087, %v5821, 0
    %v5886 = vsel %vm2087, %v5823, 0
    %v5888 = vsel %vm2087, %v5825, 0
    %v5890 = vsel %vm2087, %v5827, 0
    %v5892 = vsel %vm2087, %v5829, 0
    %v5894 = vsel %vm2087, %v5831, 0
    %v5896 = vsel %vm2087, %v5833, 0
    %v5898 = vsel %vm2087, %v5835, 0
    %v5900 = vsel %vm2087, %v5837, 0
    %v5902 = vsel %vm2087, %v5839, 0
    %v5904 = vsel %vm2087, %v5841, 0
    %v5906 = vsel %vm2087, %v5843, 0
    %5908 = vmatprep.subr.mxu0 0.0
    %5909 = vmatpush1.xpose.msra.mxu0 %v5876
    %5910 = vmatprep.subr.mxu0 0.0
    %5911 = vmatpush1.xpose.msra.mxu0 %v5878
    %5912 = vmatprep.subr.mxu0 0.0
    %5913 = vmatpush1.xpose.msra.mxu0 %v5880
    %5914 = vmatprep.subr.mxu0 0.0
    %5915 = vmatpush1.xpose.msra.mxu0 %v5882
    %5916 = vmatprep.subr.mxu0 0.0
    %5917 = vmatpush1.xpose.msra.mxu0 %v5884
    %5918 = vmatprep.subr.mxu0 0.0
    %5919 = vmatpush1.xpose.msra.mxu0 %v5886
    %5920 = vmatprep.subr.mxu0 0.0
    %5921 = vmatpush1.xpose.msra.mxu0 %v5888
    %5922 = vmatprep.subr.mxu0 0.0
    %5923 = vmatpush1.xpose.msra.mxu0 %v5890
    %5924 = vmatprep.subr.mxu0 0.0
    %5925 = vmatpush1.xpose.msra.mxu0 %v5892
    %5926 = vmatprep.subr.mxu0 0.0
    %5927 = vmatpush1.xpose.msra.mxu0 %v5894
    %5928 = vmatprep.subr.mxu0 0.0
    %5929 = vmatpush1.xpose.msra.mxu0 %v5896
    %5930 = vmatprep.subr.mxu0 0.0
    %5931 = vmatpush1.xpose.msra.mxu0 %v5898
    %5932 = vmatprep.subr.mxu0 0.0
    %5933 = vmatpush1.xpose.msra.mxu0 %v5900
    %5934 = vmatprep.subr.mxu0 0.0
    %5935 = vmatpush1.xpose.msra.mxu0 %v5902
    %5936 = vmatprep.subr.mxu0 0.0
    %5937 = vmatpush1.xpose.msra.mxu0 %v5904
    %5938 = vmatprep.subr.mxu0 0.0
    %5939 = vmatpush1.xpose.msra.mxu0 %v5906
    %5940 = vmatprep.subr.mxu0 0.0
    %5941 = vmatpush1.xpose.msra.mxu0 0.0
    %5942 = vmatprep.subr.mxu0 0.0
    %5943 = vmatpush1.xpose.msra.mxu0 0.0
    %5944 = vmatprep.subr.mxu0 0.0
    %5945 = vmatpush1.xpose.msra.mxu0 0.0
    %5946 = vmatprep.subr.mxu0 0.0
    %5947 = vmatpush1.xpose.msra.mxu0 0.0
    %5948 = vmatprep.subr.mxu0 0.0
    %5949 = vmatpush1.xpose.msra.mxu0 0.0
    %5950 = vmatprep.subr.mxu0 0.0
    %5951 = vmatpush1.xpose.msra.mxu0 0.0
    %5952 = vmatprep.subr.mxu0 0.0
    %5953 = vmatpush1.xpose.msra.mxu0 0.0
    %5954 = vmatprep.subr.mxu0 0.0
    %5955 = vmatpush1.xpose.msra.mxu0 0.0
    %5956 = vmatprep.subr.mxu0 0.0
    %5957 = vmatpush1.xpose.msra.mxu0 0.0
    %5958 = vmatprep.subr.mxu0 0.0
    %5959 = vmatpush1.xpose.msra.mxu0 0.0
    %5960 = vmatprep.subr.mxu0 0.0
    %5961 = vmatpush1.xpose.msra.mxu0 0.0
    %5962 = vmatprep.subr.mxu0 0.0
    %5963 = vmatpush1.xpose.msra.mxu0 0.0
    %5964 = vmatprep.subr.mxu0 0.0
    %5965 = vmatpush1.xpose.msra.mxu0 0.0
    %5966 = vmatprep.subr.mxu0 0.0
    %5967 = vmatpush1.xpose.msra.mxu0 0.0
    %5968 = vmatprep.subr.mxu0 0.0
    %5969 = vmatpush1.xpose.msra.mxu0 0.0
    %5970 = vmatprep.subr.mxu0 0.0
    %5971 = vmatpush1.xpose.msra.mxu0 0.0
    %5972 = vmatprep.mubr.f32.mxu0 0.0
    %5973 = vmatmul.mubr.f32.gmra.mrb[0].mxu0 %v5844
    %v5974 = vpop.f32.mrb[0].mxu0
    %v5975 = vadd.f32 0.0, %v5974
    %v5976 = vpop.f32.mrb[0].mxu0
    %5977 = vmatprep.mubr.f32.mxu0 0.0
    %5978 = vmatmul.mubr.f32.gmra.mrb[0].mxu0 %v5846
    %v5979 = vpop.f32.mrb[0].mxu0
    %v5980 = vadd.f32 0.0, %v5979
    %v5981 = vpop.f32.mrb[0].mxu0
    %5982 = vmatprep.mubr.f32.mxu0 0.0
    %5983 = vmatmul.mubr.f32.gmra.mrb[0].mxu0 %v5848
    %v5984 = vpop.f32.mrb[0].mxu0
    %v5985 = vadd.f32 0.0, %v5984
    %v5986 = vpop.f32.mrb[0].mxu0
    %5987 = vmatprep.mubr.f32.mxu0 0.0
    %5988 = vmatmul.mubr.f32.gmra.mrb[0].mxu0 %v5850
    %v5989 = vpop.f32.mrb[0].mxu0
    %v5990 = vadd.f32 0.0, %v5989
    %v5991 = vpop.f32.mrb[0].mxu0
    %5992 = vmatprep.mubr.f32.mxu0 0.0
    %5993 = vmatmul.mubr.f32.gmra.mrb[0].mxu0 %v5852
    %v5994 = vpop.f32.mrb[0].mxu0
    %v5995 = vadd.f32 0.0, %v5994
    %v5996 = vpop.f32.mrb[0].mxu0
    %5997 = vmatprep.mubr.f32.mxu0 0.0
    %5998 = vmatmul.mubr.f32.gmra.mrb[0].mxu0 %v5854
    %v5999 = vpop.f32.mrb[0].mxu0
    %v6000 = vadd.f32 0.0, %v5999
    %v6001 = vpop.f32.mrb[0].mxu0
    %6002 = vmatprep.mubr.f32.mxu0 0.0
    %6003 = vmatmul.mubr.f32.gmra.mrb[0].mxu0 %v5856
    %v6004 = vpop.f32.mrb[0].mxu0
    %v6005 = vadd.f32 0.0, %v6004
    %v6006 = vpop.f32.mrb[0].mxu0
    %6007 = vmatprep.mubr.f32.mxu0 0.0
    %6008 = vmatmul.mubr.f32.gmra.mrb[0].mxu0 %v5858
    %v6009 = vpop.f32.mrb[0].mxu0
    %v6010 = vadd.f32 0.0, %v6009
    %v6011 = vpop.f32.mrb[0].mxu0
    %6012 = vmatprep.mubr.f32.mxu0 0.0
    %6013 = vmatmul.mubr.f32.gmra.mrb[0].mxu0 %v5860
    %v6014 = vpop.f32.mrb[0].mxu0
    %v6015 = vadd.f32 0.0, %v6014
    %v6016 = vpop.f32.mrb[0].mxu0
    %6017 = vmatprep.mubr.f32.mxu0 0.0
    %6018 = vmatmul.mubr.f32.gmra.mrb[0].mxu0 %v5862
    %v6019 = vpop.f32.mrb[0].mxu0
    %v6020 = vadd.f32 0.0, %v6019
    %v6021 = vpop.f32.mrb[0].mxu0
    %6022 = vmatprep.mubr.f32.mxu0 0.0
    %6023 = vmatmul.mubr.f32.gmra.mrb[0].mxu0 %v5864
    %v6024 = vpop.f32.mrb[0].mxu0
    %v6025 = vadd.f32 0.0, %v6024
    %v6026 = vpop.f32.mrb[0].mxu0
    %6027 = vmatprep.mubr.f32.mxu0 0.0
    %6028 = vmatmul.mubr.f32.gmra.mrb[0].mxu0 %v5866
    %v6029 = vpop.f32.mrb[0].mxu0
    %v6030 = vadd.f32 0.0, %v6029
    %v6031 = vpop.f32.mrb[0].mxu0
    %6032 = vmatprep.mubr.f32.mxu0 0.0
    %6033 = vmatmul.mubr.f32.gmra.mrb[0].mxu0 %v5868
    %v6034 = vpop.f32.mrb[0].mxu0
    %v6035 = vadd.f32 0.0, %v6034
    %v6036 = vpop.f32.mrb[0].mxu0
    %6037 = vmatprep.mubr.f32.mxu0 0.0
    %6038 = vmatmul.mubr.f32.gmra.mrb[0].mxu0 %v5870
    %v6039 = vpop.f32.mrb[0].mxu0
    %v6040 = vadd.f32 0.0, %v6039
    %v6041 = vpop.f32.mrb[0].mxu0
    %6042 = vmatprep.mubr.f32.mxu0 0.0
    %6043 = vmatmul.mubr.f32.gmra.mrb[0].mxu0 %v5872
    %v6044 = vpop.f32.mrb[0].mxu0
    %v6045 = vadd.f32 0.0, %v6044
    %v6046 = vpop.f32.mrb[0].mxu0
    %6047 = vmatprep.mubr.f32.mxu0 0.0
    %6048 = vmatmul.mubr.f32.gmra.mrb[0].mxu0 %v5874
    %v6049 = vpop.f32.mrb[0].mxu0
    %v6050 = vadd.f32 0.0, %v6049
    %v6051 = vpop.f32.mrb[0].mxu0
    %6052 = vdwg.mxu0
    %v6053 = vsel %vm2055, %v5975, -1e+30
    %v6054 = vsel %vm2056, %v5980, -1e+30
    %v6055 = vsel %vm2057, %v5985, -1e+30
    %v6056 = vsel %vm2058, %v5990, -1e+30
    %v6057 = vsel %vm2059, %v5995, -1e+30
    %v6058 = vsel %vm2060, %v6000, -1e+30
    %v6059 = vsel %vm2061, %v6005, -1e+30
    %v6060 = vsel %vm2062, %v6010, -1e+30
    %v6061 = vsel %vm2063, %v6015, -1e+30
    %v6062 = vsel %vm2064, %v6020, -1e+30
    %v6063 = vsel %vm2065, %v6025, -1e+30
    %v6064 = vsel %vm2066, %v6030, -1e+30
    %v6065 = vsel %vm2067, %v6035, -1e+30
    %v6066 = vsel %vm2068, %v6040, -1e+30
    %v6067 = vsel %vm2069, %v6045, -1e+30
    %v6068 = vsel %vm2070, %v6050, -1e+30
    %6069 = vmax.xlane.f32.xlu0 %v6053
    %v6070 = vpop.xlane.xlu0 %6069
    %6071 = vmax.xlane.f32.xlu0 %v6054
    %v6072 = vpop.xlane.xlu0 %6071
    %6073 = vmax.xlane.f32.xlu0 %v6055
    %v6074 = vpop.xlane.xlu0 %6073
    %6075 = vmax.xlane.f32.xlu0 %v6056
    %v6076 = vpop.xlane.xlu0 %6075
    %6077 = vmax.xlane.f32.xlu0 %v6057
    %v6078 = vpop.xlane.xlu0 %6077
    %6079 = vmax.xlane.f32.xlu0 %v6058
    %v6080 = vpop.xlane.xlu0 %6079
    %6081 = vmax.xlane.f32.xlu0 %v6059
    %v6082 = vpop.xlane.xlu0 %6081
    %6083 = vmax.xlane.f32.xlu0 %v6060
    %v6084 = vpop.xlane.xlu0 %6083
    %6085 = vmax.xlane.f32.xlu0 %v6061
    %v6086 = vpop.xlane.xlu0 %6085
    %6087 = vmax.xlane.f32.xlu0 %v6062
    %v6088 = vpop.xlane.xlu0 %6087
    %6089 = vmax.xlane.f32.xlu0 %v6063
    %v6090 = vpop.xlane.xlu0 %6089
    %6091 = vmax.xlane.f32.xlu0 %v6064
    %v6092 = vpop.xlane.xlu0 %6091
    %6093 = vmax.xlane.f32.xlu0 %v6065
    %v6094 = vpop.xlane.xlu0 %6093
    %6095 = vmax.xlane.f32.xlu0 %v6066
    %v6096 = vpop.xlane.xlu0 %6095
    %6097 = vmax.xlane.f32.xlu0 %v6067
    %v6098 = vpop.xlane.xlu0 %6097
    %6099 = vmax.xlane.f32.xlu0 %v6068
    %v6100 = vpop.xlane.xlu0 %6099
    %v6101 = vsub.f32 %v6053, %v6070
    %v6102 = vsub.f32 %v6054, %v6072
    %v6103 = vsub.f32 %v6055, %v6074
    %v6104 = vsub.f32 %v6056, %v6076
    %v6105 = vsub.f32 %v6057, %v6078
    %v6106 = vsub.f32 %v6058, %v6080
    %v6107 = vsub.f32 %v6059, %v6082
    %v6108 = vsub.f32 %v6060, %v6084
    %v6109 = vsub.f32 %v6061, %v6086
    %v6110 = vsub.f32 %v6062, %v6088
    %v6111 = vsub.f32 %v6063, %v6090
    %v6112 = vsub.f32 %v6064, %v6092
    %v6113 = vsub.f32 %v6065, %v6094
    %v6114 = vsub.f32 %v6066, %v6096
    %v6115 = vsub.f32 %v6067, %v6098
    %v6116 = vsub.f32 %v6068, %v6100
    %v6117 = vmul.f32 %v6101, 1.442695
    %v6118 = vpow.pop %v6117
    %v6119 = vmul.f32 %v6102, 1.442695
    %v6120 = vpow.pop %v6119
    %v6121 = vmul.f32 %v6103, 1.442695
    %v6122 = vpow.pop %v6121
    %v6123 = vmul.f32 %v6104, 1.442695
    %v6124 = vpow.pop %v6123
    %v6125 = vmul.f32 %v6105, 1.442695
    %v6126 = vpow.pop %v6125
    %v6127 = vmul.f32 %v6106, 1.442695
    %v6128 = vpow.pop %v6127
    %v6129 = vmul.f32 %v6107, 1.442695
    %v6130 = vpow.pop %v6129
    %v6131 = vmul.f32 %v6108, 1.442695
    %v6132 = vpow.pop %v6131
    %v6133 = vmul.f32 %v6109, 1.442695
    %v6134 = vpow.pop %v6133
    %v6135 = vmul.f32 %v6110, 1.442695
    %v6136 = vpow.pop %v6135
    %v6137 = vmul.f32 %v6111, 1.442695
    %v6138 = vpow.pop %v6137
    %v6139 = vmul.f32 %v6112, 1.442695
    %v6140 = vpow.pop %v6139
    %v6141 = vmul.f32 %v6113, 1.442695
    %v6142 = vpow.pop %v6141
    %v6143 = vmul.f32 %v6114, 1.442695
    %v6144 = vpow.pop %v6143
    %v6145 = vmul.f32 %v6115, 1.442695
    %v6146 = vpow.pop %v6145
    %v6147 = vmul.f32 %v6116, 1.442695
    %v6148 = vpow.pop %v6147
    %6149 = vadd.xlane.f32.xlu0 %v6118
    %v6150 = vpop.xlane.xlu0 %6149
    %6151 = vadd.xlane.f32.xlu0 %v6120
    %v6152 = vpop.xlane.xlu0 %6151
    %6153 = vadd.xlane.f32.xlu0 %v6122
    %v6154 = vpop.xlane.xlu0 %6153
    %6155 = vadd.xlane.f32.xlu0 %v6124
    %v6156 = vpop.xlane.xlu0 %6155
    %6157 = vadd.xlane.f32.xlu0 %v6126
    %v6158 = vpop.xlane.xlu0 %6157
    %6159 = vadd.xlane.f32.xlu0 %v6128
    %v6160 = vpop.xlane.xlu0 %6159
    %6161 = vadd.xlane.f32.xlu0 %v6130
    %v6162 = vpop.xlane.xlu0 %6161
    %6163 = vadd.xlane.f32.xlu0 %v6132
    %v6164 = vpop.xlane.xlu0 %6163
    %6165 = vadd.xlane.f32.xlu0 %v6134
    %v6166 = vpop.xlane.xlu0 %6165
    %6167 = vadd.xlane.f32.xlu0 %v6136
    %v6168 = vpop.xlane.xlu0 %6167
    %6169 = vadd.xlane.f32.xlu0 %v6138
    %v6170 = vpop.xlane.xlu0 %6169
    %6171 = vadd.xlane.f32.xlu0 %v6140
    %v6172 = vpop.xlane.xlu0 %6171
    %6173 = vadd.xlane.f32.xlu0 %v6142
    %v6174 = vpop.xlane.xlu0 %6173
    %6175 = vadd.xlane.f32.xlu0 %v6144
    %v6176 = vpop.xlane.xlu0 %6175
    %6177 = vadd.xlane.f32.xlu0 %v6146
    %v6178 = vpop.xlane.xlu0 %6177
    %6179 = vadd.xlane.f32.xlu0 %v6148
    %v6180 = vpop.xlane.xlu0 %6179
    %v6181 = vrcp.pop %v6150
    %v6182 = vrcp.pop %v6152
    %v6183 = vrcp.pop %v6154
    %v6184 = vrcp.pop %v6156
    %v6185 = vrcp.pop %v6158
    %v6186 = vrcp.pop %v6160
    %v6187 = vrcp.pop %v6162
    %v6188 = vrcp.pop %v6164
    %v6189 = vrcp.pop %v6166
    %v6190 = vrcp.pop %v6168
    %v6191 = vrcp.pop %v6170
    %v6192 = vrcp.pop %v6172
    %v6193 = vrcp.pop %v6174
    %v6194 = vrcp.pop %v6176
    %v6195 = vrcp.pop %v6178
    %v6196 = vrcp.pop %v6180
    %v6197 = vmul.f32 %v6118, %v6181
    %v6198 = vmul.f32 %v6120, %v6182
    %v6199 = vmul.f32 %v6122, %v6183
    %v6200 = vmul.f32 %v6124, %v6184
    %v6201 = vmul.f32 %v6126, %v6185
    %v6202 = vmul.f32 %v6128, %v6186
    %v6203 = vmul.f32 %v6130, %v6187
    %v6204 = vmul.f32 %v6132, %v6188
    %v6205 = vmul.f32 %v6134, %v6189
    %v6206 = vmul.f32 %v6136, %v6190
    %v6207 = vmul.f32 %v6138, %v6191
    %v6208 = vmul.f32 %v6140, %v6192
    %v6209 = vmul.f32 %v6142, %v6193
    %v6210 = vmul.f32 %v6144, %v6194
    %v6211 = vmul.f32 %v6146, %v6195
    %v6212 = vmul.f32 %v6148, %v6196
    %6213 = vrot.lane.b32.xlu0 %v1754, 104
    %v6214 = vpop.permute.xlu0 %6213
    %6215 = vrot.lane.b32.xlu0 %v1759, 104
    %v6216 = vpop.permute.xlu0 %6215
    %6217 = vrot.lane.b32.xlu0 %v1764, 104
    %v6218 = vpop.permute.xlu0 %6217
    %6219 = vrot.lane.b32.xlu0 %v1769, 104
    %v6220 = vpop.permute.xlu0 %6219
    %6221 = vrot.lane.b32.xlu0 %v1774, 104
    %v6222 = vpop.permute.xlu0 %6221
    %6223 = vrot.lane.b32.xlu0 %v1779, 104
    %v6224 = vpop.permute.xlu0 %6223
    %6225 = vrot.lane.b32.xlu0 %v1784, 104
    %v6226 = vpop.permute.xlu0 %6225
    %6227 = vrot.lane.b32.xlu0 %v1789, 104
    %v6228 = vpop.permute.xlu0 %6227
    %6229 = vrot.lane.b32.xlu0 %v1794, 104
    %v6230 = vpop.permute.xlu0 %6229
    %6231 = vrot.lane.b32.xlu0 %v1799, 104
    %v6232 = vpop.permute.xlu0 %6231
    %6233 = vrot.lane.b32.xlu0 %v1804, 104
    %v6234 = vpop.permute.xlu0 %6233
    %6235 = vrot.lane.b32.xlu0 %v1809, 104
    %v6236 = vpop.permute.xlu0 %6235
    %6237 = vrot.lane.b32.xlu0 %v1814, 104
    %v6238 = vpop.permute.xlu0 %6237
    %6239 = vrot.lane.b32.xlu0 %v1819, 104
    %v6240 = vpop.permute.xlu0 %6239
    %6241 = vrot.lane.b32.xlu0 %v1824, 104
    %v6242 = vpop.permute.xlu0 %6241
    %6243 = vrot.lane.b32.xlu0 %v1829, 104
    %v6244 = vpop.permute.xlu0 %6243
    %6261 = vmatprep.subr.mxu0 0.0
    %6262 = vmatpush1.msra.mxu0 %v6214
    %6263 = vmatprep.subr.mxu0 0.0
    %6264 = vmatpush1.msra.mxu0 %v6216
    %6265 = vmatprep.subr.mxu0 0.0
    %6266 = vmatpush1.msra.mxu0 %v6218
    %6267 = vmatprep.subr.mxu0 0.0
    %6268 = vmatpush1.msra.mxu0 %v6220
    %6269 = vmatprep.subr.mxu0 0.0
    %6270 = vmatpush1.msra.mxu0 %v6222
    %6271 = vmatprep.subr.mxu0 0.0
    %6272 = vmatpush1.msra.mxu0 %v6224
    %6273 = vmatprep.subr.mxu0 0.0
    %6274 = vmatpush1.msra.mxu0 %v6226
    %6275 = vmatprep.subr.mxu0 0.0
    %6276 = vmatpush1.msra.mxu0 %v6228
    %6277 = vmatprep.subr.mxu0 0.0
    %6278 = vmatpush1.msra.mxu0 %v6230
    %6279 = vmatprep.subr.mxu0 0.0
    %6280 = vmatpush1.msra.mxu0 %v6232
    %6281 = vmatprep.subr.mxu0 0.0
    %6282 = vmatpush1.msra.mxu0 %v6234
    %6283 = vmatprep.subr.mxu0 0.0
    %6284 = vmatpush1.msra.mxu0 %v6236
    %6285 = vmatprep.subr.mxu0 0.0
    %6286 = vmatpush1.msra.mxu0 %v6238
    %6287 = vmatprep.subr.mxu0 0.0
    %6288 = vmatpush1.msra.mxu0 %v6240
    %6289 = vmatprep.subr.mxu0 0.0
    %6290 = vmatpush1.msra.mxu0 %v6242
    %6291 = vmatprep.subr.mxu0 0.0
    %6292 = vmatpush1.msra.mxu0 %v6244
    %6293 = vmatprep.subr.mxu0 0.0
    %6294 = vmatpush1.msra.mxu0 0.0
    %6295 = vmatprep.subr.mxu0 0.0
    %6296 = vmatpush1.msra.mxu0 0.0
    %6297 = vmatprep.subr.mxu0 0.0
    %6298 = vmatpush1.msra.mxu0 0.0
    %6299 = vmatprep.subr.mxu0 0.0
    %6300 = vmatpush1.msra.mxu0 0.0
    %6301 = vmatprep.subr.mxu0 0.0
    %6302 = vmatpush1.msra.mxu0 0.0
    %6303 = vmatprep.subr.mxu0 0.0
    %6304 = vmatpush1.msra.mxu0 0.0
    %6305 = vmatprep.subr.mxu0 0.0
    %6306 = vmatpush1.msra.mxu0 0.0
    %6307 = vmatprep.subr.mxu0 0.0
    %6308 = vmatpush1.msra.mxu0 0.0
    %6309 = vmatprep.subr.mxu0 0.0
    %6310 = vmatpush1.msra.mxu0 0.0
    %6311 = vmatprep.subr.mxu0 0.0
    %6312 = vmatpush1.msra.mxu0 0.0
    %6313 = vmatprep.subr.mxu0 0.0
    %6314 = vmatpush1.msra.mxu0 0.0
    %6315 = vmatprep.subr.mxu0 0.0
    %6316 = vmatpush1.msra.mxu0 0.0
    %6317 = vmatprep.subr.mxu0 0.0
    %6318 = vmatpush1.msra.mxu0 0.0
    %6319 = vmatprep.subr.mxu0 0.0
    %6320 = vmatpush1.msra.mxu0 0.0
    %6321 = vmatprep.subr.mxu0 0.0
    %6322 = vmatpush1.msra.mxu0 0.0
    %6323 = vmatprep.subr.mxu0 0.0
    %6324 = vmatpush1.msra.mxu0 0.0
    %6325 = vmatprep.mubr.f32.mxu0 0.0
    %6326 = vmatmul.mubr.f32.gmra.mrb[0].mxu0 %v6197
    %v6327 = vpop.f32.mrb[0].mxu0
    %v6328 = vadd.f32 0.0, %v6327
    %v6329 = vpop.f32.mrb[0].mxu0
    %6330 = vmatprep.mubr.f32.mxu0 0.0
    %6331 = vmatmul.mubr.f32.gmra.mrb[0].mxu0 %v6198
    %v6332 = vpop.f32.mrb[0].mxu0
    %v6333 = vadd.f32 0.0, %v6332
    %v6334 = vpop.f32.mrb[0].mxu0
    %6335 = vmatprep.mubr.f32.mxu0 0.0
    %6336 = vmatmul.mubr.f32.gmra.mrb[0].mxu0 %v6199
    %v6337 = vpop.f32.mrb[0].mxu0
    %v6338 = vadd.f32 0.0, %v6337
    %v6339 = vpop.f32.mrb[0].mxu0
    %6340 = vmatprep.mubr.f32.mxu0 0.0
    %6341 = vmatmul.mubr.f32.gmra.mrb[0].mxu0 %v6200
    %v6342 = vpop.f32.mrb[0].mxu0
    %v6343 = vadd.f32 0.0, %v6342
    %v6344 = vpop.f32.mrb[0].mxu0
    %6345 = vmatprep.mubr.f32.mxu0 0.0
    %6346 = vmatmul.mubr.f32.gmra.mrb[0].mxu0 %v6201
    %v6347 = vpop.f32.mrb[0].mxu0
    %v6348 = vadd.f32 0.0, %v6347
    %v6349 = vpop.f32.mrb[0].mxu0
    %6350 = vmatprep.mubr.f32.mxu0 0.0
    %6351 = vmatmul.mubr.f32.gmra.mrb[0].mxu0 %v6202
    %v6352 = vpop.f32.mrb[0].mxu0
    %v6353 = vadd.f32 0.0, %v6352
    %v6354 = vpop.f32.mrb[0].mxu0
    %6355 = vmatprep.mubr.f32.mxu0 0.0
    %6356 = vmatmul.mubr.f32.gmra.mrb[0].mxu0 %v6203
    %v6357 = vpop.f32.mrb[0].mxu0
    %v6358 = vadd.f32 0.0, %v6357
    %v6359 = vpop.f32.mrb[0].mxu0
    %6360 = vmatprep.mubr.f32.mxu0 0.0
    %6361 = vmatmul.mubr.f32.gmra.mrb[0].mxu0 %v6204
    %v6362 = vpop.f32.mrb[0].mxu0
    %v6363 = vadd.f32 0.0, %v6362
    %v6364 = vpop.f32.mrb[0].mxu0
    %6365 = vmatprep.mubr.f32.mxu0 0.0
    %6366 = vmatmul.mubr.f32.gmra.mrb[0].mxu0 %v6205
    %v6367 = vpop.f32.mrb[0].mxu0
    %v6368 = vadd.f32 0.0, %v6367
    %v6369 = vpop.f32.mrb[0].mxu0
    %6370 = vmatprep.mubr.f32.mxu0 0.0
    %6371 = vmatmul.mubr.f32.gmra.mrb[0].mxu0 %v6206
    %v6372 = vpop.f32.mrb[0].mxu0
    %v6373 = vadd.f32 0.0, %v6372
    %v6374 = vpop.f32.mrb[0].mxu0
    %6375 = vmatprep.mubr.f32.mxu0 0.0
    %6376 = vmatmul.mubr.f32.gmra.mrb[0].mxu0 %v6207
    %v6377 = vpop.f32.mrb[0].mxu0
    %v6378 = vadd.f32 0.0, %v6377
    %v6379 = vpop.f32.mrb[0].mxu0
    %6380 = vmatprep.mubr.f32.mxu0 0.0
    %6381 = vmatmul.mubr.f32.gmra.mrb[0].mxu0 %v6208
    %v6382 = vpop.f32.mrb[0].mxu0
    %v6383 = vadd.f32 0.0, %v6382
    %v6384 = vpop.f32.mrb[0].mxu0
    %6385 = vmatprep.mubr.f32.mxu0 0.0
    %6386 = vmatmul.mubr.f32.gmra.mrb[0].mxu0 %v6209
    %v6387 = vpop.f32.mrb[0].mxu0
    %v6388 = vadd.f32 0.0, %v6387
    %v6389 = vpop.f32.mrb[0].mxu0
    %6390 = vmatprep.mubr.f32.mxu0 0.0
    %6391 = vmatmul.mubr.f32.gmra.mrb[0].mxu0 %v6210
    %v6392 = vpop.f32.mrb[0].mxu0
    %v6393 = vadd.f32 0.0, %v6392
    %v6394 = vpop.f32.mrb[0].mxu0
    %6395 = vmatprep.mubr.f32.mxu0 0.0
    %6396 = vmatmul.mubr.f32.gmra.mrb[0].mxu0 %v6211
    %v6397 = vpop.f32.mrb[0].mxu0
    %v6398 = vadd.f32 0.0, %v6397
    %v6399 = vpop.f32.mrb[0].mxu0
    %6400 = vmatprep.mubr.f32.mxu0 0.0
    %6401 = vmatmul.mubr.f32.gmra.mrb[0].mxu0 %v6212
    %v6402 = vpop.f32.mrb[0].mxu0
    %v6403 = vadd.f32 0.0, %v6402
    %v6404 = vpop.f32.mrb[0].mxu0
    %6405 = vdwg.mxu0
    %6406 = vrot.lane.b32.xlu0 %v2071, 100
    %v6407 = vpop.permute.xlu0 %6406
    %6408 = vrot.lane.b32.xlu0 %v2072, 100
    %v6409 = vpop.permute.xlu0 %6408
    %6410 = vrot.lane.b32.xlu0 %v2073, 100
    %v6411 = vpop.permute.xlu0 %6410
    %6412 = vrot.lane.b32.xlu0 %v2074, 100
    %v6413 = vpop.permute.xlu0 %6412
    %6414 = vrot.lane.b32.xlu0 %v2075, 100
    %v6415 = vpop.permute.xlu0 %6414
    %6416 = vrot.lane.b32.xlu0 %v2076, 100
    %v6417 = vpop.permute.xlu0 %6416
    %6418 = vrot.lane.b32.xlu0 %v2077, 100
    %v6419 = vpop.permute.xlu0 %6418
    %6420 = vrot.lane.b32.xlu0 %v2078, 100
    %v6421 = vpop.permute.xlu0 %6420
    %6422 = vrot.lane.b32.xlu0 %v2079, 100
    %v6423 = vpop.permute.xlu0 %6422
    %6424 = vrot.lane.b32.xlu0 %v2080, 100
    %v6425 = vpop.permute.xlu0 %6424
    %6426 = vrot.lane.b32.xlu0 %v2081, 100
    %v6427 = vpop.permute.xlu0 %6426
    %6428 = vrot.lane.b32.xlu0 %v2082, 100
    %v6429 = vpop.permute.xlu0 %6428
    %6430 = vrot.lane.b32.xlu0 %v2083, 100
    %v6431 = vpop.permute.xlu0 %6430
    %6432 = vrot.lane.b32.xlu0 %v2084, 100
    %v6433 = vpop.permute.xlu0 %6432
    %6434 = vrot.lane.b32.xlu0 %v2085, 100
    %v6435 = vpop.permute.xlu0 %6434
    %6436 = vrot.lane.b32.xlu0 %v2086, 100
    %v6437 = vpop.permute.xlu0 %6436
    %6438 = vrot.lane.b32.xlu0 %v1598, 100
    %v6439 = vpop.permute.xlu0 %6438
    %6440 = vrot.lane.b32.xlu0 %v1603, 100
    %v6441 = vpop.permute.xlu0 %6440
    %6442 = vrot.lane.b32.xlu0 %v1608, 100
    %v6443 = vpop.permute.xlu0 %6442
    %6444 = vrot.lane.b32.xlu0 %v1613, 100
    %v6445 = vpop.permute.xlu0 %6444
    %6446 = vrot.lane.b32.xlu0 %v1618, 100
    %v6447 = vpop.permute.xlu0 %6446
    %6448 = vrot.lane.b32.xlu0 %v1623, 100
    %v6449 = vpop.permute.xlu0 %6448
    %6450 = vrot.lane.b32.xlu0 %v1628, 100
    %v6451 = vpop.permute.xlu0 %6450
    %6452 = vrot.lane.b32.xlu0 %v1633, 100
    %v6453 = vpop.permute.xlu0 %6452
    %6454 = vrot.lane.b32.xlu0 %v1638, 100
    %v6455 = vpop.permute.xlu0 %6454
    %6456 = vrot.lane.b32.xlu0 %v1643, 100
    %v6457 = vpop.permute.xlu0 %6456
    %6458 = vrot.lane.b32.xlu0 %v1648, 100
    %v6459 = vpop.permute.xlu0 %6458
    %6460 = vrot.lane.b32.xlu0 %v1653, 100
    %v6461 = vpop.permute.xlu0 %6460
    %6462 = vrot.lane.b32.xlu0 %v1658, 100
    %v6463 = vpop.permute.xlu0 %6462
    %6464 = vrot.lane.b32.xlu0 %v1663, 100
    %v6465 = vpop.permute.xlu0 %6464
    %6466 = vrot.lane.b32.xlu0 %v1668, 100
    %v6467 = vpop.permute.xlu0 %6466
    %6468 = vrot.lane.b32.xlu0 %v1673, 100
    %v6469 = vpop.permute.xlu0 %6468
    %v6470 = vsel %vm2087, %v6407, 0
    %v6472 = vsel %vm2087, %v6409, 0
    %v6474 = vsel %vm2087, %v6411, 0
    %v6476 = vsel %vm2087, %v6413, 0
    %v6478 = vsel %vm2087, %v6415, 0
    %v6480 = vsel %vm2087, %v6417, 0
    %v6482 = vsel %vm2087, %v6419, 0
    %v6484 = vsel %vm2087, %v6421, 0
    %v6486 = vsel %vm2087, %v6423, 0
    %v6488 = vsel %vm2087, %v6425, 0
    %v6490 = vsel %vm2087, %v6427, 0
    %v6492 = vsel %vm2087, %v6429, 0
    %v6494 = vsel %vm2087, %v6431, 0
    %v6496 = vsel %vm2087, %v6433, 0
    %v6498 = vsel %vm2087, %v6435, 0
    %v6500 = vsel %vm2087, %v6437, 0
    %v6502 = vsel %vm2087, %v6439, 0
    %v6504 = vsel %vm2087, %v6441, 0
    %v6506 = vsel %vm2087, %v6443, 0
    %v6508 = vsel %vm2087, %v6445, 0
    %v6510 = vsel %vm2087, %v6447, 0
    %v6512 = vsel %vm2087, %v6449, 0
    %v6514 = vsel %vm2087, %v6451, 0
    %v6516 = vsel %vm2087, %v6453, 0
    %v6518 = vsel %vm2087, %v6455, 0
    %v6520 = vsel %vm2087, %v6457, 0
    %v6522 = vsel %vm2087, %v6459, 0
    %v6524 = vsel %vm2087, %v6461, 0
    %v6526 = vsel %vm2087, %v6463, 0
    %v6528 = vsel %vm2087, %v6465, 0
    %v6530 = vsel %vm2087, %v6467, 0
    %v6532 = vsel %vm2087, %v6469, 0
    %6534 = vmatprep.subr.mxu0 0.0
    %6535 = vmatpush1.xpose.msra.mxu0 %v6502
    %6536 = vmatprep.subr.mxu0 0.0
    %6537 = vmatpush1.xpose.msra.mxu0 %v6504
    %6538 = vmatprep.subr.mxu0 0.0
    %6539 = vmatpush1.xpose.msra.mxu0 %v6506
    %6540 = vmatprep.subr.mxu0 0.0
    %6541 = vmatpush1.xpose.msra.mxu0 %v6508
    %6542 = vmatprep.subr.mxu0 0.0
    %6543 = vmatpush1.xpose.msra.mxu0 %v6510
    %6544 = vmatprep.subr.mxu0 0.0
    %6545 = vmatpush1.xpose.msra.mxu0 %v6512
    %6546 = vmatprep.subr.mxu0 0.0
    %6547 = vmatpush1.xpose.msra.mxu0 %v6514
    %6548 = vmatprep.subr.mxu0 0.0
    %6549 = vmatpush1.xpose.msra.mxu0 %v6516
    %6550 = vmatprep.subr.mxu0 0.0
    %6551 = vmatpush1.xpose.msra.mxu0 %v6518
    %6552 = vmatprep.subr.mxu0 0.0
    %6553 = vmatpush1.xpose.msra.mxu0 %v6520
    %6554 = vmatprep.subr.mxu0 0.0
    %6555 = vmatpush1.xpose.msra.mxu0 %v6522
    %6556 = vmatprep.subr.mxu0 0.0
    %6557 = vmatpush1.xpose.msra.mxu0 %v6524
    %6558 = vmatprep.subr.mxu0 0.0
    %6559 = vmatpush1.xpose.msra.mxu0 %v6526
    %6560 = vmatprep.subr.mxu0 0.0
    %6561 = vmatpush1.xpose.msra.mxu0 %v6528
    %6562 = vmatprep.subr.mxu0 0.0
    %6563 = vmatpush1.xpose.msra.mxu0 %v6530
    %6564 = vmatprep.subr.mxu0 0.0
    %6565 = vmatpush1.xpose.msra.mxu0 %v6532
    %6566 = vmatprep.subr.mxu0 0.0
    %6567 = vmatpush1.xpose.msra.mxu0 0.0
    %6568 = vmatprep.subr.mxu0 0.0
    %6569 = vmatpush1.xpose.msra.mxu0 0.0
    %6570 = vmatprep.subr.mxu0 0.0
    %6571 = vmatpush1.xpose.msra.mxu0 0.0
    %6572 = vmatprep.subr.mxu0 0.0
    %6573 = vmatpush1.xpose.msra.mxu0 0.0
    %6574 = vmatprep.subr.mxu0 0.0
    %6575 = vmatpush1.xpose.msra.mxu0 0.0
    %6576 = vmatprep.subr.mxu0 0.0
    %6577 = vmatpush1.xpose.msra.mxu0 0.0
    %6578 = vmatprep.subr.mxu0 0.0
    %6579 = vmatpush1.xpose.msra.mxu0 0.0
    %6580 = vmatprep.subr.mxu0 0.0
    %6581 = vmatpush1.xpose.msra.mxu0 0.0
    %6582 = vmatprep.subr.mxu0 0.0
    %6583 = vmatpush1.xpose.msra.mxu0 0.0
    %6584 = vmatprep.subr.mxu0 0.0
    %6585 = vmatpush1.xpose.msra.mxu0 0.0
    %6586 = vmatprep.subr.mxu0 0.0
    %6587 = vmatpush1.xpose.msra.mxu0 0.0
    %6588 = vmatprep.subr.mxu0 0.0
    %6589 = vmatpush1.xpose.msra.mxu0 0.0
    %6590 = vmatprep.subr.mxu0 0.0
    %6591 = vmatpush1.xpose.msra.mxu0 0.0
    %6592 = vmatprep.subr.mxu0 0.0
    %6593 = vmatpush1.xpose.msra.mxu0 0.0
    %6594 = vmatprep.subr.mxu0 0.0
    %6595 = vmatpush1.xpose.msra.mxu0 0.0
    %6596 = vmatprep.subr.mxu0 0.0
    %6597 = vmatpush1.xpose.msra.mxu0 0.0
    %6598 = vmatprep.mubr.f32.mxu0 0.0
    %6599 = vmatmul.mubr.f32.gmra.mrb[0].mxu0 %v6470
    %v6600 = vpop.f32.mrb[0].mxu0
    %v6601 = vadd.f32 0.0, %v6600
    %v6602 = vpop.f32.mrb[0].mxu0
    %6603 = vmatprep.mubr.f32.mxu0 0.0
    %6604 = vmatmul.mubr.f32.gmra.mrb[0].mxu0 %v6472
    %v6605 = vpop.f32.mrb[0].mxu0
    %v6606 = vadd.f32 0.0, %v6605
    %v6607 = vpop.f32.mrb[0].mxu0
    %6608 = vmatprep.mubr.f32.mxu0 0.0
    %6609 = vmatmul.mubr.f32.gmra.mrb[0].mxu0 %v6474
    %v6610 = vpop.f32.mrb[0].mxu0
    %v6611 = vadd.f32 0.0, %v6610
    %v6612 = vpop.f32.mrb[0].mxu0
    %6613 = vmatprep.mubr.f32.mxu0 0.0
    %6614 = vmatmul.mubr.f32.gmra.mrb[0].mxu0 %v6476
    %v6615 = vpop.f32.mrb[0].mxu0
    %v6616 = vadd.f32 0.0, %v6615
    %v6617 = vpop.f32.mrb[0].mxu0
    %6618 = vmatprep.mubr.f32.mxu0 0.0
    %6619 = vmatmul.mubr.f32.gmra.mrb[0].mxu0 %v6478
    %v6620 = vpop.f32.mrb[0].mxu0
    %v6621 = vadd.f32 0.0, %v6620
    %v6622 = vpop.f32.mrb[0].mxu0
    %6623 = vmatprep.mubr.f32.mxu0 0.0
    %6624 = vmatmul.mubr.f32.gmra.mrb[0].mxu0 %v6480
    %v6625 = vpop.f32.mrb[0].mxu0
    %v6626 = vadd.f32 0.0, %v6625
    %v6627 = vpop.f32.mrb[0].mxu0
    %6628 = vmatprep.mubr.f32.mxu0 0.0
    %6629 = vmatmul.mubr.f32.gmra.mrb[0].mxu0 %v6482
    %v6630 = vpop.f32.mrb[0].mxu0
    %v6631 = vadd.f32 0.0, %v6630
    %v6632 = vpop.f32.mrb[0].mxu0
    %6633 = vmatprep.mubr.f32.mxu0 0.0
    %6634 = vmatmul.mubr.f32.gmra.mrb[0].mxu0 %v6484
    %v6635 = vpop.f32.mrb[0].mxu0
    %v6636 = vadd.f32 0.0, %v6635
    %v6637 = vpop.f32.mrb[0].mxu0
    %6638 = vmatprep.mubr.f32.mxu0 0.0
    %6639 = vmatmul.mubr.f32.gmra.mrb[0].mxu0 %v6486
    %v6640 = vpop.f32.mrb[0].mxu0
    %v6641 = vadd.f32 0.0, %v6640
    %v6642 = vpop.f32.mrb[0].mxu0
    %6643 = vmatprep.mubr.f32.mxu0 0.0
    %6644 = vmatmul.mubr.f32.gmra.mrb[0].mxu0 %v6488
    %v6645 = vpop.f32.mrb[0].mxu0
    %v6646 = vadd.f32 0.0, %v6645
    %v6647 = vpop.f32.mrb[0].mxu0
    %6648 = vmatprep.mubr.f32.mxu0 0.0
    %6649 = vmatmul.mubr.f32.gmra.mrb[0].mxu0 %v6490
    %v6650 = vpop.f32.mrb[0].mxu0
    %v6651 = vadd.f32 0.0, %v6650
    %v6652 = vpop.f32.mrb[0].mxu0
    %6653 = vmatprep.mubr.f32.mxu0 0.0
    %6654 = vmatmul.mubr.f32.gmra.mrb[0].mxu0 %v6492
    %v6655 = vpop.f32.mrb[0].mxu0
    %v6656 = vadd.f32 0.0, %v6655
    %v6657 = vpop.f32.mrb[0].mxu0
    %6658 = vmatprep.mubr.f32.mxu0 0.0
    %6659 = vmatmul.mubr.f32.gmra.mrb[0].mxu0 %v6494
    %v6660 = vpop.f32.mrb[0].mxu0
    %v6661 = vadd.f32 0.0, %v6660
    %v6662 = vpop.f32.mrb[0].mxu0
    %6663 = vmatprep.mubr.f32.mxu0 0.0
    %6664 = vmatmul.mubr.f32.gmra.mrb[0].mxu0 %v6496
    %v6665 = vpop.f32.mrb[0].mxu0
    %v6666 = vadd.f32 0.0, %v6665
    %v6667 = vpop.f32.mrb[0].mxu0
    %6668 = vmatprep.mubr.f32.mxu0 0.0
    %6669 = vmatmul.mubr.f32.gmra.mrb[0].mxu0 %v6498
    %v6670 = vpop.f32.mrb[0].mxu0
    %v6671 = vadd.f32 0.0, %v6670
    %v6672 = vpop.f32.mrb[0].mxu0
    %6673 = vmatprep.mubr.f32.mxu0 0.0
    %6674 = vmatmul.mubr.f32.gmra.mrb[0].mxu0 %v6500
    %v6675 = vpop.f32.mrb[0].mxu0
    %v6676 = vadd.f32 0.0, %v6675
    %v6677 = vpop.f32.mrb[0].mxu0
    %6678 = vdwg.mxu0
    %v6679 = vsel %vm2055, %v6601, -1e+30
    %v6680 = vsel %vm2056, %v6606, -1e+30
    %v6681 = vsel %vm2057, %v6611, -1e+30
    %v6682 = vsel %vm2058, %v6616, -1e+30
    %v6683 = vsel %vm2059, %v6621, -1e+30
    %v6684 = vsel %vm2060, %v6626, -1e+30
    %v6685 = vsel %vm2061, %v6631, -1e+30
    %v6686 = vsel %vm2062, %v6636, -1e+30
    %v6687 = vsel %vm2063, %v6641, -1e+30
    %v6688 = vsel %vm2064, %v6646, -1e+30
    %v6689 = vsel %vm2065, %v6651, -1e+30
    %v6690 = vsel %vm2066, %v6656, -1e+30
    %v6691 = vsel %vm2067, %v6661, -1e+30
    %v6692 = vsel %vm2068, %v6666, -1e+30
    %v6693 = vsel %vm2069, %v6671, -1e+30
    %v6694 = vsel %vm2070, %v6676, -1e+30
    %6695 = vmax.xlane.f32.xlu0 %v6679
    %v6696 = vpop.xlane.xlu0 %6695
    %6697 = vmax.xlane.f32.xlu0 %v6680
    %v6698 = vpop.xlane.xlu0 %6697
    %6699 = vmax.xlane.f32.xlu0 %v6681
    %v6700 = vpop.xlane.xlu0 %6699
    %6701 = vmax.xlane.f32.xlu0 %v6682
    %v6702 = vpop.xlane.xlu0 %6701
    %6703 = vmax.xlane.f32.xlu0 %v6683
    %v6704 = vpop.xlane.xlu0 %6703
    %6705 = vmax.xlane.f32.xlu0 %v6684
    %v6706 = vpop.xlane.xlu0 %6705
    %6707 = vmax.xlane.f32.xlu0 %v6685
    %v6708 = vpop.xlane.xlu0 %6707
    %6709 = vmax.xlane.f32.xlu0 %v6686
    %v6710 = vpop.xlane.xlu0 %6709
    %6711 = vmax.xlane.f32.xlu0 %v6687
    %v6712 = vpop.xlane.xlu0 %6711
    %6713 = vmax.xlane.f32.xlu0 %v6688
    %v6714 = vpop.xlane.xlu0 %6713
    %6715 = vmax.xlane.f32.xlu0 %v6689
    %v6716 = vpop.xlane.xlu0 %6715
    %6717 = vmax.xlane.f32.xlu0 %v6690
    %v6718 = vpop.xlane.xlu0 %6717
    %6719 = vmax.xlane.f32.xlu0 %v6691
    %v6720 = vpop.xlane.xlu0 %6719
    %6721 = vmax.xlane.f32.xlu0 %v6692
    %v6722 = vpop.xlane.xlu0 %6721
    %6723 = vmax.xlane.f32.xlu0 %v6693
    %v6724 = vpop.xlane.xlu0 %6723
    %6725 = vmax.xlane.f32.xlu0 %v6694
    %v6726 = vpop.xlane.xlu0 %6725
    %v6727 = vsub.f32 %v6679, %v6696
    %v6728 = vsub.f32 %v6680, %v6698
    %v6729 = vsub.f32 %v6681, %v6700
    %v6730 = vsub.f32 %v6682, %v6702
    %v6731 = vsub.f32 %v6683, %v6704
    %v6732 = vsub.f32 %v6684, %v6706
    %v6733 = vsub.f32 %v6685, %v6708
    %v6734 = vsub.f32 %v6686, %v6710
    %v6735 = vsub.f32 %v6687, %v6712
    %v6736 = vsub.f32 %v6688, %v6714
    %v6737 = vsub.f32 %v6689, %v6716
    %v6738 = vsub.f32 %v6690, %v6718
    %v6739 = vsub.f32 %v6691, %v6720
    %v6740 = vsub.f32 %v6692, %v6722
    %v6741 = vsub.f32 %v6693, %v6724
    %v6742 = vsub.f32 %v6694, %v6726
    %v6743 = vmul.f32 %v6727, 1.442695
    %v6744 = vpow.pop %v6743
    %v6745 = vmul.f32 %v6728, 1.442695
    %v6746 = vpow.pop %v6745
    %v6747 = vmul.f32 %v6729, 1.442695
    %v6748 = vpow.pop %v6747
    %v6749 = vmul.f32 %v6730, 1.442695
    %v6750 = vpow.pop %v6749
    %v6751 = vmul.f32 %v6731, 1.442695
    %v6752 = vpow.pop %v6751
    %v6753 = vmul.f32 %v6732, 1.442695
    %v6754 = vpow.pop %v6753
    %v6755 = vmul.f32 %v6733, 1.442695
    %v6756 = vpow.pop %v6755
    %v6757 = vmul.f32 %v6734, 1.442695
    %v6758 = vpow.pop %v6757
    %v6759 = vmul.f32 %v6735, 1.442695
    %v6760 = vpow.pop %v6759
    %v6761 = vmul.f32 %v6736, 1.442695
    %v6762 = vpow.pop %v6761
    %v6763 = vmul.f32 %v6737, 1.442695
    %v6764 = vpow.pop %v6763
    %v6765 = vmul.f32 %v6738, 1.442695
    %v6766 = vpow.pop %v6765
    %v6767 = vmul.f32 %v6739, 1.442695
    %v6768 = vpow.pop %v6767
    %v6769 = vmul.f32 %v6740, 1.442695
    %v6770 = vpow.pop %v6769
    %v6771 = vmul.f32 %v6741, 1.442695
    %v6772 = vpow.pop %v6771
    %v6773 = vmul.f32 %v6742, 1.442695
    %v6774 = vpow.pop %v6773
    %6775 = vadd.xlane.f32.xlu0 %v6744
    %v6776 = vpop.xlane.xlu0 %6775
    %6777 = vadd.xlane.f32.xlu0 %v6746
    %v6778 = vpop.xlane.xlu0 %6777
    %6779 = vadd.xlane.f32.xlu0 %v6748
    %v6780 = vpop.xlane.xlu0 %6779
    %6781 = vadd.xlane.f32.xlu0 %v6750
    %v6782 = vpop.xlane.xlu0 %6781
    %6783 = vadd.xlane.f32.xlu0 %v6752
    %v6784 = vpop.xlane.xlu0 %6783
    %6785 = vadd.xlane.f32.xlu0 %v6754
    %v6786 = vpop.xlane.xlu0 %6785
    %6787 = vadd.xlane.f32.xlu0 %v6756
    %v6788 = vpop.xlane.xlu0 %6787
    %6789 = vadd.xlane.f32.xlu0 %v6758
    %v6790 = vpop.xlane.xlu0 %6789
    %6791 = vadd.xlane.f32.xlu0 %v6760
    %v6792 = vpop.xlane.xlu0 %6791
    %6793 = vadd.xlane.f32.xlu0 %v6762
    %v6794 = vpop.xlane.xlu0 %6793
    %6795 = vadd.xlane.f32.xlu0 %v6764
    %v6796 = vpop.xlane.xlu0 %6795
    %6797 = vadd.xlane.f32.xlu0 %v6766
    %v6798 = vpop.xlane.xlu0 %6797
    %6799 = vadd.xlane.f32.xlu0 %v6768
    %v6800 = vpop.xlane.xlu0 %6799
    %6801 = vadd.xlane.f32.xlu0 %v6770
    %v6802 = vpop.xlane.xlu0 %6801
    %6803 = vadd.xlane.f32.xlu0 %v6772
    %v6804 = vpop.xlane.xlu0 %6803
    %6805 = vadd.xlane.f32.xlu0 %v6774
    %v6806 = vpop.xlane.xlu0 %6805
    %v6807 = vrcp.pop %v6776
    %v6808 = vrcp.pop %v6778
    %v6809 = vrcp.pop %v6780
    %v6810 = vrcp.pop %v6782
    %v6811 = vrcp.pop %v6784
    %v6812 = vrcp.pop %v6786
    %v6813 = vrcp.pop %v6788
    %v6814 = vrcp.pop %v6790
    %v6815 = vrcp.pop %v6792
    %v6816 = vrcp.pop %v6794
    %v6817 = vrcp.pop %v6796
    %v6818 = vrcp.pop %v6798
    %v6819 = vrcp.pop %v6800
    %v6820 = vrcp.pop %v6802
    %v6821 = vrcp.pop %v6804
    %v6822 = vrcp.pop %v6806
    %v6823 = vmul.f32 %v6744, %v6807
    %v6824 = vmul.f32 %v6746, %v6808
    %v6825 = vmul.f32 %v6748, %v6809
    %v6826 = vmul.f32 %v6750, %v6810
    %v6827 = vmul.f32 %v6752, %v6811
    %v6828 = vmul.f32 %v6754, %v6812
    %v6829 = vmul.f32 %v6756, %v6813
    %v6830 = vmul.f32 %v6758, %v6814
    %v6831 = vmul.f32 %v6760, %v6815
    %v6832 = vmul.f32 %v6762, %v6816
    %v6833 = vmul.f32 %v6764, %v6817
    %v6834 = vmul.f32 %v6766, %v6818
    %v6835 = vmul.f32 %v6768, %v6819
    %v6836 = vmul.f32 %v6770, %v6820
    %v6837 = vmul.f32 %v6772, %v6821
    %v6838 = vmul.f32 %v6774, %v6822
    %6839 = vrot.lane.b32.xlu0 %v1754, 100
    %v6840 = vpop.permute.xlu0 %6839
    %6841 = vrot.lane.b32.xlu0 %v1759, 100
    %v6842 = vpop.permute.xlu0 %6841
    %6843 = vrot.lane.b32.xlu0 %v1764, 100
    %v6844 = vpop.permute.xlu0 %6843
    %6845 = vrot.lane.b32.xlu0 %v1769, 100
    %v6846 = vpop.permute.xlu0 %6845
    %6847 = vrot.lane.b32.xlu0 %v1774, 100
    %v6848 = vpop.permute.xlu0 %6847
    %6849 = vrot.lane.b32.xlu0 %v1779, 100
    %v6850 = vpop.permute.xlu0 %6849
    %6851 = vrot.lane.b32.xlu0 %v1784, 100
    %v6852 = vpop.permute.xlu0 %6851
    %6853 = vrot.lane.b32.xlu0 %v1789, 100
    %v6854 = vpop.permute.xlu0 %6853
    %6855 = vrot.lane.b32.xlu0 %v1794, 100
    %v6856 = vpop.permute.xlu0 %6855
    %6857 = vrot.lane.b32.xlu0 %v1799, 100
    %v6858 = vpop.permute.xlu0 %6857
    %6859 = vrot.lane.b32.xlu0 %v1804, 100
    %v6860 = vpop.permute.xlu0 %6859
    %6861 = vrot.lane.b32.xlu0 %v1809, 100
    %v6862 = vpop.permute.xlu0 %6861
    %6863 = vrot.lane.b32.xlu0 %v1814, 100
    %v6864 = vpop.permute.xlu0 %6863
    %6865 = vrot.lane.b32.xlu0 %v1819, 100
    %v6866 = vpop.permute.xlu0 %6865
    %6867 = vrot.lane.b32.xlu0 %v1824, 100
    %v6868 = vpop.permute.xlu0 %6867
    %6869 = vrot.lane.b32.xlu0 %v1829, 100
    %v6870 = vpop.permute.xlu0 %6869
    %6887 = vmatprep.subr.mxu0 0.0
    %6888 = vmatpush1.msra.mxu0 %v6840
    %6889 = vmatprep.subr.mxu0 0.0
    %6890 = vmatpush1.msra.mxu0 %v6842
    %6891 = vmatprep.subr.mxu0 0.0
    %6892 = vmatpush1.msra.mxu0 %v6844
    %6893 = vmatprep.subr.mxu0 0.0
    %6894 = vmatpush1.msra.mxu0 %v6846
    %6895 = vmatprep.subr.mxu0 0.0
    %6896 = vmatpush1.msra.mxu0 %v6848
    %6897 = vmatprep.subr.mxu0 0.0
    %6898 = vmatpush1.msra.mxu0 %v6850
    %6899 = vmatprep.subr.mxu0 0.0
    %6900 = vmatpush1.msra.mxu0 %v6852
    %6901 = vmatprep.subr.mxu0 0.0
    %6902 = vmatpush1.msra.mxu0 %v6854
    %6903 = vmatprep.subr.mxu0 0.0
    %6904 = vmatpush1.msra.mxu0 %v6856
    %6905 = vmatprep.subr.mxu0 0.0
    %6906 = vmatpush1.msra.mxu0 %v6858
    %6907 = vmatprep.subr.mxu0 0.0
    %6908 = vmatpush1.msra.mxu0 %v6860
    %6909 = vmatprep.subr.mxu0 0.0
    %6910 = vmatpush1.msra.mxu0 %v6862
    %6911 = vmatprep.subr.mxu0 0.0
    %6912 = vmatpush1.msra.mxu0 %v6864
    %6913 = vmatprep.subr.mxu0 0.0
    %6914 = vmatpush1.msra.mxu0 %v6866
    %6915 = vmatprep.subr.mxu0 0.0
    %6916 = vmatpush1.msra.mxu0 %v6868
    %6917 = vmatprep.subr.mxu0 0.0
    %6918 = vmatpush1.msra.mxu0 %v6870
    %6919 = vmatprep.subr.mxu0 0.0
    %6920 = vmatpush1.msra.mxu0 0.0
    %6921 = vmatprep.subr.mxu0 0.0
    %6922 = vmatpush1.msra.mxu0 0.0
    %6923 = vmatprep.subr.mxu0 0.0
    %6924 = vmatpush1.msra.mxu0 0.0
    %6925 = vmatprep.subr.mxu0 0.0
    %6926 = vmatpush1.msra.mxu0 0.0
    %6927 = vmatprep.subr.mxu0 0.0
    %6928 = vmatpush1.msra.mxu0 0.0
    %6929 = vmatprep.subr.mxu0 0.0
    %6930 = vmatpush1.msra.mxu0 0.0
    %6931 = vmatprep.subr.mxu0 0.0
    %6932 = vmatpush1.msra.mxu0 0.0
    %6933 = vmatprep.subr.mxu0 0.0
    %6934 = vmatpush1.msra.mxu0 0.0
    %6935 = vmatprep.subr.mxu0 0.0
    %6936 = vmatpush1.msra.mxu0 0.0
    %6937 = vmatprep.subr.mxu0 0.0
    %6938 = vmatpush1.msra.mxu0 0.0
    %6939 = vmatprep.subr.mxu0 0.0
    %6940 = vmatpush1.msra.mxu0 0.0
    %6941 = vmatprep.subr.mxu0 0.0
    %6942 = vmatpush1.msra.mxu0 0.0
    %6943 = vmatprep.subr.mxu0 0.0
    %6944 = vmatpush1.msra.mxu0 0.0
    %6945 = vmatprep.subr.mxu0 0.0
    %6946 = vmatpush1.msra.mxu0 0.0
    %6947 = vmatprep.subr.mxu0 0.0
    %6948 = vmatpush1.msra.mxu0 0.0
    %6949 = vmatprep.subr.mxu0 0.0
    %6950 = vmatpush1.msra.mxu0 0.0
    %6951 = vmatprep.mubr.f32.mxu0 0.0
    %6952 = vmatmul.mubr.f32.gmra.mrb[0].mxu0 %v6823
    %v6953 = vpop.f32.mrb[0].mxu0
    %v6954 = vadd.f32 0.0, %v6953
    %v6955 = vpop.f32.mrb[0].mxu0
    %6956 = vmatprep.mubr.f32.mxu0 0.0
    %6957 = vmatmul.mubr.f32.gmra.mrb[0].mxu0 %v6824
    %v6958 = vpop.f32.mrb[0].mxu0
    %v6959 = vadd.f32 0.0, %v6958
    %v6960 = vpop.f32.mrb[0].mxu0
    %6961 = vmatprep.mubr.f32.mxu0 0.0
    %6962 = vmatmul.mubr.f32.gmra.mrb[0].mxu0 %v6825
    %v6963 = vpop.f32.mrb[0].mxu0
    %v6964 = vadd.f32 0.0, %v6963
    %v6965 = vpop.f32.mrb[0].mxu0
    %6966 = vmatprep.mubr.f32.mxu0 0.0
    %6967 = vmatmul.mubr.f32.gmra.mrb[0].mxu0 %v6826
    %v6968 = vpop.f32.mrb[0].mxu0
    %v6969 = vadd.f32 0.0, %v6968
    %v6970 = vpop.f32.mrb[0].mxu0
    %6971 = vmatprep.mubr.f32.mxu0 0.0
    %6972 = vmatmul.mubr.f32.gmra.mrb[0].mxu0 %v6827
    %v6973 = vpop.f32.mrb[0].mxu0
    %v6974 = vadd.f32 0.0, %v6973
    %v6975 = vpop.f32.mrb[0].mxu0
    %6976 = vmatprep.mubr.f32.mxu0 0.0
    %6977 = vmatmul.mubr.f32.gmra.mrb[0].mxu0 %v6828
    %v6978 = vpop.f32.mrb[0].mxu0
    %v6979 = vadd.f32 0.0, %v6978
    %v6980 = vpop.f32.mrb[0].mxu0
    %6981 = vmatprep.mubr.f32.mxu0 0.0
    %6982 = vmatmul.mubr.f32.gmra.mrb[0].mxu0 %v6829
    %v6983 = vpop.f32.mrb[0].mxu0
    %v6984 = vadd.f32 0.0, %v6983
    %v6985 = vpop.f32.mrb[0].mxu0
    %6986 = vmatprep.mubr.f32.mxu0 0.0
    %6987 = vmatmul.mubr.f32.gmra.mrb[0].mxu0 %v6830
    %v6988 = vpop.f32.mrb[0].mxu0
    %v6989 = vadd.f32 0.0, %v6988
    %v6990 = vpop.f32.mrb[0].mxu0
    %6991 = vmatprep.mubr.f32.mxu0 0.0
    %6992 = vmatmul.mubr.f32.gmra.mrb[0].mxu0 %v6831
    %v6993 = vpop.f32.mrb[0].mxu0
    %v6994 = vadd.f32 0.0, %v6993
    %v6995 = vpop.f32.mrb[0].mxu0
    %6996 = vmatprep.mubr.f32.mxu0 0.0
    %6997 = vmatmul.mubr.f32.gmra.mrb[0].mxu0 %v6832
    %v6998 = vpop.f32.mrb[0].mxu0
    %v6999 = vadd.f32 0.0, %v6998
    %v7000 = vpop.f32.mrb[0].mxu0
    %7001 = vmatprep.mubr.f32.mxu0 0.0
    %7002 = vmatmul.mubr.f32.gmra.mrb[0].mxu0 %v6833
    %v7003 = vpop.f32.mrb[0].mxu0
    %v7004 = vadd.f32 0.0, %v7003
    %v7005 = vpop.f32.mrb[0].mxu0
    %7006 = vmatprep.mubr.f32.mxu0 0.0
    %7007 = vmatmul.mubr.f32.gmra.mrb[0].mxu0 %v6834
    %v7008 = vpop.f32.mrb[0].mxu0
    %v7009 = vadd.f32 0.0, %v7008
    %v7010 = vpop.f32.mrb[0].mxu0
    %7011 = vmatprep.mubr.f32.mxu0 0.0
    %7012 = vmatmul.mubr.f32.gmra.mrb[0].mxu0 %v6835
    %v7013 = vpop.f32.mrb[0].mxu0
    %v7014 = vadd.f32 0.0, %v7013
    %v7015 = vpop.f32.mrb[0].mxu0
    %7016 = vmatprep.mubr.f32.mxu0 0.0
    %7017 = vmatmul.mubr.f32.gmra.mrb[0].mxu0 %v6836
    %v7018 = vpop.f32.mrb[0].mxu0
    %v7019 = vadd.f32 0.0, %v7018
    %v7020 = vpop.f32.mrb[0].mxu0
    %7021 = vmatprep.mubr.f32.mxu0 0.0
    %7022 = vmatmul.mubr.f32.gmra.mrb[0].mxu0 %v6837
    %v7023 = vpop.f32.mrb[0].mxu0
    %v7024 = vadd.f32 0.0, %v7023
    %v7025 = vpop.f32.mrb[0].mxu0
    %7026 = vmatprep.mubr.f32.mxu0 0.0
    %7027 = vmatmul.mubr.f32.gmra.mrb[0].mxu0 %v6838
    %v7028 = vpop.f32.mrb[0].mxu0
    %v7029 = vadd.f32 0.0, %v7028
    %v7030 = vpop.f32.mrb[0].mxu0
    %7031 = vdwg.mxu0
    %7048 = vrot.lane.b32.xlu0 %v3198, 4
    %v7049 = vpop.permute.xlu0 %7048
    %7050 = vrot.lane.b32.xlu0 %v3203, 4
    %v7051 = vpop.permute.xlu0 %7050
    %7052 = vrot.lane.b32.xlu0 %v3208, 4
    %v7053 = vpop.permute.xlu0 %7052
    %7054 = vrot.lane.b32.xlu0 %v3213, 4
    %v7055 = vpop.permute.xlu0 %7054
    %7056 = vrot.lane.b32.xlu0 %v3218, 4
    %v7057 = vpop.permute.xlu0 %7056
    %7058 = vrot.lane.b32.xlu0 %v3223, 4
    %v7059 = vpop.permute.xlu0 %7058
    %7060 = vrot.lane.b32.xlu0 %v3228, 4
    %v7061 = vpop.permute.xlu0 %7060
    %7062 = vrot.lane.b32.xlu0 %v3233, 4
    %v7063 = vpop.permute.xlu0 %7062
    %7064 = vrot.lane.b32.xlu0 %v3238, 4
    %v7065 = vpop.permute.xlu0 %7064
    %7066 = vrot.lane.b32.xlu0 %v3243, 4
    %v7067 = vpop.permute.xlu0 %7066
    %7068 = vrot.lane.b32.xlu0 %v3248, 4
    %v7069 = vpop.permute.xlu0 %7068
    %7070 = vrot.lane.b32.xlu0 %v3253, 4
    %v7071 = vpop.permute.xlu0 %7070
    %7072 = vrot.lane.b32.xlu0 %v3258, 4
    %v7073 = vpop.permute.xlu0 %7072
    %7074 = vrot.lane.b32.xlu0 %v3263, 4
    %v7075 = vpop.permute.xlu0 %7074
    %7076 = vrot.lane.b32.xlu0 %v3268, 4
    %v7077 = vpop.permute.xlu0 %7076
    %7078 = vrot.lane.b32.xlu0 %v3273, 4
    %v7079 = vpop.permute.xlu0 %7078
    %7112 = vrot.lane.b32.xlu0 %v3824, 8
    %v7113 = vpop.permute.xlu0 %7112
    %7114 = vrot.lane.b32.xlu0 %v3829, 8
    %v7115 = vpop.permute.xlu0 %7114
    %7116 = vrot.lane.b32.xlu0 %v3834, 8
    %v7117 = vpop.permute.xlu0 %7116
    %7118 = vrot.lane.b32.xlu0 %v3839, 8
    %v7119 = vpop.permute.xlu0 %7118
    %7120 = vrot.lane.b32.xlu0 %v3844, 8
    %v7121 = vpop.permute.xlu0 %7120
    %7122 = vrot.lane.b32.xlu0 %v3849, 8
    %v7123 = vpop.permute.xlu0 %7122
    %7124 = vrot.lane.b32.xlu0 %v3854, 8
    %v7125 = vpop.permute.xlu0 %7124
    %7126 = vrot.lane.b32.xlu0 %v3859, 8
    %v7127 = vpop.permute.xlu0 %7126
    %7128 = vrot.lane.b32.xlu0 %v3864, 8
    %v7129 = vpop.permute.xlu0 %7128
    %7130 = vrot.lane.b32.xlu0 %v3869, 8
    %v7131 = vpop.permute.xlu0 %7130
    %7132 = vrot.lane.b32.xlu0 %v3874, 8
    %v7133 = vpop.permute.xlu0 %7132
    %7134 = vrot.lane.b32.xlu0 %v3879, 8
    %v7135 = vpop.permute.xlu0 %7134
    %7136 = vrot.lane.b32.xlu0 %v3884, 8
    %v7137 = vpop.permute.xlu0 %7136
    %7138 = vrot.lane.b32.xlu0 %v3889, 8
    %v7139 = vpop.permute.xlu0 %7138
    %7140 = vrot.lane.b32.xlu0 %v3894, 8
    %v7141 = vpop.permute.xlu0 %7140
    %7142 = vrot.lane.b32.xlu0 %v3899, 8
    %v7143 = vpop.permute.xlu0 %7142
    %7176 = vrot.lane.b32.xlu0 %v4450, 12
    %v7177 = vpop.permute.xlu0 %7176
    %7178 = vrot.lane.b32.xlu0 %v4455, 12
    %v7179 = vpop.permute.xlu0 %7178
    %7180 = vrot.lane.b32.xlu0 %v4460, 12
    %v7181 = vpop.permute.xlu0 %7180
    %7182 = vrot.lane.b32.xlu0 %v4465, 12
    %v7183 = vpop.permute.xlu0 %7182
    %7184 = vrot.lane.b32.xlu0 %v4470, 12
    %v7185 = vpop.permute.xlu0 %7184
    %7186 = vrot.lane.b32.xlu0 %v4475, 12
    %v7187 = vpop.permute.xlu0 %7186
    %7188 = vrot.lane.b32.xlu0 %v4480, 12
    %v7189 = vpop.permute.xlu0 %7188
    %7190 = vrot.lane.b32.xlu0 %v4485, 12
    %v7191 = vpop.permute.xlu0 %7190
    %7192 = vrot.lane.b32.xlu0 %v4490, 12
    %v7193 = vpop.permute.xlu0 %7192
    %7194 = vrot.lane.b32.xlu0 %v4495, 12
    %v7195 = vpop.permute.xlu0 %7194
    %7196 = vrot.lane.b32.xlu0 %v4500, 12
    %v7197 = vpop.permute.xlu0 %7196
    %7198 = vrot.lane.b32.xlu0 %v4505, 12
    %v7199 = vpop.permute.xlu0 %7198
    %7200 = vrot.lane.b32.xlu0 %v4510, 12
    %v7201 = vpop.permute.xlu0 %7200
    %7202 = vrot.lane.b32.xlu0 %v4515, 12
    %v7203 = vpop.permute.xlu0 %7202
    %7204 = vrot.lane.b32.xlu0 %v4520, 12
    %v7205 = vpop.permute.xlu0 %7204
    %7206 = vrot.lane.b32.xlu0 %v4525, 12
    %v7207 = vpop.permute.xlu0 %7206
    %7240 = vrot.lane.b32.xlu0 %v5076, 16
    %v7241 = vpop.permute.xlu0 %7240
    %7242 = vrot.lane.b32.xlu0 %v5081, 16
    %v7243 = vpop.permute.xlu0 %7242
    %7244 = vrot.lane.b32.xlu0 %v5086, 16
    %v7245 = vpop.permute.xlu0 %7244
    %7246 = vrot.lane.b32.xlu0 %v5091, 16
    %v7247 = vpop.permute.xlu0 %7246
    %7248 = vrot.lane.b32.xlu0 %v5096, 16
    %v7249 = vpop.permute.xlu0 %7248
    %7250 = vrot.lane.b32.xlu0 %v5101, 16
    %v7251 = vpop.permute.xlu0 %7250
    %7252 = vrot.lane.b32.xlu0 %v5106, 16
    %v7253 = vpop.permute.xlu0 %7252
    %7254 = vrot.lane.b32.xlu0 %v5111, 16
    %v7255 = vpop.permute.xlu0 %7254
    %7256 = vrot.lane.b32.xlu0 %v5116, 16
    %v7257 = vpop.permute.xlu0 %7256
    %7258 = vrot.lane.b32.xlu0 %v5121, 16
    %v7259 = vpop.permute.xlu0 %7258
    %7260 = vrot.lane.b32.xlu0 %v5126, 16
    %v7261 = vpop.permute.xlu0 %7260
    %7262 = vrot.lane.b32.xlu0 %v5131, 16
    %v7263 = vpop.permute.xlu0 %7262
    %7264 = vrot.lane.b32.xlu0 %v5136, 16
    %v7265 = vpop.permute.xlu0 %7264
    %7266 = vrot.lane.b32.xlu0 %v5141, 16
    %v7267 = vpop.permute.xlu0 %7266
    %7268 = vrot.lane.b32.xlu0 %v5146, 16
    %v7269 = vpop.permute.xlu0 %7268
    %7270 = vrot.lane.b32.xlu0 %v5151, 16
    %v7271 = vpop.permute.xlu0 %7270
    %7304 = vrot.lane.b32.xlu0 %v5702, 20
    %v7305 = vpop.permute.xlu0 %7304
    %7306 = vrot.lane.b32.xlu0 %v5707, 20
    %v7307 = vpop.permute.xlu0 %7306
    %7308 = vrot.lane.b32.xlu0 %v5712, 20
    %v7309 = vpop.permute.xlu0 %7308
    %7310 = vrot.lane.b32.xlu0 %v5717, 20
    %v7311 = vpop.permute.xlu0 %7310
    %7312 = vrot.lane.b32.xlu0 %v5722, 20
    %v7313 = vpop.permute.xlu0 %7312
    %7314 = vrot.lane.b32.xlu0 %v5727, 20
    %v7315 = vpop.permute.xlu0 %7314
    %7316 = vrot.lane.b32.xlu0 %v5732, 20
    %v7317 = vpop.permute.xlu0 %7316
    %7318 = vrot.lane.b32.xlu0 %v5737, 20
    %v7319 = vpop.permute.xlu0 %7318
    %7320 = vrot.lane.b32.xlu0 %v5742, 20
    %v7321 = vpop.permute.xlu0 %7320
    %7322 = vrot.lane.b32.xlu0 %v5747, 20
    %v7323 = vpop.permute.xlu0 %7322
    %7324 = vrot.lane.b32.xlu0 %v5752, 20
    %v7325 = vpop.permute.xlu0 %7324
    %7326 = vrot.lane.b32.xlu0 %v5757, 20
    %v7327 = vpop.permute.xlu0 %7326
    %7328 = vrot.lane.b32.xlu0 %v5762, 20
    %v7329 = vpop.permute.xlu0 %7328
    %7330 = vrot.lane.b32.xlu0 %v5767, 20
    %v7331 = vpop.permute.xlu0 %7330
    %7332 = vrot.lane.b32.xlu0 %v5772, 20
    %v7333 = vpop.permute.xlu0 %7332
    %7334 = vrot.lane.b32.xlu0 %v5777, 20
    %v7335 = vpop.permute.xlu0 %7334
    %7368 = vrot.lane.b32.xlu0 %v6328, 24
    %v7369 = vpop.permute.xlu0 %7368
    %7370 = vrot.lane.b32.xlu0 %v6333, 24
    %v7371 = vpop.permute.xlu0 %7370
    %7372 = vrot.lane.b32.xlu0 %v6338, 24
    %v7373 = vpop.permute.xlu0 %7372
    %7374 = vrot.lane.b32.xlu0 %v6343, 24
    %v7375 = vpop.permute.xlu0 %7374
    %7376 = vrot.lane.b32.xlu0 %v6348, 24
    %v7377 = vpop.permute.xlu0 %7376
    %7378 = vrot.lane.b32.xlu0 %v6353, 24
    %v7379 = vpop.permute.xlu0 %7378
    %7380 = vrot.lane.b32.xlu0 %v6358, 24
    %v7381 = vpop.permute.xlu0 %7380
    %7382 = vrot.lane.b32.xlu0 %v6363, 24
    %v7383 = vpop.permute.xlu0 %7382
    %7384 = vrot.lane.b32.xlu0 %v6368, 24
    %v7385 = vpop.permute.xlu0 %7384
    %7386 = vrot.lane.b32.xlu0 %v6373, 24
    %v7387 = vpop.permute.xlu0 %7386
    %7388 = vrot.lane.b32.xlu0 %v6378, 24
    %v7389 = vpop.permute.xlu0 %7388
    %7390 = vrot.lane.b32.xlu0 %v6383, 24
    %v7391 = vpop.permute.xlu0 %7390
    %7392 = vrot.lane.b32.xlu0 %v6388, 24
    %v7393 = vpop.permute.xlu0 %7392
    %7394 = vrot.lane.b32.xlu0 %v6393, 24
    %v7395 = vpop.permute.xlu0 %7394
    %7396 = vrot.lane.b32.xlu0 %v6398, 24
    %v7397 = vpop.permute.xlu0 %7396
    %7398 = vrot.lane.b32.xlu0 %v6403, 24
    %v7399 = vpop.permute.xlu0 %7398
    %7432 = vrot.lane.b32.xlu0 %v6954, 28
    %v7433 = vpop.permute.xlu0 %7432
    %7434 = vrot.lane.b32.xlu0 %v6959, 28
    %v7435 = vpop.permute.xlu0 %7434
    %7436 = vrot.lane.b32.xlu0 %v6964, 28
    %v7437 = vpop.permute.xlu0 %7436
    %7438 = vrot.lane.b32.xlu0 %v6969, 28
    %v7439 = vpop.permute.xlu0 %7438
    %7440 = vrot.lane.b32.xlu0 %v6974, 28
    %v7441 = vpop.permute.xlu0 %7440
    %7442 = vrot.lane.b32.xlu0 %v6979, 28
    %v7443 = vpop.permute.xlu0 %7442
    %7444 = vrot.lane.b32.xlu0 %v6984, 28
    %v7445 = vpop.permute.xlu0 %7444
    %7446 = vrot.lane.b32.xlu0 %v6989, 28
    %v7447 = vpop.permute.xlu0 %7446
    %7448 = vrot.lane.b32.xlu0 %v6994, 28
    %v7449 = vpop.permute.xlu0 %7448
    %7450 = vrot.lane.b32.xlu0 %v6999, 28
    %v7451 = vpop.permute.xlu0 %7450
    %7452 = vrot.lane.b32.xlu0 %v7004, 28
    %v7453 = vpop.permute.xlu0 %7452
    %7454 = vrot.lane.b32.xlu0 %v7009, 28
    %v7455 = vpop.permute.xlu0 %7454
    %7456 = vrot.lane.b32.xlu0 %v7014, 28
    %v7457 = vpop.permute.xlu0 %7456
    %7458 = vrot.lane.b32.xlu0 %v7019, 28
    %v7459 = vpop.permute.xlu0 %7458
    %7460 = vrot.lane.b32.xlu0 %v7024, 28
    %v7461 = vpop.permute.xlu0 %7460
    %7462 = vrot.lane.b32.xlu0 %v7029, 28
    %v7463 = vpop.permute.xlu0 %7462
    %v7480 = vsel %vm2087, %v2556, %v7049
    %v7481 = vsel %vm2087, %v2561, %v7051
    %v7482 = vsel %vm2087, %v2566, %v7053
    %v7483 = vsel %vm2087, %v2571, %v7055
    %v7484 = vsel %vm2087, %v2576, %v7057
    %v7485 = vsel %vm2087, %v2581, %v7059
    %v7486 = vsel %vm2087, %v2586, %v7061
    %v7487 = vsel %vm2087, %v2591, %v7063
    %v7488 = vsel %vm2087, %v2596, %v7065
    %v7489 = vsel %vm2087, %v2601, %v7067
    %v7490 = vsel %vm2087, %v2606, %v7069
    %v7491 = vsel %vm2087, %v2611, %v7071
    %v7492 = vsel %vm2087, %v2616, %v7073
    %v7493 = vsel %vm2087, %v2621, %v7075
    %v7494 = vsel %vm2087, %v2626, %v7077
    %v7495 = vsel %vm2087, %v2631, %v7079
    %vm7496 = vcmask 64512
    %v7497 = vsel %vm7496, %v7480, %v7113
    %v7498 = vsel %vm7496, %v7481, %v7115
    %v7499 = vsel %vm7496, %v7482, %v7117
    %v7500 = vsel %vm7496, %v7483, %v7119
    %v7501 = vsel %vm7496, %v7484, %v7121
    %v7502 = vsel %vm7496, %v7485, %v7123
    %v7503 = vsel %vm7496, %v7486, %v7125
    %v7504 = vsel %vm7496, %v7487, %v7127
    %v7505 = vsel %vm7496, %v7488, %v7129
    %v7506 = vsel %vm7496, %v7489, %v7131
    %v7507 = vsel %vm7496, %v7490, %v7133
    %v7508 = vsel %vm7496, %v7491, %v7135
    %v7509 = vsel %vm7496, %v7492, %v7137
    %v7510 = vsel %vm7496, %v7493, %v7139
    %v7511 = vsel %vm7496, %v7494, %v7141
    %v7512 = vsel %vm7496, %v7495, %v7143
    %vm7513 = vcmask 97280
    %v7514 = vsel %vm7513, %v7497, %v7177
    %v7515 = vsel %vm7513, %v7498, %v7179
    %v7516 = vsel %vm7513, %v7499, %v7181
    %v7517 = vsel %vm7513, %v7500, %v7183
    %v7518 = vsel %vm7513, %v7501, %v7185
    %v7519 = vsel %vm7513, %v7502, %v7187
    %v7520 = vsel %vm7513, %v7503, %v7189
    %v7521 = vsel %vm7513, %v7504, %v7191
    %v7522 = vsel %vm7513, %v7505, %v7193
    %v7523 = vsel %vm7513, %v7506, %v7195
    %v7524 = vsel %vm7513, %v7507, %v7197
    %v7525 = vsel %vm7513, %v7508, %v7199
    %v7526 = vsel %vm7513, %v7509, %v7201
    %v7527 = vsel %vm7513, %v7510, %v7203
    %v7528 = vsel %vm7513, %v7511, %v7205
    %v7529 = vsel %vm7513, %v7512, %v7207
    %vm7530 = vcmask 130048
    %v7531 = vsel %vm7530, %v7514, %v7241
    %v7532 = vsel %vm7530, %v7515, %v7243
    %v7533 = vsel %vm7530, %v7516, %v7245
    %v7534 = vsel %vm7530, %v7517, %v7247
    %v7535 = vsel %vm7530, %v7518, %v7249
    %v7536 = vsel %vm7530, %v7519, %v7251
    %v7537 = vsel %vm7530, %v7520, %v7253
    %v7538 = vsel %vm7530, %v7521, %v7255
    %v7539 = vsel %vm7530, %v7522, %v7257
    %v7540 = vsel %vm7530, %v7523, %v7259
    %v7541 = vsel %vm7530, %v7524, %v7261
    %v7542 = vsel %vm7530, %v7525, %v7263
    %v7543 = vsel %vm7530, %v7526, %v7265
    %v7544 = vsel %vm7530, %v7527, %v7267
    %v7545 = vsel %vm7530, %v7528, %v7269
    %v7546 = vsel %vm7530, %v7529, %v7271
    %vm7547 = vcmask 162816
    %v7548 = vsel %vm7547, %v7531, %v7305
    %v7549 = vsel %vm7547, %v7532, %v7307
    %v7550 = vsel %vm7547, %v7533, %v7309
    %v7551 = vsel %vm7547, %v7534, %v7311
    %v7552 = vsel %vm7547, %v7535, %v7313
    %v7553 = vsel %vm7547, %v7536, %v7315
    %v7554 = vsel %vm7547, %v7537, %v7317
    %v7555 = vsel %vm7547, %v7538, %v7319
    %v7556 = vsel %vm7547, %v7539, %v7321
    %v7557 = vsel %vm7547, %v7540, %v7323
    %v7558 = vsel %vm7547, %v7541, %v7325
    %v7559 = vsel %vm7547, %v7542, %v7327
    %v7560 = vsel %vm7547, %v7543, %v7329
    %v7561 = vsel %vm7547, %v7544, %v7331
    %v7562 = vsel %vm7547, %v7545, %v7333
    %v7563 = vsel %vm7547, %v7546, %v7335
    %vm7564 = vcmask 195584
    %v7565 = vsel %vm7564, %v7548, %v7369
    %v7566 = vsel %vm7564, %v7549, %v7371
    %v7567 = vsel %vm7564, %v7550, %v7373
    %v7568 = vsel %vm7564, %v7551, %v7375
    %v7569 = vsel %vm7564, %v7552, %v7377
    %v7570 = vsel %vm7564, %v7553, %v7379
    %v7571 = vsel %vm7564, %v7554, %v7381
    %v7572 = vsel %vm7564, %v7555, %v7383
    %v7573 = vsel %vm7564, %v7556, %v7385
    %v7574 = vsel %vm7564, %v7557, %v7387
    %v7575 = vsel %vm7564, %v7558, %v7389
    %v7576 = vsel %vm7564, %v7559, %v7391
    %v7577 = vsel %vm7564, %v7560, %v7393
    %v7578 = vsel %vm7564, %v7561, %v7395
    %v7579 = vsel %vm7564, %v7562, %v7397
    %v7580 = vsel %vm7564, %v7563, %v7399
    %vm7581 = vcmask 228352
    %v7582 = vsel %vm7581, %v7565, %v7433
    %v7583 = vsel %vm7581, %v7566, %v7435
    %v7584 = vsel %vm7581, %v7567, %v7437
    %v7585 = vsel %vm7581, %v7568, %v7439
    %v7586 = vsel %vm7581, %v7569, %v7441
    %v7587 = vsel %vm7581, %v7570, %v7443
    %v7588 = vsel %vm7581, %v7571, %v7445
    %v7589 = vsel %vm7581, %v7572, %v7447
    %v7590 = vsel %vm7581, %v7573, %v7449
    %v7591 = vsel %vm7581, %v7574, %v7451
    %v7592 = vsel %vm7581, %v7575, %v7453
    %v7593 = vsel %vm7581, %v7576, %v7455
    %v7594 = vsel %vm7581, %v7577, %v7457
    %v7595 = vsel %vm7581, %v7578, %v7459
    %v7596 = vsel %vm7581, %v7579, %v7461
    %v7597 = vsel %vm7581, %v7580, %v7463
    %v7598 = vld [vmem:[%s31] sm:$0xff]
    %v7599 = vld [vmem:[%s31 + $0x8] sm:$0xff]
    %v7600 = vld [vmem:[%s31 + $0x10] sm:$0xff]
    %v7601 = vld [vmem:[%s31 + $0x18] sm:$0xff]
    %v7603 = vsel %vm314, %v7582, 0
    %v7606 = vsel %vm314, %v7583, 0
    %v7609 = vsel %vm314, %v7584, 0
    %v7612 = vsel %vm314, %v7585, 0
    %v7615 = vsel %vm314, %v7586, 0
    %v7618 = vsel %vm314, %v7587, 0
    %v7621 = vsel %vm314, %v7588, 0
    %v7624 = vsel %vm314, %v7589, 0
    %v7627 = vsel %vm314, %v7590, 0
    %v7630 = vsel %vm314, %v7591, 0
    %v7633 = vsel %vm314, %v7592, 0
    %v7636 = vsel %vm314, %v7593, 0
    %v7639 = vsel %vm314, %v7594, 0
    %v7642 = vsel %vm314, %v7595, 0
    %v7645 = vsel %vm314, %v7596, 0
    %v7648 = vsel %vm314, %v7597, 0
    %7650 = vmatprep.subr.mxu0 0.0
    %7651 = vmatpush1.msra.mxu0 %v7598
    %7652 = vmatprep.subr.mxu0 0.0
    %7653 = vmatpush1.msra.mxu0 %v7599
    %7654 = vmatprep.subr.mxu0 0.0
    %7655 = vmatpush1.msra.mxu0 %v7600
    %7656 = vmatprep.subr.mxu0 0.0
    %7657 = vmatpush1.msra.mxu0 %v7601
    %7658 = vmatprep.subr.mxu0 0.0
    %7659 = vmatpush1.msra.mxu0 0.0
    %7660 = vmatprep.subr.mxu0 0.0
    %7661 = vmatpush1.msra.mxu0 0.0
    %7662 = vmatprep.subr.mxu0 0.0
    %7663 = vmatpush1.msra.mxu0 0.0
    %7664 = vmatprep.subr.mxu0 0.0
    %7665 = vmatpush1.msra.mxu0 0.0
    %7666 = vmatprep.subr.mxu0 0.0
    %7667 = vmatpush1.msra.mxu0 0.0
    %7668 = vmatprep.subr.mxu0 0.0
    %7669 = vmatpush1.msra.mxu0 0.0
    %7670 = vmatprep.subr.mxu0 0.0
    %7671 = vmatpush1.msra.mxu0 0.0
    %7672 = vmatprep.subr.mxu0 0.0
    %7673 = vmatpush1.msra.mxu0 0.0
    %7674 = vmatprep.subr.mxu0 0.0
    %7675 = vmatpush1.msra.mxu0 0.0
    %7676 = vmatprep.subr.mxu0 0.0
    %7677 = vmatpush1.msra.mxu0 0.0
    %7678 = vmatprep.subr.mxu0 0.0
    %7679 = vmatpush1.msra.mxu0 0.0
    %7680 = vmatprep.subr.mxu0 0.0
    %7681 = vmatpush1.msra.mxu0 0.0
    %7682 = vmatprep.subr.mxu0 0.0
    %7683 = vmatpush1.msra.mxu0 0.0
    %7684 = vmatprep.subr.mxu0 0.0
    %7685 = vmatpush1.msra.mxu0 0.0
    %7686 = vmatprep.subr.mxu0 0.0
    %7687 = vmatpush1.msra.mxu0 0.0
    %7688 = vmatprep.subr.mxu0 0.0
    %7689 = vmatpush1.msra.mxu0 0.0
    %7690 = vmatprep.subr.mxu0 0.0
    %7691 = vmatpush1.msra.mxu0 0.0
    %7692 = vmatprep.subr.mxu0 0.0
    %7693 = vmatpush1.msra.mxu0 0.0
    %7694 = vmatprep.subr.mxu0 0.0
    %7695 = vmatpush1.msra.mxu0 0.0
    %7696 = vmatprep.subr.mxu0 0.0
    %7697 = vmatpush1.msra.mxu0 0.0
    %7698 = vmatprep.subr.mxu0 0.0
    %7699 = vmatpush1.msra.mxu0 0.0
    %7700 = vmatprep.subr.mxu0 0.0
    %7701 = vmatpush1.msra.mxu0 0.0
    %7702 = vmatprep.subr.mxu0 0.0
    %7703 = vmatpush1.msra.mxu0 0.0
    %7704 = vmatprep.subr.mxu0 0.0
    %7705 = vmatpush1.msra.mxu0 0.0
    %7706 = vmatprep.subr.mxu0 0.0
    %7707 = vmatpush1.msra.mxu0 0.0
    %7708 = vmatprep.subr.mxu0 0.0
    %7709 = vmatpush1.msra.mxu0 0.0
    %7710 = vmatprep.subr.mxu0 0.0
    %7711 = vmatpush1.msra.mxu0 0.0
    %7712 = vmatprep.subr.mxu0 0.0
    %7713 = vmatpush1.msra.mxu0 0.0
    %7714 = vmatprep.mubr.f32.mxu0 0.0
    %7715 = vmatmul.mubr.f32.gmra.mrb[0].mxu0 %v7603
    %v7716 = vpop.f32.mrb[0].mxu0
    %v7717 = vadd.f32 0.0, %v7716
    %v7718 = vpop.f32.mrb[0].mxu0
    %7719 = vmatprep.mubr.f32.mxu0 0.0
    %7720 = vmatmul.mubr.f32.gmra.mrb[0].mxu0 %v7606
    %v7721 = vpop.f32.mrb[0].mxu0
    %v7722 = vadd.f32 0.0, %v7721
    %v7723 = vpop.f32.mrb[0].mxu0
    %7724 = vmatprep.mubr.f32.mxu0 0.0
    %7725 = vmatmul.mubr.f32.gmra.mrb[0].mxu0 %v7609
    %v7726 = vpop.f32.mrb[0].mxu0
    %v7727 = vadd.f32 0.0, %v7726
    %v7728 = vpop.f32.mrb[0].mxu0
    %7729 = vmatprep.mubr.f32.mxu0 0.0
    %7730 = vmatmul.mubr.f32.gmra.mrb[0].mxu0 %v7612
    %v7731 = vpop.f32.mrb[0].mxu0
    %v7732 = vadd.f32 0.0, %v7731
    %v7733 = vpop.f32.mrb[0].mxu0
    %7734 = vmatprep.mubr.f32.mxu0 0.0
    %7735 = vmatmul.mubr.f32.gmra.mrb[0].mxu0 %v7615
    %v7736 = vpop.f32.mrb[0].mxu0
    %v7737 = vadd.f32 0.0, %v7736
    %v7738 = vpop.f32.mrb[0].mxu0
    %7739 = vmatprep.mubr.f32.mxu0 0.0
    %7740 = vmatmul.mubr.f32.gmra.mrb[0].mxu0 %v7618
    %v7741 = vpop.f32.mrb[0].mxu0
    %v7742 = vadd.f32 0.0, %v7741
    %v7743 = vpop.f32.mrb[0].mxu0
    %7744 = vmatprep.mubr.f32.mxu0 0.0
    %7745 = vmatmul.mubr.f32.gmra.mrb[0].mxu0 %v7621
    %v7746 = vpop.f32.mrb[0].mxu0
    %v7747 = vadd.f32 0.0, %v7746
    %v7748 = vpop.f32.mrb[0].mxu0
    %7749 = vmatprep.mubr.f32.mxu0 0.0
    %7750 = vmatmul.mubr.f32.gmra.mrb[0].mxu0 %v7624
    %v7751 = vpop.f32.mrb[0].mxu0
    %v7752 = vadd.f32 0.0, %v7751
    %v7753 = vpop.f32.mrb[0].mxu0
    %7754 = vmatprep.mubr.f32.mxu0 0.0
    %7755 = vmatmul.mubr.f32.gmra.mrb[0].mxu0 %v7627
    %v7756 = vpop.f32.mrb[0].mxu0
    %v7757 = vadd.f32 0.0, %v7756
    %v7758 = vpop.f32.mrb[0].mxu0
    %7759 = vmatprep.mubr.f32.mxu0 0.0
    %7760 = vmatmul.mubr.f32.gmra.mrb[0].mxu0 %v7630
    %v7761 = vpop.f32.mrb[0].mxu0
    %v7762 = vadd.f32 0.0, %v7761
    %v7763 = vpop.f32.mrb[0].mxu0
    %7764 = vmatprep.mubr.f32.mxu0 0.0
    %7765 = vmatmul.mubr.f32.gmra.mrb[0].mxu0 %v7633
    %v7766 = vpop.f32.mrb[0].mxu0
    %v7767 = vadd.f32 0.0, %v7766
    %v7768 = vpop.f32.mrb[0].mxu0
    %7769 = vmatprep.mubr.f32.mxu0 0.0
    %7770 = vmatmul.mubr.f32.gmra.mrb[0].mxu0 %v7636
    %v7771 = vpop.f32.mrb[0].mxu0
    %v7772 = vadd.f32 0.0, %v7771
    %v7773 = vpop.f32.mrb[0].mxu0
    %7774 = vmatprep.mubr.f32.mxu0 0.0
    %7775 = vmatmul.mubr.f32.gmra.mrb[0].mxu0 %v7639
    %v7776 = vpop.f32.mrb[0].mxu0
    %v7777 = vadd.f32 0.0, %v7776
    %v7778 = vpop.f32.mrb[0].mxu0
    %7779 = vmatprep.mubr.f32.mxu0 0.0
    %7780 = vmatmul.mubr.f32.gmra.mrb[0].mxu0 %v7642
    %v7781 = vpop.f32.mrb[0].mxu0
    %v7782 = vadd.f32 0.0, %v7781
    %v7783 = vpop.f32.mrb[0].mxu0
    %7784 = vmatprep.mubr.f32.mxu0 0.0
    %7785 = vmatmul.mubr.f32.gmra.mrb[0].mxu0 %v7645
    %v7786 = vpop.f32.mrb[0].mxu0
    %v7787 = vadd.f32 0.0, %v7786
    %v7788 = vpop.f32.mrb[0].mxu0
    %7789 = vmatprep.mubr.f32.mxu0 0.0
    %7790 = vmatmul.mubr.f32.gmra.mrb[0].mxu0 %v7648
    %v7791 = vpop.f32.mrb[0].mxu0
    %v7792 = vadd.f32 0.0, %v7791
    %v7793 = vpop.f32.mrb[0].mxu0
    %7794 = vdwg.mxu0
    %v7795 = vadd.f32 %v1046, %v7717
    %v7796 = vadd.f32 %v1047, %v7722
    %v7797 = vadd.f32 %v1048, %v7727
    %v7798 = vadd.f32 %v1049, %v7732
    %v7799 = vadd.f32 %v1050, %v7737
    %v7800 = vadd.f32 %v1051, %v7742
    %v7801 = vadd.f32 %v1052, %v7747
    %v7802 = vadd.f32 %v1053, %v7752
    %v7803 = vadd.f32 %v1054, %v7757
    %v7804 = vadd.f32 %v1055, %v7762
    %v7805 = vadd.f32 %v1056, %v7767
    %v7806 = vadd.f32 %v1057, %v7772
    %v7807 = vadd.f32 %v1058, %v7777
    %v7808 = vadd.f32 %v1059, %v7782
    %v7809 = vadd.f32 %v1060, %v7787
    %v7810 = vadd.f32 %v1061, %v7792
    %v7811 = vld [vmem:[#allocation17] sm:$0x1]
    %v7813 = vlaneseq
    %v7814 = vshrl.u32 %v7813, 7
    %v7815 = vsub.s32 0, %v7814
    %v7816 = vrot.slane %v7811, %v7815
    %v7818 = vadd.f32 %v7795, %v7816
    %v7819 = vadd.f32 %v7796, %v7816
    %v7820 = vadd.f32 %v7797, %v7816
    %v7821 = vadd.f32 %v7798, %v7816
    %v7822 = vadd.f32 %v7799, %v7816
    %v7823 = vadd.f32 %v7800, %v7816
    %v7824 = vadd.f32 %v7801, %v7816
    %v7825 = vadd.f32 %v7802, %v7816
    %v7826 = vadd.f32 %v7803, %v7816
    %v7827 = vadd.f32 %v7804, %v7816
    %v7828 = vadd.f32 %v7805, %v7816
    %v7829 = vadd.f32 %v7806, %v7816
    %v7830 = vadd.f32 %v7807, %v7816
    %v7831 = vadd.f32 %v7808, %v7816
    %v7832 = vadd.f32 %v7809, %v7816
    %v7833 = vadd.f32 %v7810, %v7816
    %v7834 = vld [vmem:[#allocation19] sm:$0x1]
    %v7835 = vld [vmem:[%s37] sm:$0x1]
    %v7836 = vsel %vm314, %v7818, 0.0
    %7837 = vadd.xlane.f32.xlu0 %v7836
    %v7838 = vpop.xlane.xlu0 %7837
    %v7839 = vsel %vm314, %v7819, 0.0
    %7840 = vadd.xlane.f32.xlu0 %v7839
    %v7841 = vpop.xlane.xlu0 %7840
    %v7842 = vsel %vm314, %v7820, 0.0
    %7843 = vadd.xlane.f32.xlu0 %v7842
    %v7844 = vpop.xlane.xlu0 %7843
    %v7845 = vsel %vm314, %v7821, 0.0
    %7846 = vadd.xlane.f32.xlu0 %v7845
    %v7847 = vpop.xlane.xlu0 %7846
    %v7848 = vsel %vm314, %v7822, 0.0
    %7849 = vadd.xlane.f32.xlu0 %v7848
    %v7850 = vpop.xlane.xlu0 %7849
    %v7851 = vsel %vm314, %v7823, 0.0
    %7852 = vadd.xlane.f32.xlu0 %v7851
    %v7853 = vpop.xlane.xlu0 %7852
    %v7854 = vsel %vm314, %v7824, 0.0
    %7855 = vadd.xlane.f32.xlu0 %v7854
    %v7856 = vpop.xlane.xlu0 %7855
    %v7857 = vsel %vm314, %v7825, 0.0
    %7858 = vadd.xlane.f32.xlu0 %v7857
    %v7859 = vpop.xlane.xlu0 %7858
    %v7860 = vsel %vm314, %v7826, 0.0
    %7861 = vadd.xlane.f32.xlu0 %v7860
    %v7862 = vpop.xlane.xlu0 %7861
    %v7863 = vsel %vm314, %v7827, 0.0
    %7864 = vadd.xlane.f32.xlu0 %v7863
    %v7865 = vpop.xlane.xlu0 %7864
    %v7866 = vsel %vm314, %v7828, 0.0
    %7867 = vadd.xlane.f32.xlu0 %v7866
    %v7868 = vpop.xlane.xlu0 %7867
    %v7869 = vsel %vm314, %v7829, 0.0
    %7870 = vadd.xlane.f32.xlu0 %v7869
    %v7871 = vpop.xlane.xlu0 %7870
    %v7872 = vsel %vm314, %v7830, 0.0
    %7873 = vadd.xlane.f32.xlu0 %v7872
    %v7874 = vpop.xlane.xlu0 %7873
    %v7875 = vsel %vm314, %v7831, 0.0
    %7876 = vadd.xlane.f32.xlu0 %v7875
    %v7877 = vpop.xlane.xlu0 %7876
    %v7878 = vsel %vm314, %v7832, 0.0
    %7879 = vadd.xlane.f32.xlu0 %v7878
    %v7880 = vpop.xlane.xlu0 %7879
    %v7881 = vsel %vm314, %v7833, 0.0
    %7882 = vadd.xlane.f32.xlu0 %v7881
    %v7883 = vpop.xlane.xlu0 %7882
    %v7884 = vmul.f32 %v7838, %v363
    %v7885 = vmul.f32 %v7841, %v363
    %v7886 = vmul.f32 %v7844, %v363
    %v7887 = vmul.f32 %v7847, %v363
    %v7888 = vmul.f32 %v7850, %v363
    %v7889 = vmul.f32 %v7853, %v363
    %v7890 = vmul.f32 %v7856, %v363
    %v7891 = vmul.f32 %v7859, %v363
    %v7892 = vmul.f32 %v7862, %v363
    %v7893 = vmul.f32 %v7865, %v363
    %v7894 = vmul.f32 %v7868, %v363
    %v7895 = vmul.f32 %v7871, %v363
    %v7896 = vmul.f32 %v7874, %v363
    %v7897 = vmul.f32 %v7877, %v363
    %v7898 = vmul.f32 %v7880, %v363
    %v7899 = vmul.f32 %v7883, %v363
    %v7900 = vsub.f32 %v7818, %v7884
    %v7901 = vsub.f32 %v7819, %v7885
    %v7902 = vsub.f32 %v7820, %v7886
    %v7903 = vsub.f32 %v7821, %v7887
    %v7904 = vsub.f32 %v7822, %v7888
    %v7905 = vsub.f32 %v7823, %v7889
    %v7906 = vsub.f32 %v7824, %v7890
    %v7907 = vsub.f32 %v7825, %v7891
    %v7908 = vsub.f32 %v7826, %v7892
    %v7909 = vsub.f32 %v7827, %v7893
    %v7910 = vsub.f32 %v7828, %v7894
    %v7911 = vsub.f32 %v7829, %v7895
    %v7912 = vsub.f32 %v7830, %v7896
    %v7913 = vsub.f32 %v7831, %v7897
    %v7914 = vsub.f32 %v7832, %v7898
    %v7915 = vsub.f32 %v7833, %v7899
    %v7916 = vmul.f32 %v7900, %v7900
    %v7917 = vmul.f32 %v7901, %v7901
    %v7918 = vmul.f32 %v7902, %v7902
    %v7919 = vmul.f32 %v7903, %v7903
    %v7920 = vmul.f32 %v7904, %v7904
    %v7921 = vmul.f32 %v7905, %v7905
    %v7922 = vmul.f32 %v7906, %v7906
    %v7923 = vmul.f32 %v7907, %v7907
    %v7924 = vmul.f32 %v7908, %v7908
    %v7925 = vmul.f32 %v7909, %v7909
    %v7926 = vmul.f32 %v7910, %v7910
    %v7927 = vmul.f32 %v7911, %v7911
    %v7928 = vmul.f32 %v7912, %v7912
    %v7929 = vmul.f32 %v7913, %v7913
    %v7930 = vmul.f32 %v7914, %v7914
    %v7931 = vmul.f32 %v7915, %v7915
    %v7932 = vsel %vm314, %v7916, 0.0
    %7933 = vadd.xlane.f32.xlu0 %v7932
    %v7934 = vpop.xlane.xlu0 %7933
    %v7935 = vsel %vm314, %v7917, 0.0
    %7936 = vadd.xlane.f32.xlu0 %v7935
    %v7937 = vpop.xlane.xlu0 %7936
    %v7938 = vsel %vm314, %v7918, 0.0
    %7939 = vadd.xlane.f32.xlu0 %v7938
    %v7940 = vpop.xlane.xlu0 %7939
    %v7941 = vsel %vm314, %v7919, 0.0
    %7942 = vadd.xlane.f32.xlu0 %v7941
    %v7943 = vpop.xlane.xlu0 %7942
    %v7944 = vsel %vm314, %v7920, 0.0
    %7945 = vadd.xlane.f32.xlu0 %v7944
    %v7946 = vpop.xlane.xlu0 %7945
    %v7947 = vsel %vm314, %v7921, 0.0
    %7948 = vadd.xlane.f32.xlu0 %v7947
    %v7949 = vpop.xlane.xlu0 %7948
    %v7950 = vsel %vm314, %v7922, 0.0
    %7951 = vadd.xlane.f32.xlu0 %v7950
    %v7952 = vpop.xlane.xlu0 %7951
    %v7953 = vsel %vm314, %v7923, 0.0
    %7954 = vadd.xlane.f32.xlu0 %v7953
    %v7955 = vpop.xlane.xlu0 %7954
    %v7956 = vsel %vm314, %v7924, 0.0
    %7957 = vadd.xlane.f32.xlu0 %v7956
    %v7958 = vpop.xlane.xlu0 %7957
    %v7959 = vsel %vm314, %v7925, 0.0
    %7960 = vadd.xlane.f32.xlu0 %v7959
    %v7961 = vpop.xlane.xlu0 %7960
    %v7962 = vsel %vm314, %v7926, 0.0
    %7963 = vadd.xlane.f32.xlu0 %v7962
    %v7964 = vpop.xlane.xlu0 %7963
    %v7965 = vsel %vm314, %v7927, 0.0
    %7966 = vadd.xlane.f32.xlu0 %v7965
    %v7967 = vpop.xlane.xlu0 %7966
    %v7968 = vsel %vm314, %v7928, 0.0
    %7969 = vadd.xlane.f32.xlu0 %v7968
    %v7970 = vpop.xlane.xlu0 %7969
    %v7971 = vsel %vm314, %v7929, 0.0
    %7972 = vadd.xlane.f32.xlu0 %v7971
    %v7973 = vpop.xlane.xlu0 %7972
    %v7974 = vsel %vm314, %v7930, 0.0
    %7975 = vadd.xlane.f32.xlu0 %v7974
    %v7976 = vpop.xlane.xlu0 %7975
    %v7977 = vsel %vm314, %v7931, 0.0
    %7978 = vadd.xlane.f32.xlu0 %v7977
    %v7979 = vpop.xlane.xlu0 %7978
    %v7980 = vmul.f32 %v7934, %v363
    %v7981 = vmul.f32 %v7937, %v363
    %v7982 = vmul.f32 %v7940, %v363
    %v7983 = vmul.f32 %v7943, %v363
    %v7984 = vmul.f32 %v7946, %v363
    %v7985 = vmul.f32 %v7949, %v363
    %v7986 = vmul.f32 %v7952, %v363
    %v7987 = vmul.f32 %v7955, %v363
    %v7988 = vmul.f32 %v7958, %v363
    %v7989 = vmul.f32 %v7961, %v363
    %v7990 = vmul.f32 %v7964, %v363
    %v7991 = vmul.f32 %v7967, %v363
    %v7992 = vmul.f32 %v7970, %v363
    %v7993 = vmul.f32 %v7973, %v363
    %v7994 = vmul.f32 %v7976, %v363
    %v7995 = vmul.f32 %v7979, %v363
    %v7996 = vadd.f32 %v7980, 1e-05
    %v7997 = vadd.f32 %v7981, 1e-05
    %v7998 = vadd.f32 %v7982, 1e-05
    %v7999 = vadd.f32 %v7983, 1e-05
    %v8000 = vadd.f32 %v7984, 1e-05
    %v8001 = vadd.f32 %v7985, 1e-05
    %v8002 = vadd.f32 %v7986, 1e-05
    %v8003 = vadd.f32 %v7987, 1e-05
    %v8004 = vadd.f32 %v7988, 1e-05
    %v8005 = vadd.f32 %v7989, 1e-05
    %v8006 = vadd.f32 %v7990, 1e-05
    %v8007 = vadd.f32 %v7991, 1e-05
    %v8008 = vadd.f32 %v7992, 1e-05
    %v8009 = vadd.f32 %v7993, 1e-05
    %v8010 = vadd.f32 %v7994, 1e-05
    %v8011 = vadd.f32 %v7995, 1e-05
    %v8012 = vrsqrt.pop %v7996
    %v8013 = vrsqrt.pop %v7997
    %v8014 = vrsqrt.pop %v7998
    %v8015 = vrsqrt.pop %v7999
    %v8016 = vrsqrt.pop %v8000
    %v8017 = vrsqrt.pop %v8001
    %v8018 = vrsqrt.pop %v8002
    %v8019 = vrsqrt.pop %v8003
    %v8020 = vrsqrt.pop %v8004
    %v8021 = vrsqrt.pop %v8005
    %v8022 = vrsqrt.pop %v8006
    %v8023 = vrsqrt.pop %v8007
    %v8024 = vrsqrt.pop %v8008
    %v8025 = vrsqrt.pop %v8009
    %v8026 = vrsqrt.pop %v8010
    %v8027 = vrsqrt.pop %v8011
    %v8028 = vmul.f32 %v7900, %v8012
    %v8029 = vmul.f32 %v7901, %v8013
    %v8030 = vmul.f32 %v7902, %v8014
    %v8031 = vmul.f32 %v7903, %v8015
    %v8032 = vmul.f32 %v7904, %v8016
    %v8033 = vmul.f32 %v7905, %v8017
    %v8034 = vmul.f32 %v7906, %v8018
    %v8035 = vmul.f32 %v7907, %v8019
    %v8036 = vmul.f32 %v7908, %v8020
    %v8037 = vmul.f32 %v7909, %v8021
    %v8038 = vmul.f32 %v7910, %v8022
    %v8039 = vmul.f32 %v7911, %v8023
    %v8040 = vmul.f32 %v7912, %v8024
    %v8041 = vmul.f32 %v7913, %v8025
    %v8042 = vmul.f32 %v7914, %v8026
    %v8043 = vmul.f32 %v7915, %v8027
    %v8045 = vlaneseq
    %v8046 = vshrl.u32 %v8045, 7
    %v8047 = vsub.s32 0, %v8046
    %v8048 = vrot.slane %v7834, %v8047
    %v8050 = vmul.f32 %v8028, %v8048
    %v8051 = vmul.f32 %v8029, %v8048
    %v8052 = vmul.f32 %v8030, %v8048
    %v8053 = vmul.f32 %v8031, %v8048
    %v8054 = vmul.f32 %v8032, %v8048
    %v8055 = vmul.f32 %v8033, %v8048
    %v8056 = vmul.f32 %v8034, %v8048
    %v8057 = vmul.f32 %v8035, %v8048
    %v8058 = vmul.f32 %v8036, %v8048
    %v8059 = vmul.f32 %v8037, %v8048
    %v8060 = vmul.f32 %v8038, %v8048
    %v8061 = vmul.f32 %v8039, %v8048
    %v8062 = vmul.f32 %v8040, %v8048
    %v8063 = vmul.f32 %v8041, %v8048
    %v8064 = vmul.f32 %v8042, %v8048
    %v8065 = vmul.f32 %v8043, %v8048
    %v8067 = vlaneseq
    %v8068 = vshrl.u32 %v8067, 7
    %v8069 = vsub.s32 0, %v8068
    %v8070 = vrot.slane %v7835, %v8069
    %v8072 = vadd.f32 %v8050, %v8070
    %v8073 = vadd.f32 %v8051, %v8070
    %v8074 = vadd.f32 %v8052, %v8070
    %v8075 = vadd.f32 %v8053, %v8070
    %v8076 = vadd.f32 %v8054, %v8070
    %v8077 = vadd.f32 %v8055, %v8070
    %v8078 = vadd.f32 %v8056, %v8070
    %v8079 = vadd.f32 %v8057, %v8070
    %v8080 = vadd.f32 %v8058, %v8070
    %v8081 = vadd.f32 %v8059, %v8070
    %v8082 = vadd.f32 %v8060, %v8070
    %v8083 = vadd.f32 %v8061, %v8070
    %v8084 = vadd.f32 %v8062, %v8070
    %v8085 = vadd.f32 %v8063, %v8070
    %v8086 = vadd.f32 %v8064, %v8070
    %v8087 = vadd.f32 %v8065, %v8070
    %v8088 = vld [vmem:[%s39] sm:$0xff]
    %v8089 = vld [vmem:[%s39 + $0x8] sm:$0xff]
    %v8090 = vld [vmem:[%s39 + $0x10] sm:$0xff]
    %v8091 = vld [vmem:[%s39 + $0x18] sm:$0xff]
    %v8092 = vld [vmem:[%s41] sm:$0x1]
    %v8094 = vlaneseq
    %v8095 = vshrl.u32 %v8094, 7
    %v8096 = vsub.s32 0, %v8095
    %v8097 = vrot.slane %v8092, %v8096
    %v8100 = vsel %vm314, %v8072, 0
    %v8103 = vsel %vm314, %v8073, 0
    %v8106 = vsel %vm314, %v8074, 0
    %v8109 = vsel %vm314, %v8075, 0
    %v8112 = vsel %vm314, %v8076, 0
    %v8115 = vsel %vm314, %v8077, 0
    %v8118 = vsel %vm314, %v8078, 0
    %v8121 = vsel %vm314, %v8079, 0
    %v8124 = vsel %vm314, %v8080, 0
    %v8127 = vsel %vm314, %v8081, 0
    %v8130 = vsel %vm314, %v8082, 0
    %v8133 = vsel %vm314, %v8083, 0
    %v8136 = vsel %vm314, %v8084, 0
    %v8139 = vsel %vm314, %v8085, 0
    %v8142 = vsel %vm314, %v8086, 0
    %v8145 = vsel %vm314, %v8087, 0
    %8147 = vmatprep.subr.mxu0 0.0
    %8148 = vmatpush1.msra.mxu0 %v8088
    %8149 = vmatprep.subr.mxu0 0.0
    %8150 = vmatpush1.msra.mxu0 %v8089
    %8151 = vmatprep.subr.mxu0 0.0
    %8152 = vmatpush1.msra.mxu0 %v8090
    %8153 = vmatprep.subr.mxu0 0.0
    %8154 = vmatpush1.msra.mxu0 %v8091
    %8155 = vmatprep.subr.mxu0 0.0
    %8156 = vmatpush1.msra.mxu0 0.0
    %8157 = vmatprep.subr.mxu0 0.0
    %8158 = vmatpush1.msra.mxu0 0.0
    %8159 = vmatprep.subr.mxu0 0.0
    %8160 = vmatpush1.msra.mxu0 0.0
    %8161 = vmatprep.subr.mxu0 0.0
    %8162 = vmatpush1.msra.mxu0 0.0
    %8163 = vmatprep.subr.mxu0 0.0
    %8164 = vmatpush1.msra.mxu0 0.0
    %8165 = vmatprep.subr.mxu0 0.0
    %8166 = vmatpush1.msra.mxu0 0.0
    %8167 = vmatprep.subr.mxu0 0.0
    %8168 = vmatpush1.msra.mxu0 0.0
    %8169 = vmatprep.subr.mxu0 0.0
    %8170 = vmatpush1.msra.mxu0 0.0
    %8171 = vmatprep.subr.mxu0 0.0
    %8172 = vmatpush1.msra.mxu0 0.0
    %8173 = vmatprep.subr.mxu0 0.0
    %8174 = vmatpush1.msra.mxu0 0.0
    %8175 = vmatprep.subr.mxu0 0.0
    %8176 = vmatpush1.msra.mxu0 0.0
    %8177 = vmatprep.subr.mxu0 0.0
    %8178 = vmatpush1.msra.mxu0 0.0
    %8179 = vmatprep.subr.mxu0 0.0
    %8180 = vmatpush1.msra.mxu0 0.0
    %8181 = vmatprep.subr.mxu0 0.0
    %8182 = vmatpush1.msra.mxu0 0.0
    %8183 = vmatprep.subr.mxu0 0.0
    %8184 = vmatpush1.msra.mxu0 0.0
    %8185 = vmatprep.subr.mxu0 0.0
    %8186 = vmatpush1.msra.mxu0 0.0
    %8187 = vmatprep.subr.mxu0 0.0
    %8188 = vmatpush1.msra.mxu0 0.0
    %8189 = vmatprep.subr.mxu0 0.0
    %8190 = vmatpush1.msra.mxu0 0.0
    %8191 = vmatprep.subr.mxu0 0.0
    %8192 = vmatpush1.msra.mxu0 0.0
    %8193 = vmatprep.subr.mxu0 0.0
    %8194 = vmatpush1.msra.mxu0 0.0
    %8195 = vmatprep.subr.mxu0 0.0
    %8196 = vmatpush1.msra.mxu0 0.0
    %8197 = vmatprep.subr.mxu0 0.0
    %8198 = vmatpush1.msra.mxu0 0.0
    %8199 = vmatprep.subr.mxu0 0.0
    %8200 = vmatpush1.msra.mxu0 0.0
    %8201 = vmatprep.subr.mxu0 0.0
    %8202 = vmatpush1.msra.mxu0 0.0
    %8203 = vmatprep.subr.mxu0 0.0
    %8204 = vmatpush1.msra.mxu0 0.0
    %8205 = vmatprep.subr.mxu0 0.0
    %8206 = vmatpush1.msra.mxu0 0.0
    %8207 = vmatprep.subr.mxu0 0.0
    %8208 = vmatpush1.msra.mxu0 0.0
    %8209 = vmatprep.subr.mxu0 0.0
    %8210 = vmatpush1.msra.mxu0 0.0
    %8211 = vmatprep.mubr.f32.mxu0 0.0
    %8212 = vmatmul.mubr.f32.gmra.mrb[0].mxu0 %v8100
    %v8213 = vpop.f32.mrb[0].mxu0
    %v8214 = vadd.f32 %v8097, %v8213
    %v8215 = vpop.f32.mrb[0].mxu0
    %8216 = vmatprep.mubr.f32.mxu0 0.0
    %8217 = vmatmul.mubr.f32.gmra.mrb[0].mxu0 %v8103
    %v8218 = vpop.f32.mrb[0].mxu0
    %v8219 = vadd.f32 %v8097, %v8218
    %v8220 = vpop.f32.mrb[0].mxu0
    %8221 = vmatprep.mubr.f32.mxu0 0.0
    %8222 = vmatmul.mubr.f32.gmra.mrb[0].mxu0 %v8106
    %v8223 = vpop.f32.mrb[0].mxu0
    %v8224 = vadd.f32 %v8097, %v8223
    %v8225 = vpop.f32.mrb[0].mxu0
    %8226 = vmatprep.mubr.f32.mxu0 0.0
    %8227 = vmatmul.mubr.f32.gmra.mrb[0].mxu0 %v8109
    %v8228 = vpop.f32.mrb[0].mxu0
    %v8229 = vadd.f32 %v8097, %v8228
    %v8230 = vpop.f32.mrb[0].mxu0
    %8231 = vmatprep.mubr.f32.mxu0 0.0
    %8232 = vmatmul.mubr.f32.gmra.mrb[0].mxu0 %v8112
    %v8233 = vpop.f32.mrb[0].mxu0
    %v8234 = vadd.f32 %v8097, %v8233
    %v8235 = vpop.f32.mrb[0].mxu0
    %8236 = vmatprep.mubr.f32.mxu0 0.0
    %8237 = vmatmul.mubr.f32.gmra.mrb[0].mxu0 %v8115
    %v8238 = vpop.f32.mrb[0].mxu0
    %v8239 = vadd.f32 %v8097, %v8238
    %v8240 = vpop.f32.mrb[0].mxu0
    %8241 = vmatprep.mubr.f32.mxu0 0.0
    %8242 = vmatmul.mubr.f32.gmra.mrb[0].mxu0 %v8118
    %v8243 = vpop.f32.mrb[0].mxu0
    %v8244 = vadd.f32 %v8097, %v8243
    %v8245 = vpop.f32.mrb[0].mxu0
    %8246 = vmatprep.mubr.f32.mxu0 0.0
    %8247 = vmatmul.mubr.f32.gmra.mrb[0].mxu0 %v8121
    %v8248 = vpop.f32.mrb[0].mxu0
    %v8249 = vadd.f32 %v8097, %v8248
    %v8250 = vpop.f32.mrb[0].mxu0
    %8251 = vmatprep.mubr.f32.mxu0 0.0
    %8252 = vmatmul.mubr.f32.gmra.mrb[0].mxu0 %v8124
    %v8253 = vpop.f32.mrb[0].mxu0
    %v8254 = vadd.f32 %v8097, %v8253
    %v8255 = vpop.f32.mrb[0].mxu0
    %8256 = vmatprep.mubr.f32.mxu0 0.0
    %8257 = vmatmul.mubr.f32.gmra.mrb[0].mxu0 %v8127
    %v8258 = vpop.f32.mrb[0].mxu0
    %v8259 = vadd.f32 %v8097, %v8258
    %v8260 = vpop.f32.mrb[0].mxu0
    %8261 = vmatprep.mubr.f32.mxu0 0.0
    %8262 = vmatmul.mubr.f32.gmra.mrb[0].mxu0 %v8130
    %v8263 = vpop.f32.mrb[0].mxu0
    %v8264 = vadd.f32 %v8097, %v8263
    %v8265 = vpop.f32.mrb[0].mxu0
    %8266 = vmatprep.mubr.f32.mxu0 0.0
    %8267 = vmatmul.mubr.f32.gmra.mrb[0].mxu0 %v8133
    %v8268 = vpop.f32.mrb[0].mxu0
    %v8269 = vadd.f32 %v8097, %v8268
    %v8270 = vpop.f32.mrb[0].mxu0
    %8271 = vmatprep.mubr.f32.mxu0 0.0
    %8272 = vmatmul.mubr.f32.gmra.mrb[0].mxu0 %v8136
    %v8273 = vpop.f32.mrb[0].mxu0
    %v8274 = vadd.f32 %v8097, %v8273
    %v8275 = vpop.f32.mrb[0].mxu0
    %8276 = vmatprep.mubr.f32.mxu0 0.0
    %8277 = vmatmul.mubr.f32.gmra.mrb[0].mxu0 %v8139
    %v8278 = vpop.f32.mrb[0].mxu0
    %v8279 = vadd.f32 %v8097, %v8278
    %v8280 = vpop.f32.mrb[0].mxu0
    %8281 = vmatprep.mubr.f32.mxu0 0.0
    %8282 = vmatmul.mubr.f32.gmra.mrb[0].mxu0 %v8142
    %v8283 = vpop.f32.mrb[0].mxu0
    %v8284 = vadd.f32 %v8097, %v8283
    %v8285 = vpop.f32.mrb[0].mxu0
    %8286 = vmatprep.mubr.f32.mxu0 0.0
    %8287 = vmatmul.mubr.f32.gmra.mrb[0].mxu0 %v8145
    %v8288 = vpop.f32.mrb[0].mxu0
    %v8289 = vadd.f32 %v8097, %v8288
    %v8290 = vpop.f32.mrb[0].mxu0
    %8291 = vdwg.mxu0
    %v8292 = vxor.u32 %v8214, 2147483648
    %v8293 = vxor.u32 %v8219, 2147483648
    %v8294 = vxor.u32 %v8224, 2147483648
    %v8295 = vxor.u32 %v8229, 2147483648
    %v8296 = vxor.u32 %v8234, 2147483648
    %v8297 = vxor.u32 %v8239, 2147483648
    %v8298 = vxor.u32 %v8244, 2147483648
    %v8299 = vxor.u32 %v8249, 2147483648
    %v8300 = vxor.u32 %v8254, 2147483648
    %v8301 = vxor.u32 %v8259, 2147483648
    %v8302 = vxor.u32 %v8264, 2147483648
    %v8303 = vxor.u32 %v8269, 2147483648
    %v8304 = vxor.u32 %v8274, 2147483648
    %v8305 = vxor.u32 %v8279, 2147483648
    %v8306 = vxor.u32 %v8284, 2147483648
    %v8307 = vxor.u32 %v8289, 2147483648
    %v8308 = vmul.f32 %v8292, 1.442695
    %v8309 = vpow.pop %v8308
    %v8310 = vmul.f32 %v8293, 1.442695
    %v8311 = vpow.pop %v8310
    %v8312 = vmul.f32 %v8294, 1.442695
    %v8313 = vpow.pop %v8312
    %v8314 = vmul.f32 %v8295, 1.442695
    %v8315 = vpow.pop %v8314
    %v8316 = vmul.f32 %v8296, 1.442695
    %v8317 = vpow.pop %v8316
    %v8318 = vmul.f32 %v8297, 1.442695
    %v8319 = vpow.pop %v8318
    %v8320 = vmul.f32 %v8298, 1.442695
    %v8321 = vpow.pop %v8320
    %v8322 = vmul.f32 %v8299, 1.442695
    %v8323 = vpow.pop %v8322
    %v8324 = vmul.f32 %v8300, 1.442695
    %v8325 = vpow.pop %v8324
    %v8326 = vmul.f32 %v8301, 1.442695
    %v8327 = vpow.pop %v8326
    %v8328 = vmul.f32 %v8302, 1.442695
    %v8329 = vpow.pop %v8328
    %v8330 = vmul.f32 %v8303, 1.442695
    %v8331 = vpow.pop %v8330
    %v8332 = vmul.f32 %v8304, 1.442695
    %v8333 = vpow.pop %v8332
    %v8334 = vmul.f32 %v8305, 1.442695
    %v8335 = vpow.pop %v8334
    %v8336 = vmul.f32 %v8306, 1.442695
    %v8337 = vpow.pop %v8336
    %v8338 = vmul.f32 %v8307, 1.442695
    %v8339 = vpow.pop %v8338
    %v8340 = vadd.f32 %v8309, 1.0
    %v8341 = vadd.f32 %v8311, 1.0
    %v8342 = vadd.f32 %v8313, 1.0
    %v8343 = vadd.f32 %v8315, 1.0
    %v8344 = vadd.f32 %v8317, 1.0
    %v8345 = vadd.f32 %v8319, 1.0
    %v8346 = vadd.f32 %v8321, 1.0
    %v8347 = vadd.f32 %v8323, 1.0
    %v8348 = vadd.f32 %v8325, 1.0
    %v8349 = vadd.f32 %v8327, 1.0
    %v8350 = vadd.f32 %v8329, 1.0
    %v8351 = vadd.f32 %v8331, 1.0
    %v8352 = vadd.f32 %v8333, 1.0
    %v8353 = vadd.f32 %v8335, 1.0
    %v8354 = vadd.f32 %v8337, 1.0
    %v8355 = vadd.f32 %v8339, 1.0
    %v8356 = vrcp.pop %v8340
    %v8357 = vmul.f32 1.0, %v8356
    %v8358 = vrcp.pop %v8341
    %v8359 = vmul.f32 1.0, %v8358
    %v8360 = vrcp.pop %v8342
    %v8361 = vmul.f32 1.0, %v8360
    %v8362 = vrcp.pop %v8343
    %v8363 = vmul.f32 1.0, %v8362
    %v8364 = vrcp.pop %v8344
    %v8365 = vmul.f32 1.0, %v8364
    %v8366 = vrcp.pop %v8345
    %v8367 = vmul.f32 1.0, %v8366
    %v8368 = vrcp.pop %v8346
    %v8369 = vmul.f32 1.0, %v8368
    %v8370 = vrcp.pop %v8347
    %v8371 = vmul.f32 1.0, %v8370
    %v8372 = vrcp.pop %v8348
    %v8373 = vmul.f32 1.0, %v8372
    %v8374 = vrcp.pop %v8349
    %v8375 = vmul.f32 1.0, %v8374
    %v8376 = vrcp.pop %v8350
    %v8377 = vmul.f32 1.0, %v8376
    %v8378 = vrcp.pop %v8351
    %v8379 = vmul.f32 1.0, %v8378
    %v8380 = vrcp.pop %v8352
    %v8381 = vmul.f32 1.0, %v8380
    %v8382 = vrcp.pop %v8353
    %v8383 = vmul.f32 1.0, %v8382
    %v8384 = vrcp.pop %v8354
    %v8385 = vmul.f32 1.0, %v8384
    %v8386 = vrcp.pop %v8355
    %v8387 = vmul.f32 1.0, %v8386
    %8404 = vrot.lane.b32.xlu0 %v8357, 64
    %v8405 = vpop.permute.xlu0 %8404
    %8406 = vrot.lane.b32.xlu0 %v8359, 64
    %v8407 = vpop.permute.xlu0 %8406
    %8408 = vrot.lane.b32.xlu0 %v8361, 64
    %v8409 = vpop.permute.xlu0 %8408
    %8410 = vrot.lane.b32.xlu0 %v8363, 64
    %v8411 = vpop.permute.xlu0 %8410
    %8412 = vrot.lane.b32.xlu0 %v8365, 64
    %v8413 = vpop.permute.xlu0 %8412
    %8414 = vrot.lane.b32.xlu0 %v8367, 64
    %v8415 = vpop.permute.xlu0 %8414
    %8416 = vrot.lane.b32.xlu0 %v8369, 64
    %v8417 = vpop.permute.xlu0 %8416
    %8418 = vrot.lane.b32.xlu0 %v8371, 64
    %v8419 = vpop.permute.xlu0 %8418
    %8420 = vrot.lane.b32.xlu0 %v8373, 64
    %v8421 = vpop.permute.xlu0 %8420
    %8422 = vrot.lane.b32.xlu0 %v8375, 64
    %v8423 = vpop.permute.xlu0 %8422
    %8424 = vrot.lane.b32.xlu0 %v8377, 64
    %v8425 = vpop.permute.xlu0 %8424
    %8426 = vrot.lane.b32.xlu0 %v8379, 64
    %v8427 = vpop.permute.xlu0 %8426
    %8428 = vrot.lane.b32.xlu0 %v8381, 64
    %v8429 = vpop.permute.xlu0 %8428
    %8430 = vrot.lane.b32.xlu0 %v8383, 64
    %v8431 = vpop.permute.xlu0 %8430
    %8432 = vrot.lane.b32.xlu0 %v8385, 64
    %v8433 = vpop.permute.xlu0 %8432
    %8434 = vrot.lane.b32.xlu0 %v8387, 64
    %v8435 = vpop.permute.xlu0 %8434
    %v8452 = vmul.f32 %v8214, %v8405
    %v8453 = vmul.f32 %v8219, %v8407
    %v8454 = vmul.f32 %v8224, %v8409
    %v8455 = vmul.f32 %v8229, %v8411
    %v8456 = vmul.f32 %v8234, %v8413
    %v8457 = vmul.f32 %v8239, %v8415
    %v8458 = vmul.f32 %v8244, %v8417
    %v8459 = vmul.f32 %v8249, %v8419
    %v8460 = vmul.f32 %v8254, %v8421
    %v8461 = vmul.f32 %v8259, %v8423
    %v8462 = vmul.f32 %v8264, %v8425
    %v8463 = vmul.f32 %v8269, %v8427
    %v8464 = vmul.f32 %v8274, %v8429
    %v8465 = vmul.f32 %v8279, %v8431
    %v8466 = vmul.f32 %v8284, %v8433
    %v8467 = vmul.f32 %v8289, %v8435
    %v8484 = vrot.slane %v8452, 1
    %v8485 = vrot.slane %v8453, 1
    %v8486 = vrot.slane %v8454, 1
    %v8487 = vrot.slane %v8455, 1
    %v8488 = vrot.slane %v8456, 1
    %v8489 = vrot.slane %v8457, 1
    %v8490 = vrot.slane %v8458, 1
    %v8491 = vrot.slane %v8459, 1
    %v8492 = vrot.slane %v8460, 1
    %v8493 = vrot.slane %v8461, 1
    %v8494 = vrot.slane %v8462, 1
    %v8495 = vrot.slane %v8463, 1
    %v8496 = vrot.slane %v8464, 1
    %v8497 = vrot.slane %v8465, 1
    %v8498 = vrot.slane %v8466, 1
    %v8499 = vrot.slane %v8467, 1
    %vm8516 = vcmask 1046528
    %v8517 = vsel %vm8516, 0.0, %v8484
    %v8518 = vsel %vm8516, 0.0, %v8485
    %v8519 = vsel %vm8516, 0.0, %v8486
    %v8520 = vsel %vm8516, 0.0, %v8487
    %v8521 = vsel %vm8516, 0.0, %v8488
    %v8522 = vsel %vm8516, 0.0, %v8489
    %v8523 = vsel %vm8516, 0.0, %v8490
    %v8524 = vsel %vm8516, 0.0, %v8491
    %v8525 = vsel %vm8516, 0.0, %v8492
    %v8526 = vsel %vm8516, 0.0, %v8493
    %v8527 = vsel %vm8516, 0.0, %v8494
    %v8528 = vsel %vm8516, 0.0, %v8495
    %v8529 = vsel %vm8516, 0.0, %v8496
    %v8530 = vsel %vm8516, 0.0, %v8497
    %v8531 = vsel %vm8516, 0.0, %v8498
    %v8532 = vsel %vm8516, 0.0, %v8499
    %v8533 = vsel %vm8516, %v8484, 0.0
    %v8534 = vsel %vm8516, %v8485, 0.0
    %v8535 = vsel %vm8516, %v8486, 0.0
    %v8536 = vsel %vm8516, %v8487, 0.0
    %v8537 = vsel %vm8516, %v8488, 0.0
    %v8538 = vsel %vm8516, %v8489, 0.0
    %v8539 = vsel %vm8516, %v8490, 0.0
    %v8540 = vsel %vm8516, %v8491, 0.0
    %v8541 = vsel %vm8516, %v8492, 0.0
    %v8542 = vsel %vm8516, %v8493, 0.0
    %v8543 = vsel %vm8516, %v8494, 0.0
    %v8544 = vsel %vm8516, %v8495, 0.0
    %v8545 = vsel %vm8516, %v8496, 0.0
    %v8546 = vsel %vm8516, %v8497, 0.0
    %v8547 = vsel %vm8516, %v8498, 0.0
    %v8548 = vsel %vm8516, %v8499, 0.0
    %v8549 = vld [vmem:[%s43 + $0x8] sm:$0xff]
    %v8550 = vld [vmem:[%s43 + $0x10] sm:$0xff]
    %v8551 = vlaneseq
    %v8552 = vshrl.u32 %v8551, 7
    %v8553 = vsub.s32 0, %v8552
    %v8554 = vrot.slane %v8549, %v8553
    %v8555 = vmul.f32 %v8517, %v8554
    %v8556 = vmul.f32 %v8518, %v8554
    %v8557 = vmul.f32 %v8519, %v8554
    %v8558 = vmul.f32 %v8520, %v8554
    %v8559 = vmul.f32 %v8521, %v8554
    %v8560 = vmul.f32 %v8522, %v8554
    %v8561 = vmul.f32 %v8523, %v8554
    %v8562 = vmul.f32 %v8524, %v8554
    %v8563 = vmul.f32 %v8525, %v8554
    %v8564 = vmul.f32 %v8526, %v8554
    %v8565 = vmul.f32 %v8527, %v8554
    %v8566 = vmul.f32 %v8528, %v8554
    %v8567 = vmul.f32 %v8529, %v8554
    %v8568 = vmul.f32 %v8530, %v8554
    %v8569 = vmul.f32 %v8531, %v8554
    %v8570 = vmul.f32 %v8532, %v8554
    %v8571 = vadd.f32 %v8555, 0.0
    %v8572 = vadd.f32 %v8556, 0.0
    %v8573 = vadd.f32 %v8557, 0.0
    %v8574 = vadd.f32 %v8558, 0.0
    %v8575 = vadd.f32 %v8559, 0.0
    %v8576 = vadd.f32 %v8560, 0.0
    %v8577 = vadd.f32 %v8561, 0.0
    %v8578 = vadd.f32 %v8562, 0.0
    %v8579 = vadd.f32 %v8563, 0.0
    %v8580 = vadd.f32 %v8564, 0.0
    %v8581 = vadd.f32 %v8565, 0.0
    %v8582 = vadd.f32 %v8566, 0.0
    %v8583 = vadd.f32 %v8567, 0.0
    %v8584 = vadd.f32 %v8568, 0.0
    %v8585 = vadd.f32 %v8569, 0.0
    %v8586 = vadd.f32 %v8570, 0.0
    %v8587 = vlaneseq
    %v8588 = vshrl.u32 %v8587, 7
    %v8589 = vsub.s32 1, %v8588
    %v8590 = vrot.slane %v8549, %v8589
    %v8591 = vmul.f32 %v8517, %v8590
    %v8592 = vmul.f32 %v8533, %v8590
    %v8593 = vmul.f32 %v8518, %v8590
    %v8594 = vmul.f32 %v8534, %v8590
    %v8595 = vmul.f32 %v8519, %v8590
    %v8596 = vmul.f32 %v8535, %v8590
    %v8597 = vmul.f32 %v8520, %v8590
    %v8598 = vmul.f32 %v8536, %v8590
    %v8599 = vmul.f32 %v8521, %v8590
    %v8600 = vmul.f32 %v8537, %v8590
    %v8601 = vmul.f32 %v8522, %v8590
    %v8602 = vmul.f32 %v8538, %v8590
    %v8603 = vmul.f32 %v8523, %v8590
    %v8604 = vmul.f32 %v8539, %v8590
    %v8605 = vmul.f32 %v8524, %v8590
    %v8606 = vmul.f32 %v8540, %v8590
    %v8607 = vmul.f32 %v8525, %v8590
    %v8608 = vmul.f32 %v8541, %v8590
    %v8609 = vmul.f32 %v8526, %v8590
    %v8610 = vmul.f32 %v8542, %v8590
    %v8611 = vmul.f32 %v8527, %v8590
    %v8612 = vmul.f32 %v8543, %v8590
    %v8613 = vmul.f32 %v8528, %v8590
    %v8614 = vmul.f32 %v8544, %v8590
    %v8615 = vmul.f32 %v8529, %v8590
    %v8616 = vmul.f32 %v8545, %v8590
    %v8617 = vmul.f32 %v8530, %v8590
    %v8618 = vmul.f32 %v8546, %v8590
    %v8619 = vmul.f32 %v8531, %v8590
    %v8620 = vmul.f32 %v8547, %v8590
    %v8621 = vmul.f32 %v8532, %v8590
    %v8622 = vmul.f32 %v8548, %v8590
    %v8655 = vrot.slane %v8591, 1
    %v8656 = vrot.slane %v8592, 1
    %v8657 = vsel %vm8516, %v8655, %v8656
    %v8658 = vrot.slane %v8593, 1
    %v8659 = vrot.slane %v8594, 1
    %v8660 = vsel %vm8516, %v8658, %v8659
    %v8661 = vrot.slane %v8595, 1
    %v8662 = vrot.slane %v8596, 1
    %v8663 = vsel %vm8516, %v8661, %v8662
    %v8664 = vrot.slane %v8597, 1
    %v8665 = vrot.slane %v8598, 1
    %v8666 = vsel %vm8516, %v8664, %v8665
    %v8667 = vrot.slane %v8599, 1
    %v8668 = vrot.slane %v8600, 1
    %v8669 = vsel %vm8516, %v8667, %v8668
    %v8670 = vrot.slane %v8601, 1
    %v8671 = vrot.slane %v8602, 1
    %v8672 = vsel %vm8516, %v8670, %v8671
    %v8673 = vrot.slane %v8603, 1
    %v8674 = vrot.slane %v8604, 1
    %v8675 = vsel %vm8516, %v8673, %v8674
    %v8676 = vrot.slane %v8605, 1
    %v8677 = vrot.slane %v8606, 1
    %v8678 = vsel %vm8516, %v8676, %v8677
    %v8679 = vrot.slane %v8607, 1
    %v8680 = vrot.slane %v8608, 1
    %v8681 = vsel %vm8516, %v8679, %v8680
    %v8682 = vrot.slane %v8609, 1
    %v8683 = vrot.slane %v8610, 1
    %v8684 = vsel %vm8516, %v8682, %v8683
    %v8685 = vrot.slane %v8611, 1
    %v8686 = vrot.slane %v8612, 1
    %v8687 = vsel %vm8516, %v8685, %v8686
    %v8688 = vrot.slane %v8613, 1
    %v8689 = vrot.slane %v8614, 1
    %v8690 = vsel %vm8516, %v8688, %v8689
    %v8691 = vrot.slane %v8615, 1
    %v8692 = vrot.slane %v8616, 1
    %v8693 = vsel %vm8516, %v8691, %v8692
    %v8694 = vrot.slane %v8617, 1
    %v8695 = vrot.slane %v8618, 1
    %v8696 = vsel %vm8516, %v8694, %v8695
    %v8697 = vrot.slane %v8619, 1
    %v8698 = vrot.slane %v8620, 1
    %v8699 = vsel %vm8516, %v8697, %v8698
    %v8700 = vrot.slane %v8621, 1
    %v8701 = vrot.slane %v8622, 1
    %v8702 = vsel %vm8516, %v8700, %v8701
    %v8719 = vadd.f32 %v8571, %v8657
    %v8720 = vadd.f32 %v8572, %v8660
    %v8721 = vadd.f32 %v8573, %v8663
    %v8722 = vadd.f32 %v8574, %v8666
    %v8723 = vadd.f32 %v8575, %v8669
    %v8724 = vadd.f32 %v8576, %v8672
    %v8725 = vadd.f32 %v8577, %v8675
    %v8726 = vadd.f32 %v8578, %v8678
    %v8727 = vadd.f32 %v8579, %v8681
    %v8728 = vadd.f32 %v8580, %v8684
    %v8729 = vadd.f32 %v8581, %v8687
    %v8730 = vadd.f32 %v8582, %v8690
    %v8731 = vadd.f32 %v8583, %v8693
    %v8732 = vadd.f32 %v8584, %v8696
    %v8733 = vadd.f32 %v8585, %v8699
    %v8734 = vadd.f32 %v8586, %v8702
    %v8735 = vlaneseq
    %v8736 = vshrl.u32 %v8735, 7
    %v8737 = vsub.s32 2, %v8736
    %v8738 = vrot.slane %v8549, %v8737
    %v8739 = vmul.f32 %v8517, %v8738
    %v8740 = vmul.f32 %v8533, %v8738
    %v8741 = vmul.f32 %v8518, %v8738
    %v8742 = vmul.f32 %v8534, %v8738
    %v8743 = vmul.f32 %v8519, %v8738
    %v8744 = vmul.f32 %v8535, %v8738
    %v8745 = vmul.f32 %v8520, %v8738
    %v8746 = vmul.f32 %v8536, %v8738
    %v8747 = vmul.f32 %v8521, %v8738
    %v8748 = vmul.f32 %v8537, %v8738
    %v8749 = vmul.f32 %v8522, %v8738
    %v8750 = vmul.f32 %v8538, %v8738
    %v8751 = vmul.f32 %v8523, %v8738
    %v8752 = vmul.f32 %v8539, %v8738
    %v8753 = vmul.f32 %v8524, %v8738
    %v8754 = vmul.f32 %v8540, %v8738
    %v8755 = vmul.f32 %v8525, %v8738
    %v8756 = vmul.f32 %v8541, %v8738
    %v8757 = vmul.f32 %v8526, %v8738
    %v8758 = vmul.f32 %v8542, %v8738
    %v8759 = vmul.f32 %v8527, %v8738
    %v8760 = vmul.f32 %v8543, %v8738
    %v8761 = vmul.f32 %v8528, %v8738
    %v8762 = vmul.f32 %v8544, %v8738
    %v8763 = vmul.f32 %v8529, %v8738
    %v8764 = vmul.f32 %v8545, %v8738
    %v8765 = vmul.f32 %v8530, %v8738
    %v8766 = vmul.f32 %v8546, %v8738
    %v8767 = vmul.f32 %v8531, %v8738
    %v8768 = vmul.f32 %v8547, %v8738
    %v8769 = vmul.f32 %v8532, %v8738
    %v8770 = vmul.f32 %v8548, %v8738
    %vm8803 = vcmask 1045504
    %v8804 = vrot.slane %v8739, 2
    %v8805 = vrot.slane %v8740, 2
    %v8806 = vsel %vm8803, %v8804, %v8805
    %v8807 = vrot.slane %v8741, 2
    %v8808 = vrot.slane %v8742, 2
    %v8809 = vsel %vm8803, %v8807, %v8808
    %v8810 = vrot.slane %v8743, 2
    %v8811 = vrot.slane %v8744, 2
    %v8812 = vsel %vm8803, %v8810, %v8811
    %v8813 = vrot.slane %v8745, 2
    %v8814 = vrot.slane %v8746, 2
    %v8815 = vsel %vm8803, %v8813, %v8814
    %v8816 = vrot.slane %v8747, 2
    %v8817 = vrot.slane %v8748, 2
    %v8818 = vsel %vm8803, %v8816, %v8817
    %v8819 = vrot.slane %v8749, 2
    %v8820 = vrot.slane %v8750, 2
    %v8821 = vsel %vm8803, %v8819, %v8820
    %v8822 = vrot.slane %v8751, 2
    %v8823 = vrot.slane %v8752, 2
    %v8824 = vsel %vm8803, %v8822, %v8823
    %v8825 = vrot.slane %v8753, 2
    %v8826 = vrot.slane %v8754, 2
    %v8827 = vsel %vm8803, %v8825, %v8826
    %v8828 = vrot.slane %v8755, 2
    %v8829 = vrot.slane %v8756, 2
    %v8830 = vsel %vm8803, %v8828, %v8829
    %v8831 = vrot.slane %v8757, 2
    %v8832 = vrot.slane %v8758, 2
    %v8833 = vsel %vm8803, %v8831, %v8832
    %v8834 = vrot.slane %v8759, 2
    %v8835 = vrot.slane %v8760, 2
    %v8836 = vsel %vm8803, %v8834, %v8835
    %v8837 = vrot.slane %v8761, 2
    %v8838 = vrot.slane %v8762, 2
    %v8839 = vsel %vm8803, %v8837, %v8838
    %v8840 = vrot.slane %v8763, 2
    %v8841 = vrot.slane %v8764, 2
    %v8842 = vsel %vm8803, %v8840, %v8841
    %v8843 = vrot.slane %v8765, 2
    %v8844 = vrot.slane %v8766, 2
    %v8845 = vsel %vm8803, %v8843, %v8844
    %v8846 = vrot.slane %v8767, 2
    %v8847 = vrot.slane %v8768, 2
    %v8848 = vsel %vm8803, %v8846, %v8847
    %v8849 = vrot.slane %v8769, 2
    %v8850 = vrot.slane %v8770, 2
    %v8851 = vsel %vm8803, %v8849, %v8850
    %v8868 = vadd.f32 %v8719, %v8806
    %v8869 = vadd.f32 %v8720, %v8809
    %v8870 = vadd.f32 %v8721, %v8812
    %v8871 = vadd.f32 %v8722, %v8815
    %v8872 = vadd.f32 %v8723, %v8818
    %v8873 = vadd.f32 %v8724, %v8821
    %v8874 = vadd.f32 %v8725, %v8824
    %v8875 = vadd.f32 %v8726, %v8827
    %v8876 = vadd.f32 %v8727, %v8830
    %v8877 = vadd.f32 %v8728, %v8833
    %v8878 = vadd.f32 %v8729, %v8836
    %v8879 = vadd.f32 %v8730, %v8839
    %v8880 = vadd.f32 %v8731, %v8842
    %v8881 = vadd.f32 %v8732, %v8845
    %v8882 = vadd.f32 %v8733, %v8848
    %v8883 = vadd.f32 %v8734, %v8851
    %v8884 = vlaneseq
    %v8885 = vshrl.u32 %v8884, 7
    %v8886 = vsub.s32 3, %v8885
    %v8887 = vrot.slane %v8549, %v8886
    %v8888 = vmul.f32 %v8517, %v8887
    %v8889 = vmul.f32 %v8533, %v8887
    %v8890 = vmul.f32 %v8518, %v8887
    %v8891 = vmul.f32 %v8534, %v8887
    %v8892 = vmul.f32 %v8519, %v8887
    %v8893 = vmul.f32 %v8535, %v8887
    %v8894 = vmul.f32 %v8520, %v8887
    %v8895 = vmul.f32 %v8536, %v8887
    %v8896 = vmul.f32 %v8521, %v8887
    %v8897 = vmul.f32 %v8537, %v8887
    %v8898 = vmul.f32 %v8522, %v8887
    %v8899 = vmul.f32 %v8538, %v8887
    %v8900 = vmul.f32 %v8523, %v8887
    %v8901 = vmul.f32 %v8539, %v8887
    %v8902 = vmul.f32 %v8524, %v8887
    %v8903 = vmul.f32 %v8540, %v8887
    %v8904 = vmul.f32 %v8525, %v8887
    %v8905 = vmul.f32 %v8541, %v8887
    %v8906 = vmul.f32 %v8526, %v8887
    %v8907 = vmul.f32 %v8542, %v8887
    %v8908 = vmul.f32 %v8527, %v8887
    %v8909 = vmul.f32 %v8543, %v8887
    %v8910 = vmul.f32 %v8528, %v8887
    %v8911 = vmul.f32 %v8544, %v8887
    %v8912 = vmul.f32 %v8529, %v8887
    %v8913 = vmul.f32 %v8545, %v8887
    %v8914 = vmul.f32 %v8530, %v8887
    %v8915 = vmul.f32 %v8546, %v8887
    %v8916 = vmul.f32 %v8531, %v8887
    %v8917 = vmul.f32 %v8547, %v8887
    %v8918 = vmul.f32 %v8532, %v8887
    %v8919 = vmul.f32 %v8548, %v8887
    %vm8952 = vcmask 1044480
    %v8953 = vrot.slane %v8888, 3
    %v8954 = vrot.slane %v8889, 3
    %v8955 = vsel %vm8952, %v8953, %v8954
    %v8956 = vrot.slane %v8890, 3
    %v8957 = vrot.slane %v8891, 3
    %v8958 = vsel %vm8952, %v8956, %v8957
    %v8959 = vrot.slane %v8892, 3
    %v8960 = vrot.slane %v8893, 3
    %v8961 = vsel %vm8952, %v8959, %v8960
    %v8962 = vrot.slane %v8894, 3
    %v8963 = vrot.slane %v8895, 3
    %v8964 = vsel %vm8952, %v8962, %v8963
    %v8965 = vrot.slane %v8896, 3
    %v8966 = vrot.slane %v8897, 3
    %v8967 = vsel %vm8952, %v8965, %v8966
    %v8968 = vrot.slane %v8898, 3
    %v8969 = vrot.slane %v8899, 3
    %v8970 = vsel %vm8952, %v8968, %v8969
    %v8971 = vrot.slane %v8900, 3
    %v8972 = vrot.slane %v8901, 3
    %v8973 = vsel %vm8952, %v8971, %v8972
    %v8974 = vrot.slane %v8902, 3
    %v8975 = vrot.slane %v8903, 3
    %v8976 = vsel %vm8952, %v8974, %v8975
    %v8977 = vrot.slane %v8904, 3
    %v8978 = vrot.slane %v8905, 3
    %v8979 = vsel %vm8952, %v8977, %v8978
    %v8980 = vrot.slane %v8906, 3
    %v8981 = vrot.slane %v8907, 3
    %v8982 = vsel %vm8952, %v8980, %v8981
    %v8983 = vrot.slane %v8908, 3
    %v8984 = vrot.slane %v8909, 3
    %v8985 = vsel %vm8952, %v8983, %v8984
    %v8986 = vrot.slane %v8910, 3
    %v8987 = vrot.slane %v8911, 3
    %v8988 = vsel %vm8952, %v8986, %v8987
    %v8989 = vrot.slane %v8912, 3
    %v8990 = vrot.slane %v8913, 3
    %v8991 = vsel %vm8952, %v8989, %v8990
    %v8992 = vrot.slane %v8914, 3
    %v8993 = vrot.slane %v8915, 3
    %v8994 = vsel %vm8952, %v8992, %v8993
    %v8995 = vrot.slane %v8916, 3
    %v8996 = vrot.slane %v8917, 3
    %v8997 = vsel %vm8952, %v8995, %v8996
    %v8998 = vrot.slane %v8918, 3
    %v8999 = vrot.slane %v8919, 3
    %v9000 = vsel %vm8952, %v8998, %v8999
    %v9017 = vadd.f32 %v8868, %v8955
    %v9018 = vadd.f32 %v8869, %v8958
    %v9019 = vadd.f32 %v8870, %v8961
    %v9020 = vadd.f32 %v8871, %v8964
    %v9021 = vadd.f32 %v8872, %v8967
    %v9022 = vadd.f32 %v8873, %v8970
    %v9023 = vadd.f32 %v8874, %v8973
    %v9024 = vadd.f32 %v8875, %v8976
    %v9025 = vadd.f32 %v8876, %v8979
    %v9026 = vadd.f32 %v8877, %v8982
    %v9027 = vadd.f32 %v8878, %v8985
    %v9028 = vadd.f32 %v8879, %v8988
    %v9029 = vadd.f32 %v8880, %v8991
    %v9030 = vadd.f32 %v8881, %v8994
    %v9031 = vadd.f32 %v8882, %v8997
    %v9032 = vadd.f32 %v8883, %v9000
    %v9033 = vlaneseq
    %v9034 = vshrl.u32 %v9033, 7
    %v9035 = vsub.s32 4, %v9034
    %v9036 = vrot.slane %v8549, %v9035
    %v9037 = vmul.f32 %v8517, %v9036
    %v9038 = vmul.f32 %v8533, %v9036
    %v9039 = vmul.f32 %v8518, %v9036
    %v9040 = vmul.f32 %v8534, %v9036
    %v9041 = vmul.f32 %v8519, %v9036
    %v9042 = vmul.f32 %v8535, %v9036
    %v9043 = vmul.f32 %v8520, %v9036
    %v9044 = vmul.f32 %v8536, %v9036
    %v9045 = vmul.f32 %v8521, %v9036
    %v9046 = vmul.f32 %v8537, %v9036
    %v9047 = vmul.f32 %v8522, %v9036
    %v9048 = vmul.f32 %v8538, %v9036
    %v9049 = vmul.f32 %v8523, %v9036
    %v9050 = vmul.f32 %v8539, %v9036
    %v9051 = vmul.f32 %v8524, %v9036
    %v9052 = vmul.f32 %v8540, %v9036
    %v9053 = vmul.f32 %v8525, %v9036
    %v9054 = vmul.f32 %v8541, %v9036
    %v9055 = vmul.f32 %v8526, %v9036
    %v9056 = vmul.f32 %v8542, %v9036
    %v9057 = vmul.f32 %v8527, %v9036
    %v9058 = vmul.f32 %v8543, %v9036
    %v9059 = vmul.f32 %v8528, %v9036
    %v9060 = vmul.f32 %v8544, %v9036
    %v9061 = vmul.f32 %v8529, %v9036
    %v9062 = vmul.f32 %v8545, %v9036
    %v9063 = vmul.f32 %v8530, %v9036
    %v9064 = vmul.f32 %v8546, %v9036
    %v9065 = vmul.f32 %v8531, %v9036
    %v9066 = vmul.f32 %v8547, %v9036
    %v9067 = vmul.f32 %v8532, %v9036
    %v9068 = vmul.f32 %v8548, %v9036
    %vm9101 = vcmask 1043456
    %v9102 = vrot.slane %v9037, 4
    %v9103 = vrot.slane %v9038, 4
    %v9104 = vsel %vm9101, %v9102, %v9103
    %v9105 = vrot.slane %v9039, 4
    %v9106 = vrot.slane %v9040, 4
    %v9107 = vsel %vm9101, %v9105, %v9106
    %v9108 = vrot.slane %v9041, 4
    %v9109 = vrot.slane %v9042, 4
    %v9110 = vsel %vm9101, %v9108, %v9109
    %v9111 = vrot.slane %v9043, 4
    %v9112 = vrot.slane %v9044, 4
    %v9113 = vsel %vm9101, %v9111, %v9112
    %v9114 = vrot.slane %v9045, 4
    %v9115 = vrot.slane %v9046, 4
    %v9116 = vsel %vm9101, %v9114, %v9115
    %v9117 = vrot.slane %v9047, 4
    %v9118 = vrot.slane %v9048, 4
    %v9119 = vsel %vm9101, %v9117, %v9118
    %v9120 = vrot.slane %v9049, 4
    %v9121 = vrot.slane %v9050, 4
    %v9122 = vsel %vm9101, %v9120, %v9121
    %v9123 = vrot.slane %v9051, 4
    %v9124 = vrot.slane %v9052, 4
    %v9125 = vsel %vm9101, %v9123, %v9124
    %v9126 = vrot.slane %v9053, 4
    %v9127 = vrot.slane %v9054, 4
    %v9128 = vsel %vm9101, %v9126, %v9127
    %v9129 = vrot.slane %v9055, 4
    %v9130 = vrot.slane %v9056, 4
    %v9131 = vsel %vm9101, %v9129, %v9130
    %v9132 = vrot.slane %v9057, 4
    %v9133 = vrot.slane %v9058, 4
    %v9134 = vsel %vm9101, %v9132, %v9133
    %v9135 = vrot.slane %v9059, 4
    %v9136 = vrot.slane %v9060, 4
    %v9137 = vsel %vm9101, %v9135, %v9136
    %v9138 = vrot.slane %v9061, 4
    %v9139 = vrot.slane %v9062, 4
    %v9140 = vsel %vm9101, %v9138, %v9139
    %v9141 = vrot.slane %v9063, 4
    %v9142 = vrot.slane %v9064, 4
    %v9143 = vsel %vm9101, %v9141, %v9142
    %v9144 = vrot.slane %v9065, 4
    %v9145 = vrot.slane %v9066, 4
    %v9146 = vsel %vm9101, %v9144, %v9145
    %v9147 = vrot.slane %v9067, 4
    %v9148 = vrot.slane %v9068, 4
    %v9149 = vsel %vm9101, %v9147, %v9148
    %v9166 = vadd.f32 %v9017, %v9104
    %v9167 = vadd.f32 %v9018, %v9107
    %v9168 = vadd.f32 %v9019, %v9110
    %v9169 = vadd.f32 %v9020, %v9113
    %v9170 = vadd.f32 %v9021, %v9116
    %v9171 = vadd.f32 %v9022, %v9119
    %v9172 = vadd.f32 %v9023, %v9122
    %v9173 = vadd.f32 %v9024, %v9125
    %v9174 = vadd.f32 %v9025, %v9128
    %v9175 = vadd.f32 %v9026, %v9131
    %v9176 = vadd.f32 %v9027, %v9134
    %v9177 = vadd.f32 %v9028, %v9137
    %v9178 = vadd.f32 %v9029, %v9140
    %v9179 = vadd.f32 %v9030, %v9143
    %v9180 = vadd.f32 %v9031, %v9146
    %v9181 = vadd.f32 %v9032, %v9149
    %v9182 = vlaneseq
    %v9183 = vshrl.u32 %v9182, 7
    %v9184 = vsub.s32 5, %v9183
    %v9185 = vrot.slane %v8549, %v9184
    %v9186 = vmul.f32 %v8517, %v9185
    %v9187 = vmul.f32 %v8533, %v9185
    %v9188 = vmul.f32 %v8518, %v9185
    %v9189 = vmul.f32 %v8534, %v9185
    %v9190 = vmul.f32 %v8519, %v9185
    %v9191 = vmul.f32 %v8535, %v9185
    %v9192 = vmul.f32 %v8520, %v9185
    %v9193 = vmul.f32 %v8536, %v9185
    %v9194 = vmul.f32 %v8521, %v9185
    %v9195 = vmul.f32 %v8537, %v9185
    %v9196 = vmul.f32 %v8522, %v9185
    %v9197 = vmul.f32 %v8538, %v9185
    %v9198 = vmul.f32 %v8523, %v9185
    %v9199 = vmul.f32 %v8539, %v9185
    %v9200 = vmul.f32 %v8524, %v9185
    %v9201 = vmul.f32 %v8540, %v9185
    %v9202 = vmul.f32 %v8525, %v9185
    %v9203 = vmul.f32 %v8541, %v9185
    %v9204 = vmul.f32 %v8526, %v9185
    %v9205 = vmul.f32 %v8542, %v9185
    %v9206 = vmul.f32 %v8527, %v9185
    %v9207 = vmul.f32 %v8543, %v9185
    %v9208 = vmul.f32 %v8528, %v9185
    %v9209 = vmul.f32 %v8544, %v9185
    %v9210 = vmul.f32 %v8529, %v9185
    %v9211 = vmul.f32 %v8545, %v9185
    %v9212 = vmul.f32 %v8530, %v9185
    %v9213 = vmul.f32 %v8546, %v9185
    %v9214 = vmul.f32 %v8531, %v9185
    %v9215 = vmul.f32 %v8547, %v9185
    %v9216 = vmul.f32 %v8532, %v9185
    %v9217 = vmul.f32 %v8548, %v9185
    %vm9250 = vcmask 1042432
    %v9251 = vrot.slane %v9186, 5
    %v9252 = vrot.slane %v9187, 5
    %v9253 = vsel %vm9250, %v9251, %v9252
    %v9254 = vrot.slane %v9188, 5
    %v9255 = vrot.slane %v9189, 5
    %v9256 = vsel %vm9250, %v9254, %v9255
    %v9257 = vrot.slane %v9190, 5
    %v9258 = vrot.slane %v9191, 5
    %v9259 = vsel %vm9250, %v9257, %v9258
    %v9260 = vrot.slane %v9192, 5
    %v9261 = vrot.slane %v9193, 5
    %v9262 = vsel %vm9250, %v9260, %v9261
    %v9263 = vrot.slane %v9194, 5
    %v9264 = vrot.slane %v9195, 5
    %v9265 = vsel %vm9250, %v9263, %v9264
    %v9266 = vrot.slane %v9196, 5
    %v9267 = vrot.slane %v9197, 5
    %v9268 = vsel %vm9250, %v9266, %v9267
    %v9269 = vrot.slane %v9198, 5
    %v9270 = vrot.slane %v9199, 5
    %v9271 = vsel %vm9250, %v9269, %v9270
    %v9272 = vrot.slane %v9200, 5
    %v9273 = vrot.slane %v9201, 5
    %v9274 = vsel %vm9250, %v9272, %v9273
    %v9275 = vrot.slane %v9202, 5
    %v9276 = vrot.slane %v9203, 5
    %v9277 = vsel %vm9250, %v9275, %v9276
    %v9278 = vrot.slane %v9204, 5
    %v9279 = vrot.slane %v9205, 5
    %v9280 = vsel %vm9250, %v9278, %v9279
    %v9281 = vrot.slane %v9206, 5
    %v9282 = vrot.slane %v9207, 5
    %v9283 = vsel %vm9250, %v9281, %v9282
    %v9284 = vrot.slane %v9208, 5
    %v9285 = vrot.slane %v9209, 5
    %v9286 = vsel %vm9250, %v9284, %v9285
    %v9287 = vrot.slane %v9210, 5
    %v9288 = vrot.slane %v9211, 5
    %v9289 = vsel %vm9250, %v9287, %v9288
    %v9290 = vrot.slane %v9212, 5
    %v9291 = vrot.slane %v9213, 5
    %v9292 = vsel %vm9250, %v9290, %v9291
    %v9293 = vrot.slane %v9214, 5
    %v9294 = vrot.slane %v9215, 5
    %v9295 = vsel %vm9250, %v9293, %v9294
    %v9296 = vrot.slane %v9216, 5
    %v9297 = vrot.slane %v9217, 5
    %v9298 = vsel %vm9250, %v9296, %v9297
    %v9315 = vadd.f32 %v9166, %v9253
    %v9316 = vadd.f32 %v9167, %v9256
    %v9317 = vadd.f32 %v9168, %v9259
    %v9318 = vadd.f32 %v9169, %v9262
    %v9319 = vadd.f32 %v9170, %v9265
    %v9320 = vadd.f32 %v9171, %v9268
    %v9321 = vadd.f32 %v9172, %v9271
    %v9322 = vadd.f32 %v9173, %v9274
    %v9323 = vadd.f32 %v9174, %v9277
    %v9324 = vadd.f32 %v9175, %v9280
    %v9325 = vadd.f32 %v9176, %v9283
    %v9326 = vadd.f32 %v9177, %v9286
    %v9327 = vadd.f32 %v9178, %v9289
    %v9328 = vadd.f32 %v9179, %v9292
    %v9329 = vadd.f32 %v9180, %v9295
    %v9330 = vadd.f32 %v9181, %v9298
    %v9331 = vlaneseq
    %v9332 = vshrl.u32 %v9331, 7
    %v9333 = vsub.s32 6, %v9332
    %v9334 = vrot.slane %v8549, %v9333
    %v9335 = vmul.f32 %v8517, %v9334
    %v9336 = vmul.f32 %v8533, %v9334
    %v9337 = vmul.f32 %v8518, %v9334
    %v9338 = vmul.f32 %v8534, %v9334
    %v9339 = vmul.f32 %v8519, %v9334
    %v9340 = vmul.f32 %v8535, %v9334
    %v9341 = vmul.f32 %v8520, %v9334
    %v9342 = vmul.f32 %v8536, %v9334
    %v9343 = vmul.f32 %v8521, %v9334
    %v9344 = vmul.f32 %v8537, %v9334
    %v9345 = vmul.f32 %v8522, %v9334
    %v9346 = vmul.f32 %v8538, %v9334
    %v9347 = vmul.f32 %v8523, %v9334
    %v9348 = vmul.f32 %v8539, %v9334
    %v9349 = vmul.f32 %v8524, %v9334
    %v9350 = vmul.f32 %v8540, %v9334
    %v9351 = vmul.f32 %v8525, %v9334
    %v9352 = vmul.f32 %v8541, %v9334
    %v9353 = vmul.f32 %v8526, %v9334
    %v9354 = vmul.f32 %v8542, %v9334
    %v9355 = vmul.f32 %v8527, %v9334
    %v9356 = vmul.f32 %v8543, %v9334
    %v9357 = vmul.f32 %v8528, %v9334
    %v9358 = vmul.f32 %v8544, %v9334
    %v9359 = vmul.f32 %v8529, %v9334
    %v9360 = vmul.f32 %v8545, %v9334
    %v9361 = vmul.f32 %v8530, %v9334
    %v9362 = vmul.f32 %v8546, %v9334
    %v9363 = vmul.f32 %v8531, %v9334
    %v9364 = vmul.f32 %v8547, %v9334
    %v9365 = vmul.f32 %v8532, %v9334
    %v9366 = vmul.f32 %v8548, %v9334
    %vm9399 = vcmask 1041408
    %v9400 = vrot.slane %v9335, 6
    %v9401 = vrot.slane %v9336, 6
    %v9402 = vsel %vm9399, %v9400, %v9401
    %v9403 = vrot.slane %v9337, 6
    %v9404 = vrot.slane %v9338, 6
    %v9405 = vsel %vm9399, %v9403, %v9404
    %v9406 = vrot.slane %v9339, 6
    %v9407 = vrot.slane %v9340, 6
    %v9408 = vsel %vm9399, %v9406, %v9407
    %v9409 = vrot.slane %v9341, 6
    %v9410 = vrot.slane %v9342, 6
    %v9411 = vsel %vm9399, %v9409, %v9410
    %v9412 = vrot.slane %v9343, 6
    %v9413 = vrot.slane %v9344, 6
    %v9414 = vsel %vm9399, %v9412, %v9413
    %v9415 = vrot.slane %v9345, 6
    %v9416 = vrot.slane %v9346, 6
    %v9417 = vsel %vm9399, %v9415, %v9416
    %v9418 = vrot.slane %v9347, 6
    %v9419 = vrot.slane %v9348, 6
    %v9420 = vsel %vm9399, %v9418, %v9419
    %v9421 = vrot.slane %v9349, 6
    %v9422 = vrot.slane %v9350, 6
    %v9423 = vsel %vm9399, %v9421, %v9422
    %v9424 = vrot.slane %v9351, 6
    %v9425 = vrot.slane %v9352, 6
    %v9426 = vsel %vm9399, %v9424, %v9425
    %v9427 = vrot.slane %v9353, 6
    %v9428 = vrot.slane %v9354, 6
    %v9429 = vsel %vm9399, %v9427, %v9428
    %v9430 = vrot.slane %v9355, 6
    %v9431 = vrot.slane %v9356, 6
    %v9432 = vsel %vm9399, %v9430, %v9431
    %v9433 = vrot.slane %v9357, 6
    %v9434 = vrot.slane %v9358, 6
    %v9435 = vsel %vm9399, %v9433, %v9434
    %v9436 = vrot.slane %v9359, 6
    %v9437 = vrot.slane %v9360, 6
    %v9438 = vsel %vm9399, %v9436, %v9437
    %v9439 = vrot.slane %v9361, 6
    %v9440 = vrot.slane %v9362, 6
    %v9441 = vsel %vm9399, %v9439, %v9440
    %v9442 = vrot.slane %v9363, 6
    %v9443 = vrot.slane %v9364, 6
    %v9444 = vsel %vm9399, %v9442, %v9443
    %v9445 = vrot.slane %v9365, 6
    %v9446 = vrot.slane %v9366, 6
    %v9447 = vsel %vm9399, %v9445, %v9446
    %v9464 = vadd.f32 %v9315, %v9402
    %v9465 = vadd.f32 %v9316, %v9405
    %v9466 = vadd.f32 %v9317, %v9408
    %v9467 = vadd.f32 %v9318, %v9411
    %v9468 = vadd.f32 %v9319, %v9414
    %v9469 = vadd.f32 %v9320, %v9417
    %v9470 = vadd.f32 %v9321, %v9420
    %v9471 = vadd.f32 %v9322, %v9423
    %v9472 = vadd.f32 %v9323, %v9426
    %v9473 = vadd.f32 %v9324, %v9429
    %v9474 = vadd.f32 %v9325, %v9432
    %v9475 = vadd.f32 %v9326, %v9435
    %v9476 = vadd.f32 %v9327, %v9438
    %v9477 = vadd.f32 %v9328, %v9441
    %v9478 = vadd.f32 %v9329, %v9444
    %v9479 = vadd.f32 %v9330, %v9447
    %v9480 = vlaneseq
    %v9481 = vshrl.u32 %v9480, 7
    %v9482 = vsub.s32 7, %v9481
    %v9483 = vrot.slane %v8549, %v9482
    %v9484 = vmul.f32 %v8517, %v9483
    %v9485 = vmul.f32 %v8533, %v9483
    %v9486 = vmul.f32 %v8518, %v9483
    %v9487 = vmul.f32 %v8534, %v9483
    %v9488 = vmul.f32 %v8519, %v9483
    %v9489 = vmul.f32 %v8535, %v9483
    %v9490 = vmul.f32 %v8520, %v9483
    %v9491 = vmul.f32 %v8536, %v9483
    %v9492 = vmul.f32 %v8521, %v9483
    %v9493 = vmul.f32 %v8537, %v9483
    %v9494 = vmul.f32 %v8522, %v9483
    %v9495 = vmul.f32 %v8538, %v9483
    %v9496 = vmul.f32 %v8523, %v9483
    %v9497 = vmul.f32 %v8539, %v9483
    %v9498 = vmul.f32 %v8524, %v9483
    %v9499 = vmul.f32 %v8540, %v9483
    %v9500 = vmul.f32 %v8525, %v9483
    %v9501 = vmul.f32 %v8541, %v9483
    %v9502 = vmul.f32 %v8526, %v9483
    %v9503 = vmul.f32 %v8542, %v9483
    %v9504 = vmul.f32 %v8527, %v9483
    %v9505 = vmul.f32 %v8543, %v9483
    %v9506 = vmul.f32 %v8528, %v9483
    %v9507 = vmul.f32 %v8544, %v9483
    %v9508 = vmul.f32 %v8529, %v9483
    %v9509 = vmul.f32 %v8545, %v9483
    %v9510 = vmul.f32 %v8530, %v9483
    %v9511 = vmul.f32 %v8546, %v9483
    %v9512 = vmul.f32 %v8531, %v9483
    %v9513 = vmul.f32 %v8547, %v9483
    %v9514 = vmul.f32 %v8532, %v9483
    %v9515 = vmul.f32 %v8548, %v9483
    %vm9548 = vcmask 1040384
    %v9549 = vrot.slane %v9484, 7
    %v9550 = vrot.slane %v9485, 7
    %v9551 = vsel %vm9548, %v9549, %v9550
    %v9552 = vrot.slane %v9486, 7
    %v9553 = vrot.slane %v9487, 7
    %v9554 = vsel %vm9548, %v9552, %v9553
    %v9555 = vrot.slane %v9488, 7
    %v9556 = vrot.slane %v9489, 7
    %v9557 = vsel %vm9548, %v9555, %v9556
    %v9558 = vrot.slane %v9490, 7
    %v9559 = vrot.slane %v9491, 7
    %v9560 = vsel %vm9548, %v9558, %v9559
    %v9561 = vrot.slane %v9492, 7
    %v9562 = vrot.slane %v9493, 7
    %v9563 = vsel %vm9548, %v9561, %v9562
    %v9564 = vrot.slane %v9494, 7
    %v9565 = vrot.slane %v9495, 7
    %v9566 = vsel %vm9548, %v9564, %v9565
    %v9567 = vrot.slane %v9496, 7
    %v9568 = vrot.slane %v9497, 7
    %v9569 = vsel %vm9548, %v9567, %v9568
    %v9570 = vrot.slane %v9498, 7
    %v9571 = vrot.slane %v9499, 7
    %v9572 = vsel %vm9548, %v9570, %v9571
    %v9573 = vrot.slane %v9500, 7
    %v9574 = vrot.slane %v9501, 7
    %v9575 = vsel %vm9548, %v9573, %v9574
    %v9576 = vrot.slane %v9502, 7
    %v9577 = vrot.slane %v9503, 7
    %v9578 = vsel %vm9548, %v9576, %v9577
    %v9579 = vrot.slane %v9504, 7
    %v9580 = vrot.slane %v9505, 7
    %v9581 = vsel %vm9548, %v9579, %v9580
    %v9582 = vrot.slane %v9506, 7
    %v9583 = vrot.slane %v9507, 7
    %v9584 = vsel %vm9548, %v9582, %v9583
    %v9585 = vrot.slane %v9508, 7
    %v9586 = vrot.slane %v9509, 7
    %v9587 = vsel %vm9548, %v9585, %v9586
    %v9588 = vrot.slane %v9510, 7
    %v9589 = vrot.slane %v9511, 7
    %v9590 = vsel %vm9548, %v9588, %v9589
    %v9591 = vrot.slane %v9512, 7
    %v9592 = vrot.slane %v9513, 7
    %v9593 = vsel %vm9548, %v9591, %v9592
    %v9594 = vrot.slane %v9514, 7
    %v9595 = vrot.slane %v9515, 7
    %v9596 = vsel %vm9548, %v9594, %v9595
    %v9613 = vadd.f32 %v9464, %v9551
    %v9614 = vadd.f32 %v9465, %v9554
    %v9615 = vadd.f32 %v9466, %v9557
    %v9616 = vadd.f32 %v9467, %v9560
    %v9617 = vadd.f32 %v9468, %v9563
    %v9618 = vadd.f32 %v9469, %v9566
    %v9619 = vadd.f32 %v9470, %v9569
    %v9620 = vadd.f32 %v9471, %v9572
    %v9621 = vadd.f32 %v9472, %v9575
    %v9622 = vadd.f32 %v9473, %v9578
    %v9623 = vadd.f32 %v9474, %v9581
    %v9624 = vadd.f32 %v9475, %v9584
    %v9625 = vadd.f32 %v9476, %v9587
    %v9626 = vadd.f32 %v9477, %v9590
    %v9627 = vadd.f32 %v9478, %v9593
    %v9628 = vadd.f32 %v9479, %v9596
    %v9629 = vlaneseq
    %v9630 = vshrl.u32 %v9629, 7
    %v9631 = vsub.s32 0, %v9630
    %v9632 = vrot.slane %v8550, %v9631
    %v9633 = vmul.f32 %v8533, %v9632
    %v9634 = vmul.f32 %v8534, %v9632
    %v9635 = vmul.f32 %v8535, %v9632
    %v9636 = vmul.f32 %v8536, %v9632
    %v9637 = vmul.f32 %v8537, %v9632
    %v9638 = vmul.f32 %v8538, %v9632
    %v9639 = vmul.f32 %v8539, %v9632
    %v9640 = vmul.f32 %v8540, %v9632
    %v9641 = vmul.f32 %v8541, %v9632
    %v9642 = vmul.f32 %v8542, %v9632
    %v9643 = vmul.f32 %v8543, %v9632
    %v9644 = vmul.f32 %v8544, %v9632
    %v9645 = vmul.f32 %v8545, %v9632
    %v9646 = vmul.f32 %v8546, %v9632
    %v9647 = vmul.f32 %v8547, %v9632
    %v9648 = vmul.f32 %v8548, %v9632
    %v9649 = vadd.f32 %v9613, %v9633
    %v9650 = vadd.f32 %v9614, %v9634
    %v9651 = vadd.f32 %v9615, %v9635
    %v9652 = vadd.f32 %v9616, %v9636
    %v9653 = vadd.f32 %v9617, %v9637
    %v9654 = vadd.f32 %v9618, %v9638
    %v9655 = vadd.f32 %v9619, %v9639
    %v9656 = vadd.f32 %v9620, %v9640
    %v9657 = vadd.f32 %v9621, %v9641
    %v9658 = vadd.f32 %v9622, %v9642
    %v9659 = vadd.f32 %v9623, %v9643
    %v9660 = vadd.f32 %v9624, %v9644
    %v9661 = vadd.f32 %v9625, %v9645
    %v9662 = vadd.f32 %v9626, %v9646
    %v9663 = vadd.f32 %v9627, %v9647
    %v9664 = vadd.f32 %v9628, %v9648
    %v9665 = vlaneseq
    %v9666 = vshrl.u32 %v9665, 7
    %v9667 = vsub.s32 1, %v9666
    %v9668 = vrot.slane %v8550, %v9667
    %v9669 = vmul.f32 %v8533, %v9668
    %v9670 = vmul.f32 %v9668, 0.0
    %v9671 = vmul.f32 %v8534, %v9668
    %v9672 = vmul.f32 %v8535, %v9668
    %v9673 = vmul.f32 %v8536, %v9668
    %v9674 = vmul.f32 %v8537, %v9668
    %v9675 = vmul.f32 %v8538, %v9668
    %v9676 = vmul.f32 %v8539, %v9668
    %v9677 = vmul.f32 %v8540, %v9668
    %v9678 = vmul.f32 %v8541, %v9668
    %v9679 = vmul.f32 %v8542, %v9668
    %v9680 = vmul.f32 %v8543, %v9668
    %v9681 = vmul.f32 %v8544, %v9668
    %v9682 = vmul.f32 %v8545, %v9668
    %v9683 = vmul.f32 %v8546, %v9668
    %v9684 = vmul.f32 %v8547, %v9668
    %v9685 = vmul.f32 %v8548, %v9668
    %v9703 = vrot.slane %v9669, 1
    %v9704 = vrot.slane %v9670, 1
    %v9705 = vsel %vm8516, %v9703, %v9704
    %v9706 = vrot.slane %v9671, 1
    %v9707 = vsel %vm8516, %v9706, %v9704
    %v9708 = vrot.slane %v9672, 1
    %v9709 = vsel %vm8516, %v9708, %v9704
    %v9710 = vrot.slane %v9673, 1
    %v9711 = vsel %vm8516, %v9710, %v9704
    %v9712 = vrot.slane %v9674, 1
    %v9713 = vsel %vm8516, %v9712, %v9704
    %v9714 = vrot.slane %v9675, 1
    %v9715 = vsel %vm8516, %v9714, %v9704
    %v9716 = vrot.slane %v9676, 1
    %v9717 = vsel %vm8516, %v9716, %v9704
    %v9718 = vrot.slane %v9677, 1
    %v9719 = vsel %vm8516, %v9718, %v9704
    %v9720 = vrot.slane %v9678, 1
    %v9721 = vsel %vm8516, %v9720, %v9704
    %v9722 = vrot.slane %v9679, 1
    %v9723 = vsel %vm8516, %v9722, %v9704
    %v9724 = vrot.slane %v9680, 1
    %v9725 = vsel %vm8516, %v9724, %v9704
    %v9726 = vrot.slane %v9681, 1
    %v9727 = vsel %vm8516, %v9726, %v9704
    %v9728 = vrot.slane %v9682, 1
    %v9729 = vsel %vm8516, %v9728, %v9704
    %v9730 = vrot.slane %v9683, 1
    %v9731 = vsel %vm8516, %v9730, %v9704
    %v9732 = vrot.slane %v9684, 1
    %v9733 = vsel %vm8516, %v9732, %v9704
    %v9734 = vrot.slane %v9685, 1
    %v9735 = vsel %vm8516, %v9734, %v9704
    %v9752 = vadd.f32 %v9649, %v9705
    %v9753 = vadd.f32 %v9650, %v9707
    %v9754 = vadd.f32 %v9651, %v9709
    %v9755 = vadd.f32 %v9652, %v9711
    %v9756 = vadd.f32 %v9653, %v9713
    %v9757 = vadd.f32 %v9654, %v9715
    %v9758 = vadd.f32 %v9655, %v9717
    %v9759 = vadd.f32 %v9656, %v9719
    %v9760 = vadd.f32 %v9657, %v9721
    %v9761 = vadd.f32 %v9658, %v9723
    %v9762 = vadd.f32 %v9659, %v9725
    %v9763 = vadd.f32 %v9660, %v9727
    %v9764 = vadd.f32 %v9661, %v9729
    %v9765 = vadd.f32 %v9662, %v9731
    %v9766 = vadd.f32 %v9663, %v9733
    %v9767 = vadd.f32 %v9664, %v9735
    %v9768 = vlaneseq
    %v9769 = vshrl.u32 %v9768, 7
    %v9770 = vsub.s32 2, %v9769
    %v9771 = vrot.slane %v8550, %v9770
    %v9772 = vmul.f32 %v8533, %v9771
    %v9773 = vmul.f32 %v9771, 0.0
    %v9774 = vmul.f32 %v8534, %v9771
    %v9775 = vmul.f32 %v8535, %v9771
    %v9776 = vmul.f32 %v8536, %v9771
    %v9777 = vmul.f32 %v8537, %v9771
    %v9778 = vmul.f32 %v8538, %v9771
    %v9779 = vmul.f32 %v8539, %v9771
    %v9780 = vmul.f32 %v8540, %v9771
    %v9781 = vmul.f32 %v8541, %v9771
    %v9782 = vmul.f32 %v8542, %v9771
    %v9783 = vmul.f32 %v8543, %v9771
    %v9784 = vmul.f32 %v8544, %v9771
    %v9785 = vmul.f32 %v8545, %v9771
    %v9786 = vmul.f32 %v8546, %v9771
    %v9787 = vmul.f32 %v8547, %v9771
    %v9788 = vmul.f32 %v8548, %v9771
    %v9806 = vrot.slane %v9772, 2
    %v9807 = vrot.slane %v9773, 2
    %v9808 = vsel %vm8803, %v9806, %v9807
    %v9809 = vrot.slane %v9774, 2
    %v9810 = vsel %vm8803, %v9809, %v9807
    %v9811 = vrot.slane %v9775, 2
    %v9812 = vsel %vm8803, %v9811, %v9807
    %v9813 = vrot.slane %v9776, 2
    %v9814 = vsel %vm8803, %v9813, %v9807
    %v9815 = vrot.slane %v9777, 2
    %v9816 = vsel %vm8803, %v9815, %v9807
    %v9817 = vrot.slane %v9778, 2
    %v9818 = vsel %vm8803, %v9817, %v9807
    %v9819 = vrot.slane %v9779, 2
    %v9820 = vsel %vm8803, %v9819, %v9807
    %v9821 = vrot.slane %v9780, 2
    %v9822 = vsel %vm8803, %v9821, %v9807
    %v9823 = vrot.slane %v9781, 2
    %v9824 = vsel %vm8803, %v9823, %v9807
    %v9825 = vrot.slane %v9782, 2
    %v9826 = vsel %vm8803, %v9825, %v9807
    %v9827 = vrot.slane %v9783, 2
    %v9828 = vsel %vm8803, %v9827, %v9807
    %v9829 = vrot.slane %v9784, 2
    %v9830 = vsel %vm8803, %v9829, %v9807
    %v9831 = vrot.slane %v9785, 2
    %v9832 = vsel %vm8803, %v9831, %v9807
    %v9833 = vrot.slane %v9786, 2
    %v9834 = vsel %vm8803, %v9833, %v9807
    %v9835 = vrot.slane %v9787, 2
    %v9836 = vsel %vm8803, %v9835, %v9807
    %v9837 = vrot.slane %v9788, 2
    %v9838 = vsel %vm8803, %v9837, %v9807
    %v9855 = vadd.f32 %v9752, %v9808
    %v9856 = vadd.f32 %v9753, %v9810
    %v9857 = vadd.f32 %v9754, %v9812
    %v9858 = vadd.f32 %v9755, %v9814
    %v9859 = vadd.f32 %v9756, %v9816
    %v9860 = vadd.f32 %v9757, %v9818
    %v9861 = vadd.f32 %v9758, %v9820
    %v9862 = vadd.f32 %v9759, %v9822
    %v9863 = vadd.f32 %v9760, %v9824
    %v9864 = vadd.f32 %v9761, %v9826
    %v9865 = vadd.f32 %v9762, %v9828
    %v9866 = vadd.f32 %v9763, %v9830
    %v9867 = vadd.f32 %v9764, %v9832
    %v9868 = vadd.f32 %v9765, %v9834
    %v9869 = vadd.f32 %v9766, %v9836
    %v9870 = vadd.f32 %v9767, %v9838
    %v9871 = vlaneseq
    %v9872 = vshrl.u32 %v9871, 7
    %v9873 = vsub.s32 3, %v9872
    %v9874 = vrot.slane %v8550, %v9873
    %v9875 = vmul.f32 %v8533, %v9874
    %v9876 = vmul.f32 %v9874, 0.0
    %v9877 = vmul.f32 %v8534, %v9874
    %v9878 = vmul.f32 %v8535, %v9874
    %v9879 = vmul.f32 %v8536, %v9874
    %v9880 = vmul.f32 %v8537, %v9874
    %v9881 = vmul.f32 %v8538, %v9874
    %v9882 = vmul.f32 %v8539, %v9874
    %v9883 = vmul.f32 %v8540, %v9874
    %v9884 = vmul.f32 %v8541, %v9874
    %v9885 = vmul.f32 %v8542, %v9874
    %v9886 = vmul.f32 %v8543, %v9874
    %v9887 = vmul.f32 %v8544, %v9874
    %v9888 = vmul.f32 %v8545, %v9874
    %v9889 = vmul.f32 %v8546, %v9874
    %v9890 = vmul.f32 %v8547, %v9874
    %v9891 = vmul.f32 %v8548, %v9874
    %v9909 = vrot.slane %v9875, 3
    %v9910 = vrot.slane %v9876, 3
    %v9911 = vsel %vm8952, %v9909, %v9910
    %v9912 = vrot.slane %v9877, 3
    %v9913 = vsel %vm8952, %v9912, %v9910
    %v9914 = vrot.slane %v9878, 3
    %v9915 = vsel %vm8952, %v9914, %v9910
    %v9916 = vrot.slane %v9879, 3
    %v9917 = vsel %vm8952, %v9916, %v9910
    %v9918 = vrot.slane %v9880, 3
    %v9919 = vsel %vm8952, %v9918, %v9910
    %v9920 = vrot.slane %v9881, 3
    %v9921 = vsel %vm8952, %v9920, %v9910
    %v9922 = vrot.slane %v9882, 3
    %v9923 = vsel %vm8952, %v9922, %v9910
    %v9924 = vrot.slane %v9883, 3
    %v9925 = vsel %vm8952, %v9924, %v9910
    %v9926 = vrot.slane %v9884, 3
    %v9927 = vsel %vm8952, %v9926, %v9910
    %v9928 = vrot.slane %v9885, 3
    %v9929 = vsel %vm8952, %v9928, %v9910
    %v9930 = vrot.slane %v9886, 3
    %v9931 = vsel %vm8952, %v9930, %v9910
    %v9932 = vrot.slane %v9887, 3
    %v9933 = vsel %vm8952, %v9932, %v9910
    %v9934 = vrot.slane %v9888, 3
    %v9935 = vsel %vm8952, %v9934, %v9910
    %v9936 = vrot.slane %v9889, 3
    %v9937 = vsel %vm8952, %v9936, %v9910
    %v9938 = vrot.slane %v9890, 3
    %v9939 = vsel %vm8952, %v9938, %v9910
    %v9940 = vrot.slane %v9891, 3
    %v9941 = vsel %vm8952, %v9940, %v9910
    %v9958 = vadd.f32 %v9855, %v9911
    %v9959 = vadd.f32 %v9856, %v9913
    %v9960 = vadd.f32 %v9857, %v9915
    %v9961 = vadd.f32 %v9858, %v9917
    %v9962 = vadd.f32 %v9859, %v9919
    %v9963 = vadd.f32 %v9860, %v9921
    %v9964 = vadd.f32 %v9861, %v9923
    %v9965 = vadd.f32 %v9862, %v9925
    %v9966 = vadd.f32 %v9863, %v9927
    %v9967 = vadd.f32 %v9864, %v9929
    %v9968 = vadd.f32 %v9865, %v9931
    %v9969 = vadd.f32 %v9866, %v9933
    %v9970 = vadd.f32 %v9867, %v9935
    %v9971 = vadd.f32 %v9868, %v9937
    %v9972 = vadd.f32 %v9869, %v9939
    %v9973 = vadd.f32 %v9870, %v9941
    %v9974 = vlaneseq
    %v9975 = vshrl.u32 %v9974, 7
    %v9976 = vsub.s32 4, %v9975
    %v9977 = vrot.slane %v8550, %v9976
    %v9978 = vmul.f32 %v8533, %v9977
    %v9979 = vmul.f32 %v9977, 0.0
    %v9980 = vmul.f32 %v8534, %v9977
    %v9981 = vmul.f32 %v8535, %v9977
    %v9982 = vmul.f32 %v8536, %v9977
    %v9983 = vmul.f32 %v8537, %v9977
    %v9984 = vmul.f32 %v8538, %v9977
    %v9985 = vmul.f32 %v8539, %v9977
    %v9986 = vmul.f32 %v8540, %v9977
    %v9987 = vmul.f32 %v8541, %v9977
    %v9988 = vmul.f32 %v8542, %v9977
    %v9989 = vmul.f32 %v8543, %v9977
    %v9990 = vmul.f32 %v8544, %v9977
    %v9991 = vmul.f32 %v8545, %v9977
    %v9992 = vmul.f32 %v8546, %v9977
    %v9993 = vmul.f32 %v8547, %v9977
    %v9994 = vmul.f32 %v8548, %v9977
    %v10012 = vrot.slane %v9978, 4
    %v10013 = vrot.slane %v9979, 4
    %v10014 = vsel %vm9101, %v10012, %v10013
    %v10015 = vrot.slane %v9980, 4
    %v10016 = vsel %vm9101, %v10015, %v10013
    %v10017 = vrot.slane %v9981, 4
    %v10018 = vsel %vm9101, %v10017, %v10013
    %v10019 = vrot.slane %v9982, 4
    %v10020 = vsel %vm9101, %v10019, %v10013
    %v10021 = vrot.slane %v9983, 4
    %v10022 = vsel %vm9101, %v10021, %v10013
    %v10023 = vrot.slane %v9984, 4
    %v10024 = vsel %vm9101, %v10023, %v10013
    %v10025 = vrot.slane %v9985, 4
    %v10026 = vsel %vm9101, %v10025, %v10013
    %v10027 = vrot.slane %v9986, 4
    %v10028 = vsel %vm9101, %v10027, %v10013
    %v10029 = vrot.slane %v9987, 4
    %v10030 = vsel %vm9101, %v10029, %v10013
    %v10031 = vrot.slane %v9988, 4
    %v10032 = vsel %vm9101, %v10031, %v10013
    %v10033 = vrot.slane %v9989, 4
    %v10034 = vsel %vm9101, %v10033, %v10013
    %v10035 = vrot.slane %v9990, 4
    %v10036 = vsel %vm9101, %v10035, %v10013
    %v10037 = vrot.slane %v9991, 4
    %v10038 = vsel %vm9101, %v10037, %v10013
    %v10039 = vrot.slane %v9992, 4
    %v10040 = vsel %vm9101, %v10039, %v10013
    %v10041 = vrot.slane %v9993, 4
    %v10042 = vsel %vm9101, %v10041, %v10013
    %v10043 = vrot.slane %v9994, 4
    %v10044 = vsel %vm9101, %v10043, %v10013
    %v10061 = vadd.f32 %v9958, %v10014
    %v10062 = vadd.f32 %v9959, %v10016
    %v10063 = vadd.f32 %v9960, %v10018
    %v10064 = vadd.f32 %v9961, %v10020
    %v10065 = vadd.f32 %v9962, %v10022
    %v10066 = vadd.f32 %v9963, %v10024
    %v10067 = vadd.f32 %v9964, %v10026
    %v10068 = vadd.f32 %v9965, %v10028
    %v10069 = vadd.f32 %v9966, %v10030
    %v10070 = vadd.f32 %v9967, %v10032
    %v10071 = vadd.f32 %v9968, %v10034
    %v10072 = vadd.f32 %v9969, %v10036
    %v10073 = vadd.f32 %v9970, %v10038
    %v10074 = vadd.f32 %v9971, %v10040
    %v10075 = vadd.f32 %v9972, %v10042
    %v10076 = vadd.f32 %v9973, %v10044
    %v10077 = vlaneseq
    %v10078 = vshrl.u32 %v10077, 7
    %v10079 = vsub.s32 5, %v10078
    %v10080 = vrot.slane %v8550, %v10079
    %v10081 = vmul.f32 %v8533, %v10080
    %v10082 = vmul.f32 %v10080, 0.0
    %v10083 = vmul.f32 %v8534, %v10080
    %v10084 = vmul.f32 %v8535, %v10080
    %v10085 = vmul.f32 %v8536, %v10080
    %v10086 = vmul.f32 %v8537, %v10080
    %v10087 = vmul.f32 %v8538, %v10080
    %v10088 = vmul.f32 %v8539, %v10080
    %v10089 = vmul.f32 %v8540, %v10080
    %v10090 = vmul.f32 %v8541, %v10080
    %v10091 = vmul.f32 %v8542, %v10080
    %v10092 = vmul.f32 %v8543, %v10080
    %v10093 = vmul.f32 %v8544, %v10080
    %v10094 = vmul.f32 %v8545, %v10080
    %v10095 = vmul.f32 %v8546, %v10080
    %v10096 = vmul.f32 %v8547, %v10080
    %v10097 = vmul.f32 %v8548, %v10080
    %v10115 = vrot.slane %v10081, 5
    %v10116 = vrot.slane %v10082, 5
    %v10117 = vsel %vm9250, %v10115, %v10116
    %v10118 = vrot.slane %v10083, 5
    %v10119 = vsel %vm9250, %v10118, %v10116
    %v10120 = vrot.slane %v10084, 5
    %v10121 = vsel %vm9250, %v10120, %v10116
    %v10122 = vrot.slane %v10085, 5
    %v10123 = vsel %vm9250, %v10122, %v10116
    %v10124 = vrot.slane %v10086, 5
    %v10125 = vsel %vm9250, %v10124, %v10116
    %v10126 = vrot.slane %v10087, 5
    %v10127 = vsel %vm9250, %v10126, %v10116
    %v10128 = vrot.slane %v10088, 5
    %v10129 = vsel %vm9250, %v10128, %v10116
    %v10130 = vrot.slane %v10089, 5
    %v10131 = vsel %vm9250, %v10130, %v10116
    %v10132 = vrot.slane %v10090, 5
    %v10133 = vsel %vm9250, %v10132, %v10116
    %v10134 = vrot.slane %v10091, 5
    %v10135 = vsel %vm9250, %v10134, %v10116
    %v10136 = vrot.slane %v10092, 5
    %v10137 = vsel %vm9250, %v10136, %v10116
    %v10138 = vrot.slane %v10093, 5
    %v10139 = vsel %vm9250, %v10138, %v10116
    %v10140 = vrot.slane %v10094, 5
    %v10141 = vsel %vm9250, %v10140, %v10116
    %v10142 = vrot.slane %v10095, 5
    %v10143 = vsel %vm9250, %v10142, %v10116
    %v10144 = vrot.slane %v10096, 5
    %v10145 = vsel %vm9250, %v10144, %v10116
    %v10146 = vrot.slane %v10097, 5
    %v10147 = vsel %vm9250, %v10146, %v10116
    %v10164 = vadd.f32 %v10061, %v10117
    %v10165 = vadd.f32 %v10062, %v10119
    %v10166 = vadd.f32 %v10063, %v10121
    %v10167 = vadd.f32 %v10064, %v10123
    %v10168 = vadd.f32 %v10065, %v10125
    %v10169 = vadd.f32 %v10066, %v10127
    %v10170 = vadd.f32 %v10067, %v10129
    %v10171 = vadd.f32 %v10068, %v10131
    %v10172 = vadd.f32 %v10069, %v10133
    %v10173 = vadd.f32 %v10070, %v10135
    %v10174 = vadd.f32 %v10071, %v10137
    %v10175 = vadd.f32 %v10072, %v10139
    %v10176 = vadd.f32 %v10073, %v10141
    %v10177 = vadd.f32 %v10074, %v10143
    %v10178 = vadd.f32 %v10075, %v10145
    %v10179 = vadd.f32 %v10076, %v10147
    %v10180 = vlaneseq
    %v10181 = vshrl.u32 %v10180, 7
    %v10182 = vsub.s32 6, %v10181
    %v10183 = vrot.slane %v8550, %v10182
    %v10184 = vmul.f32 %v8533, %v10183
    %v10185 = vmul.f32 %v10183, 0.0
    %v10186 = vmul.f32 %v8534, %v10183
    %v10187 = vmul.f32 %v8535, %v10183
    %v10188 = vmul.f32 %v8536, %v10183
    %v10189 = vmul.f32 %v8537, %v10183
    %v10190 = vmul.f32 %v8538, %v10183
    %v10191 = vmul.f32 %v8539, %v10183
    %v10192 = vmul.f32 %v8540, %v10183
    %v10193 = vmul.f32 %v8541, %v10183
    %v10194 = vmul.f32 %v8542, %v10183
    %v10195 = vmul.f32 %v8543, %v10183
    %v10196 = vmul.f32 %v8544, %v10183
    %v10197 = vmul.f32 %v8545, %v10183
    %v10198 = vmul.f32 %v8546, %v10183
    %v10199 = vmul.f32 %v8547, %v10183
    %v10200 = vmul.f32 %v8548, %v10183
    %v10218 = vrot.slane %v10184, 6
    %v10219 = vrot.slane %v10185, 6
    %v10220 = vsel %vm9399, %v10218, %v10219
    %v10221 = vrot.slane %v10186, 6
    %v10222 = vsel %vm9399, %v10221, %v10219
    %v10223 = vrot.slane %v10187, 6
    %v10224 = vsel %vm9399, %v10223, %v10219
    %v10225 = vrot.slane %v10188, 6
    %v10226 = vsel %vm9399, %v10225, %v10219
    %v10227 = vrot.slane %v10189, 6
    %v10228 = vsel %vm9399, %v10227, %v10219
    %v10229 = vrot.slane %v10190, 6
    %v10230 = vsel %vm9399, %v10229, %v10219
    %v10231 = vrot.slane %v10191, 6
    %v10232 = vsel %vm9399, %v10231, %v10219
    %v10233 = vrot.slane %v10192, 6
    %v10234 = vsel %vm9399, %v10233, %v10219
    %v10235 = vrot.slane %v10193, 6
    %v10236 = vsel %vm9399, %v10235, %v10219
    %v10237 = vrot.slane %v10194, 6
    %v10238 = vsel %vm9399, %v10237, %v10219
    %v10239 = vrot.slane %v10195, 6
    %v10240 = vsel %vm9399, %v10239, %v10219
    %v10241 = vrot.slane %v10196, 6
    %v10242 = vsel %vm9399, %v10241, %v10219
    %v10243 = vrot.slane %v10197, 6
    %v10244 = vsel %vm9399, %v10243, %v10219
    %v10245 = vrot.slane %v10198, 6
    %v10246 = vsel %vm9399, %v10245, %v10219
    %v10247 = vrot.slane %v10199, 6
    %v10248 = vsel %vm9399, %v10247, %v10219
    %v10249 = vrot.slane %v10200, 6
    %v10250 = vsel %vm9399, %v10249, %v10219
    %v10267 = vadd.f32 %v10164, %v10220
    %v10268 = vadd.f32 %v10165, %v10222
    %v10269 = vadd.f32 %v10166, %v10224
    %v10270 = vadd.f32 %v10167, %v10226
    %v10271 = vadd.f32 %v10168, %v10228
    %v10272 = vadd.f32 %v10169, %v10230
    %v10273 = vadd.f32 %v10170, %v10232
    %v10274 = vadd.f32 %v10171, %v10234
    %v10275 = vadd.f32 %v10172, %v10236
    %v10276 = vadd.f32 %v10173, %v10238
    %v10277 = vadd.f32 %v10174, %v10240
    %v10278 = vadd.f32 %v10175, %v10242
    %v10279 = vadd.f32 %v10176, %v10244
    %v10280 = vadd.f32 %v10177, %v10246
    %v10281 = vadd.f32 %v10178, %v10248
    %v10282 = vadd.f32 %v10179, %v10250
    %v10283 = vld [vmem:[%s45] sm:$0x1]
    %v10285 = vlaneseq
    %v10286 = vshrl.u32 %v10285, 7
    %v10287 = vsub.s32 0, %v10286
    %v10288 = vrot.slane %v10283, %v10287
    %v10290 = vadd.f32 %v10267, %v10288
    %v10291 = vadd.f32 %v10268, %v10288
    %v10292 = vadd.f32 %v10269, %v10288
    %v10293 = vadd.f32 %v10270, %v10288
    %v10294 = vadd.f32 %v10271, %v10288
    %v10295 = vadd.f32 %v10272, %v10288
    %v10296 = vadd.f32 %v10273, %v10288
    %v10297 = vadd.f32 %v10274, %v10288
    %v10298 = vadd.f32 %v10275, %v10288
    %v10299 = vadd.f32 %v10276, %v10288
    %v10300 = vadd.f32 %v10277, %v10288
    %v10301 = vadd.f32 %v10278, %v10288
    %v10302 = vadd.f32 %v10279, %v10288
    %v10303 = vadd.f32 %v10280, %v10288
    %v10304 = vadd.f32 %v10281, %v10288
    %v10305 = vadd.f32 %v10282, %v10288
    %vm10306 = vcmask 523264
    %v10307 = vsel %vm10306, %v10290, 0.0
    %v10308 = vsel %vm10306, %v10291, 0.0
    %v10309 = vadd.f32 %v10307, %v10308
    %v10310 = vsel %vm10306, %v10292, 0.0
    %v10311 = vadd.f32 %v10309, %v10310
    %v10312 = vsel %vm10306, %v10293, 0.0
    %v10313 = vadd.f32 %v10311, %v10312
    %v10314 = vsel %vm10306, %v10294, 0.0
    %v10315 = vadd.f32 %v10313, %v10314
    %v10316 = vsel %vm10306, %v10295, 0.0
    %v10317 = vadd.f32 %v10315, %v10316
    %v10318 = vsel %vm10306, %v10296, 0.0
    %v10319 = vadd.f32 %v10317, %v10318
    %v10320 = vsel %vm10306, %v10297, 0.0
    %v10321 = vadd.f32 %v10319, %v10320
    %v10322 = vsel %vm10306, %v10298, 0.0
    %v10323 = vadd.f32 %v10321, %v10322
    %v10324 = vsel %vm10306, %v10299, 0.0
    %v10325 = vadd.f32 %v10323, %v10324
    %v10326 = vsel %vm10306, %v10300, 0.0
    %v10327 = vadd.f32 %v10325, %v10326
    %v10328 = vsel %vm10306, %v10301, 0.0
    %v10329 = vadd.f32 %v10327, %v10328
    %v10330 = vsel %vm10306, %v10302, 0.0
    %v10331 = vadd.f32 %v10329, %v10330
    %v10332 = vsel %vm10306, %v10303, 0.0
    %v10333 = vadd.f32 %v10331, %v10332
    %v10334 = vsel %vm10306, %v10304, 0.0
    %v10335 = vadd.f32 %v10333, %v10334
    %v10336 = vsel %vm10306, %v10305, 0.0
    %v10337 = vadd.f32 %v10335, %v10336
    %v10338 = vrot.slane %v10337, 4
    %v10339 = vadd.f32 %v10337, %v10338
    %v10340 = vrot.slane %v10339, 2
    %v10341 = vadd.f32 %v10339, %v10340
    %v10342 = vrot.slane %v10341, 1
    %v10343 = vadd.f32 %v10341, %v10342
    %v10344 = vrcp.pop 128.0
    %v10345 = vmul.f32 %v10343, %v10344
    %v10346 = vsub.f32 %v10290, %v10345
    %v10347 = vsub.f32 %v10291, %v10345
    %v10348 = vsub.f32 %v10292, %v10345
    %v10349 = vsub.f32 %v10293, %v10345
    %v10350 = vsub.f32 %v10294, %v10345
    %v10351 = vsub.f32 %v10295, %v10345
    %v10352 = vsub.f32 %v10296, %v10345
    %v10353 = vsub.f32 %v10297, %v10345
    %v10354 = vsub.f32 %v10298, %v10345
    %v10355 = vsub.f32 %v10299, %v10345
    %v10356 = vsub.f32 %v10300, %v10345
    %v10357 = vsub.f32 %v10301, %v10345
    %v10358 = vsub.f32 %v10302, %v10345
    %v10359 = vsub.f32 %v10303, %v10345
    %v10360 = vsub.f32 %v10304, %v10345
    %v10361 = vsub.f32 %v10305, %v10345
    %v10362 = vmul.f32 %v10346, %v10346
    %v10363 = vmul.f32 %v10347, %v10347
    %v10364 = vmul.f32 %v10348, %v10348
    %v10365 = vmul.f32 %v10349, %v10349
    %v10366 = vmul.f32 %v10350, %v10350
    %v10367 = vmul.f32 %v10351, %v10351
    %v10368 = vmul.f32 %v10352, %v10352
    %v10369 = vmul.f32 %v10353, %v10353
    %v10370 = vmul.f32 %v10354, %v10354
    %v10371 = vmul.f32 %v10355, %v10355
    %v10372 = vmul.f32 %v10356, %v10356
    %v10373 = vmul.f32 %v10357, %v10357
    %v10374 = vmul.f32 %v10358, %v10358
    %v10375 = vmul.f32 %v10359, %v10359
    %v10376 = vmul.f32 %v10360, %v10360
    %v10377 = vmul.f32 %v10361, %v10361
    %v10378 = vsel %vm10306, %v10362, 0.0
    %v10379 = vsel %vm10306, %v10363, 0.0
    %v10380 = vadd.f32 %v10378, %v10379
    %v10381 = vsel %vm10306, %v10364, 0.0
    %v10382 = vadd.f32 %v10380, %v10381
    %v10383 = vsel %vm10306, %v10365, 0.0
    %v10384 = vadd.f32 %v10382, %v10383
    %v10385 = vsel %vm10306, %v10366, 0.0
    %v10386 = vadd.f32 %v10384, %v10385
    %v10387 = vsel %vm10306, %v10367, 0.0
    %v10388 = vadd.f32 %v10386, %v10387
    %v10389 = vsel %vm10306, %v10368, 0.0
    %v10390 = vadd.f32 %v10388, %v10389
    %v10391 = vsel %vm10306, %v10369, 0.0
    %v10392 = vadd.f32 %v10390, %v10391
    %v10393 = vsel %vm10306, %v10370, 0.0
    %v10394 = vadd.f32 %v10392, %v10393
    %v10395 = vsel %vm10306, %v10371, 0.0
    %v10396 = vadd.f32 %v10394, %v10395
    %v10397 = vsel %vm10306, %v10372, 0.0
    %v10398 = vadd.f32 %v10396, %v10397
    %v10399 = vsel %vm10306, %v10373, 0.0
    %v10400 = vadd.f32 %v10398, %v10399
    %v10401 = vsel %vm10306, %v10374, 0.0
    %v10402 = vadd.f32 %v10400, %v10401
    %v10403 = vsel %vm10306, %v10375, 0.0
    %v10404 = vadd.f32 %v10402, %v10403
    %v10405 = vsel %vm10306, %v10376, 0.0
    %v10406 = vadd.f32 %v10404, %v10405
    %v10407 = vsel %vm10306, %v10377, 0.0
    %v10408 = vadd.f32 %v10406, %v10407
    %v10409 = vrot.slane %v10408, 4
    %v10410 = vadd.f32 %v10408, %v10409
    %v10411 = vrot.slane %v10410, 2
    %v10412 = vadd.f32 %v10410, %v10411
    %v10413 = vrot.slane %v10412, 1
    %v10414 = vadd.f32 %v10412, %v10413
    %v10415 = vmul.f32 %v10414, %v10344
    %v10416 = vadd.f32 %v10415, 1e-05
    %v10417 = vrsqrt.pop %v10416
    %v10418 = vmul.f32 %v10346, %v10417
    %v10419 = vmul.f32 %v10347, %v10417
    %v10420 = vmul.f32 %v10348, %v10417
    %v10421 = vmul.f32 %v10349, %v10417
    %v10422 = vmul.f32 %v10350, %v10417
    %v10423 = vmul.f32 %v10351, %v10417
    %v10424 = vmul.f32 %v10352, %v10417
    %v10425 = vmul.f32 %v10353, %v10417
    %v10426 = vmul.f32 %v10354, %v10417
    %v10427 = vmul.f32 %v10355, %v10417
    %v10428 = vmul.f32 %v10356, %v10417
    %v10429 = vmul.f32 %v10357, %v10417
    %v10430 = vmul.f32 %v10358, %v10417
    %v10431 = vmul.f32 %v10359, %v10417
    %v10432 = vmul.f32 %v10360, %v10417
    %v10433 = vmul.f32 %v10361, %v10417
    %v10434 = vld [vmem:[%s47] sm:$0x1]
    %v10436 = vlaneseq
    %v10437 = vshrl.u32 %v10436, 7
    %v10438 = vsub.s32 0, %v10437
    %v10439 = vrot.slane %v10434, %v10438
    %v10441 = vmul.f32 %v10418, %v10439
    %v10442 = vmul.f32 %v10419, %v10439
    %v10443 = vmul.f32 %v10420, %v10439
    %v10444 = vmul.f32 %v10421, %v10439
    %v10445 = vmul.f32 %v10422, %v10439
    %v10446 = vmul.f32 %v10423, %v10439
    %v10447 = vmul.f32 %v10424, %v10439
    %v10448 = vmul.f32 %v10425, %v10439
    %v10449 = vmul.f32 %v10426, %v10439
    %v10450 = vmul.f32 %v10427, %v10439
    %v10451 = vmul.f32 %v10428, %v10439
    %v10452 = vmul.f32 %v10429, %v10439
    %v10453 = vmul.f32 %v10430, %v10439
    %v10454 = vmul.f32 %v10431, %v10439
    %v10455 = vmul.f32 %v10432, %v10439
    %v10456 = vmul.f32 %v10433, %v10439
    %v10457 = vld [vmem:[%s49] sm:$0x1]
    %v10459 = vlaneseq
    %v10460 = vshrl.u32 %v10459, 7
    %v10461 = vsub.s32 0, %v10460
    %v10462 = vrot.slane %v10457, %v10461
    %v10464 = vadd.f32 %v10441, %v10462
    %v10465 = vadd.f32 %v10442, %v10462
    %v10466 = vadd.f32 %v10443, %v10462
    %v10467 = vadd.f32 %v10444, %v10462
    %v10468 = vadd.f32 %v10445, %v10462
    %v10469 = vadd.f32 %v10446, %v10462
    %v10470 = vadd.f32 %v10447, %v10462
    %v10471 = vadd.f32 %v10448, %v10462
    %v10472 = vadd.f32 %v10449, %v10462
    %v10473 = vadd.f32 %v10450, %v10462
    %v10474 = vadd.f32 %v10451, %v10462
    %v10475 = vadd.f32 %v10452, %v10462
    %v10476 = vadd.f32 %v10453, %v10462
    %v10477 = vadd.f32 %v10454, %v10462
    %v10478 = vadd.f32 %v10455, %v10462
    %v10479 = vadd.f32 %v10456, %v10462
    %v10480 = vxor.u32 %v10464, 2147483648
    %v10481 = vxor.u32 %v10465, 2147483648
    %v10482 = vxor.u32 %v10466, 2147483648
    %v10483 = vxor.u32 %v10467, 2147483648
    %v10484 = vxor.u32 %v10468, 2147483648
    %v10485 = vxor.u32 %v10469, 2147483648
    %v10486 = vxor.u32 %v10470, 2147483648
    %v10487 = vxor.u32 %v10471, 2147483648
    %v10488 = vxor.u32 %v10472, 2147483648
    %v10489 = vxor.u32 %v10473, 2147483648
    %v10490 = vxor.u32 %v10474, 2147483648
    %v10491 = vxor.u32 %v10475, 2147483648
    %v10492 = vxor.u32 %v10476, 2147483648
    %v10493 = vxor.u32 %v10477, 2147483648
    %v10494 = vxor.u32 %v10478, 2147483648
    %v10495 = vxor.u32 %v10479, 2147483648
    %v10496 = vmul.f32 %v10480, 1.442695
    %v10497 = vpow.pop %v10496
    %v10498 = vmul.f32 %v10481, 1.442695
    %v10499 = vpow.pop %v10498
    %v10500 = vmul.f32 %v10482, 1.442695
    %v10501 = vpow.pop %v10500
    %v10502 = vmul.f32 %v10483, 1.442695
    %v10503 = vpow.pop %v10502
    %v10504 = vmul.f32 %v10484, 1.442695
    %v10505 = vpow.pop %v10504
    %v10506 = vmul.f32 %v10485, 1.442695
    %v10507 = vpow.pop %v10506
    %v10508 = vmul.f32 %v10486, 1.442695
    %v10509 = vpow.pop %v10508
    %v10510 = vmul.f32 %v10487, 1.442695
    %v10511 = vpow.pop %v10510
    %v10512 = vmul.f32 %v10488, 1.442695
    %v10513 = vpow.pop %v10512
    %v10514 = vmul.f32 %v10489, 1.442695
    %v10515 = vpow.pop %v10514
    %v10516 = vmul.f32 %v10490, 1.442695
    %v10517 = vpow.pop %v10516
    %v10518 = vmul.f32 %v10491, 1.442695
    %v10519 = vpow.pop %v10518
    %v10520 = vmul.f32 %v10492, 1.442695
    %v10521 = vpow.pop %v10520
    %v10522 = vmul.f32 %v10493, 1.442695
    %v10523 = vpow.pop %v10522
    %v10524 = vmul.f32 %v10494, 1.442695
    %v10525 = vpow.pop %v10524
    %v10526 = vmul.f32 %v10495, 1.442695
    %v10527 = vpow.pop %v10526
    %v10528 = vadd.f32 %v10497, 1.0
    %v10529 = vadd.f32 %v10499, 1.0
    %v10530 = vadd.f32 %v10501, 1.0
    %v10531 = vadd.f32 %v10503, 1.0
    %v10532 = vadd.f32 %v10505, 1.0
    %v10533 = vadd.f32 %v10507, 1.0
    %v10534 = vadd.f32 %v10509, 1.0
    %v10535 = vadd.f32 %v10511, 1.0
    %v10536 = vadd.f32 %v10513, 1.0
    %v10537 = vadd.f32 %v10515, 1.0
    %v10538 = vadd.f32 %v10517, 1.0
    %v10539 = vadd.f32 %v10519, 1.0
    %v10540 = vadd.f32 %v10521, 1.0
    %v10541 = vadd.f32 %v10523, 1.0
    %v10542 = vadd.f32 %v10525, 1.0
    %v10543 = vadd.f32 %v10527, 1.0
    %v10544 = vrcp.pop %v10528
    %v10545 = vmul.f32 1.0, %v10544
    %v10546 = vrcp.pop %v10529
    %v10547 = vmul.f32 1.0, %v10546
    %v10548 = vrcp.pop %v10530
    %v10549 = vmul.f32 1.0, %v10548
    %v10550 = vrcp.pop %v10531
    %v10551 = vmul.f32 1.0, %v10550
    %v10552 = vrcp.pop %v10532
    %v10553 = vmul.f32 1.0, %v10552
    %v10554 = vrcp.pop %v10533
    %v10555 = vmul.f32 1.0, %v10554
    %v10556 = vrcp.pop %v10534
    %v10557 = vmul.f32 1.0, %v10556
    %v10558 = vrcp.pop %v10535
    %v10559 = vmul.f32 1.0, %v10558
    %v10560 = vrcp.pop %v10536
    %v10561 = vmul.f32 1.0, %v10560
    %v10562 = vrcp.pop %v10537
    %v10563 = vmul.f32 1.0, %v10562
    %v10564 = vrcp.pop %v10538
    %v10565 = vmul.f32 1.0, %v10564
    %v10566 = vrcp.pop %v10539
    %v10567 = vmul.f32 1.0, %v10566
    %v10568 = vrcp.pop %v10540
    %v10569 = vmul.f32 1.0, %v10568
    %v10570 = vrcp.pop %v10541
    %v10571 = vmul.f32 1.0, %v10570
    %v10572 = vrcp.pop %v10542
    %v10573 = vmul.f32 1.0, %v10572
    %v10574 = vrcp.pop %v10543
    %v10575 = vmul.f32 1.0, %v10574
    %v10576 = vmul.f32 %v10464, %v10545
    %v10577 = vmul.f32 %v10465, %v10547
    %v10578 = vmul.f32 %v10466, %v10549
    %v10579 = vmul.f32 %v10467, %v10551
    %v10580 = vmul.f32 %v10468, %v10553
    %v10581 = vmul.f32 %v10469, %v10555
    %v10582 = vmul.f32 %v10470, %v10557
    %v10583 = vmul.f32 %v10471, %v10559
    %v10584 = vmul.f32 %v10472, %v10561
    %v10585 = vmul.f32 %v10473, %v10563
    %v10586 = vmul.f32 %v10474, %v10565
    %v10587 = vmul.f32 %v10475, %v10567
    %v10588 = vmul.f32 %v10476, %v10569
    %v10589 = vmul.f32 %v10477, %v10571
    %v10590 = vmul.f32 %v10478, %v10573
    %v10591 = vmul.f32 %v10479, %v10575
    %v10592 = vld [vmem:[%s51] sm:$0xff]
    %v10593 = vld [vmem:[%s51 + $0x8] sm:$0xff]
    %v10594 = vld [vmem:[%s51 + $0x10] sm:$0xff]
    %v10595 = vld [vmem:[%s51 + $0x18] sm:$0xff]
    %v10596 = vld [vmem:[%s51 + $0x20] sm:$0xff]
    %v10597 = vld [vmem:[%s51 + $0x28] sm:$0xff]
    %v10598 = vld [vmem:[%s51 + $0x30] sm:$0xff]
    %v10599 = vld [vmem:[%s51 + $0x38] sm:$0xff]
    %v10601 = vsel %vm10306, %v10576, 0
    %v10604 = vsel %vm10306, %v10577, 0
    %v10607 = vsel %vm10306, %v10578, 0
    %v10610 = vsel %vm10306, %v10579, 0
    %v10613 = vsel %vm10306, %v10580, 0
    %v10616 = vsel %vm10306, %v10581, 0
    %v10619 = vsel %vm10306, %v10582, 0
    %v10622 = vsel %vm10306, %v10583, 0
    %v10625 = vsel %vm10306, %v10584, 0
    %v10628 = vsel %vm10306, %v10585, 0
    %v10631 = vsel %vm10306, %v10586, 0
    %v10634 = vsel %vm10306, %v10587, 0
    %v10637 = vsel %vm10306, %v10588, 0
    %v10640 = vsel %vm10306, %v10589, 0
    %v10643 = vsel %vm10306, %v10590, 0
    %v10646 = vsel %vm10306, %v10591, 0
    %10648 = vmatprep.subr.mxu0 0.0
    %10649 = vmatpush1.msra.mxu0 %v10592
    %10650 = vmatprep.subr.mxu0 0.0
    %10651 = vmatpush1.msra.mxu0 %v10593
    %10652 = vmatprep.subr.mxu0 0.0
    %10653 = vmatpush1.msra.mxu0 %v10594
    %10654 = vmatprep.subr.mxu0 0.0
    %10655 = vmatpush1.msra.mxu0 %v10595
    %10656 = vmatprep.subr.mxu0 0.0
    %10657 = vmatpush1.msra.mxu0 %v10596
    %10658 = vmatprep.subr.mxu0 0.0
    %10659 = vmatpush1.msra.mxu0 %v10597
    %10660 = vmatprep.subr.mxu0 0.0
    %10661 = vmatpush1.msra.mxu0 %v10598
    %10662 = vmatprep.subr.mxu0 0.0
    %10663 = vmatpush1.msra.mxu0 %v10599
    %10664 = vmatprep.subr.mxu0 0.0
    %10665 = vmatpush1.msra.mxu0 0.0
    %10666 = vmatprep.subr.mxu0 0.0
    %10667 = vmatpush1.msra.mxu0 0.0
    %10668 = vmatprep.subr.mxu0 0.0
    %10669 = vmatpush1.msra.mxu0 0.0
    %10670 = vmatprep.subr.mxu0 0.0
    %10671 = vmatpush1.msra.mxu0 0.0
    %10672 = vmatprep.subr.mxu0 0.0
    %10673 = vmatpush1.msra.mxu0 0.0
    %10674 = vmatprep.subr.mxu0 0.0
    %10675 = vmatpush1.msra.mxu0 0.0
    %10676 = vmatprep.subr.mxu0 0.0
    %10677 = vmatpush1.msra.mxu0 0.0
    %10678 = vmatprep.subr.mxu0 0.0
    %10679 = vmatpush1.msra.mxu0 0.0
    %10680 = vmatprep.subr.mxu0 0.0
    %10681 = vmatpush1.msra.mxu0 0.0
    %10682 = vmatprep.subr.mxu0 0.0
    %10683 = vmatpush1.msra.mxu0 0.0
    %10684 = vmatprep.subr.mxu0 0.0
    %10685 = vmatpush1.msra.mxu0 0.0
    %10686 = vmatprep.subr.mxu0 0.0
    %10687 = vmatpush1.msra.mxu0 0.0
    %10688 = vmatprep.subr.mxu0 0.0
    %10689 = vmatpush1.msra.mxu0 0.0
    %10690 = vmatprep.subr.mxu0 0.0
    %10691 = vmatpush1.msra.mxu0 0.0
    %10692 = vmatprep.subr.mxu0 0.0
    %10693 = vmatpush1.msra.mxu0 0.0
    %10694 = vmatprep.subr.mxu0 0.0
    %10695 = vmatpush1.msra.mxu0 0.0
    %10696 = vmatprep.subr.mxu0 0.0
    %10697 = vmatpush1.msra.mxu0 0.0
    %10698 = vmatprep.subr.mxu0 0.0
    %10699 = vmatpush1.msra.mxu0 0.0
    %10700 = vmatprep.subr.mxu0 0.0
    %10701 = vmatpush1.msra.mxu0 0.0
    %10702 = vmatprep.subr.mxu0 0.0
    %10703 = vmatpush1.msra.mxu0 0.0
    %10704 = vmatprep.subr.mxu0 0.0
    %10705 = vmatpush1.msra.mxu0 0.0
    %10706 = vmatprep.subr.mxu0 0.0
    %10707 = vmatpush1.msra.mxu0 0.0
    %10708 = vmatprep.subr.mxu0 0.0
    %10709 = vmatpush1.msra.mxu0 0.0
    %10710 = vmatprep.subr.mxu0 0.0
    %10711 = vmatpush1.msra.mxu0 0.0
    %10712 = vmatprep.mubr.f32.mxu0 0.0
    %10713 = vmatmul.mubr.f32.gmra.mrb[0].mxu0 %v10601
    %v10714 = vpop.f32.mrb[0].mxu0
    %v10715 = vadd.f32 0.0, %v10714
    %v10716 = vpop.f32.mrb[0].mxu0
    %10717 = vmatprep.mubr.f32.mxu0 0.0
    %10718 = vmatmul.mubr.f32.gmra.mrb[0].mxu0 %v10604
    %v10719 = vpop.f32.mrb[0].mxu0
    %v10720 = vadd.f32 0.0, %v10719
    %v10721 = vpop.f32.mrb[0].mxu0
    %10722 = vmatprep.mubr.f32.mxu0 0.0
    %10723 = vmatmul.mubr.f32.gmra.mrb[0].mxu0 %v10607
    %v10724 = vpop.f32.mrb[0].mxu0
    %v10725 = vadd.f32 0.0, %v10724
    %v10726 = vpop.f32.mrb[0].mxu0
    %10727 = vmatprep.mubr.f32.mxu0 0.0
    %10728 = vmatmul.mubr.f32.gmra.mrb[0].mxu0 %v10610
    %v10729 = vpop.f32.mrb[0].mxu0
    %v10730 = vadd.f32 0.0, %v10729
    %v10731 = vpop.f32.mrb[0].mxu0
    %10732 = vmatprep.mubr.f32.mxu0 0.0
    %10733 = vmatmul.mubr.f32.gmra.mrb[0].mxu0 %v10613
    %v10734 = vpop.f32.mrb[0].mxu0
    %v10735 = vadd.f32 0.0, %v10734
    %v10736 = vpop.f32.mrb[0].mxu0
    %10737 = vmatprep.mubr.f32.mxu0 0.0
    %10738 = vmatmul.mubr.f32.gmra.mrb[0].mxu0 %v10616
    %v10739 = vpop.f32.mrb[0].mxu0
    %v10740 = vadd.f32 0.0, %v10739
    %v10741 = vpop.f32.mrb[0].mxu0
    %10742 = vmatprep.mubr.f32.mxu0 0.0
    %10743 = vmatmul.mubr.f32.gmra.mrb[0].mxu0 %v10619
    %v10744 = vpop.f32.mrb[0].mxu0
    %v10745 = vadd.f32 0.0, %v10744
    %v10746 = vpop.f32.mrb[0].mxu0
    %10747 = vmatprep.mubr.f32.mxu0 0.0
    %10748 = vmatmul.mubr.f32.gmra.mrb[0].mxu0 %v10622
    %v10749 = vpop.f32.mrb[0].mxu0
    %v10750 = vadd.f32 0.0, %v10749
    %v10751 = vpop.f32.mrb[0].mxu0
    %10752 = vmatprep.mubr.f32.mxu0 0.0
    %10753 = vmatmul.mubr.f32.gmra.mrb[0].mxu0 %v10625
    %v10754 = vpop.f32.mrb[0].mxu0
    %v10755 = vadd.f32 0.0, %v10754
    %v10756 = vpop.f32.mrb[0].mxu0
    %10757 = vmatprep.mubr.f32.mxu0 0.0
    %10758 = vmatmul.mubr.f32.gmra.mrb[0].mxu0 %v10628
    %v10759 = vpop.f32.mrb[0].mxu0
    %v10760 = vadd.f32 0.0, %v10759
    %v10761 = vpop.f32.mrb[0].mxu0
    %10762 = vmatprep.mubr.f32.mxu0 0.0
    %10763 = vmatmul.mubr.f32.gmra.mrb[0].mxu0 %v10631
    %v10764 = vpop.f32.mrb[0].mxu0
    %v10765 = vadd.f32 0.0, %v10764
    %v10766 = vpop.f32.mrb[0].mxu0
    %10767 = vmatprep.mubr.f32.mxu0 0.0
    %10768 = vmatmul.mubr.f32.gmra.mrb[0].mxu0 %v10634
    %v10769 = vpop.f32.mrb[0].mxu0
    %v10770 = vadd.f32 0.0, %v10769
    %v10771 = vpop.f32.mrb[0].mxu0
    %10772 = vmatprep.mubr.f32.mxu0 0.0
    %10773 = vmatmul.mubr.f32.gmra.mrb[0].mxu0 %v10637
    %v10774 = vpop.f32.mrb[0].mxu0
    %v10775 = vadd.f32 0.0, %v10774
    %v10776 = vpop.f32.mrb[0].mxu0
    %10777 = vmatprep.mubr.f32.mxu0 0.0
    %10778 = vmatmul.mubr.f32.gmra.mrb[0].mxu0 %v10640
    %v10779 = vpop.f32.mrb[0].mxu0
    %v10780 = vadd.f32 0.0, %v10779
    %v10781 = vpop.f32.mrb[0].mxu0
    %10782 = vmatprep.mubr.f32.mxu0 0.0
    %10783 = vmatmul.mubr.f32.gmra.mrb[0].mxu0 %v10643
    %v10784 = vpop.f32.mrb[0].mxu0
    %v10785 = vadd.f32 0.0, %v10784
    %v10786 = vpop.f32.mrb[0].mxu0
    %10787 = vmatprep.mubr.f32.mxu0 0.0
    %10788 = vmatmul.mubr.f32.gmra.mrb[0].mxu0 %v10646
    %v10789 = vpop.f32.mrb[0].mxu0
    %v10790 = vadd.f32 0.0, %v10789
    %v10791 = vpop.f32.mrb[0].mxu0
    %10792 = vdwg.mxu0
    %v10793 = vadd.f32 %v7818, %v10715
    %v10794 = vadd.f32 %v7819, %v10720
    %v10795 = vadd.f32 %v7820, %v10725
    %v10796 = vadd.f32 %v7821, %v10730
    %v10797 = vadd.f32 %v7822, %v10735
    %v10798 = vadd.f32 %v7823, %v10740
    %v10799 = vadd.f32 %v7824, %v10745
    %v10800 = vadd.f32 %v7825, %v10750
    %v10801 = vadd.f32 %v7826, %v10755
    %v10802 = vadd.f32 %v7827, %v10760
    %v10803 = vadd.f32 %v7828, %v10765
    %v10804 = vadd.f32 %v7829, %v10770
    %v10805 = vadd.f32 %v7830, %v10775
    %v10806 = vadd.f32 %v7831, %v10780
    %v10807 = vadd.f32 %v7832, %v10785
    %v10808 = vadd.f32 %v7833, %v10790
    %v10809 = vld [vmem:[%s53] sm:$0x1]
    %v10811 = vlaneseq
    %v10812 = vshrl.u32 %v10811, 7
    %v10813 = vsub.s32 0, %v10812
    %v10814 = vrot.slane %v10809, %v10813
    %v10816 = vadd.f32 %v10793, %v10814
    %v10817 = vadd.f32 %v10794, %v10814
    %v10818 = vadd.f32 %v10795, %v10814
    %v10819 = vadd.f32 %v10796, %v10814
    %v10820 = vadd.f32 %v10797, %v10814
    %v10821 = vadd.f32 %v10798, %v10814
    %v10822 = vadd.f32 %v10799, %v10814
    %v10823 = vadd.f32 %v10800, %v10814
    %v10824 = vadd.f32 %v10801, %v10814
    %v10825 = vadd.f32 %v10802, %v10814
    %v10826 = vadd.f32 %v10803, %v10814
    %v10827 = vadd.f32 %v10804, %v10814
    %v10828 = vadd.f32 %v10805, %v10814
    %v10829 = vadd.f32 %v10806, %v10814
    %v10830 = vadd.f32 %v10807, %v10814
    %v10831 = vadd.f32 %v10808, %v10814
    %v10832 = vld [vmem:[%s55] sm:$0x1]
    %v10833 = vld [vmem:[%s57] sm:$0x1]
    %v10834 = vld [vmem:[%s59] sm:$0xff]
    %v10835 = vld [vmem:[%s59 + $0x8] sm:$0xff]
    %v10836 = vld [vmem:[%s59 + $0x10] sm:$0xff]
    %v10837 = vld [vmem:[%s59 + $0x18] sm:$0xff]
    %v10838 = vld [vmem:[%s61] sm:$0x1]
    %v10839 = vld [vmem:[%s63] sm:$0xff]
    %v10840 = vld [vmem:[%s63 + $0x8] sm:$0xff]
    %v10841 = vld [vmem:[%s63 + $0x10] sm:$0xff]
    %v10842 = vld [vmem:[%s63 + $0x18] sm:$0xff]
    %v10843 = vld [vmem:[%s63 + $0x20] sm:$0xff]
    %v10844 = vld [vmem:[%s63 + $0x28] sm:$0xff]
    %v10845 = vld [vmem:[%s63 + $0x30] sm:$0xff]
    %v10846 = vld [vmem:[%s63 + $0x38] sm:$0xff]
    %v10847 = vld [vmem:[%s63 + $0x40] sm:$0xff]
    %v10848 = vld [vmem:[%s63 + $0x48] sm:$0xff]
    %v10849 = vld [vmem:[%s63 + $0x50] sm:$0xff]
    %v10850 = vld [vmem:[%s63 + $0x58] sm:$0xff]
    %v10851 = vld [vmem:[%s63 + $0x60] sm:$0xff]
    %v10852 = vld [vmem:[%s63 + $0x68] sm:$0xff]
    %v10853 = vld [vmem:[%s63 + $0x70] sm:$0xff]
    %v10854 = vld [vmem:[%s63 + $0x78] sm:$0xff]
    %v10855 = vld [vmem:[%s65] sm:$0x1]
    %v10856 = vsel %vm314, %v10816, 0.0
    %10857 = vadd.xlane.f32.xlu0 %v10856
    %v10858 = vpop.xlane.xlu0 %10857
    %v10859 = vsel %vm314, %v10817, 0.0
    %10860 = vadd.xlane.f32.xlu0 %v10859
    %v10861 = vpop.xlane.xlu0 %10860
    %v10862 = vsel %vm314, %v10818, 0.0
    %10863 = vadd.xlane.f32.xlu0 %v10862
    %v10864 = vpop.xlane.xlu0 %10863
    %v10865 = vsel %vm314, %v10819, 0.0
    %10866 = vadd.xlane.f32.xlu0 %v10865
    %v10867 = vpop.xlane.xlu0 %10866
    %v10868 = vsel %vm314, %v10820, 0.0
    %10869 = vadd.xlane.f32.xlu0 %v10868
    %v10870 = vpop.xlane.xlu0 %10869
    %v10871 = vsel %vm314, %v10821, 0.0
    %10872 = vadd.xlane.f32.xlu0 %v10871
    %v10873 = vpop.xlane.xlu0 %10872
    %v10874 = vsel %vm314, %v10822, 0.0
    %10875 = vadd.xlane.f32.xlu0 %v10874
    %v10876 = vpop.xlane.xlu0 %10875
    %v10877 = vsel %vm314, %v10823, 0.0
    %10878 = vadd.xlane.f32.xlu0 %v10877
    %v10879 = vpop.xlane.xlu0 %10878
    %v10880 = vsel %vm314, %v10824, 0.0
    %10881 = vadd.xlane.f32.xlu0 %v10880
    %v10882 = vpop.xlane.xlu0 %10881
    %v10883 = vsel %vm314, %v10825, 0.0
    %10884 = vadd.xlane.f32.xlu0 %v10883
    %v10885 = vpop.xlane.xlu0 %10884
    %v10886 = vsel %vm314, %v10826, 0.0
    %10887 = vadd.xlane.f32.xlu0 %v10886
    %v10888 = vpop.xlane.xlu0 %10887
    %v10889 = vsel %vm314, %v10827, 0.0
    %10890 = vadd.xlane.f32.xlu0 %v10889
    %v10891 = vpop.xlane.xlu0 %10890
    %v10892 = vsel %vm314, %v10828, 0.0
    %10893 = vadd.xlane.f32.xlu0 %v10892
    %v10894 = vpop.xlane.xlu0 %10893
    %v10895 = vsel %vm314, %v10829, 0.0
    %10896 = vadd.xlane.f32.xlu0 %v10895
    %v10897 = vpop.xlane.xlu0 %10896
    %v10898 = vsel %vm314, %v10830, 0.0
    %10899 = vadd.xlane.f32.xlu0 %v10898
    %v10900 = vpop.xlane.xlu0 %10899
    %v10901 = vsel %vm314, %v10831, 0.0
    %10902 = vadd.xlane.f32.xlu0 %v10901
    %v10903 = vpop.xlane.xlu0 %10902
    %v10904 = vmul.f32 %v10858, %v363
    %v10905 = vmul.f32 %v10861, %v363
    %v10906 = vmul.f32 %v10864, %v363
    %v10907 = vmul.f32 %v10867, %v363
    %v10908 = vmul.f32 %v10870, %v363
    %v10909 = vmul.f32 %v10873, %v363
    %v10910 = vmul.f32 %v10876, %v363
    %v10911 = vmul.f32 %v10879, %v363
    %v10912 = vmul.f32 %v10882, %v363
    %v10913 = vmul.f32 %v10885, %v363
    %v10914 = vmul.f32 %v10888, %v363
    %v10915 = vmul.f32 %v10891, %v363
    %v10916 = vmul.f32 %v10894, %v363
    %v10917 = vmul.f32 %v10897, %v363
    %v10918 = vmul.f32 %v10900, %v363
    %v10919 = vmul.f32 %v10903, %v363
    %v10920 = vsub.f32 %v10816, %v10904
    %v10921 = vsub.f32 %v10817, %v10905
    %v10922 = vsub.f32 %v10818, %v10906
    %v10923 = vsub.f32 %v10819, %v10907
    %v10924 = vsub.f32 %v10820, %v10908
    %v10925 = vsub.f32 %v10821, %v10909
    %v10926 = vsub.f32 %v10822, %v10910
    %v10927 = vsub.f32 %v10823, %v10911
    %v10928 = vsub.f32 %v10824, %v10912
    %v10929 = vsub.f32 %v10825, %v10913
    %v10930 = vsub.f32 %v10826, %v10914
    %v10931 = vsub.f32 %v10827, %v10915
    %v10932 = vsub.f32 %v10828, %v10916
    %v10933 = vsub.f32 %v10829, %v10917
    %v10934 = vsub.f32 %v10830, %v10918
    %v10935 = vsub.f32 %v10831, %v10919
    %v10936 = vmul.f32 %v10920, %v10920
    %v10937 = vmul.f32 %v10921, %v10921
    %v10938 = vmul.f32 %v10922, %v10922
    %v10939 = vmul.f32 %v10923, %v10923
    %v10940 = vmul.f32 %v10924, %v10924
    %v10941 = vmul.f32 %v10925, %v10925
    %v10942 = vmul.f32 %v10926, %v10926
    %v10943 = vmul.f32 %v10927, %v10927
    %v10944 = vmul.f32 %v10928, %v10928
    %v10945 = vmul.f32 %v10929, %v10929
    %v10946 = vmul.f32 %v10930, %v10930
    %v10947 = vmul.f32 %v10931, %v10931
    %v10948 = vmul.f32 %v10932, %v10932
    %v10949 = vmul.f32 %v10933, %v10933
    %v10950 = vmul.f32 %v10934, %v10934
    %v10951 = vmul.f32 %v10935, %v10935
    %v10952 = vsel %vm314, %v10936, 0.0
    %10953 = vadd.xlane.f32.xlu0 %v10952
    %v10954 = vpop.xlane.xlu0 %10953
    %v10955 = vsel %vm314, %v10937, 0.0
    %10956 = vadd.xlane.f32.xlu0 %v10955
    %v10957 = vpop.xlane.xlu0 %10956
    %v10958 = vsel %vm314, %v10938, 0.0
    %10959 = vadd.xlane.f32.xlu0 %v10958
    %v10960 = vpop.xlane.xlu0 %10959
    %v10961 = vsel %vm314, %v10939, 0.0
    %10962 = vadd.xlane.f32.xlu0 %v10961
    %v10963 = vpop.xlane.xlu0 %10962
    %v10964 = vsel %vm314, %v10940, 0.0
    %10965 = vadd.xlane.f32.xlu0 %v10964
    %v10966 = vpop.xlane.xlu0 %10965
    %v10967 = vsel %vm314, %v10941, 0.0
    %10968 = vadd.xlane.f32.xlu0 %v10967
    %v10969 = vpop.xlane.xlu0 %10968
    %v10970 = vsel %vm314, %v10942, 0.0
    %10971 = vadd.xlane.f32.xlu0 %v10970
    %v10972 = vpop.xlane.xlu0 %10971
    %v10973 = vsel %vm314, %v10943, 0.0
    %10974 = vadd.xlane.f32.xlu0 %v10973
    %v10975 = vpop.xlane.xlu0 %10974
    %v10976 = vsel %vm314, %v10944, 0.0
    %10977 = vadd.xlane.f32.xlu0 %v10976
    %v10978 = vpop.xlane.xlu0 %10977
    %v10979 = vsel %vm314, %v10945, 0.0
    %10980 = vadd.xlane.f32.xlu0 %v10979
    %v10981 = vpop.xlane.xlu0 %10980
    %v10982 = vsel %vm314, %v10946, 0.0
    %10983 = vadd.xlane.f32.xlu0 %v10982
    %v10984 = vpop.xlane.xlu0 %10983
    %v10985 = vsel %vm314, %v10947, 0.0
    %10986 = vadd.xlane.f32.xlu0 %v10985
    %v10987 = vpop.xlane.xlu0 %10986
    %v10988 = vsel %vm314, %v10948, 0.0
    %10989 = vadd.xlane.f32.xlu0 %v10988
    %v10990 = vpop.xlane.xlu0 %10989
    %v10991 = vsel %vm314, %v10949, 0.0
    %10992 = vadd.xlane.f32.xlu0 %v10991
    %v10993 = vpop.xlane.xlu0 %10992
    %v10994 = vsel %vm314, %v10950, 0.0
    %10995 = vadd.xlane.f32.xlu0 %v10994
    %v10996 = vpop.xlane.xlu0 %10995
    %v10997 = vsel %vm314, %v10951, 0.0
    %10998 = vadd.xlane.f32.xlu0 %v10997
    %v10999 = vpop.xlane.xlu0 %10998
    %v11000 = vmul.f32 %v10954, %v363
    %v11001 = vmul.f32 %v10957, %v363
    %v11002 = vmul.f32 %v10960, %v363
    %v11003 = vmul.f32 %v10963, %v363
    %v11004 = vmul.f32 %v10966, %v363
    %v11005 = vmul.f32 %v10969, %v363
    %v11006 = vmul.f32 %v10972, %v363
    %v11007 = vmul.f32 %v10975, %v363
    %v11008 = vmul.f32 %v10978, %v363
    %v11009 = vmul.f32 %v10981, %v363
    %v11010 = vmul.f32 %v10984, %v363
    %v11011 = vmul.f32 %v10987, %v363
    %v11012 = vmul.f32 %v10990, %v363
    %v11013 = vmul.f32 %v10993, %v363
    %v11014 = vmul.f32 %v10996, %v363
    %v11015 = vmul.f32 %v10999, %v363
    %v11016 = vadd.f32 %v11000, 1e-05
    %v11017 = vadd.f32 %v11001, 1e-05
    %v11018 = vadd.f32 %v11002, 1e-05
    %v11019 = vadd.f32 %v11003, 1e-05
    %v11020 = vadd.f32 %v11004, 1e-05
    %v11021 = vadd.f32 %v11005, 1e-05
    %v11022 = vadd.f32 %v11006, 1e-05
    %v11023 = vadd.f32 %v11007, 1e-05
    %v11024 = vadd.f32 %v11008, 1e-05
    %v11025 = vadd.f32 %v11009, 1e-05
    %v11026 = vadd.f32 %v11010, 1e-05
    %v11027 = vadd.f32 %v11011, 1e-05
    %v11028 = vadd.f32 %v11012, 1e-05
    %v11029 = vadd.f32 %v11013, 1e-05
    %v11030 = vadd.f32 %v11014, 1e-05
    %v11031 = vadd.f32 %v11015, 1e-05
    %v11032 = vrsqrt.pop %v11016
    %v11033 = vrsqrt.pop %v11017
    %v11034 = vrsqrt.pop %v11018
    %v11035 = vrsqrt.pop %v11019
    %v11036 = vrsqrt.pop %v11020
    %v11037 = vrsqrt.pop %v11021
    %v11038 = vrsqrt.pop %v11022
    %v11039 = vrsqrt.pop %v11023
    %v11040 = vrsqrt.pop %v11024
    %v11041 = vrsqrt.pop %v11025
    %v11042 = vrsqrt.pop %v11026
    %v11043 = vrsqrt.pop %v11027
    %v11044 = vrsqrt.pop %v11028
    %v11045 = vrsqrt.pop %v11029
    %v11046 = vrsqrt.pop %v11030
    %v11047 = vrsqrt.pop %v11031
    %v11048 = vmul.f32 %v10920, %v11032
    %v11049 = vmul.f32 %v10921, %v11033
    %v11050 = vmul.f32 %v10922, %v11034
    %v11051 = vmul.f32 %v10923, %v11035
    %v11052 = vmul.f32 %v10924, %v11036
    %v11053 = vmul.f32 %v10925, %v11037
    %v11054 = vmul.f32 %v10926, %v11038
    %v11055 = vmul.f32 %v10927, %v11039
    %v11056 = vmul.f32 %v10928, %v11040
    %v11057 = vmul.f32 %v10929, %v11041
    %v11058 = vmul.f32 %v10930, %v11042
    %v11059 = vmul.f32 %v10931, %v11043
    %v11060 = vmul.f32 %v10932, %v11044
    %v11061 = vmul.f32 %v10933, %v11045
    %v11062 = vmul.f32 %v10934, %v11046
    %v11063 = vmul.f32 %v10935, %v11047
    %v11065 = vlaneseq
    %v11066 = vshrl.u32 %v11065, 7
    %v11067 = vsub.s32 0, %v11066
    %v11068 = vrot.slane %v10832, %v11067
    %v11070 = vmul.f32 %v11048, %v11068
    %v11071 = vmul.f32 %v11049, %v11068
    %v11072 = vmul.f32 %v11050, %v11068
    %v11073 = vmul.f32 %v11051, %v11068
    %v11074 = vmul.f32 %v11052, %v11068
    %v11075 = vmul.f32 %v11053, %v11068
    %v11076 = vmul.f32 %v11054, %v11068
    %v11077 = vmul.f32 %v11055, %v11068
    %v11078 = vmul.f32 %v11056, %v11068
    %v11079 = vmul.f32 %v11057, %v11068
    %v11080 = vmul.f32 %v11058, %v11068
    %v11081 = vmul.f32 %v11059, %v11068
    %v11082 = vmul.f32 %v11060, %v11068
    %v11083 = vmul.f32 %v11061, %v11068
    %v11084 = vmul.f32 %v11062, %v11068
    %v11085 = vmul.f32 %v11063, %v11068
    %v11087 = vlaneseq
    %v11088 = vshrl.u32 %v11087, 7
    %v11089 = vsub.s32 0, %v11088
    %v11090 = vrot.slane %v10833, %v11089
    %v11092 = vadd.f32 %v11070, %v11090
    %v11093 = vadd.f32 %v11071, %v11090
    %v11094 = vadd.f32 %v11072, %v11090
    %v11095 = vadd.f32 %v11073, %v11090
    %v11096 = vadd.f32 %v11074, %v11090
    %v11097 = vadd.f32 %v11075, %v11090
    %v11098 = vadd.f32 %v11076, %v11090
    %v11099 = vadd.f32 %v11077, %v11090
    %v11100 = vadd.f32 %v11078, %v11090
    %v11101 = vadd.f32 %v11079, %v11090
    %v11102 = vadd.f32 %v11080, %v11090
    %v11103 = vadd.f32 %v11081, %v11090
    %v11104 = vadd.f32 %v11082, %v11090
    %v11105 = vadd.f32 %v11083, %v11090
    %v11106 = vadd.f32 %v11084, %v11090
    %v11107 = vadd.f32 %v11085, %v11090
    %v11109 = vlaneseq
    %v11110 = vshrl.u32 %v11109, 7
    %v11111 = vsub.s32 0, %v11110
    %v11112 = vrot.slane %v10838, %v11111
    %v11115 = vsel %vm314, %v11092, 0
    %v11118 = vsel %vm314, %v11093, 0
    %v11121 = vsel %vm314, %v11094, 0
    %v11124 = vsel %vm314, %v11095, 0
    %v11127 = vsel %vm314, %v11096, 0
    %v11130 = vsel %vm314, %v11097, 0
    %v11133 = vsel %vm314, %v11098, 0
    %v11136 = vsel %vm314, %v11099, 0
    %v11139 = vsel %vm314, %v11100, 0
    %v11142 = vsel %vm314, %v11101, 0
    %v11145 = vsel %vm314, %v11102, 0
    %v11148 = vsel %vm314, %v11103, 0
    %v11151 = vsel %vm314, %v11104, 0
    %v11154 = vsel %vm314, %v11105, 0
    %v11157 = vsel %vm314, %v11106, 0
    %v11160 = vsel %vm314, %v11107, 0
    %11162 = vmatprep.subr.mxu0 0.0
    %11163 = vmatpush1.msra.mxu0 %v10834
    %11164 = vmatprep.subr.mxu0 0.0
    %11165 = vmatpush1.msra.mxu0 %v10835
    %11166 = vmatprep.subr.mxu0 0.0
    %11167 = vmatpush1.msra.mxu0 %v10836
    %11168 = vmatprep.subr.mxu0 0.0
    %11169 = vmatpush1.msra.mxu0 %v10837
    %11170 = vmatprep.subr.mxu0 0.0
    %11171 = vmatpush1.msra.mxu0 0.0
    %11172 = vmatprep.subr.mxu0 0.0
    %11173 = vmatpush1.msra.mxu0 0.0
    %11174 = vmatprep.subr.mxu0 0.0
    %11175 = vmatpush1.msra.mxu0 0.0
    %11176 = vmatprep.subr.mxu0 0.0
    %11177 = vmatpush1.msra.mxu0 0.0
    %11178 = vmatprep.subr.mxu0 0.0
    %11179 = vmatpush1.msra.mxu0 0.0
    %11180 = vmatprep.subr.mxu0 0.0
    %11181 = vmatpush1.msra.mxu0 0.0
    %11182 = vmatprep.subr.mxu0 0.0
    %11183 = vmatpush1.msra.mxu0 0.0
    %11184 = vmatprep.subr.mxu0 0.0
    %11185 = vmatpush1.msra.mxu0 0.0
    %11186 = vmatprep.subr.mxu0 0.0
    %11187 = vmatpush1.msra.mxu0 0.0
    %11188 = vmatprep.subr.mxu0 0.0
    %11189 = vmatpush1.msra.mxu0 0.0
    %11190 = vmatprep.subr.mxu0 0.0
    %11191 = vmatpush1.msra.mxu0 0.0
    %11192 = vmatprep.subr.mxu0 0.0
    %11193 = vmatpush1.msra.mxu0 0.0
    %11194 = vmatprep.subr.mxu0 0.0
    %11195 = vmatpush1.msra.mxu0 0.0
    %11196 = vmatprep.subr.mxu0 0.0
    %11197 = vmatpush1.msra.mxu0 0.0
    %11198 = vmatprep.subr.mxu0 0.0
    %11199 = vmatpush1.msra.mxu0 0.0
    %11200 = vmatprep.subr.mxu0 0.0
    %11201 = vmatpush1.msra.mxu0 0.0
    %11202 = vmatprep.subr.mxu0 0.0
    %11203 = vmatpush1.msra.mxu0 0.0
    %11204 = vmatprep.subr.mxu0 0.0
    %11205 = vmatpush1.msra.mxu0 0.0
    %11206 = vmatprep.subr.mxu0 0.0
    %11207 = vmatpush1.msra.mxu0 0.0
    %11208 = vmatprep.subr.mxu0 0.0
    %11209 = vmatpush1.msra.mxu0 0.0
    %11210 = vmatprep.subr.mxu0 0.0
    %11211 = vmatpush1.msra.mxu0 0.0
    %11212 = vmatprep.subr.mxu0 0.0
    %11213 = vmatpush1.msra.mxu0 0.0
    %11214 = vmatprep.subr.mxu0 0.0
    %11215 = vmatpush1.msra.mxu0 0.0
    %11216 = vmatprep.subr.mxu0 0.0
    %11217 = vmatpush1.msra.mxu0 0.0
    %11218 = vmatprep.subr.mxu0 0.0
    %11219 = vmatpush1.msra.mxu0 0.0
    %11220 = vmatprep.subr.mxu0 0.0
    %11221 = vmatpush1.msra.mxu0 0.0
    %11222 = vmatprep.subr.mxu0 0.0
    %11223 = vmatpush1.msra.mxu0 0.0
    %11224 = vmatprep.subr.mxu0 0.0
    %11225 = vmatpush1.msra.mxu0 0.0
    %11226 = vmatprep.mubr.f32.mxu0 0.0
    %11227 = vmatmul.mubr.f32.gmra.mrb[0].mxu0 %v11115
    %v11228 = vpop.f32.mrb[0].mxu0
    %v11229 = vadd.f32 %v11112, %v11228
    %v11230 = vpop.f32.mrb[0].mxu0
    %11231 = vmatprep.mubr.f32.mxu0 0.0
    %11232 = vmatmul.mubr.f32.gmra.mrb[0].mxu0 %v11118
    %v11233 = vpop.f32.mrb[0].mxu0
    %v11234 = vadd.f32 %v11112, %v11233
    %v11235 = vpop.f32.mrb[0].mxu0
    %11236 = vmatprep.mubr.f32.mxu0 0.0
    %11237 = vmatmul.mubr.f32.gmra.mrb[0].mxu0 %v11121
    %v11238 = vpop.f32.mrb[0].mxu0
    %v11239 = vadd.f32 %v11112, %v11238
    %v11240 = vpop.f32.mrb[0].mxu0
    %11241 = vmatprep.mubr.f32.mxu0 0.0
    %11242 = vmatmul.mubr.f32.gmra.mrb[0].mxu0 %v11124
    %v11243 = vpop.f32.mrb[0].mxu0
    %v11244 = vadd.f32 %v11112, %v11243
    %v11245 = vpop.f32.mrb[0].mxu0
    %11246 = vmatprep.mubr.f32.mxu0 0.0
    %11247 = vmatmul.mubr.f32.gmra.mrb[0].mxu0 %v11127
    %v11248 = vpop.f32.mrb[0].mxu0
    %v11249 = vadd.f32 %v11112, %v11248
    %v11250 = vpop.f32.mrb[0].mxu0
    %11251 = vmatprep.mubr.f32.mxu0 0.0
    %11252 = vmatmul.mubr.f32.gmra.mrb[0].mxu0 %v11130
    %v11253 = vpop.f32.mrb[0].mxu0
    %v11254 = vadd.f32 %v11112, %v11253
    %v11255 = vpop.f32.mrb[0].mxu0
    %11256 = vmatprep.mubr.f32.mxu0 0.0
    %11257 = vmatmul.mubr.f32.gmra.mrb[0].mxu0 %v11133
    %v11258 = vpop.f32.mrb[0].mxu0
    %v11259 = vadd.f32 %v11112, %v11258
    %v11260 = vpop.f32.mrb[0].mxu0
    %11261 = vmatprep.mubr.f32.mxu0 0.0
    %11262 = vmatmul.mubr.f32.gmra.mrb[0].mxu0 %v11136
    %v11263 = vpop.f32.mrb[0].mxu0
    %v11264 = vadd.f32 %v11112, %v11263
    %v11265 = vpop.f32.mrb[0].mxu0
    %11266 = vmatprep.mubr.f32.mxu0 0.0
    %11267 = vmatmul.mubr.f32.gmra.mrb[0].mxu0 %v11139
    %v11268 = vpop.f32.mrb[0].mxu0
    %v11269 = vadd.f32 %v11112, %v11268
    %v11270 = vpop.f32.mrb[0].mxu0
    %11271 = vmatprep.mubr.f32.mxu0 0.0
    %11272 = vmatmul.mubr.f32.gmra.mrb[0].mxu0 %v11142
    %v11273 = vpop.f32.mrb[0].mxu0
    %v11274 = vadd.f32 %v11112, %v11273
    %v11275 = vpop.f32.mrb[0].mxu0
    %11276 = vmatprep.mubr.f32.mxu0 0.0
    %11277 = vmatmul.mubr.f32.gmra.mrb[0].mxu0 %v11145
    %v11278 = vpop.f32.mrb[0].mxu0
    %v11279 = vadd.f32 %v11112, %v11278
    %v11280 = vpop.f32.mrb[0].mxu0
    %11281 = vmatprep.mubr.f32.mxu0 0.0
    %11282 = vmatmul.mubr.f32.gmra.mrb[0].mxu0 %v11148
    %v11283 = vpop.f32.mrb[0].mxu0
    %v11284 = vadd.f32 %v11112, %v11283
    %v11285 = vpop.f32.mrb[0].mxu0
    %11286 = vmatprep.mubr.f32.mxu0 0.0
    %11287 = vmatmul.mubr.f32.gmra.mrb[0].mxu0 %v11151
    %v11288 = vpop.f32.mrb[0].mxu0
    %v11289 = vadd.f32 %v11112, %v11288
    %v11290 = vpop.f32.mrb[0].mxu0
    %11291 = vmatprep.mubr.f32.mxu0 0.0
    %11292 = vmatmul.mubr.f32.gmra.mrb[0].mxu0 %v11154
    %v11293 = vpop.f32.mrb[0].mxu0
    %v11294 = vadd.f32 %v11112, %v11293
    %v11295 = vpop.f32.mrb[0].mxu0
    %11296 = vmatprep.mubr.f32.mxu0 0.0
    %11297 = vmatmul.mubr.f32.gmra.mrb[0].mxu0 %v11157
    %v11298 = vpop.f32.mrb[0].mxu0
    %v11299 = vadd.f32 %v11112, %v11298
    %v11300 = vpop.f32.mrb[0].mxu0
    %11301 = vmatprep.mubr.f32.mxu0 0.0
    %11302 = vmatmul.mubr.f32.gmra.mrb[0].mxu0 %v11160
    %v11303 = vpop.f32.mrb[0].mxu0
    %v11304 = vadd.f32 %v11112, %v11303
    %v11305 = vpop.f32.mrb[0].mxu0
    %11306 = vdwg.mxu0
    %v11307 = vxor.u32 %v11229, 2147483648
    %v11308 = vxor.u32 %v11234, 2147483648
    %v11309 = vxor.u32 %v11239, 2147483648
    %v11310 = vxor.u32 %v11244, 2147483648
    %v11311 = vxor.u32 %v11249, 2147483648
    %v11312 = vxor.u32 %v11254, 2147483648
    %v11313 = vxor.u32 %v11259, 2147483648
    %v11314 = vxor.u32 %v11264, 2147483648
    %v11315 = vxor.u32 %v11269, 2147483648
    %v11316 = vxor.u32 %v11274, 2147483648
    %v11317 = vxor.u32 %v11279, 2147483648
    %v11318 = vxor.u32 %v11284, 2147483648
    %v11319 = vxor.u32 %v11289, 2147483648
    %v11320 = vxor.u32 %v11294, 2147483648
    %v11321 = vxor.u32 %v11299, 2147483648
    %v11322 = vxor.u32 %v11304, 2147483648
    %v11323 = vmul.f32 %v11307, 1.442695
    %v11324 = vpow.pop %v11323
    %v11325 = vmul.f32 %v11308, 1.442695
    %v11326 = vpow.pop %v11325
    %v11327 = vmul.f32 %v11309, 1.442695
    %v11328 = vpow.pop %v11327
    %v11329 = vmul.f32 %v11310, 1.442695
    %v11330 = vpow.pop %v11329
    %v11331 = vmul.f32 %v11311, 1.442695
    %v11332 = vpow.pop %v11331
    %v11333 = vmul.f32 %v11312, 1.442695
    %v11334 = vpow.pop %v11333
    %v11335 = vmul.f32 %v11313, 1.442695
    %v11336 = vpow.pop %v11335
    %v11337 = vmul.f32 %v11314, 1.442695
    %v11338 = vpow.pop %v11337
    %v11339 = vmul.f32 %v11315, 1.442695
    %v11340 = vpow.pop %v11339
    %v11341 = vmul.f32 %v11316, 1.442695
    %v11342 = vpow.pop %v11341
    %v11343 = vmul.f32 %v11317, 1.442695
    %v11344 = vpow.pop %v11343
    %v11345 = vmul.f32 %v11318, 1.442695
    %v11346 = vpow.pop %v11345
    %v11347 = vmul.f32 %v11319, 1.442695
    %v11348 = vpow.pop %v11347
    %v11349 = vmul.f32 %v11320, 1.442695
    %v11350 = vpow.pop %v11349
    %v11351 = vmul.f32 %v11321, 1.442695
    %v11352 = vpow.pop %v11351
    %v11353 = vmul.f32 %v11322, 1.442695
    %v11354 = vpow.pop %v11353
    %v11355 = vadd.f32 %v11324, 1.0
    %v11356 = vadd.f32 %v11326, 1.0
    %v11357 = vadd.f32 %v11328, 1.0
    %v11358 = vadd.f32 %v11330, 1.0
    %v11359 = vadd.f32 %v11332, 1.0
    %v11360 = vadd.f32 %v11334, 1.0
    %v11361 = vadd.f32 %v11336, 1.0
    %v11362 = vadd.f32 %v11338, 1.0
    %v11363 = vadd.f32 %v11340, 1.0
    %v11364 = vadd.f32 %v11342, 1.0
    %v11365 = vadd.f32 %v11344, 1.0
    %v11366 = vadd.f32 %v11346, 1.0
    %v11367 = vadd.f32 %v11348, 1.0
    %v11368 = vadd.f32 %v11350, 1.0
    %v11369 = vadd.f32 %v11352, 1.0
    %v11370 = vadd.f32 %v11354, 1.0
    %v11371 = vrcp.pop %v11355
    %v11372 = vmul.f32 1.0, %v11371
    %v11373 = vrcp.pop %v11356
    %v11374 = vmul.f32 1.0, %v11373
    %v11375 = vrcp.pop %v11357
    %v11376 = vmul.f32 1.0, %v11375
    %v11377 = vrcp.pop %v11358
    %v11378 = vmul.f32 1.0, %v11377
    %v11379 = vrcp.pop %v11359
    %v11380 = vmul.f32 1.0, %v11379
    %v11381 = vrcp.pop %v11360
    %v11382 = vmul.f32 1.0, %v11381
    %v11383 = vrcp.pop %v11361
    %v11384 = vmul.f32 1.0, %v11383
    %v11385 = vrcp.pop %v11362
    %v11386 = vmul.f32 1.0, %v11385
    %v11387 = vrcp.pop %v11363
    %v11388 = vmul.f32 1.0, %v11387
    %v11389 = vrcp.pop %v11364
    %v11390 = vmul.f32 1.0, %v11389
    %v11391 = vrcp.pop %v11365
    %v11392 = vmul.f32 1.0, %v11391
    %v11393 = vrcp.pop %v11366
    %v11394 = vmul.f32 1.0, %v11393
    %v11395 = vrcp.pop %v11367
    %v11396 = vmul.f32 1.0, %v11395
    %v11397 = vrcp.pop %v11368
    %v11398 = vmul.f32 1.0, %v11397
    %v11399 = vrcp.pop %v11369
    %v11400 = vmul.f32 1.0, %v11399
    %v11401 = vrcp.pop %v11370
    %v11402 = vmul.f32 1.0, %v11401
    %v11403 = vmul.f32 %v11229, %v11372
    %v11404 = vmul.f32 %v11234, %v11374
    %v11405 = vmul.f32 %v11239, %v11376
    %v11406 = vmul.f32 %v11244, %v11378
    %v11407 = vmul.f32 %v11249, %v11380
    %v11408 = vmul.f32 %v11254, %v11382
    %v11409 = vmul.f32 %v11259, %v11384
    %v11410 = vmul.f32 %v11264, %v11386
    %v11411 = vmul.f32 %v11269, %v11388
    %v11412 = vmul.f32 %v11274, %v11390
    %v11413 = vmul.f32 %v11279, %v11392
    %v11414 = vmul.f32 %v11284, %v11394
    %v11415 = vmul.f32 %v11289, %v11396
    %v11416 = vmul.f32 %v11294, %v11398
    %v11417 = vmul.f32 %v11299, %v11400
    %v11418 = vmul.f32 %v11304, %v11402
    %v11420 = vlaneseq
    %v11421 = vshrl.u32 %v11420, 7
    %v11422 = vsub.s32 0, %v11421
    %v11423 = vrot.slane %v10855, %v11422
    %11425 = vmatprep.subr.mxu0 0.0
    %11426 = vmatpush1.msra.mxu0 %v10839
    %11427 = vmatprep.subr.mxu0 0.0
    %11428 = vmatpush1.msra.mxu0 %v10840
    %11429 = vmatprep.subr.mxu0 0.0
    %11430 = vmatpush1.msra.mxu0 %v10841
    %11431 = vmatprep.subr.mxu0 0.0
    %11432 = vmatpush1.msra.mxu0 %v10842
    %11433 = vmatprep.subr.mxu0 0.0
    %11434 = vmatpush1.msra.mxu0 %v10843
    %11435 = vmatprep.subr.mxu0 0.0
    %11436 = vmatpush1.msra.mxu0 %v10844
    %11437 = vmatprep.subr.mxu0 0.0
    %11438 = vmatpush1.msra.mxu0 %v10845
    %11439 = vmatprep.subr.mxu0 0.0
    %11440 = vmatpush1.msra.mxu0 %v10846
    %11441 = vmatprep.subr.mxu0 0.0
    %11442 = vmatpush1.msra.mxu0 %v10847
    %11443 = vmatprep.subr.mxu0 0.0
    %11444 = vmatpush1.msra.mxu0 %v10848
    %11445 = vmatprep.subr.mxu0 0.0
    %11446 = vmatpush1.msra.mxu0 %v10849
    %11447 = vmatprep.subr.mxu0 0.0
    %11448 = vmatpush1.msra.mxu0 %v10850
    %11449 = vmatprep.subr.mxu0 0.0
    %11450 = vmatpush1.msra.mxu0 %v10851
    %11451 = vmatprep.subr.mxu0 0.0
    %11452 = vmatpush1.msra.mxu0 %v10852
    %11453 = vmatprep.subr.mxu0 0.0
    %11454 = vmatpush1.msra.mxu0 %v10853
    %11455 = vmatprep.subr.mxu0 0.0
    %11456 = vmatpush1.msra.mxu0 %v10854
    %11457 = vmatprep.subr.mxu0 0.0
    %11458 = vmatpush1.msra.mxu0 0.0
    %11459 = vmatprep.subr.mxu0 0.0
    %11460 = vmatpush1.msra.mxu0 0.0
    %11461 = vmatprep.subr.mxu0 0.0
    %11462 = vmatpush1.msra.mxu0 0.0
    %11463 = vmatprep.subr.mxu0 0.0
    %11464 = vmatpush1.msra.mxu0 0.0
    %11465 = vmatprep.subr.mxu0 0.0
    %11466 = vmatpush1.msra.mxu0 0.0
    %11467 = vmatprep.subr.mxu0 0.0
    %11468 = vmatpush1.msra.mxu0 0.0
    %11469 = vmatprep.subr.mxu0 0.0
    %11470 = vmatpush1.msra.mxu0 0.0
    %11471 = vmatprep.subr.mxu0 0.0
    %11472 = vmatpush1.msra.mxu0 0.0
    %11473 = vmatprep.subr.mxu0 0.0
    %11474 = vmatpush1.msra.mxu0 0.0
    %11475 = vmatprep.subr.mxu0 0.0
    %11476 = vmatpush1.msra.mxu0 0.0
    %11477 = vmatprep.subr.mxu0 0.0
    %11478 = vmatpush1.msra.mxu0 0.0
    %11479 = vmatprep.subr.mxu0 0.0
    %11480 = vmatpush1.msra.mxu0 0.0
    %11481 = vmatprep.subr.mxu0 0.0
    %11482 = vmatpush1.msra.mxu0 0.0
    %11483 = vmatprep.subr.mxu0 0.0
    %11484 = vmatpush1.msra.mxu0 0.0
    %11485 = vmatprep.subr.mxu0 0.0
    %11486 = vmatpush1.msra.mxu0 0.0
    %11487 = vmatprep.subr.mxu0 0.0
    %11488 = vmatpush1.msra.mxu0 0.0
    %11489 = vmatprep.mubr.f32.mxu0 0.0
    %11490 = vmatmul.mubr.f32.gmra.mrb[0].mxu0 %v11403
    %v11491 = vpop.f32.mrb[0].mxu0
    %v11492 = vadd.f32 %v11423, %v11491
    %v11493 = vpop.f32.mrb[0].mxu0
    %11494 = vmatprep.mubr.f32.mxu0 0.0
    %11495 = vmatmul.mubr.f32.gmra.mrb[0].mxu0 %v11404
    %v11496 = vpop.f32.mrb[0].mxu0
    %v11497 = vadd.f32 %v11423, %v11496
    %v11498 = vpop.f32.mrb[0].mxu0
    %11499 = vmatprep.mubr.f32.mxu0 0.0
    %11500 = vmatmul.mubr.f32.gmra.mrb[0].mxu0 %v11405
    %v11501 = vpop.f32.mrb[0].mxu0
    %v11502 = vadd.f32 %v11423, %v11501
    %v11503 = vpop.f32.mrb[0].mxu0
    %11504 = vmatprep.mubr.f32.mxu0 0.0
    %11505 = vmatmul.mubr.f32.gmra.mrb[0].mxu0 %v11406
    %v11506 = vpop.f32.mrb[0].mxu0
    %v11507 = vadd.f32 %v11423, %v11506
    %v11508 = vpop.f32.mrb[0].mxu0
    %11509 = vmatprep.mubr.f32.mxu0 0.0
    %11510 = vmatmul.mubr.f32.gmra.mrb[0].mxu0 %v11407
    %v11511 = vpop.f32.mrb[0].mxu0
    %v11512 = vadd.f32 %v11423, %v11511
    %v11513 = vpop.f32.mrb[0].mxu0
    %11514 = vmatprep.mubr.f32.mxu0 0.0
    %11515 = vmatmul.mubr.f32.gmra.mrb[0].mxu0 %v11408
    %v11516 = vpop.f32.mrb[0].mxu0
    %v11517 = vadd.f32 %v11423, %v11516
    %v11518 = vpop.f32.mrb[0].mxu0
    %11519 = vmatprep.mubr.f32.mxu0 0.0
    %11520 = vmatmul.mubr.f32.gmra.mrb[0].mxu0 %v11409
    %v11521 = vpop.f32.mrb[0].mxu0
    %v11522 = vadd.f32 %v11423, %v11521
    %v11523 = vpop.f32.mrb[0].mxu0
    %11524 = vmatprep.mubr.f32.mxu0 0.0
    %11525 = vmatmul.mubr.f32.gmra.mrb[0].mxu0 %v11410
    %v11526 = vpop.f32.mrb[0].mxu0
    %v11527 = vadd.f32 %v11423, %v11526
    %v11528 = vpop.f32.mrb[0].mxu0
    %11529 = vmatprep.mubr.f32.mxu0 0.0
    %11530 = vmatmul.mubr.f32.gmra.mrb[0].mxu0 %v11411
    %v11531 = vpop.f32.mrb[0].mxu0
    %v11532 = vadd.f32 %v11423, %v11531
    %v11533 = vpop.f32.mrb[0].mxu0
    %11534 = vmatprep.mubr.f32.mxu0 0.0
    %11535 = vmatmul.mubr.f32.gmra.mrb[0].mxu0 %v11412
    %v11536 = vpop.f32.mrb[0].mxu0
    %v11537 = vadd.f32 %v11423, %v11536
    %v11538 = vpop.f32.mrb[0].mxu0
    %11539 = vmatprep.mubr.f32.mxu0 0.0
    %11540 = vmatmul.mubr.f32.gmra.mrb[0].mxu0 %v11413
    %v11541 = vpop.f32.mrb[0].mxu0
    %v11542 = vadd.f32 %v11423, %v11541
    %v11543 = vpop.f32.mrb[0].mxu0
    %11544 = vmatprep.mubr.f32.mxu0 0.0
    %11545 = vmatmul.mubr.f32.gmra.mrb[0].mxu0 %v11414
    %v11546 = vpop.f32.mrb[0].mxu0
    %v11547 = vadd.f32 %v11423, %v11546
    %v11548 = vpop.f32.mrb[0].mxu0
    %11549 = vmatprep.mubr.f32.mxu0 0.0
    %11550 = vmatmul.mubr.f32.gmra.mrb[0].mxu0 %v11415
    %v11551 = vpop.f32.mrb[0].mxu0
    %v11552 = vadd.f32 %v11423, %v11551
    %v11553 = vpop.f32.mrb[0].mxu0
    %11554 = vmatprep.mubr.f32.mxu0 0.0
    %11555 = vmatmul.mubr.f32.gmra.mrb[0].mxu0 %v11416
    %v11556 = vpop.f32.mrb[0].mxu0
    %v11557 = vadd.f32 %v11423, %v11556
    %v11558 = vpop.f32.mrb[0].mxu0
    %11559 = vmatprep.mubr.f32.mxu0 0.0
    %11560 = vmatmul.mubr.f32.gmra.mrb[0].mxu0 %v11417
    %v11561 = vpop.f32.mrb[0].mxu0
    %v11562 = vadd.f32 %v11423, %v11561
    %v11563 = vpop.f32.mrb[0].mxu0
    %11564 = vmatprep.mubr.f32.mxu0 0.0
    %11565 = vmatmul.mubr.f32.gmra.mrb[0].mxu0 %v11418
    %v11566 = vpop.f32.mrb[0].mxu0
    %v11567 = vadd.f32 %v11423, %v11566
    %v11568 = vpop.f32.mrb[0].mxu0
    %11569 = vdwg.mxu0
    %v11570 = vmul.f32 %v11492, 0.5
    %v11571 = vmul.f32 %v11497, 0.5
    %v11572 = vmul.f32 %v11502, 0.5
    %v11573 = vmul.f32 %v11507, 0.5
    %v11574 = vmul.f32 %v11512, 0.5
    %v11575 = vmul.f32 %v11517, 0.5
    %v11576 = vmul.f32 %v11522, 0.5
    %v11577 = vmul.f32 %v11527, 0.5
    %v11578 = vmul.f32 %v11532, 0.5
    %v11579 = vmul.f32 %v11537, 0.5
    %v11580 = vmul.f32 %v11542, 0.5
    %v11581 = vmul.f32 %v11547, 0.5
    %v11582 = vmul.f32 %v11552, 0.5
    %v11583 = vmul.f32 %v11557, 0.5
    %v11584 = vmul.f32 %v11562, 0.5
    %v11585 = vmul.f32 %v11567, 0.5
    %v11586 = vadd.f32 %v10816, %v11570
    %v11587 = vadd.f32 %v10817, %v11571
    %v11588 = vadd.f32 %v10818, %v11572
    %v11589 = vadd.f32 %v10819, %v11573
    %v11590 = vadd.f32 %v10820, %v11574
    %v11591 = vadd.f32 %v10821, %v11575
    %v11592 = vadd.f32 %v10822, %v11576
    %v11593 = vadd.f32 %v10823, %v11577
    %v11594 = vadd.f32 %v10824, %v11578
    %v11595 = vadd.f32 %v10825, %v11579
    %v11596 = vadd.f32 %v10826, %v11580
    %v11597 = vadd.f32 %v10827, %v11581
    %v11598 = vadd.f32 %v10828, %v11582
    %v11599 = vadd.f32 %v10829, %v11583
    %v11600 = vadd.f32 %v10830, %v11584
    %v11601 = vadd.f32 %v10831, %v11585
    %v11602 = vld [vmem:[%s67] sm:$0x1]
    %v11603 = vld [vmem:[%s69] sm:$0x1]
    %v11604 = vsel %vm314, %v11586, 0.0
    %11605 = vadd.xlane.f32.xlu0 %v11604
    %v11606 = vpop.xlane.xlu0 %11605
    %v11607 = vsel %vm314, %v11587, 0.0
    %11608 = vadd.xlane.f32.xlu0 %v11607
    %v11609 = vpop.xlane.xlu0 %11608
    %v11610 = vsel %vm314, %v11588, 0.0
    %11611 = vadd.xlane.f32.xlu0 %v11610
    %v11612 = vpop.xlane.xlu0 %11611
    %v11613 = vsel %vm314, %v11589, 0.0
    %11614 = vadd.xlane.f32.xlu0 %v11613
    %v11615 = vpop.xlane.xlu0 %11614
    %v11616 = vsel %vm314, %v11590, 0.0
    %11617 = vadd.xlane.f32.xlu0 %v11616
    %v11618 = vpop.xlane.xlu0 %11617
    %v11619 = vsel %vm314, %v11591, 0.0
    %11620 = vadd.xlane.f32.xlu0 %v11619
    %v11621 = vpop.xlane.xlu0 %11620
    %v11622 = vsel %vm314, %v11592, 0.0
    %11623 = vadd.xlane.f32.xlu0 %v11622
    %v11624 = vpop.xlane.xlu0 %11623
    %v11625 = vsel %vm314, %v11593, 0.0
    %11626 = vadd.xlane.f32.xlu0 %v11625
    %v11627 = vpop.xlane.xlu0 %11626
    %v11628 = vsel %vm314, %v11594, 0.0
    %11629 = vadd.xlane.f32.xlu0 %v11628
    %v11630 = vpop.xlane.xlu0 %11629
    %v11631 = vsel %vm314, %v11595, 0.0
    %11632 = vadd.xlane.f32.xlu0 %v11631
    %v11633 = vpop.xlane.xlu0 %11632
    %v11634 = vsel %vm314, %v11596, 0.0
    %11635 = vadd.xlane.f32.xlu0 %v11634
    %v11636 = vpop.xlane.xlu0 %11635
    %v11637 = vsel %vm314, %v11597, 0.0
    %11638 = vadd.xlane.f32.xlu0 %v11637
    %v11639 = vpop.xlane.xlu0 %11638
    %v11640 = vsel %vm314, %v11598, 0.0
    %11641 = vadd.xlane.f32.xlu0 %v11640
    %v11642 = vpop.xlane.xlu0 %11641
    %v11643 = vsel %vm314, %v11599, 0.0
    %11644 = vadd.xlane.f32.xlu0 %v11643
    %v11645 = vpop.xlane.xlu0 %11644
    %v11646 = vsel %vm314, %v11600, 0.0
    %11647 = vadd.xlane.f32.xlu0 %v11646
    %v11648 = vpop.xlane.xlu0 %11647
    %v11649 = vsel %vm314, %v11601, 0.0
    %11650 = vadd.xlane.f32.xlu0 %v11649
    %v11651 = vpop.xlane.xlu0 %11650
    %v11652 = vmul.f32 %v11606, %v363
    %v11653 = vmul.f32 %v11609, %v363
    %v11654 = vmul.f32 %v11612, %v363
    %v11655 = vmul.f32 %v11615, %v363
    %v11656 = vmul.f32 %v11618, %v363
    %v11657 = vmul.f32 %v11621, %v363
    %v11658 = vmul.f32 %v11624, %v363
    %v11659 = vmul.f32 %v11627, %v363
    %v11660 = vmul.f32 %v11630, %v363
    %v11661 = vmul.f32 %v11633, %v363
    %v11662 = vmul.f32 %v11636, %v363
    %v11663 = vmul.f32 %v11639, %v363
    %v11664 = vmul.f32 %v11642, %v363
    %v11665 = vmul.f32 %v11645, %v363
    %v11666 = vmul.f32 %v11648, %v363
    %v11667 = vmul.f32 %v11651, %v363
    %v11668 = vsub.f32 %v11586, %v11652
    %v11669 = vsub.f32 %v11587, %v11653
    %v11670 = vsub.f32 %v11588, %v11654
    %v11671 = vsub.f32 %v11589, %v11655
    %v11672 = vsub.f32 %v11590, %v11656
    %v11673 = vsub.f32 %v11591, %v11657
    %v11674 = vsub.f32 %v11592, %v11658
    %v11675 = vsub.f32 %v11593, %v11659
    %v11676 = vsub.f32 %v11594, %v11660
    %v11677 = vsub.f32 %v11595, %v11661
    %v11678 = vsub.f32 %v11596, %v11662
    %v11679 = vsub.f32 %v11597, %v11663
    %v11680 = vsub.f32 %v11598, %v11664
    %v11681 = vsub.f32 %v11599, %v11665
    %v11682 = vsub.f32 %v11600, %v11666
    %v11683 = vsub.f32 %v11601, %v11667
    %v11684 = vmul.f32 %v11668, %v11668
    %v11685 = vmul.f32 %v11669, %v11669
    %v11686 = vmul.f32 %v11670, %v11670
    %v11687 = vmul.f32 %v11671, %v11671
    %v11688 = vmul.f32 %v11672, %v11672
    %v11689 = vmul.f32 %v11673, %v11673
    %v11690 = vmul.f32 %v11674, %v11674
    %v11691 = vmul.f32 %v11675, %v11675
    %v11692 = vmul.f32 %v11676, %v11676
    %v11693 = vmul.f32 %v11677, %v11677
    %v11694 = vmul.f32 %v11678, %v11678
    %v11695 = vmul.f32 %v11679, %v11679
    %v11696 = vmul.f32 %v11680, %v11680
    %v11697 = vmul.f32 %v11681, %v11681
    %v11698 = vmul.f32 %v11682, %v11682
    %v11699 = vmul.f32 %v11683, %v11683
    %v11700 = vsel %vm314, %v11684, 0.0
    %11701 = vadd.xlane.f32.xlu0 %v11700
    %v11702 = vpop.xlane.xlu0 %11701
    %v11703 = vsel %vm314, %v11685, 0.0
    %11704 = vadd.xlane.f32.xlu0 %v11703
    %v11705 = vpop.xlane.xlu0 %11704
    %v11706 = vsel %vm314, %v11686, 0.0
    %11707 = vadd.xlane.f32.xlu0 %v11706
    %v11708 = vpop.xlane.xlu0 %11707
    %v11709 = vsel %vm314, %v11687, 0.0
    %11710 = vadd.xlane.f32.xlu0 %v11709
    %v11711 = vpop.xlane.xlu0 %11710
    %v11712 = vsel %vm314, %v11688, 0.0
    %11713 = vadd.xlane.f32.xlu0 %v11712
    %v11714 = vpop.xlane.xlu0 %11713
    %v11715 = vsel %vm314, %v11689, 0.0
    %11716 = vadd.xlane.f32.xlu0 %v11715
    %v11717 = vpop.xlane.xlu0 %11716
    %v11718 = vsel %vm314, %v11690, 0.0
    %11719 = vadd.xlane.f32.xlu0 %v11718
    %v11720 = vpop.xlane.xlu0 %11719
    %v11721 = vsel %vm314, %v11691, 0.0
    %11722 = vadd.xlane.f32.xlu0 %v11721
    %v11723 = vpop.xlane.xlu0 %11722
    %v11724 = vsel %vm314, %v11692, 0.0
    %11725 = vadd.xlane.f32.xlu0 %v11724
    %v11726 = vpop.xlane.xlu0 %11725
    %v11727 = vsel %vm314, %v11693, 0.0
    %11728 = vadd.xlane.f32.xlu0 %v11727
    %v11729 = vpop.xlane.xlu0 %11728
    %v11730 = vsel %vm314, %v11694, 0.0
    %11731 = vadd.xlane.f32.xlu0 %v11730
    %v11732 = vpop.xlane.xlu0 %11731
    %v11733 = vsel %vm314, %v11695, 0.0
    %11734 = vadd.xlane.f32.xlu0 %v11733
    %v11735 = vpop.xlane.xlu0 %11734
    %v11736 = vsel %vm314, %v11696, 0.0
    %11737 = vadd.xlane.f32.xlu0 %v11736
    %v11738 = vpop.xlane.xlu0 %11737
    %v11739 = vsel %vm314, %v11697, 0.0
    %11740 = vadd.xlane.f32.xlu0 %v11739
    %v11741 = vpop.xlane.xlu0 %11740
    %v11742 = vsel %vm314, %v11698, 0.0
    %11743 = vadd.xlane.f32.xlu0 %v11742
    %v11744 = vpop.xlane.xlu0 %11743
    %v11745 = vsel %vm314, %v11699, 0.0
    %11746 = vadd.xlane.f32.xlu0 %v11745
    %v11747 = vpop.xlane.xlu0 %11746
    %v11748 = vmul.f32 %v11702, %v363
    %v11749 = vmul.f32 %v11705, %v363
    %v11750 = vmul.f32 %v11708, %v363
    %v11751 = vmul.f32 %v11711, %v363
    %v11752 = vmul.f32 %v11714, %v363
    %v11753 = vmul.f32 %v11717, %v363
    %v11754 = vmul.f32 %v11720, %v363
    %v11755 = vmul.f32 %v11723, %v363
    %v11756 = vmul.f32 %v11726, %v363
    %v11757 = vmul.f32 %v11729, %v363
    %v11758 = vmul.f32 %v11732, %v363
    %v11759 = vmul.f32 %v11735, %v363
    %v11760 = vmul.f32 %v11738, %v363
    %v11761 = vmul.f32 %v11741, %v363
    %v11762 = vmul.f32 %v11744, %v363
    %v11763 = vmul.f32 %v11747, %v363
    %v11764 = vadd.f32 %v11748, 1e-05
    %v11765 = vadd.f32 %v11749, 1e-05
    %v11766 = vadd.f32 %v11750, 1e-05
    %v11767 = vadd.f32 %v11751, 1e-05
    %v11768 = vadd.f32 %v11752, 1e-05
    %v11769 = vadd.f32 %v11753, 1e-05
    %v11770 = vadd.f32 %v11754, 1e-05
    %v11771 = vadd.f32 %v11755, 1e-05
    %v11772 = vadd.f32 %v11756, 1e-05
    %v11773 = vadd.f32 %v11757, 1e-05
    %v11774 = vadd.f32 %v11758, 1e-05
    %v11775 = vadd.f32 %v11759, 1e-05
    %v11776 = vadd.f32 %v11760, 1e-05
    %v11777 = vadd.f32 %v11761, 1e-05
    %v11778 = vadd.f32 %v11762, 1e-05
    %v11779 = vadd.f32 %v11763, 1e-05
    %v11780 = vrsqrt.pop %v11764
    %v11781 = vrsqrt.pop %v11765
    %v11782 = vrsqrt.pop %v11766
    %v11783 = vrsqrt.pop %v11767
    %v11784 = vrsqrt.pop %v11768
    %v11785 = vrsqrt.pop %v11769
    %v11786 = vrsqrt.pop %v11770
    %v11787 = vrsqrt.pop %v11771
    %v11788 = vrsqrt.pop %v11772
    %v11789 = vrsqrt.pop %v11773
    %v11790 = vrsqrt.pop %v11774
    %v11791 = vrsqrt.pop %v11775
    %v11792 = vrsqrt.pop %v11776
    %v11793 = vrsqrt.pop %v11777
    %v11794 = vrsqrt.pop %v11778
    %v11795 = vrsqrt.pop %v11779
    %v11796 = vmul.f32 %v11668, %v11780
    %v11797 = vmul.f32 %v11669, %v11781
    %v11798 = vmul.f32 %v11670, %v11782
    %v11799 = vmul.f32 %v11671, %v11783
    %v11800 = vmul.f32 %v11672, %v11784
    %v11801 = vmul.f32 %v11673, %v11785
    %v11802 = vmul.f32 %v11674, %v11786
    %v11803 = vmul.f32 %v11675, %v11787
    %v11804 = vmul.f32 %v11676, %v11788
    %v11805 = vmul.f32 %v11677, %v11789
    %v11806 = vmul.f32 %v11678, %v11790
    %v11807 = vmul.f32 %v11679, %v11791
    %v11808 = vmul.f32 %v11680, %v11792
    %v11809 = vmul.f32 %v11681, %v11793
    %v11810 = vmul.f32 %v11682, %v11794
    %v11811 = vmul.f32 %v11683, %v11795
    %v11813 = vlaneseq
    %v11814 = vshrl.u32 %v11813, 7
    %v11815 = vsub.s32 0, %v11814
    %v11816 = vrot.slane %v11602, %v11815
    %v11818 = vmul.f32 %v11796, %v11816
    %v11819 = vmul.f32 %v11797, %v11816
    %v11820 = vmul.f32 %v11798, %v11816
    %v11821 = vmul.f32 %v11799, %v11816
    %v11822 = vmul.f32 %v11800, %v11816
    %v11823 = vmul.f32 %v11801, %v11816
    %v11824 = vmul.f32 %v11802, %v11816
    %v11825 = vmul.f32 %v11803, %v11816
    %v11826 = vmul.f32 %v11804, %v11816
    %v11827 = vmul.f32 %v11805, %v11816
    %v11828 = vmul.f32 %v11806, %v11816
    %v11829 = vmul.f32 %v11807, %v11816
    %v11830 = vmul.f32 %v11808, %v11816
    %v11831 = vmul.f32 %v11809, %v11816
    %v11832 = vmul.f32 %v11810, %v11816
    %v11833 = vmul.f32 %v11811, %v11816
    %v11835 = vlaneseq
    %v11836 = vshrl.u32 %v11835, 7
    %v11837 = vsub.s32 0, %v11836
    %v11838 = vrot.slane %v11603, %v11837
    %v11840 = vadd.f32 %v11818, %v11838
    %v11841 = vadd.f32 %v11819, %v11838
    %v11842 = vadd.f32 %v11820, %v11838
    %v11843 = vadd.f32 %v11821, %v11838
    %v11844 = vadd.f32 %v11822, %v11838
    %v11845 = vadd.f32 %v11823, %v11838
    %v11846 = vadd.f32 %v11824, %v11838
    %v11847 = vadd.f32 %v11825, %v11838
    %v11848 = vadd.f32 %v11826, %v11838
    %v11849 = vadd.f32 %v11827, %v11838
    %v11850 = vadd.f32 %v11828, %v11838
    %v11851 = vadd.f32 %v11829, %v11838
    %v11852 = vadd.f32 %v11830, %v11838
    %v11853 = vadd.f32 %v11831, %v11838
    %v11854 = vadd.f32 %v11832, %v11838
    %v11855 = vadd.f32 %v11833, %v11838
    %11856 = vst.msk [vmem:[#allocation20] sm:$0xff] %vm314, %v11840
    %11857 = vst.msk [vmem:[#allocation20 + $0x8] sm:$0xff] %vm314, %v11841
    %11858 = vst.msk [vmem:[#allocation20 + $0x10] sm:$0xff] %vm314, %v11842
    %11859 = vst.msk [vmem:[#allocation20 + $0x18] sm:$0xff] %vm314, %v11843
    %11860 = vst.msk [vmem:[#allocation20 + $0x20] sm:$0xff] %vm314, %v11844
    %11861 = vst.msk [vmem:[#allocation20 + $0x28] sm:$0xff] %vm314, %v11845
    %11862 = vst.msk [vmem:[#allocation20 + $0x30] sm:$0xff] %vm314, %v11846
    %11863 = vst.msk [vmem:[#allocation20 + $0x38] sm:$0xff] %vm314, %v11847
    %11864 = vst.msk [vmem:[#allocation20 + $0x40] sm:$0xff] %vm314, %v11848
    %11865 = vst.msk [vmem:[#allocation20 + $0x48] sm:$0xff] %vm314, %v11849
    %11866 = vst.msk [vmem:[#allocation20 + $0x50] sm:$0xff] %vm314, %v11850
    %11867 = vst.msk [vmem:[#allocation20 + $0x58] sm:$0xff] %vm314, %v11851
    %11868 = vst.msk [vmem:[#allocation20 + $0x60] sm:$0xff] %vm314, %v11852
    %11869 = vst.msk [vmem:[#allocation20 + $0x68] sm:$0xff] %vm314, %v11853
    %11870 = vst.msk [vmem:[#allocation20 + $0x70] sm:$0xff] %vm314, %v11854
    %11871 = vst.msk [vmem:[#allocation20 + $0x78] sm:$0xff] %vm314, %v11855
    // Predicated region
    $region186: #{tpu_custom_call.1} parent=1 // pred_check
      _
    $region187: #{tpu_custom_call.1} parent=1 // pred_check_branch
      %11873 = sbr.rel (0) target = $region189
    $region188: #{tpu_custom_call.1} parent=1 // pred_region
      %s11875 = ssub.s32 2048, 2048
      %11876 = vsyncadd [#allocation4], %s11875
      %s11877 = sshll.u32 [#allocation20], 4
      %s11878 = int_to_ptr.vmem [resolvable:$true] %s11877
      %11883 = dma.vmem_to_hbm [thread:$0]  %s11878, 2048, %s71, [#allocation4], 128, 128, 8
    $region189: #{tpu_custom_call.1} parent=1 // pred_fallthru
      _
    // Predicated region
    $region190: #{tpu_custom_call.1} parent=1 // pred_check
      _
    $region191: #{tpu_custom_call.1} parent=1 // pred_check_branch
      %11885 = sbr.rel (0) target = $region193
    $region192: #{tpu_custom_call.1} parent=1 // pred_region
      %11886 = dma.done [#allocation4], 2048
    $region193: #{tpu_custom_call.1} parent=1 // pred_fallthru
      _
    %11887 = vsyncpa [#allocation3], 1
    %11888 = vsyncpa [#allocation6], 1
    %11889 = vsyncpa [#allocation9], 1
    %11890 = vsyncpa [#allocation12], 1
    %11891 = vsyncpa [#allocation15], 1
    %11892 = vsyncpa [#allocation18], 1
    %11893 = vsyncpa [#allocation4], 1

</llo_original>
